<compile_context>
chip_gen: v7x
topology: tpu7x:2x2x1
jax: 0.10.0
libtpu: 0.0.40
codegen_flags: <defaults>
</compile_context>

<pallas_src>
import functools
import math

import jax
import jax.numpy as jnp
from jax import lax
from jax.experimental import pallas as pl
from jax.experimental.pallas import tpu as pltpu


# -----------------------------------------------------------------------------
# In-kernel building blocks
# -----------------------------------------------------------------------------
def _pool2x2(y, ys_ref):
    """2x2 max-pool (stride 2) of value y:(H,W,C); ys_ref is matching VMEM scratch."""
    H, W, C = y.shape
    Ho, Wo = H // 2, W // 2
    ys_ref[...] = y
    # pool width with two strided sublane reads from the scratch ref
    a = jnp.maximum(ys_ref[:, pl.ds(0, Wo, 2), :],
                    ys_ref[:, pl.ds(1, Wo, 2), :])          # (H, Wo, C)
    # pool height with a free outer-dim split of the value (no relayout)
    ar = a.reshape(Ho, 2, Wo, C)
    return jnp.maximum(ar[:, 0], ar[:, 1])                  # (Ho, Wo, C)


def _conv3x3_relu_pool(p_ref, ys_ref, w_ref, b_ref):
    """Conv3x3 (padding already in p_ref) + bias + ReLU + 2x2 max-pool.

    p_ref : (S+2, S+2, Cin) zero-padded f32 activations (VMEM scratch)
    ys_ref: (S, S, Cout)    conv+relu scratch used by the pooling
    w_ref : (9, Cin, Cout)  bf16 weights, tap index = dy*3 + dx
    b_ref : (1, Cout)       f32 bias
    """
    Sp, _, Cin = p_ref.shape
    S = Sp - 2
    Cout = w_ref.shape[-1]
    # Hoist the three width shifts: the unaligned sublane load happens once per
    # dx instead of once per tap; dy slices of the hoisted values are free.
    xs = [p_ref[:, dx:dx + S, :] for dx in range(3)]        # each (S+2, S, Cin)
    acc = jnp.zeros((S * S, Cout), jnp.float32)
    for dy in range(3):
        for dx in range(3):
            lhs = xs[dx][dy:dy + S].reshape(S * S, Cin).astype(jnp.bfloat16)
            acc = acc + jnp.dot(lhs, w_ref[dy * 3 + dx],
                                preferred_element_type=jnp.float32)
    y = jnp.maximum(acc + b_ref[...], 0.0).reshape(S, S, Cout)
    return _pool2x2(y, ys_ref)


def _linear(x, w_ref, b_ref):
    return jnp.dot(x.astype(jnp.bfloat16), w_ref[...],
                   preferred_element_type=jnp.float32) + b_ref[...]


def _mlp3(x, p):
    # TODO(synk): nn.Dropout layers of the classifier are identity (eval mode).
    h = jnp.maximum(_linear(x, p[0], p[1]), 0.0)
    h = jnp.maximum(_linear(h, p[2], p[3]), 0.0)
    return _linear(h, p[4], p[5])


# -----------------------------------------------------------------------------
# Fused VGG kernel (features + flatten + heads), one image per grid step
# -----------------------------------------------------------------------------
def _make_vgg_kernel(cfg, hw, has_gate, struct):
    n = len(cfg)
    S = [hw // (2 ** i) for i in range(n)]       # input spatial size of block i
    Sf = hw // (2 ** n)                          # final spatial size
    Cf = cfg[-1]

    def kernel(*refs):
        it = iter(refs)
        x0_ref = next(it)                                    # (1, hw*hw, 9*Cin0) bf16
        gin_ref = next(it) if (has_gate and struct) else None
        conv = [(next(it), next(it)) for _ in range(n)]      # (w, b) per block
        cls = [next(it) for _ in range(6)]
        if has_gate:
            pcls = [next(it) for _ in range(6)]
            gw, gb = next(it), next(it)
            y_ref, g_ref, z_ref = next(it), next(it), next(it)
        else:
            o_ref = next(it)
        p_refs = [next(it) for _ in range(n - 1)]            # padded activations
        ys_refs = [next(it) for _ in range(n)]               # conv+relu scratch
        fs_ref = next(it)                                    # (1, 512) feature row

        # ---- features: block 0 is one K = 9*Cin im2col matmul ----
        w0, b0 = conv[0]
        acc = jnp.dot(x0_ref[0], w0[...], preferred_element_type=jnp.float32)
        y = jnp.maximum(acc + b0[...], 0.0).reshape(S[0], S[0], cfg[0])
        pooled = _pool2x2(y, ys_refs[0])
        for i in range(1, n):
            p = p_refs[i - 1]
            p[...] = jnp.zeros_like(p)                       # padding = 1 border
            p[1:S[i] + 1, 1:S[i] + 1, :] = pooled
            pooled = _conv3x3_relu_pool(p, ys_refs[i], conv[i][0], conv[i][1])

        # ---- flatten to a lane-dense (1, 512) row (NHWC order; head weights
        #      are pre-permuted in the wrapper to match PyTorch's NCHW flatten)
        for h in range(Sf):
            for w in range(Sf):
                fs_ref[:, pl.ds((h * Sf + w) * Cf, Cf)] = pooled[h:h + 1, w, :]
        feat = fs_ref[...]                                   # (1, 512)

        # ---- heads ----
        if has_gate:
            yv = _mlp3(feat, cls)
            zv = _mlp3(feat, pcls)
            gin = gin_ref[0] if struct else feat
            glogit = _linear(gin, gw, gb)                    # (1, 1)
            g = pl.reciprocal(1.0 + jnp.exp(-glogit), approx=True)  # sigmoid
            y_ref[0] = (yv * g + zv * (1.0 - g)).astype(y_ref.dtype)
            g_ref[0] = g.astype(g_ref.dtype)
            z_ref[0] = zv.astype(z_ref.dtype)
        else:
            o_ref[0] = _mlp3(feat, cls).astype(o_ref.dtype)

    return kernel


# -----------------------------------------------------------------------------
# Wrapper
# -----------------------------------------------------------------------------
def _im2col3x3(x_nhwc):
    """(B,H,W,C) -> (B, H*W, 9*C) patches for 3x3/pad=1; k = (dy*3+dx)*C + c."""
    B, H, W, C = x_nhwc.shape
    xp = jnp.pad(x_nhwc, ((0, 0), (1, 1), (1, 1), (0, 0)))
    cols = [xp[:, dy:dy + H, dx:dx + W, :] for dy in range(3) for dx in range(3)]
    return jnp.concatenate(cols, axis=-1).reshape(B, H * W, 9 * C)


def _const_index_map(ndim):
    if ndim == 2:
        return lambda b: (0, 0)
    return lambda b: (0, 0, 0)


@functools.partial(jax.jit, static_argnames=("has_gate", "struct"))
def vgg_forward(params, x_nchw, has_gate=False, struct=False):
    B, Cin0, HW, _ = x_nchw.shape
    cfg = [w.shape[-1] for (w, _) in params["features"]]
    n = len(cfg)
    S = [HW // (2 ** i) for i in range(n)]
    Sf = HW // (2 ** n)
    Cf = cfg[-1]
    feat_dim = Sf * Sf * Cf
    assert feat_dim == 512, "feature stack must flatten to 512"

    x_nhwc = jnp.transpose(x_nchw, (0, 2, 3, 1))
    x_im2col = _im2col3x3(x_nhwc).astype(jnp.bfloat16)       # (B, HW*HW, 9*Cin0)

    # conv weights: block 0 -> (9*Cin, Cout); others -> (9, Cin, Cout); bf16
    conv_args = []
    for i, (w, b) in enumerate(params["features"]):
        cin, cout = w.shape[2], w.shape[3]
        if i == 0:
            conv_args.append(w.reshape(9 * cin, cout).astype(jnp.bfloat16))
        else:
            conv_args.append(w.reshape(9, cin, cout).astype(jnp.bfloat16))
        conv_args.append(b.reshape(1, cout).astype(jnp.float32))

    # kernel flattens features in NHWC order; PyTorch flattens NCHW.
    # Reorder the rows of the head input weights so results match exactly.
    def perm_in(w):
        return (w.reshape(Cf, Sf, Sf, -1).transpose(1, 2, 0, 3)
                 .reshape(feat_dim, -1))

    def head_args(head):
        (w1, b1), (w2, b2), (w3, b3) = head
        return [perm_in(w1).astype(jnp.bfloat16), b1.astype(jnp.float32),
                w2.astype(jnp.bfloat16), b2.astype(jnp.float32),
                w3.astype(jnp.bfloat16), b3.astype(jnp.float32)]

    inputs = [x_im2col]
    in_specs = [pl.BlockSpec((1,) + x_im2col.shape[1:], lambda b: (b, 0, 0))]
    if has_gate and struct:
        gflat = x_nchw.reshape(B, 1, -1).astype(jnp.bfloat16)
        inputs.append(gflat)
        in_specs.append(pl.BlockSpec((1,) + gflat.shape[1:], lambda b: (b, 0, 0)))

    const_inputs = list(conv_args) + head_args(params["classifier"])
    if has_gate:
        const_inputs += head_args(params["pclassifier"])
        gw, gb = params["gate"]
        gw = gw if struct else perm_in(gw)
        const_inputs += [gw.astype(jnp.bfloat16), gb.astype(jnp.float32)]
    for a in const_inputs:
        inputs.append(a)
        in_specs.append(pl.BlockSpec(a.shape, _const_index_map(a.ndim)))

    if has_gate:
        out_shape = (jax.ShapeDtypeStruct((B, 1, 10), jnp.float32),
                     jax.ShapeDtypeStruct((B, 1, 1), jnp.float32),
                     jax.ShapeDtypeStruct((B, 1, 10), jnp.float32))
        out_specs = (pl.BlockSpec((1, 1, 10), lambda b: (b, 0, 0)),
                     pl.BlockSpec((1, 1, 1), lambda b: (b, 0, 0)),
                     pl.BlockSpec((1, 1, 10), lambda b: (b, 0, 0)))
    else:
        out_shape = jax.ShapeDtypeStruct((B, 1, 10), jnp.float32)
        out_specs = pl.BlockSpec((1, 1, 10), lambda b: (b, 0, 0))

    scratch = []
    scratch += [pltpu.VMEM((S[i] + 2, S[i] + 2, cfg[i - 1]), jnp.float32)
                for i in range(1, n)]                         # padded activations
    scratch += [pltpu.VMEM((S[i], S[i], cfg[i]), jnp.float32)
                for i in range(n)]                            # conv+relu buffers
    scratch += [pltpu.VMEM((1, feat_dim), jnp.float32)]       # lane-dense feature

    kernel = _make_vgg_kernel(cfg, HW, has_gate, struct)
    out = pl.pallas_call(
        kernel,
        out_shape=out_shape,
        grid=(B,),
        in_specs=in_specs,
        out_specs=out_specs,
        scratch_shapes=scratch,
        compiler_params=pltpu.CompilerParams(
            dimension_semantics=("parallel",)),   # batch across v7x's 2 TCs
    )(*inputs)

    if has_gate:
        y, g, z = out
        return y[:, 0, :], g[:, 0, :], z[:, 0, :]
    return out[:, 0, :]


# -----------------------------------------------------------------------------
# Parameter init (mirrors the PyTorch module's init)
# -----------------------------------------------------------------------------
def conv_init(key, cin, cout):
    n = 3 * 3 * cout                              # m.weight.data.normal_(0, sqrt(2/n))
    w = jax.random.normal(key, (3, 3, cin, cout), jnp.float32) * math.sqrt(2.0 / n)
    b = jnp.zeros((cout,), jnp.float32)           # m.bias.data.zero_()
    return w, b


def linear_init(key, fan_in, fan_out):
    k1, k2 = jax.random.split(key)
    bound = 1.0 / math.sqrt(fan_in)
    w = jax.random.uniform(k1, (fan_in, fan_out), jnp.float32, -bound, bound)
    b = jax.random.uniform(k2, (1, fan_out), jnp.float32, -bound, bound)
    return w, b


def init_vgg_params(key, feature_cfg, in_ch=3, has_gate=False, struct=False,
                    input_hw=32):
    params = {"features": [], "classifier": [], "pclassifier": None, "gate": None}
    cin = in_ch
    for cout in feature_cfg:
        key, k = jax.random.split(key)
        params["features"].append(conv_init(k, cin, cout))
        cin = cout
    dims = [(512, 512), (512, 512), (512, 10)]
    for din, dout in dims:
        key, k = jax.random.split(key)
        params["classifier"].append(linear_init(k, din, dout))
    if has_gate:
        params["pclassifier"] = []
        for din, dout in dims:
            key, k = jax.random.split(key)
            params["pclassifier"].append(linear_init(k, din, dout))
        gate_in = in_ch * input_hw * input_hw if struct else 512
        key, k = jax.random.split(key)
        params["gate"] = linear_init(k, gate_in, 1)
    return params


# -----------------------------------------------------------------------------
# Pure-JAX reference (f32) for a correctness check
# -----------------------------------------------------------------------------
def vgg_reference(params, x_nchw, has_gate=False, struct=False):
    x = jnp.transpose(x_nchw, (0, 2, 3, 1)).astype(jnp.float32)
    for (w, b) in params["features"]:
        x = lax.conv_general_dilated(x, w, (1, 1), "SAME",
                                     dimension_numbers=("NHWC", "HWIO", "NHWC"))
        x = jnp.maximum(x + b, 0.0)
        x = lax.reduce_window(x, -jnp.inf, lax.max,
                              (1, 2, 2, 1), (1, 2, 2, 1), "VALID")
    B = x.shape[0]
    feat = jnp.transpose(x, (0, 3, 1, 2)).reshape(B, -1)      # NCHW flatten

    def mlp(f, head):
        (w1, b1), (w2, b2), (w3, b3) = head
        h = jnp.maximum(f @ w1 + b1, 0.0)
        h = jnp.maximum(h @ w2 + b2, 0.0)
        return h @ w3 + b3

    y = mlp(feat, params["classifier"])
    if not has_gate:
        return y
    z = mlp(feat, params["pclassifier"])
    gw, gb = params["gate"]
    gin = x_nchw.reshape(B, -1) if struct else feat
    g = jax.nn.sigmoid(gin @ gw + gb)
    return y * g + z * (1 - g), g, z


if __name__ == "__main__":
    key = jax.random.PRNGKey(0)
    key, kx = jax.random.split(key)

    # CIFAR-like input: (B=2, C=3, H=32, W=32), NCHW as in PyTorch.
    x = jax.random.normal(kx, (2, 3, 32, 32), jnp.float32)

    # features cfg: 3 conv-relu-pool blocks; 32->16->8->4 spatial, 32 channels
    # at the end => flatten = 4*4*32 = 512, matching Linear(512, 512).
    feature_cfg = [16, 32, 32]
    params = init_vgg_params(key, feature_cfg, in_ch=3, has_gate=True,
                             struct=False, input_hw=32)

    # has_gate=False path: logits (B, 10)
    out = vgg_forward(params, x, has_gate=False)
    # has_gate=True, struct=False path: (y*g + z*(1-g), g, z)
    mixed, g, z = vgg_forward(params, x, has_gate=True, struct=False)
    jax.block_until_ready((out, mixed, g, z))

    assert out.shape == (2, 10)
    assert mixed.shape == (2, 10) and g.shape == (2, 1) and z.shape == (2, 10)
    assert jnp.all(jnp.isfinite(out)) and jnp.all(jnp.isfinite(mixed))

    # numerical check vs f32 reference (kernel uses bf16 MXU inputs -> loose tol)
    ref_out = vgg_reference(params, x, has_gate=False)
    ref_mixed, ref_g, ref_z = vgg_reference(params, x, has_gate=True, struct=False)
    for a, b in ((out, ref_out), (mixed, ref_mixed), (g, ref_g), (z, ref_z)):
        err = float(jnp.max(jnp.abs(a - b)))
        assert err < 0.1, f"mismatch vs reference: max|diff| = {err}"

    print("KERNEL_OK")
</pallas_src>

<mosaic_0001>
module attributes {stable_mosaic.version = 11 : i64} {
  func.func @kernel(%arg0: i32, %arg1: memref<1x1024x27xbf16, #tpu.memory_space<vmem>>, %arg2: memref<27x16xbf16, #tpu.memory_space<vmem>>, %arg3: memref<1x16xf32, #tpu.memory_space<vmem>>, %arg4: memref<9x16x32xbf16, #tpu.memory_space<vmem>>, %arg5: memref<1x32xf32, #tpu.memory_space<vmem>>, %arg6: memref<9x32x32xbf16, #tpu.memory_space<vmem>>, %arg7: memref<1x32xf32, #tpu.memory_space<vmem>>, %arg8: memref<512x512xbf16, #tpu.memory_space<vmem>>, %arg9: memref<1x512xf32, #tpu.memory_space<vmem>>, %arg10: memref<512x512xbf16, #tpu.memory_space<vmem>>, %arg11: memref<1x512xf32, #tpu.memory_space<vmem>>, %arg12: memref<512x10xbf16, #tpu.memory_space<vmem>>, %arg13: memref<1x10xf32, #tpu.memory_space<vmem>>, %arg14: memref<1x1x10xf32, #tpu.memory_space<vmem>>, %arg15: memref<18x18x16xf32, #tpu.memory_space<vmem>>, %arg16: memref<10x10x32xf32, #tpu.memory_space<vmem>>, %arg17: memref<32x32x16xf32, #tpu.memory_space<vmem>>, %arg18: memref<16x16x32xf32, #tpu.memory_space<vmem>>, %arg19: memref<8x8x32xf32, #tpu.memory_space<vmem>>, %arg20: memref<1x512xf32, #tpu.memory_space<vmem>>) attributes {dimension_semantics = [#tpu.dimension_semantics<parallel>], iteration_bounds = array<i64: 2>, scalar_prefetch = 0 : i64, scratch_operands = 6 : i64, tpu.core_type = #tpu.core_type<tc>, window_params = [{transform_indices = @transform_0, window_bounds = array<i64: 1, 1024, 27>}, {pipeline_mode = #tpu.pipeline_mode<synchronous>, transform_indices = @transform_1, window_bounds = array<i64: 27, 16>}, {pipeline_mode = #tpu.pipeline_mode<synchronous>, transform_indices = @transform_2, window_bounds = array<i64: 1, 16>}, {pipeline_mode = #tpu.pipeline_mode<synchronous>, transform_indices = @transform_3, window_bounds = array<i64: 9, 16, 32>}, {pipeline_mode = #tpu.pipeline_mode<synchronous>, transform_indices = @transform_4, window_bounds = array<i64: 1, 32>}, {pipeline_mode = #tpu.pipeline_mode<synchronous>, transform_indices = @transform_5, window_bounds = array<i64: 9, 32, 32>}, {pipeline_mode = #tpu.pipeline_mode<synchronous>, transform_indices = @transform_6, window_bounds = array<i64: 1, 32>}, {pipeline_mode = #tpu.pipeline_mode<synchronous>, transform_indices = @transform_7, window_bounds = array<i64: 512, 512>}, {pipeline_mode = #tpu.pipeline_mode<synchronous>, transform_indices = @transform_8, window_bounds = array<i64: 1, 512>}, {pipeline_mode = #tpu.pipeline_mode<synchronous>, transform_indices = @transform_9, window_bounds = array<i64: 512, 512>}, {pipeline_mode = #tpu.pipeline_mode<synchronous>, transform_indices = @transform_10, window_bounds = array<i64: 1, 512>}, {pipeline_mode = #tpu.pipeline_mode<synchronous>, transform_indices = @transform_11, window_bounds = array<i64: 512, 10>}, {pipeline_mode = #tpu.pipeline_mode<synchronous>, transform_indices = @transform_12, window_bounds = array<i64: 1, 10>}, {transform_indices = @transform_13, window_bounds = array<i64: 1, 1, 10>}]} {
    %c0 = arith.constant 0 : index
    %c0_0 = arith.constant 0 : index
    %c0_1 = arith.constant 0 : index
    %0 = vector.load %arg1[%c0, %c0_0, %c0_1] : memref<1x1024x27xbf16, #tpu.memory_space<vmem>>, vector<1x1024x27xbf16>
    %1 = vector.shape_cast %0 : vector<1x1024x27xbf16> to vector<1024x27xbf16>
    %c0_2 = arith.constant 0 : index
    %c0_3 = arith.constant 0 : index
    %2 = vector.load %arg2[%c0_2, %c0_3] : memref<27x16xbf16, #tpu.memory_space<vmem>>, vector<27x16xbf16>
    %cst = arith.constant dense<0.000000e+00> : vector<1024x16xf32>
    %3 = tpu.matmul %1, %2, %cst {dimension_numbers = #tpu.dot_dimension_numbers<[1], [0], [0], [1], [0, 0, 1, 1], [], []>} : vector<1024x27xbf16>, vector<27x16xbf16>, vector<1024x16xf32> -> vector<1024x16xf32>
    %c0_4 = arith.constant 0 : index
    %c0_5 = arith.constant 0 : index
    %4 = vector.load %arg3[%c0_4, %c0_5] : memref<1x16xf32, #tpu.memory_space<vmem>>, vector<1x16xf32>
    %5 = vector.broadcast %4 : vector<1x16xf32> to vector<1024x16xf32>
    %6 = arith.addf %3, %5 : vector<1024x16xf32>
    %cst_6 = arith.constant 0.000000e+00 : f32
    %7 = vector.broadcast %cst_6 : f32 to vector<1024x16xf32>
    %8 = arith.maximumf %6, %7 : vector<1024x16xf32>
    %9 = vector.shape_cast %8 : vector<1024x16xf32> to vector<32x32x16xf32>
    %c0_7 = arith.constant 0 : index
    %c0_8 = arith.constant 0 : index
    %c0_9 = arith.constant 0 : index
    %10 = vector.load %arg17[%c0_7, %c0_8, %c0_9] : memref<32x32x16xf32, #tpu.memory_space<vmem>>, vector<32x32x16xf32>
    tpu.vector_store %arg17[%c0_7, %c0_8, %c0_9], %9 {strides = array<i32>} : memref<32x32x16xf32, #tpu.memory_space<vmem>>, vector<32x32x16xf32>,
    %c0_10 = arith.constant 0 : index
    %c0_11 = arith.constant 0 : index
    %c0_12 = arith.constant 0 : index
    %11 = tpu.strided_load %arg17[%c0_10, %c0_11, %c0_12] {strides = array<i32: 1, 2, 1>} : memref<32x32x16xf32, #tpu.memory_space<vmem>>, vector<32x16x16xf32>
    %c0_13 = arith.constant 0 : index
    %c1 = arith.constant 1 : index
    %c0_14 = arith.constant 0 : index
    %12 = tpu.strided_load %arg17[%c0_13, %c1, %c0_14] {strides = array<i32: 1, 2, 1>} : memref<32x32x16xf32, #tpu.memory_space<vmem>>, vector<32x16x16xf32>
    %13 = arith.maximumf %11, %12 : vector<32x16x16xf32>
    %14 = vector.shape_cast %13 : vector<32x16x16xf32> to vector<16x2x16x16xf32>
    %15 = vector.extract_strided_slice %14 {offsets = [0, 0, 0, 0], sizes = [16, 1, 16, 16], strides = [1, 1, 1, 1]} : vector<16x2x16x16xf32> to vector<16x1x16x16xf32>
    %16 = vector.shape_cast %15 : vector<16x1x16x16xf32> to vector<16x16x16xf32>
    %17 = vector.extract_strided_slice %14 {offsets = [0, 1, 0, 0], sizes = [16, 1, 16, 16], strides = [1, 1, 1, 1]} : vector<16x2x16x16xf32> to vector<16x1x16x16xf32>
    %18 = vector.shape_cast %17 : vector<16x1x16x16xf32> to vector<16x16x16xf32>
    %19 = arith.maximumf %16, %18 : vector<16x16x16xf32>
    %cst_15 = arith.constant 0.000000e+00 : f32
    %20 = vector.broadcast %cst_15 : f32 to vector<18x18x16xf32>
    %c0_16 = arith.constant 0 : index
    %c0_17 = arith.constant 0 : index
    %c0_18 = arith.constant 0 : index
    %21 = vector.load %arg15[%c0_16, %c0_17, %c0_18] : memref<18x18x16xf32, #tpu.memory_space<vmem>>, vector<18x18x16xf32>
    tpu.vector_store %arg15[%c0_16, %c0_17, %c0_18], %20 {strides = array<i32>} : memref<18x18x16xf32, #tpu.memory_space<vmem>>, vector<18x18x16xf32>,
    %c1_19 = arith.constant 1 : index
    %c1_20 = arith.constant 1 : index
    %c0_21 = arith.constant 0 : index
    %22 = vector.load %arg15[%c1_19, %c1_20, %c0_21] : memref<18x18x16xf32, #tpu.memory_space<vmem>>, vector<16x16x16xf32>
    tpu.vector_store %arg15[%c1_19, %c1_20, %c0_21], %19 {strides = array<i32>} : memref<18x18x16xf32, #tpu.memory_space<vmem>>, vector<16x16x16xf32>,
    %c0_22 = arith.constant 0 : index
    %c0_23 = arith.constant 0 : index
    %c0_24 = arith.constant 0 : index
    %23 = vector.load %arg15[%c0_22, %c0_23, %c0_24] : memref<18x18x16xf32, #tpu.memory_space<vmem>>, vector<18x16x16xf32>
    %c0_25 = arith.constant 0 : index
    %c1_26 = arith.constant 1 : index
    %c0_27 = arith.constant 0 : index
    %24 = vector.load %arg15[%c0_25, %c1_26, %c0_27] : memref<18x18x16xf32, #tpu.memory_space<vmem>>, vector<18x16x16xf32>
    %c0_28 = arith.constant 0 : index
    %c2 = arith.constant 2 : index
    %c0_29 = arith.constant 0 : index
    %25 = vector.load %arg15[%c0_28, %c2, %c0_29] : memref<18x18x16xf32, #tpu.memory_space<vmem>>, vector<18x16x16xf32>
    %cst_30 = arith.constant 0.000000e+00 : f32
    %26 = vector.broadcast %cst_30 : f32 to vector<256x32xf32>
    %27 = vector.extract_strided_slice %23 {offsets = [0, 0, 0], sizes = [16, 16, 16], strides = [1, 1, 1]} : vector<18x16x16xf32> to vector<16x16x16xf32>
    %28 = vector.shape_cast %27 : vector<16x16x16xf32> to vector<256x16xf32>
    %29 = arith.truncf %28 : vector<256x16xf32> to vector<256x16xbf16>
    %c0_31 = arith.constant 0 : index
    %c0_32 = arith.constant 0 : index
    %c0_33 = arith.constant 0 : index
    %30 = vector.load %arg4[%c0_31, %c0_32, %c0_33] : memref<9x16x32xbf16, #tpu.memory_space<vmem>>, vector<1x16x32xbf16>
    %31 = vector.shape_cast %30 : vector<1x16x32xbf16> to vector<16x32xbf16>
    %cst_34 = arith.constant dense<0.000000e+00> : vector<256x32xf32>
    %32 = tpu.matmul %29, %31, %cst_34 {dimension_numbers = #tpu.dot_dimension_numbers<[1], [0], [0], [1], [0, 0, 1, 1], [], []>} : vector<256x16xbf16>, vector<16x32xbf16>, vector<256x32xf32> -> vector<256x32xf32>
    %33 = arith.addf %26, %32 : vector<256x32xf32>
    %34 = vector.extract_strided_slice %24 {offsets = [0, 0, 0], sizes = [16, 16, 16], strides = [1, 1, 1]} : vector<18x16x16xf32> to vector<16x16x16xf32>
    %35 = vector.shape_cast %34 : vector<16x16x16xf32> to vector<256x16xf32>
    %36 = arith.truncf %35 : vector<256x16xf32> to vector<256x16xbf16>
    %c1_35 = arith.constant 1 : index
    %c0_36 = arith.constant 0 : index
    %c0_37 = arith.constant 0 : index
    %37 = vector.load %arg4[%c1_35, %c0_36, %c0_37] : memref<9x16x32xbf16, #tpu.memory_space<vmem>>, vector<1x16x32xbf16>
    %38 = vector.shape_cast %37 : vector<1x16x32xbf16> to vector<16x32xbf16>
    %cst_38 = arith.constant dense<0.000000e+00> : vector<256x32xf32>
    %39 = tpu.matmul %36, %38, %cst_38 {dimension_numbers = #tpu.dot_dimension_numbers<[1], [0], [0], [1], [0, 0, 1, 1], [], []>} : vector<256x16xbf16>, vector<16x32xbf16>, vector<256x32xf32> -> vector<256x32xf32>
    %40 = arith.addf %33, %39 : vector<256x32xf32>
    %41 = vector.extract_strided_slice %25 {offsets = [0, 0, 0], sizes = [16, 16, 16], strides = [1, 1, 1]} : vector<18x16x16xf32> to vector<16x16x16xf32>
    %42 = vector.shape_cast %41 : vector<16x16x16xf32> to vector<256x16xf32>
    %43 = arith.truncf %42 : vector<256x16xf32> to vector<256x16xbf16>
    %c2_39 = arith.constant 2 : index
    %c0_40 = arith.constant 0 : index
    %c0_41 = arith.constant 0 : index
    %44 = vector.load %arg4[%c2_39, %c0_40, %c0_41] : memref<9x16x32xbf16, #tpu.memory_space<vmem>>, vector<1x16x32xbf16>
    %45 = vector.shape_cast %44 : vector<1x16x32xbf16> to vector<16x32xbf16>
    %cst_42 = arith.constant dense<0.000000e+00> : vector<256x32xf32>
    %46 = tpu.matmul %43, %45, %cst_42 {dimension_numbers = #tpu.dot_dimension_numbers<[1], [0], [0], [1], [0, 0, 1, 1], [], []>} : vector<256x16xbf16>, vector<16x32xbf16>, vector<256x32xf32> -> vector<256x32xf32>
    %47 = arith.addf %40, %46 : vector<256x32xf32>
    %48 = vector.extract_strided_slice %23 {offsets = [1, 0, 0], sizes = [16, 16, 16], strides = [1, 1, 1]} : vector<18x16x16xf32> to vector<16x16x16xf32>
    %49 = vector.shape_cast %48 : vector<16x16x16xf32> to vector<256x16xf32>
    %50 = arith.truncf %49 : vector<256x16xf32> to vector<256x16xbf16>
    %c3 = arith.constant 3 : index
    %c0_43 = arith.constant 0 : index
    %c0_44 = arith.constant 0 : index
    %51 = vector.load %arg4[%c3, %c0_43, %c0_44] : memref<9x16x32xbf16, #tpu.memory_space<vmem>>, vector<1x16x32xbf16>
    %52 = vector.shape_cast %51 : vector<1x16x32xbf16> to vector<16x32xbf16>
    %cst_45 = arith.constant dense<0.000000e+00> : vector<256x32xf32>
    %53 = tpu.matmul %50, %52, %cst_45 {dimension_numbers = #tpu.dot_dimension_numbers<[1], [0], [0], [1], [0, 0, 1, 1], [], []>} : vector<256x16xbf16>, vector<16x32xbf16>, vector<256x32xf32> -> vector<256x32xf32>
    %54 = arith.addf %47, %53 : vector<256x32xf32>
    %55 = vector.extract_strided_slice %24 {offsets = [1, 0, 0], sizes = [16, 16, 16], strides = [1, 1, 1]} : vector<18x16x16xf32> to vector<16x16x16xf32>
    %56 = vector.shape_cast %55 : vector<16x16x16xf32> to vector<256x16xf32>
    %57 = arith.truncf %56 : vector<256x16xf32> to vector<256x16xbf16>
    %c4 = arith.constant 4 : index
    %c0_46 = arith.constant 0 : index
    %c0_47 = arith.constant 0 : index
    %58 = vector.load %arg4[%c4, %c0_46, %c0_47] : memref<9x16x32xbf16, #tpu.memory_space<vmem>>, vector<1x16x32xbf16>
    %59 = vector.shape_cast %58 : vector<1x16x32xbf16> to vector<16x32xbf16>
    %cst_48 = arith.constant dense<0.000000e+00> : vector<256x32xf32>
    %60 = tpu.matmul %57, %59, %cst_48 {dimension_numbers = #tpu.dot_dimension_numbers<[1], [0], [0], [1], [0, 0, 1, 1], [], []>} : vector<256x16xbf16>, vector<16x32xbf16>, vector<256x32xf32> -> vector<256x32xf32>
    %61 = arith.addf %54, %60 : vector<256x32xf32>
    %62 = vector.extract_strided_slice %25 {offsets = [1, 0, 0], sizes = [16, 16, 16], strides = [1, 1, 1]} : vector<18x16x16xf32> to vector<16x16x16xf32>
    %63 = vector.shape_cast %62 : vector<16x16x16xf32> to vector<256x16xf32>
    %64 = arith.truncf %63 : vector<256x16xf32> to vector<256x16xbf16>
    %c5 = arith.constant 5 : index
    %c0_49 = arith.constant 0 : index
    %c0_50 = arith.constant 0 : index
    %65 = vector.load %arg4[%c5, %c0_49, %c0_50] : memref<9x16x32xbf16, #tpu.memory_space<vmem>>, vector<1x16x32xbf16>
    %66 = vector.shape_cast %65 : vector<1x16x32xbf16> to vector<16x32xbf16>
    %cst_51 = arith.constant dense<0.000000e+00> : vector<256x32xf32>
    %67 = tpu.matmul %64, %66, %cst_51 {dimension_numbers = #tpu.dot_dimension_numbers<[1], [0], [0], [1], [0, 0, 1, 1], [], []>} : vector<256x16xbf16>, vector<16x32xbf16>, vector<256x32xf32> -> vector<256x32xf32>
    %68 = arith.addf %61, %67 : vector<256x32xf32>
    %69 = vector.extract_strided_slice %23 {offsets = [2, 0, 0], sizes = [16, 16, 16], strides = [1, 1, 1]} : vector<18x16x16xf32> to vector<16x16x16xf32>
    %70 = vector.shape_cast %69 : vector<16x16x16xf32> to vector<256x16xf32>
    %71 = arith.truncf %70 : vector<256x16xf32> to vector<256x16xbf16>
    %c6 = arith.constant 6 : index
    %c0_52 = arith.constant 0 : index
    %c0_53 = arith.constant 0 : index
    %72 = vector.load %arg4[%c6, %c0_52, %c0_53] : memref<9x16x32xbf16, #tpu.memory_space<vmem>>, vector<1x16x32xbf16>
    %73 = vector.shape_cast %72 : vector<1x16x32xbf16> to vector<16x32xbf16>
    %cst_54 = arith.constant dense<0.000000e+00> : vector<256x32xf32>
    %74 = tpu.matmul %71, %73, %cst_54 {dimension_numbers = #tpu.dot_dimension_numbers<[1], [0], [0], [1], [0, 0, 1, 1], [], []>} : vector<256x16xbf16>, vector<16x32xbf16>, vector<256x32xf32> -> vector<256x32xf32>
    %75 = arith.addf %68, %74 : vector<256x32xf32>
    %76 = vector.extract_strided_slice %24 {offsets = [2, 0, 0], sizes = [16, 16, 16], strides = [1, 1, 1]} : vector<18x16x16xf32> to vector<16x16x16xf32>
    %77 = vector.shape_cast %76 : vector<16x16x16xf32> to vector<256x16xf32>
    %78 = arith.truncf %77 : vector<256x16xf32> to vector<256x16xbf16>
    %c7 = arith.constant 7 : index
    %c0_55 = arith.constant 0 : index
    %c0_56 = arith.constant 0 : index
    %79 = vector.load %arg4[%c7, %c0_55, %c0_56] : memref<9x16x32xbf16, #tpu.memory_space<vmem>>, vector<1x16x32xbf16>
    %80 = vector.shape_cast %79 : vector<1x16x32xbf16> to vector<16x32xbf16>
    %cst_57 = arith.constant dense<0.000000e+00> : vector<256x32xf32>
    %81 = tpu.matmul %78, %80, %cst_57 {dimension_numbers = #tpu.dot_dimension_numbers<[1], [0], [0], [1], [0, 0, 1, 1], [], []>} : vector<256x16xbf16>, vector<16x32xbf16>, vector<256x32xf32> -> vector<256x32xf32>
    %82 = arith.addf %75, %81 : vector<256x32xf32>
    %83 = vector.extract_strided_slice %25 {offsets = [2, 0, 0], sizes = [16, 16, 16], strides = [1, 1, 1]} : vector<18x16x16xf32> to vector<16x16x16xf32>
    %84 = vector.shape_cast %83 : vector<16x16x16xf32> to vector<256x16xf32>
    %85 = arith.truncf %84 : vector<256x16xf32> to vector<256x16xbf16>
    %c8 = arith.constant 8 : index
    %c0_58 = arith.constant 0 : index
    %c0_59 = arith.constant 0 : index
    %86 = vector.load %arg4[%c8, %c0_58, %c0_59] : memref<9x16x32xbf16, #tpu.memory_space<vmem>>, vector<1x16x32xbf16>
    %87 = vector.shape_cast %86 : vector<1x16x32xbf16> to vector<16x32xbf16>
    %cst_60 = arith.constant dense<0.000000e+00> : vector<256x32xf32>
    %88 = tpu.matmul %85, %87, %cst_60 {dimension_numbers = #tpu.dot_dimension_numbers<[1], [0], [0], [1], [0, 0, 1, 1], [], []>} : vector<256x16xbf16>, vector<16x32xbf16>, vector<256x32xf32> -> vector<256x32xf32>
    %89 = arith.addf %82, %88 : vector<256x32xf32>
    %c0_61 = arith.constant 0 : index
    %c0_62 = arith.constant 0 : index
    %90 = vector.load %arg5[%c0_61, %c0_62] : memref<1x32xf32, #tpu.memory_space<vmem>>, vector<1x32xf32>
    %91 = vector.broadcast %90 : vector<1x32xf32> to vector<256x32xf32>
    %92 = arith.addf %89, %91 : vector<256x32xf32>
    %cst_63 = arith.constant 0.000000e+00 : f32
    %93 = vector.broadcast %cst_63 : f32 to vector<256x32xf32>
    %94 = arith.maximumf %92, %93 : vector<256x32xf32>
    %95 = vector.shape_cast %94 : vector<256x32xf32> to vector<16x16x32xf32>
    %c0_64 = arith.constant 0 : index
    %c0_65 = arith.constant 0 : index
    %c0_66 = arith.constant 0 : index
    %96 = vector.load %arg18[%c0_64, %c0_65, %c0_66] : memref<16x16x32xf32, #tpu.memory_space<vmem>>, vector<16x16x32xf32>
    tpu.vector_store %arg18[%c0_64, %c0_65, %c0_66], %95 {strides = array<i32>} : memref<16x16x32xf32, #tpu.memory_space<vmem>>, vector<16x16x32xf32>,
    %c0_67 = arith.constant 0 : index
    %c0_68 = arith.constant 0 : index
    %c0_69 = arith.constant 0 : index
    %97 = tpu.strided_load %arg18[%c0_67, %c0_68, %c0_69] {strides = array<i32: 1, 2, 1>} : memref<16x16x32xf32, #tpu.memory_space<vmem>>, vector<16x8x32xf32>
    %c0_70 = arith.constant 0 : index
    %c1_71 = arith.constant 1 : index
    %c0_72 = arith.constant 0 : index
    %98 = tpu.strided_load %arg18[%c0_70, %c1_71, %c0_72] {strides = array<i32: 1, 2, 1>} : memref<16x16x32xf32, #tpu.memory_space<vmem>>, vector<16x8x32xf32>
    %99 = arith.maximumf %97, %98 : vector<16x8x32xf32>
    %100 = vector.shape_cast %99 : vector<16x8x32xf32> to vector<8x2x8x32xf32>
    %101 = vector.extract_strided_slice %100 {offsets = [0, 0, 0, 0], sizes = [8, 1, 8, 32], strides = [1, 1, 1, 1]} : vector<8x2x8x32xf32> to vector<8x1x8x32xf32>
    %102 = vector.shape_cast %101 : vector<8x1x8x32xf32> to vector<8x8x32xf32>
    %103 = vector.extract_strided_slice %100 {offsets = [0, 1, 0, 0], sizes = [8, 1, 8, 32], strides = [1, 1, 1, 1]} : vector<8x2x8x32xf32> to vector<8x1x8x32xf32>
    %104 = vector.shape_cast %103 : vector<8x1x8x32xf32> to vector<8x8x32xf32>
    %105 = arith.maximumf %102, %104 : vector<8x8x32xf32>
    %cst_73 = arith.constant 0.000000e+00 : f32
    %106 = vector.broadcast %cst_73 : f32 to vector<10x10x32xf32>
    %c0_74 = arith.constant 0 : index
    %c0_75 = arith.constant 0 : index
    %c0_76 = arith.constant 0 : index
    %107 = vector.load %arg16[%c0_74, %c0_75, %c0_76] : memref<10x10x32xf32, #tpu.memory_space<vmem>>, vector<10x10x32xf32>
    tpu.vector_store %arg16[%c0_74, %c0_75, %c0_76], %106 {strides = array<i32>} : memref<10x10x32xf32, #tpu.memory_space<vmem>>, vector<10x10x32xf32>,
    %c1_77 = arith.constant 1 : index
    %c1_78 = arith.constant 1 : index
    %c0_79 = arith.constant 0 : index
    %108 = vector.load %arg16[%c1_77, %c1_78, %c0_79] : memref<10x10x32xf32, #tpu.memory_space<vmem>>, vector<8x8x32xf32>
    tpu.vector_store %arg16[%c1_77, %c1_78, %c0_79], %105 {strides = array<i32>} : memref<10x10x32xf32, #tpu.memory_space<vmem>>, vector<8x8x32xf32>,
    %c0_80 = arith.constant 0 : index
    %c0_81 = arith.constant 0 : index
    %c0_82 = arith.constant 0 : index
    %109 = vector.load %arg16[%c0_80, %c0_81, %c0_82] : memref<10x10x32xf32, #tpu.memory_space<vmem>>, vector<10x8x32xf32>
    %c0_83 = arith.constant 0 : index
    %c1_84 = arith.constant 1 : index
    %c0_85 = arith.constant 0 : index
    %110 = vector.load %arg16[%c0_83, %c1_84, %c0_85] : memref<10x10x32xf32, #tpu.memory_space<vmem>>, vector<10x8x32xf32>
    %c0_86 = arith.constant 0 : index
    %c2_87 = arith.constant 2 : index
    %c0_88 = arith.constant 0 : index
    %111 = vector.load %arg16[%c0_86, %c2_87, %c0_88] : memref<10x10x32xf32, #tpu.memory_space<vmem>>, vector<10x8x32xf32>
    %cst_89 = arith.constant 0.000000e+00 : f32
    %112 = vector.broadcast %cst_89 : f32 to vector<64x32xf32>
    %113 = vector.extract_strided_slice %109 {offsets = [0, 0, 0], sizes = [8, 8, 32], strides = [1, 1, 1]} : vector<10x8x32xf32> to vector<8x8x32xf32>
    %114 = vector.shape_cast %113 : vector<8x8x32xf32> to vector<64x32xf32>
    %115 = arith.truncf %114 : vector<64x32xf32> to vector<64x32xbf16>
    %c0_90 = arith.constant 0 : index
    %c0_91 = arith.constant 0 : index
    %c0_92 = arith.constant 0 : index
    %116 = vector.load %arg6[%c0_90, %c0_91, %c0_92] : memref<9x32x32xbf16, #tpu.memory_space<vmem>>, vector<1x32x32xbf16>
    %117 = vector.shape_cast %116 : vector<1x32x32xbf16> to vector<32x32xbf16>
    %cst_93 = arith.constant dense<0.000000e+00> : vector<64x32xf32>
    %118 = tpu.matmul %115, %117, %cst_93 {dimension_numbers = #tpu.dot_dimension_numbers<[1], [0], [0], [1], [0, 0, 1, 1], [], []>} : vector<64x32xbf16>, vector<32x32xbf16>, vector<64x32xf32> -> vector<64x32xf32>
    %119 = arith.addf %112, %118 : vector<64x32xf32>
    %120 = vector.extract_strided_slice %110 {offsets = [0, 0, 0], sizes = [8, 8, 32], strides = [1, 1, 1]} : vector<10x8x32xf32> to vector<8x8x32xf32>
    %121 = vector.shape_cast %120 : vector<8x8x32xf32> to vector<64x32xf32>
    %122 = arith.truncf %121 : vector<64x32xf32> to vector<64x32xbf16>
    %c1_94 = arith.constant 1 : index
    %c0_95 = arith.constant 0 : index
    %c0_96 = arith.constant 0 : index
    %123 = vector.load %arg6[%c1_94, %c0_95, %c0_96] : memref<9x32x32xbf16, #tpu.memory_space<vmem>>, vector<1x32x32xbf16>
    %124 = vector.shape_cast %123 : vector<1x32x32xbf16> to vector<32x32xbf16>
    %cst_97 = arith.constant dense<0.000000e+00> : vector<64x32xf32>
    %125 = tpu.matmul %122, %124, %cst_97 {dimension_numbers = #tpu.dot_dimension_numbers<[1], [0], [0], [1], [0, 0, 1, 1], [], []>} : vector<64x32xbf16>, vector<32x32xbf16>, vector<64x32xf32> -> vector<64x32xf32>
    %126 = arith.addf %119, %125 : vector<64x32xf32>
    %127 = vector.extract_strided_slice %111 {offsets = [0, 0, 0], sizes = [8, 8, 32], strides = [1, 1, 1]} : vector<10x8x32xf32> to vector<8x8x32xf32>
    %128 = vector.shape_cast %127 : vector<8x8x32xf32> to vector<64x32xf32>
    %129 = arith.truncf %128 : vector<64x32xf32> to vector<64x32xbf16>
    %c2_98 = arith.constant 2 : index
    %c0_99 = arith.constant 0 : index
    %c0_100 = arith.constant 0 : index
    %130 = vector.load %arg6[%c2_98, %c0_99, %c0_100] : memref<9x32x32xbf16, #tpu.memory_space<vmem>>, vector<1x32x32xbf16>
    %131 = vector.shape_cast %130 : vector<1x32x32xbf16> to vector<32x32xbf16>
    %cst_101 = arith.constant dense<0.000000e+00> : vector<64x32xf32>
    %132 = tpu.matmul %129, %131, %cst_101 {dimension_numbers = #tpu.dot_dimension_numbers<[1], [0], [0], [1], [0, 0, 1, 1], [], []>} : vector<64x32xbf16>, vector<32x32xbf16>, vector<64x32xf32> -> vector<64x32xf32>
    %133 = arith.addf %126, %132 : vector<64x32xf32>
    %134 = vector.extract_strided_slice %109 {offsets = [1, 0, 0], sizes = [8, 8, 32], strides = [1, 1, 1]} : vector<10x8x32xf32> to vector<8x8x32xf32>
    %135 = vector.shape_cast %134 : vector<8x8x32xf32> to vector<64x32xf32>
    %136 = arith.truncf %135 : vector<64x32xf32> to vector<64x32xbf16>
    %c3_102 = arith.constant 3 : index
    %c0_103 = arith.constant 0 : index
    %c0_104 = arith.constant 0 : index
    %137 = vector.load %arg6[%c3_102, %c0_103, %c0_104] : memref<9x32x32xbf16, #tpu.memory_space<vmem>>, vector<1x32x32xbf16>
    %138 = vector.shape_cast %137 : vector<1x32x32xbf16> to vector<32x32xbf16>
    %cst_105 = arith.constant dense<0.000000e+00> : vector<64x32xf32>
    %139 = tpu.matmul %136, %138, %cst_105 {dimension_numbers = #tpu.dot_dimension_numbers<[1], [0], [0], [1], [0, 0, 1, 1], [], []>} : vector<64x32xbf16>, vector<32x32xbf16>, vector<64x32xf32> -> vector<64x32xf32>
    %140 = arith.addf %133, %139 : vector<64x32xf32>
    %141 = vector.extract_strided_slice %110 {offsets = [1, 0, 0], sizes = [8, 8, 32], strides = [1, 1, 1]} : vector<10x8x32xf32> to vector<8x8x32xf32>
    %142 = vector.shape_cast %141 : vector<8x8x32xf32> to vector<64x32xf32>
    %143 = arith.truncf %142 : vector<64x32xf32> to vector<64x32xbf16>
    %c4_106 = arith.constant 4 : index
    %c0_107 = arith.constant 0 : index
    %c0_108 = arith.constant 0 : index
    %144 = vector.load %arg6[%c4_106, %c0_107, %c0_108] : memref<9x32x32xbf16, #tpu.memory_space<vmem>>, vector<1x32x32xbf16>
    %145 = vector.shape_cast %144 : vector<1x32x32xbf16> to vector<32x32xbf16>
    %cst_109 = arith.constant dense<0.000000e+00> : vector<64x32xf32>
    %146 = tpu.matmul %143, %145, %cst_109 {dimension_numbers = #tpu.dot_dimension_numbers<[1], [0], [0], [1], [0, 0, 1, 1], [], []>} : vector<64x32xbf16>, vector<32x32xbf16>, vector<64x32xf32> -> vector<64x32xf32>
    %147 = arith.addf %140, %146 : vector<64x32xf32>
    %148 = vector.extract_strided_slice %111 {offsets = [1, 0, 0], sizes = [8, 8, 32], strides = [1, 1, 1]} : vector<10x8x32xf32> to vector<8x8x32xf32>
    %149 = vector.shape_cast %148 : vector<8x8x32xf32> to vector<64x32xf32>
    %150 = arith.truncf %149 : vector<64x32xf32> to vector<64x32xbf16>
    %c5_110 = arith.constant 5 : index
    %c0_111 = arith.constant 0 : index
    %c0_112 = arith.constant 0 : index
    %151 = vector.load %arg6[%c5_110, %c0_111, %c0_112] : memref<9x32x32xbf16, #tpu.memory_space<vmem>>, vector<1x32x32xbf16>
    %152 = vector.shape_cast %151 : vector<1x32x32xbf16> to vector<32x32xbf16>
    %cst_113 = arith.constant dense<0.000000e+00> : vector<64x32xf32>
    %153 = tpu.matmul %150, %152, %cst_113 {dimension_numbers = #tpu.dot_dimension_numbers<[1], [0], [0], [1], [0, 0, 1, 1], [], []>} : vector<64x32xbf16>, vector<32x32xbf16>, vector<64x32xf32> -> vector<64x32xf32>
    %154 = arith.addf %147, %153 : vector<64x32xf32>
    %155 = vector.extract_strided_slice %109 {offsets = [2, 0, 0], sizes = [8, 8, 32], strides = [1, 1, 1]} : vector<10x8x32xf32> to vector<8x8x32xf32>
    %156 = vector.shape_cast %155 : vector<8x8x32xf32> to vector<64x32xf32>
    %157 = arith.truncf %156 : vector<64x32xf32> to vector<64x32xbf16>
    %c6_114 = arith.constant 6 : index
    %c0_115 = arith.constant 0 : index
    %c0_116 = arith.constant 0 : index
    %158 = vector.load %arg6[%c6_114, %c0_115, %c0_116] : memref<9x32x32xbf16, #tpu.memory_space<vmem>>, vector<1x32x32xbf16>
    %159 = vector.shape_cast %158 : vector<1x32x32xbf16> to vector<32x32xbf16>
    %cst_117 = arith.constant dense<0.000000e+00> : vector<64x32xf32>
    %160 = tpu.matmul %157, %159, %cst_117 {dimension_numbers = #tpu.dot_dimension_numbers<[1], [0], [0], [1], [0, 0, 1, 1], [], []>} : vector<64x32xbf16>, vector<32x32xbf16>, vector<64x32xf32> -> vector<64x32xf32>
    %161 = arith.addf %154, %160 : vector<64x32xf32>
    %162 = vector.extract_strided_slice %110 {offsets = [2, 0, 0], sizes = [8, 8, 32], strides = [1, 1, 1]} : vector<10x8x32xf32> to vector<8x8x32xf32>
    %163 = vector.shape_cast %162 : vector<8x8x32xf32> to vector<64x32xf32>
    %164 = arith.truncf %163 : vector<64x32xf32> to vector<64x32xbf16>
    %c7_118 = arith.constant 7 : index
    %c0_119 = arith.constant 0 : index
    %c0_120 = arith.constant 0 : index
    %165 = vector.load %arg6[%c7_118, %c0_119, %c0_120] : memref<9x32x32xbf16, #tpu.memory_space<vmem>>, vector<1x32x32xbf16>
    %166 = vector.shape_cast %165 : vector<1x32x32xbf16> to vector<32x32xbf16>
    %cst_121 = arith.constant dense<0.000000e+00> : vector<64x32xf32>
    %167 = tpu.matmul %164, %166, %cst_121 {dimension_numbers = #tpu.dot_dimension_numbers<[1], [0], [0], [1], [0, 0, 1, 1], [], []>} : vector<64x32xbf16>, vector<32x32xbf16>, vector<64x32xf32> -> vector<64x32xf32>
    %168 = arith.addf %161, %167 : vector<64x32xf32>
    %169 = vector.extract_strided_slice %111 {offsets = [2, 0, 0], sizes = [8, 8, 32], strides = [1, 1, 1]} : vector<10x8x32xf32> to vector<8x8x32xf32>
    %170 = vector.shape_cast %169 : vector<8x8x32xf32> to vector<64x32xf32>
    %171 = arith.truncf %170 : vector<64x32xf32> to vector<64x32xbf16>
    %c8_122 = arith.constant 8 : index
    %c0_123 = arith.constant 0 : index
    %c0_124 = arith.constant 0 : index
    %172 = vector.load %arg6[%c8_122, %c0_123, %c0_124] : memref<9x32x32xbf16, #tpu.memory_space<vmem>>, vector<1x32x32xbf16>
    %173 = vector.shape_cast %172 : vector<1x32x32xbf16> to vector<32x32xbf16>
    %cst_125 = arith.constant dense<0.000000e+00> : vector<64x32xf32>
    %174 = tpu.matmul %171, %173, %cst_125 {dimension_numbers = #tpu.dot_dimension_numbers<[1], [0], [0], [1], [0, 0, 1, 1], [], []>} : vector<64x32xbf16>, vector<32x32xbf16>, vector<64x32xf32> -> vector<64x32xf32>
    %175 = arith.addf %168, %174 : vector<64x32xf32>
    %c0_126 = arith.constant 0 : index
    %c0_127 = arith.constant 0 : index
    %176 = vector.load %arg7[%c0_126, %c0_127] : memref<1x32xf32, #tpu.memory_space<vmem>>, vector<1x32xf32>
    %177 = vector.broadcast %176 : vector<1x32xf32> to vector<64x32xf32>
    %178 = arith.addf %175, %177 : vector<64x32xf32>
    %cst_128 = arith.constant 0.000000e+00 : f32
    %179 = vector.broadcast %cst_128 : f32 to vector<64x32xf32>
    %180 = arith.maximumf %178, %179 : vector<64x32xf32>
    %181 = vector.shape_cast %180 : vector<64x32xf32> to vector<8x8x32xf32>
    %c0_129 = arith.constant 0 : index
    %c0_130 = arith.constant 0 : index
    %c0_131 = arith.constant 0 : index
    %182 = vector.load %arg19[%c0_129, %c0_130, %c0_131] : memref<8x8x32xf32, #tpu.memory_space<vmem>>, vector<8x8x32xf32>
    tpu.vector_store %arg19[%c0_129, %c0_130, %c0_131], %181 {strides = array<i32>} : memref<8x8x32xf32, #tpu.memory_space<vmem>>, vector<8x8x32xf32>,
    %c0_132 = arith.constant 0 : index
    %c0_133 = arith.constant 0 : index
    %c0_134 = arith.constant 0 : index
    %183 = tpu.strided_load %arg19[%c0_132, %c0_133, %c0_134] {strides = array<i32: 1, 2, 1>} : memref<8x8x32xf32, #tpu.memory_space<vmem>>, vector<8x4x32xf32>
    %c0_135 = arith.constant 0 : index
    %c1_136 = arith.constant 1 : index
    %c0_137 = arith.constant 0 : index
    %184 = tpu.strided_load %arg19[%c0_135, %c1_136, %c0_137] {strides = array<i32: 1, 2, 1>} : memref<8x8x32xf32, #tpu.memory_space<vmem>>, vector<8x4x32xf32>
    %185 = arith.maximumf %183, %184 : vector<8x4x32xf32>
    %186 = vector.shape_cast %185 : vector<8x4x32xf32> to vector<4x2x4x32xf32>
    %187 = vector.extract_strided_slice %186 {offsets = [0, 0, 0, 0], sizes = [4, 1, 4, 32], strides = [1, 1, 1, 1]} : vector<4x2x4x32xf32> to vector<4x1x4x32xf32>
    %188 = vector.shape_cast %187 : vector<4x1x4x32xf32> to vector<4x4x32xf32>
    %189 = vector.extract_strided_slice %186 {offsets = [0, 1, 0, 0], sizes = [4, 1, 4, 32], strides = [1, 1, 1, 1]} : vector<4x2x4x32xf32> to vector<4x1x4x32xf32>
    %190 = vector.shape_cast %189 : vector<4x1x4x32xf32> to vector<4x4x32xf32>
    %191 = arith.maximumf %188, %190 : vector<4x4x32xf32>
    %192 = vector.extract_strided_slice %191 {offsets = [0, 0, 0], sizes = [1, 1, 32], strides = [1, 1, 1]} : vector<4x4x32xf32> to vector<1x1x32xf32>
    %193 = vector.shape_cast %192 : vector<1x1x32xf32> to vector<1x32xf32>
    %c0_138 = arith.constant 0 : index
    %c0_139 = arith.constant 0 : index
    %194 = vector.load %arg20[%c0_138, %c0_139] : memref<1x512xf32, #tpu.memory_space<vmem>>, vector<1x32xf32>
    tpu.vector_store %arg20[%c0_138, %c0_139], %193 {strides = array<i32>} : memref<1x512xf32, #tpu.memory_space<vmem>>, vector<1x32xf32>,
    %195 = vector.extract_strided_slice %191 {offsets = [0, 1, 0], sizes = [1, 1, 32], strides = [1, 1, 1]} : vector<4x4x32xf32> to vector<1x1x32xf32>
    %196 = vector.shape_cast %195 : vector<1x1x32xf32> to vector<1x32xf32>
    %c0_140 = arith.constant 0 : index
    %c32 = arith.constant 32 : index
    %197 = vector.load %arg20[%c0_140, %c32] : memref<1x512xf32, #tpu.memory_space<vmem>>, vector<1x32xf32>
    tpu.vector_store %arg20[%c0_140, %c32], %196 {strides = array<i32>} : memref<1x512xf32, #tpu.memory_space<vmem>>, vector<1x32xf32>,
    %198 = vector.extract_strided_slice %191 {offsets = [0, 2, 0], sizes = [1, 1, 32], strides = [1, 1, 1]} : vector<4x4x32xf32> to vector<1x1x32xf32>
    %199 = vector.shape_cast %198 : vector<1x1x32xf32> to vector<1x32xf32>
    %c0_141 = arith.constant 0 : index
    %c64 = arith.constant 64 : index
    %200 = vector.load %arg20[%c0_141, %c64] : memref<1x512xf32, #tpu.memory_space<vmem>>, vector<1x32xf32>
    tpu.vector_store %arg20[%c0_141, %c64], %199 {strides = array<i32>} : memref<1x512xf32, #tpu.memory_space<vmem>>, vector<1x32xf32>,
    %201 = vector.extract_strided_slice %191 {offsets = [0, 3, 0], sizes = [1, 1, 32], strides = [1, 1, 1]} : vector<4x4x32xf32> to vector<1x1x32xf32>
    %202 = vector.shape_cast %201 : vector<1x1x32xf32> to vector<1x32xf32>
    %c0_142 = arith.constant 0 : index
    %c96 = arith.constant 96 : index
    %203 = vector.load %arg20[%c0_142, %c96] : memref<1x512xf32, #tpu.memory_space<vmem>>, vector<1x32xf32>
    tpu.vector_store %arg20[%c0_142, %c96], %202 {strides = array<i32>} : memref<1x512xf32, #tpu.memory_space<vmem>>, vector<1x32xf32>,
    %204 = vector.extract_strided_slice %191 {offsets = [1, 0, 0], sizes = [1, 1, 32], strides = [1, 1, 1]} : vector<4x4x32xf32> to vector<1x1x32xf32>
    %205 = vector.shape_cast %204 : vector<1x1x32xf32> to vector<1x32xf32>
    %c0_143 = arith.constant 0 : index
    %c128 = arith.constant 128 : index
    %206 = vector.load %arg20[%c0_143, %c128] : memref<1x512xf32, #tpu.memory_space<vmem>>, vector<1x32xf32>
    tpu.vector_store %arg20[%c0_143, %c128], %205 {strides = array<i32>} : memref<1x512xf32, #tpu.memory_space<vmem>>, vector<1x32xf32>,
    %207 = vector.extract_strided_slice %191 {offsets = [1, 1, 0], sizes = [1, 1, 32], strides = [1, 1, 1]} : vector<4x4x32xf32> to vector<1x1x32xf32>
    %208 = vector.shape_cast %207 : vector<1x1x32xf32> to vector<1x32xf32>
    %c0_144 = arith.constant 0 : index
    %c160 = arith.constant 160 : index
    %209 = vector.load %arg20[%c0_144, %c160] : memref<1x512xf32, #tpu.memory_space<vmem>>, vector<1x32xf32>
    tpu.vector_store %arg20[%c0_144, %c160], %208 {strides = array<i32>} : memref<1x512xf32, #tpu.memory_space<vmem>>, vector<1x32xf32>,
    %210 = vector.extract_strided_slice %191 {offsets = [1, 2, 0], sizes = [1, 1, 32], strides = [1, 1, 1]} : vector<4x4x32xf32> to vector<1x1x32xf32>
    %211 = vector.shape_cast %210 : vector<1x1x32xf32> to vector<1x32xf32>
    %c0_145 = arith.constant 0 : index
    %c192 = arith.constant 192 : index
    %212 = vector.load %arg20[%c0_145, %c192] : memref<1x512xf32, #tpu.memory_space<vmem>>, vector<1x32xf32>
    tpu.vector_store %arg20[%c0_145, %c192], %211 {strides = array<i32>} : memref<1x512xf32, #tpu.memory_space<vmem>>, vector<1x32xf32>,
    %213 = vector.extract_strided_slice %191 {offsets = [1, 3, 0], sizes = [1, 1, 32], strides = [1, 1, 1]} : vector<4x4x32xf32> to vector<1x1x32xf32>
    %214 = vector.shape_cast %213 : vector<1x1x32xf32> to vector<1x32xf32>
    %c0_146 = arith.constant 0 : index
    %c224 = arith.constant 224 : index
    %215 = vector.load %arg20[%c0_146, %c224] : memref<1x512xf32, #tpu.memory_space<vmem>>, vector<1x32xf32>
    tpu.vector_store %arg20[%c0_146, %c224], %214 {strides = array<i32>} : memref<1x512xf32, #tpu.memory_space<vmem>>, vector<1x32xf32>,
    %216 = vector.extract_strided_slice %191 {offsets = [2, 0, 0], sizes = [1, 1, 32], strides = [1, 1, 1]} : vector<4x4x32xf32> to vector<1x1x32xf32>
    %217 = vector.shape_cast %216 : vector<1x1x32xf32> to vector<1x32xf32>
    %c0_147 = arith.constant 0 : index
    %c256 = arith.constant 256 : index
    %218 = vector.load %arg20[%c0_147, %c256] : memref<1x512xf32, #tpu.memory_space<vmem>>, vector<1x32xf32>
    tpu.vector_store %arg20[%c0_147, %c256], %217 {strides = array<i32>} : memref<1x512xf32, #tpu.memory_space<vmem>>, vector<1x32xf32>,
    %219 = vector.extract_strided_slice %191 {offsets = [2, 1, 0], sizes = [1, 1, 32], strides = [1, 1, 1]} : vector<4x4x32xf32> to vector<1x1x32xf32>
    %220 = vector.shape_cast %219 : vector<1x1x32xf32> to vector<1x32xf32>
    %c0_148 = arith.constant 0 : index
    %c288 = arith.constant 288 : index
    %221 = vector.load %arg20[%c0_148, %c288] : memref<1x512xf32, #tpu.memory_space<vmem>>, vector<1x32xf32>
    tpu.vector_store %arg20[%c0_148, %c288], %220 {strides = array<i32>} : memref<1x512xf32, #tpu.memory_space<vmem>>, vector<1x32xf32>,
    %222 = vector.extract_strided_slice %191 {offsets = [2, 2, 0], sizes = [1, 1, 32], strides = [1, 1, 1]} : vector<4x4x32xf32> to vector<1x1x32xf32>
    %223 = vector.shape_cast %222 : vector<1x1x32xf32> to vector<1x32xf32>
    %c0_149 = arith.constant 0 : index
    %c320 = arith.constant 320 : index
    %224 = vector.load %arg20[%c0_149, %c320] : memref<1x512xf32, #tpu.memory_space<vmem>>, vector<1x32xf32>
    tpu.vector_store %arg20[%c0_149, %c320], %223 {strides = array<i32>} : memref<1x512xf32, #tpu.memory_space<vmem>>, vector<1x32xf32>,
    %225 = vector.extract_strided_slice %191 {offsets = [2, 3, 0], sizes = [1, 1, 32], strides = [1, 1, 1]} : vector<4x4x32xf32> to vector<1x1x32xf32>
    %226 = vector.shape_cast %225 : vector<1x1x32xf32> to vector<1x32xf32>
    %c0_150 = arith.constant 0 : index
    %c352 = arith.constant 352 : index
    %227 = vector.load %arg20[%c0_150, %c352] : memref<1x512xf32, #tpu.memory_space<vmem>>, vector<1x32xf32>
    tpu.vector_store %arg20[%c0_150, %c352], %226 {strides = array<i32>} : memref<1x512xf32, #tpu.memory_space<vmem>>, vector<1x32xf32>,
    %228 = vector.extract_strided_slice %191 {offsets = [3, 0, 0], sizes = [1, 1, 32], strides = [1, 1, 1]} : vector<4x4x32xf32> to vector<1x1x32xf32>
    %229 = vector.shape_cast %228 : vector<1x1x32xf32> to vector<1x32xf32>
    %c0_151 = arith.constant 0 : index
    %c384 = arith.constant 384 : index
    %230 = vector.load %arg20[%c0_151, %c384] : memref<1x512xf32, #tpu.memory_space<vmem>>, vector<1x32xf32>
    tpu.vector_store %arg20[%c0_151, %c384], %229 {strides = array<i32>} : memref<1x512xf32, #tpu.memory_space<vmem>>, vector<1x32xf32>,
    %231 = vector.extract_strided_slice %191 {offsets = [3, 1, 0], sizes = [1, 1, 32], strides = [1, 1, 1]} : vector<4x4x32xf32> to vector<1x1x32xf32>
    %232 = vector.shape_cast %231 : vector<1x1x32xf32> to vector<1x32xf32>
    %c0_152 = arith.constant 0 : index
    %c416 = arith.constant 416 : index
    %233 = vector.load %arg20[%c0_152, %c416] : memref<1x512xf32, #tpu.memory_space<vmem>>, vector<1x32xf32>
    tpu.vector_store %arg20[%c0_152, %c416], %232 {strides = array<i32>} : memref<1x512xf32, #tpu.memory_space<vmem>>, vector<1x32xf32>,
    %234 = vector.extract_strided_slice %191 {offsets = [3, 2, 0], sizes = [1, 1, 32], strides = [1, 1, 1]} : vector<4x4x32xf32> to vector<1x1x32xf32>
    %235 = vector.shape_cast %234 : vector<1x1x32xf32> to vector<1x32xf32>
    %c0_153 = arith.constant 0 : index
    %c448 = arith.constant 448 : index
    %236 = vector.load %arg20[%c0_153, %c448] : memref<1x512xf32, #tpu.memory_space<vmem>>, vector<1x32xf32>
    tpu.vector_store %arg20[%c0_153, %c448], %235 {strides = array<i32>} : memref<1x512xf32, #tpu.memory_space<vmem>>, vector<1x32xf32>,
    %237 = vector.extract_strided_slice %191 {offsets = [3, 3, 0], sizes = [1, 1, 32], strides = [1, 1, 1]} : vector<4x4x32xf32> to vector<1x1x32xf32>
    %238 = vector.shape_cast %237 : vector<1x1x32xf32> to vector<1x32xf32>
    %c0_154 = arith.constant 0 : index
    %c480 = arith.constant 480 : index
    %239 = vector.load %arg20[%c0_154, %c480] : memref<1x512xf32, #tpu.memory_space<vmem>>, vector<1x32xf32>
    tpu.vector_store %arg20[%c0_154, %c480], %238 {strides = array<i32>} : memref<1x512xf32, #tpu.memory_space<vmem>>, vector<1x32xf32>,
    %c0_155 = arith.constant 0 : index
    %c0_156 = arith.constant 0 : index
    %240 = vector.load %arg20[%c0_155, %c0_156] : memref<1x512xf32, #tpu.memory_space<vmem>>, vector<1x512xf32>
    %241 = arith.truncf %240 : vector<1x512xf32> to vector<1x512xbf16>
    %c0_157 = arith.constant 0 : index
    %c0_158 = arith.constant 0 : index
    %242 = vector.load %arg8[%c0_157, %c0_158] : memref<512x512xbf16, #tpu.memory_space<vmem>>, vector<512x512xbf16>
    %cst_159 = arith.constant dense<0.000000e+00> : vector<1x512xf32>
    %243 = tpu.matmul %241, %242, %cst_159 {dimension_numbers = #tpu.dot_dimension_numbers<[1], [0], [0], [1], [0, 0, 1, 1], [], []>} : vector<1x512xbf16>, vector<512x512xbf16>, vector<1x512xf32> -> vector<1x512xf32>
    %c0_160 = arith.constant 0 : index
    %c0_161 = arith.constant 0 : index
    %244 = vector.load %arg9[%c0_160, %c0_161] : memref<1x512xf32, #tpu.memory_space<vmem>>, vector<1x512xf32>
    %245 = arith.addf %243, %244 : vector<1x512xf32>
    %cst_162 = arith.constant 0.000000e+00 : f32
    %246 = vector.broadcast %cst_162 : f32 to vector<1x512xf32>
    %247 = arith.maximumf %245, %246 : vector<1x512xf32>
    %248 = arith.truncf %247 : vector<1x512xf32> to vector<1x512xbf16>
    %c0_163 = arith.constant 0 : index
    %c0_164 = arith.constant 0 : index
    %249 = vector.load %arg10[%c0_163, %c0_164] : memref<512x512xbf16, #tpu.memory_space<vmem>>, vector<512x512xbf16>
    %cst_165 = arith.constant dense<0.000000e+00> : vector<1x512xf32>
    %250 = tpu.matmul %248, %249, %cst_165 {dimension_numbers = #tpu.dot_dimension_numbers<[1], [0], [0], [1], [0, 0, 1, 1], [], []>} : vector<1x512xbf16>, vector<512x512xbf16>, vector<1x512xf32> -> vector<1x512xf32>
    %c0_166 = arith.constant 0 : index
    %c0_167 = arith.constant 0 : index
    %251 = vector.load %arg11[%c0_166, %c0_167] : memref<1x512xf32, #tpu.memory_space<vmem>>, vector<1x512xf32>
    %252 = arith.addf %250, %251 : vector<1x512xf32>
    %cst_168 = arith.constant 0.000000e+00 : f32
    %253 = vector.broadcast %cst_168 : f32 to vector<1x512xf32>
    %254 = arith.maximumf %252, %253 : vector<1x512xf32>
    %255 = arith.truncf %254 : vector<1x512xf32> to vector<1x512xbf16>
    %c0_169 = arith.constant 0 : index
    %c0_170 = arith.constant 0 : index
    %256 = vector.load %arg12[%c0_169, %c0_170] : memref<512x10xbf16, #tpu.memory_space<vmem>>, vector<512x10xbf16>
    %cst_171 = arith.constant dense<0.000000e+00> : vector<1x10xf32>
    %257 = tpu.matmul %255, %256, %cst_171 {dimension_numbers = #tpu.dot_dimension_numbers<[1], [0], [0], [1], [0, 0, 1, 1], [], []>} : vector<1x512xbf16>, vector<512x10xbf16>, vector<1x10xf32> -> vector<1x10xf32>
    %c0_172 = arith.constant 0 : index
    %c0_173 = arith.constant 0 : index
    %258 = vector.load %arg13[%c0_172, %c0_173] : memref<1x10xf32, #tpu.memory_space<vmem>>, vector<1x10xf32>
    %259 = arith.addf %257, %258 : vector<1x10xf32>
    %c0_174 = arith.constant 0 : index
    %c0_175 = arith.constant 0 : index
    %c0_176 = arith.constant 0 : index
    %260 = vector.load %arg14[%c0_174, %c0_175, %c0_176] : memref<1x1x10xf32, #tpu.memory_space<vmem>>, vector<1x1x10xf32>
    %261 = vector.shape_cast %260 : vector<1x1x10xf32> to vector<1x10xf32>
    %262 = vector.shape_cast %259 : vector<1x10xf32> to vector<1x1x10xf32>
    tpu.vector_store %arg14[%c0_174, %c0_175, %c0_176], %262 {strides = array<i32>} : memref<1x1x10xf32, #tpu.memory_space<vmem>>, vector<1x1x10xf32>,
    return
  }
  func.func @transform_0(%arg0: i32) -> (i32, i32, i32) {
    %c0_i32 = arith.constant 0 : i32
    %c0_i32_0 = arith.constant 0 : i32
    %c0_i32_1 = arith.constant 0 : i32
    return %arg0, %c0_i32, %c0_i32_0 : i32, i32, i32
  }
  func.func @transform_1(%arg0: i32) -> (i32, i32) {
    %c0_i32 = arith.constant 0 : i32
    %c0_i32_0 = arith.constant 0 : i32
    %c0_i32_1 = arith.constant 0 : i32
    return %c0_i32, %c0_i32_0 : i32, i32
  }
  func.func @transform_2(%arg0: i32) -> (i32, i32) {
    %c0_i32 = arith.constant 0 : i32
    %c0_i32_0 = arith.constant 0 : i32
    %c0_i32_1 = arith.constant 0 : i32
    return %c0_i32, %c0_i32_0 : i32, i32
  }
  func.func @transform_3(%arg0: i32) -> (i32, i32, i32) {
    %c0_i32 = arith.constant 0 : i32
    %c0_i32_0 = arith.constant 0 : i32
    %c0_i32_1 = arith.constant 0 : i32
    %c0_i32_2 = arith.constant 0 : i32
    return %c0_i32, %c0_i32_0, %c0_i32_1 : i32, i32, i32
  }
  func.func @transform_4(%arg0: i32) -> (i32, i32) {
    %c0_i32 = arith.constant 0 : i32
    %c0_i32_0 = arith.constant 0 : i32
    %c0_i32_1 = arith.constant 0 : i32
    return %c0_i32, %c0_i32_0 : i32, i32
  }
  func.func @transform_5(%arg0: i32) -> (i32, i32, i32) {
    %c0_i32 = arith.constant 0 : i32
    %c0_i32_0 = arith.constant 0 : i32
    %c0_i32_1 = arith.constant 0 : i32
    %c0_i32_2 = arith.constant 0 : i32
    return %c0_i32, %c0_i32_0, %c0_i32_1 : i32, i32, i32
  }
  func.func @transform_6(%arg0: i32) -> (i32, i32) {
    %c0_i32 = arith.constant 0 : i32
    %c0_i32_0 = arith.constant 0 : i32
    %c0_i32_1 = arith.constant 0 : i32
    return %c0_i32, %c0_i32_0 : i32, i32
  }
  func.func @transform_7(%arg0: i32) -> (i32, i32) {
    %c0_i32 = arith.constant 0 : i32
    %c0_i32_0 = arith.constant 0 : i32
    %c0_i32_1 = arith.constant 0 : i32
    return %c0_i32, %c0_i32_0 : i32, i32
  }
  func.func @transform_8(%arg0: i32) -> (i32, i32) {
    %c0_i32 = arith.constant 0 : i32
    %c0_i32_0 = arith.constant 0 : i32
    %c0_i32_1 = arith.constant 0 : i32
    return %c0_i32, %c0_i32_0 : i32, i32
  }
  func.func @transform_9(%arg0: i32) -> (i32, i32) {
    %c0_i32 = arith.constant 0 : i32
    %c0_i32_0 = arith.constant 0 : i32
    %c0_i32_1 = arith.constant 0 : i32
    return %c0_i32, %c0_i32_0 : i32, i32
  }
  func.func @transform_10(%arg0: i32) -> (i32, i32) {
    %c0_i32 = arith.constant 0 : i32
    %c0_i32_0 = arith.constant 0 : i32
    %c0_i32_1 = arith.constant 0 : i32
    return %c0_i32, %c0_i32_0 : i32, i32
  }
  func.func @transform_11(%arg0: i32) -> (i32, i32) {
    %c0_i32 = arith.constant 0 : i32
    %c0_i32_0 = arith.constant 0 : i32
    %c0_i32_1 = arith.constant 0 : i32
    return %c0_i32, %c0_i32_0 : i32, i32
  }
  func.func @transform_12(%arg0: i32) -> (i32, i32) {
    %c0_i32 = arith.constant 0 : i32
    %c0_i32_0 = arith.constant 0 : i32
    %c0_i32_1 = arith.constant 0 : i32
    return %c0_i32, %c0_i32_0 : i32, i32
  }
  func.func @transform_13(%arg0: i32) -> (i32, i32, i32) {
    %c0_i32 = arith.constant 0 : i32
    %c0_i32_0 = arith.constant 0 : i32
    %c0_i32_1 = arith.constant 0 : i32
    return %arg0, %c0_i32, %c0_i32_0 : i32, i32, i32
  }
}

</mosaic_0001>

<llo_original>
// kernel: vgg_forward.1
$region0: #{vgg_forward.1}
  #allocation0 [shape = 'u32[]', space=smem, size = 0x4, offset = 0x4, fixed_abs, tag = 'smem constant byte address 0x4 - core index']
  #allocation1 [shape = 'u32[144,128]{1,0:T(1,128)}', space=vmem, size = 0x12000, scoped, tag = 'internal scratch']
  #allocation2 [shape = 'f32[18,18,16]{2,1,0:T(8,128)}', space=vmem, size = 0x36000, scoped, tag = 'scratch operand']
  #allocation3 [shape = 'f32[10,10,32]{2,1,0:T(8,128)}', space=vmem, size = 0x14000, scoped, tag = 'scratch operand']
  #allocation4 [shape = 'f32[32,32,16]{2,1,0:T(8,128)}', space=vmem, size = 0x80000, scoped, tag = 'scratch operand']
  #allocation5 [shape = 'f32[16,16,32]{2,1,0:T(8,128)}', space=vmem, size = 0x20000, scoped, tag = 'scratch operand']
  #allocation6 [shape = 'f32[8,8,32]{2,1,0:T(8,128)}', space=vmem, size = 0x8000, scoped, tag = 'scratch operand']
  #allocation7 [shape = 'f32[1,512]{1,0:T(1,128)}', space=vmem, size = 0x800, scoped, tag = 'scratch operand']
  %s0 = inlined_call_operand.vmem [shape: bf16[2,1024,27], index: 0, kind: input, shape index: {}]
  %s1 = inlined_call_operand.vmem [shape: bf16[27,16], index: 1, kind: input, shape index: {}]
  %s2 = inlined_call_operand.vmem [shape: f32[1,16], index: 2, kind: input, shape index: {}]
  %s3 = inlined_call_operand.vmem [shape: bf16[9,16,32], index: 3, kind: input, shape index: {}]
  %s4 = inlined_call_operand.vmem [shape: f32[1,32], index: 4, kind: input, shape index: {}]
  %s5 = inlined_call_operand.vmem [shape: bf16[9,32,32], index: 5, kind: input, shape index: {}]
  %s6 = inlined_call_operand.vmem [shape: f32[1,32], index: 6, kind: input, shape index: {}]
  %s7 = inlined_call_operand.vmem [shape: bf16[512,512], index: 7, kind: input, shape index: {}]
  %s8 = inlined_call_operand.vmem [shape: f32[1,512], index: 8, kind: input, shape index: {}]
  %s9 = inlined_call_operand.vmem [shape: bf16[512,512], index: 9, kind: input, shape index: {}]
  %s10 = inlined_call_operand.vmem [shape: f32[1,512], index: 10, kind: input, shape index: {}]
  %s11 = inlined_call_operand.vmem [shape: bf16[512,10], index: 11, kind: input, shape index: {}]
  %s12 = inlined_call_operand.vmem [shape: f32[1,10], index: 12, kind: input, shape index: {}]
  %s13 = inlined_call_operand.hbm [shape: f32[2,1,10], index: 13, kind: output, shape index: {}]
  %s14 = sld [smem:[#allocation0]]
  $region85: #{vgg_forward.1} parent=0
    _
  %s16 = ssub.s32 1, %s14
  %s17 = scalar_select 0, %s16, %s14
  $region1: #{vgg_forward.1} parent=0
    #allocation8 [shape = 'u8[1024]{0}', space=vmem, size = 0x400, scoped, tag = 'output window, operand 0']
    #allocation9 [shape = 's32[2]{0}', space=sflag, size = 0x8, scoped, tag = 'scoped memory for vgg_forward.1']
    %18 = vsyncpa [#allocation9], 0
    %s19 = scalar_lea.sflag [#allocation9], 1
    %20 = vsyncpa %s19, 0
    loop: start=0, step=1, limit=4
    $region2: #{vgg_forward.1} parent=1 // loop_pre_header
      _
    $region3: #{vgg_forward.1} parent=1 // loop_header
      %s22 = sphi 0, %s26
      %p23 = scmp.ge.s32.totalorder %s22, 4
      %s32 = sphi 0, %s34
      %s35 = sphi 0, %s32
      %s36 = sphi 0, %s35
      %s52 = sphi 0, %s36
      %s56 = sphi 0, %s56
      %s58 = sphi 0, %s56
      %s59 = sphi 0, %s58
      %s73 = sphi 0, %s59
      %s77 = sphi 0, %s77
      %s79 = sphi 0, %s77
      %s80 = sphi 0, %s79
      %s94 = sphi 0, %s80
      %s98 = sphi 0, %s98
      %s100 = sphi 0, %s98
      %s101 = sphi 0, %s100
      %s115 = sphi 0, %s101
      %s119 = sphi 0, %s119
      %s121 = sphi 0, %s119
      %s122 = sphi 0, %s121
      %s136 = sphi 0, %s122
      %s140 = sphi 0, %s140
      %s142 = sphi 0, %s140
      %s143 = sphi 0, %s142
      %s157 = sphi 0, %s143
      %s161 = sphi 0, %s161
      %s163 = sphi 0, %s161
      %s164 = sphi 0, %s163
      %s178 = sphi 0, %s164
      %s182 = sphi 0, %s182
      %s184 = sphi 0, %s182
      %s185 = sphi 0, %s184
      %s199 = sphi 0, %s185
      %s203 = sphi 0, %s203
      %s205 = sphi 0, %s203
      %s206 = sphi 0, %s205
      %s220 = sphi 0, %s206
      %s224 = sphi 0, %s224
      %s226 = sphi 0, %s224
      %s227 = sphi 0, %s226
      %s241 = sphi 0, %s227
      %s245 = sphi 0, %s245
      %s247 = sphi 0, %s245
      %s248 = sphi 0, %s247
      %s262 = sphi 0, %s248
      %s266 = sphi 0, %s266
      %s268 = sphi 0, %s266
      %s269 = sphi 0, %s268
      %s283 = sphi 0, %s269
      %s287 = sphi 0, %s287
      %s289 = sphi 0, %s287
      %s290 = sphi 0, %s289
      %s304 = sphi 0, %s290
      %s310 = sphi 0, %s312
      %s313 = sphi 0, %s310
      %s314 = sphi 0, %s313
      %s330 = sphi 0, %s314
    $region4: #{vgg_forward.1} parent=1 // loop_header_branch
      %25 = sbr.rel (%p23) target = $region8
    $region5: #{vgg_forward.1} parent=1 // loop_body
      %s27 = ssub.s32 %s22, 1
      %s28 = ssub.s32 %s22, 2
      %s29 = sadd.s32 %s22, 1
      %s30 = ssub.s32 %s22, %s29
      %p31 = scmp.eq.s32.totalorder %s30, 0
      %s33 = sadd.s32 %s32, 1
      %s34 = scalar_select %p31, %s32, %s33
      %p37 = pneg %p31
      %p38 = scmp.eq.s32.totalorder %s22, 1
      %p39 = por %p37, %p38
      %p40 = scmp.ne.s32.totalorder %s32, %s35
      %p41 = scmp.eq.s32.totalorder %s22, 0
      %p42 = por %p40, %p41
      %p43 = scmp.ne.s32.totalorder %s32, %s35
      %p44 = scmp.eq.s32.totalorder %s27, 1
      %p45 = por %p43, %p44
      %p46 = scmp.ne.s32.totalorder %s35, %s36
      %p47 = scmp.eq.s32.totalorder %s27, 0
      %p48 = por %p46, %p47
      %p49 = scmp.ne.s32.totalorder %s35, %s36
      %p50 = scmp.eq.s32.totalorder %s28, 1
      %p51 = por %p49, %p50
      %p53 = scmp.ne.s32.totalorder %s36, %s52
      %p54 = scmp.eq.s32.totalorder %s28, 0
      %p55 = por %p53, %p54
      %s57 = sadd.s32 %s56, 1
      %p60 = scmp.eq.s32.totalorder %s22, 1
      %p61 = scmp.ne.s32.totalorder %s56, %s58
      %p62 = scmp.eq.s32.totalorder %s22, 0
      %p63 = por %p61, %p62
      %p64 = scmp.ne.s32.totalorder %s56, %s58
      %p65 = scmp.eq.s32.totalorder %s27, 1
      %p66 = por %p64, %p65
      %p67 = scmp.ne.s32.totalorder %s58, %s59
      %p68 = scmp.eq.s32.totalorder %s27, 0
      %p69 = por %p67, %p68
      %p70 = scmp.ne.s32.totalorder %s58, %s59
      %p71 = scmp.eq.s32.totalorder %s28, 1
      %p72 = por %p70, %p71
      %p74 = scmp.ne.s32.totalorder %s59, %s73
      %p75 = scmp.eq.s32.totalorder %s28, 0
      %p76 = por %p74, %p75
      %s78 = sadd.s32 %s77, 1
      %p81 = scmp.eq.s32.totalorder %s22, 1
      %p82 = scmp.ne.s32.totalorder %s77, %s79
      %p83 = scmp.eq.s32.totalorder %s22, 0
      %p84 = por %p82, %p83
      %p85 = scmp.ne.s32.totalorder %s77, %s79
      %p86 = scmp.eq.s32.totalorder %s27, 1
      %p87 = por %p85, %p86
      %p88 = scmp.ne.s32.totalorder %s79, %s80
      %p89 = scmp.eq.s32.totalorder %s27, 0
      %p90 = por %p88, %p89
      %p91 = scmp.ne.s32.totalorder %s79, %s80
      %p92 = scmp.eq.s32.totalorder %s28, 1
      %p93 = por %p91, %p92
      %p95 = scmp.ne.s32.totalorder %s80, %s94
      %p96 = scmp.eq.s32.totalorder %s28, 0
      %p97 = por %p95, %p96
      %s99 = sadd.s32 %s98, 1
      %p102 = scmp.eq.s32.totalorder %s22, 1
      %p103 = scmp.ne.s32.totalorder %s98, %s100
      %p104 = scmp.eq.s32.totalorder %s22, 0
      %p105 = por %p103, %p104
      %p106 = scmp.ne.s32.totalorder %s98, %s100
      %p107 = scmp.eq.s32.totalorder %s27, 1
      %p108 = por %p106, %p107
      %p109 = scmp.ne.s32.totalorder %s100, %s101
      %p110 = scmp.eq.s32.totalorder %s27, 0
      %p111 = por %p109, %p110
      %p112 = scmp.ne.s32.totalorder %s100, %s101
      %p113 = scmp.eq.s32.totalorder %s28, 1
      %p114 = por %p112, %p113
      %p116 = scmp.ne.s32.totalorder %s101, %s115
      %p117 = scmp.eq.s32.totalorder %s28, 0
      %p118 = por %p116, %p117
      %s120 = sadd.s32 %s119, 1
      %p123 = scmp.eq.s32.totalorder %s22, 1
      %p124 = scmp.ne.s32.totalorder %s119, %s121
      %p125 = scmp.eq.s32.totalorder %s22, 0
      %p126 = por %p124, %p125
      %p127 = scmp.ne.s32.totalorder %s119, %s121
      %p128 = scmp.eq.s32.totalorder %s27, 1
      %p129 = por %p127, %p128
      %p130 = scmp.ne.s32.totalorder %s121, %s122
      %p131 = scmp.eq.s32.totalorder %s27, 0
      %p132 = por %p130, %p131
      %p133 = scmp.ne.s32.totalorder %s121, %s122
      %p134 = scmp.eq.s32.totalorder %s28, 1
      %p135 = por %p133, %p134
      %p137 = scmp.ne.s32.totalorder %s122, %s136
      %p138 = scmp.eq.s32.totalorder %s28, 0
      %p139 = por %p137, %p138
      %s141 = sadd.s32 %s140, 1
      %p144 = scmp.eq.s32.totalorder %s22, 1
      %p145 = scmp.ne.s32.totalorder %s140, %s142
      %p146 = scmp.eq.s32.totalorder %s22, 0
      %p147 = por %p145, %p146
      %p148 = scmp.ne.s32.totalorder %s140, %s142
      %p149 = scmp.eq.s32.totalorder %s27, 1
      %p150 = por %p148, %p149
      %p151 = scmp.ne.s32.totalorder %s142, %s143
      %p152 = scmp.eq.s32.totalorder %s27, 0
      %p153 = por %p151, %p152
      %p154 = scmp.ne.s32.totalorder %s142, %s143
      %p155 = scmp.eq.s32.totalorder %s28, 1
      %p156 = por %p154, %p155
      %p158 = scmp.ne.s32.totalorder %s143, %s157
      %p159 = scmp.eq.s32.totalorder %s28, 0
      %p160 = por %p158, %p159
      %s162 = sadd.s32 %s161, 1
      %p165 = scmp.eq.s32.totalorder %s22, 1
      %p166 = scmp.ne.s32.totalorder %s161, %s163
      %p167 = scmp.eq.s32.totalorder %s22, 0
      %p168 = por %p166, %p167
      %p169 = scmp.ne.s32.totalorder %s161, %s163
      %p170 = scmp.eq.s32.totalorder %s27, 1
      %p171 = por %p169, %p170
      %p172 = scmp.ne.s32.totalorder %s163, %s164
      %p173 = scmp.eq.s32.totalorder %s27, 0
      %p174 = por %p172, %p173
      %p175 = scmp.ne.s32.totalorder %s163, %s164
      %p176 = scmp.eq.s32.totalorder %s28, 1
      %p177 = por %p175, %p176
      %p179 = scmp.ne.s32.totalorder %s164, %s178
      %p180 = scmp.eq.s32.totalorder %s28, 0
      %p181 = por %p179, %p180
      %s183 = sadd.s32 %s182, 1
      %p186 = scmp.eq.s32.totalorder %s22, 1
      %p187 = scmp.ne.s32.totalorder %s182, %s184
      %p188 = scmp.eq.s32.totalorder %s22, 0
      %p189 = por %p187, %p188
      %p190 = scmp.ne.s32.totalorder %s182, %s184
      %p191 = scmp.eq.s32.totalorder %s27, 1
      %p192 = por %p190, %p191
      %p193 = scmp.ne.s32.totalorder %s184, %s185
      %p194 = scmp.eq.s32.totalorder %s27, 0
      %p195 = por %p193, %p194
      %p196 = scmp.ne.s32.totalorder %s184, %s185
      %p197 = scmp.eq.s32.totalorder %s28, 1
      %p198 = por %p196, %p197
      %p200 = scmp.ne.s32.totalorder %s185, %s199
      %p201 = scmp.eq.s32.totalorder %s28, 0
      %p202 = por %p200, %p201
      %s204 = sadd.s32 %s203, 1
      %p207 = scmp.eq.s32.totalorder %s22, 1
      %p208 = scmp.ne.s32.totalorder %s203, %s205
      %p209 = scmp.eq.s32.totalorder %s22, 0
      %p210 = por %p208, %p209
      %p211 = scmp.ne.s32.totalorder %s203, %s205
      %p212 = scmp.eq.s32.totalorder %s27, 1
      %p213 = por %p211, %p212
      %p214 = scmp.ne.s32.totalorder %s205, %s206
      %p215 = scmp.eq.s32.totalorder %s27, 0
      %p216 = por %p214, %p215
      %p217 = scmp.ne.s32.totalorder %s205, %s206
      %p218 = scmp.eq.s32.totalorder %s28, 1
      %p219 = por %p217, %p218
      %p221 = scmp.ne.s32.totalorder %s206, %s220
      %p222 = scmp.eq.s32.totalorder %s28, 0
      %p223 = por %p221, %p222
      %s225 = sadd.s32 %s224, 1
      %p228 = scmp.eq.s32.totalorder %s22, 1
      %p229 = scmp.ne.s32.totalorder %s224, %s226
      %p230 = scmp.eq.s32.totalorder %s22, 0
      %p231 = por %p229, %p230
      %p232 = scmp.ne.s32.totalorder %s224, %s226
      %p233 = scmp.eq.s32.totalorder %s27, 1
      %p234 = por %p232, %p233
      %p235 = scmp.ne.s32.totalorder %s226, %s227
      %p236 = scmp.eq.s32.totalorder %s27, 0
      %p237 = por %p235, %p236
      %p238 = scmp.ne.s32.totalorder %s226, %s227
      %p239 = scmp.eq.s32.totalorder %s28, 1
      %p240 = por %p238, %p239
      %p242 = scmp.ne.s32.totalorder %s227, %s241
      %p243 = scmp.eq.s32.totalorder %s28, 0
      %p244 = por %p242, %p243
      %s246 = sadd.s32 %s245, 1
      %p249 = scmp.eq.s32.totalorder %s22, 1
      %p250 = scmp.ne.s32.totalorder %s245, %s247
      %p251 = scmp.eq.s32.totalorder %s22, 0
      %p252 = por %p250, %p251
      %p253 = scmp.ne.s32.totalorder %s245, %s247
      %p254 = scmp.eq.s32.totalorder %s27, 1
      %p255 = por %p253, %p254
      %p256 = scmp.ne.s32.totalorder %s247, %s248
      %p257 = scmp.eq.s32.totalorder %s27, 0
      %p258 = por %p256, %p257
      %p259 = scmp.ne.s32.totalorder %s247, %s248
      %p260 = scmp.eq.s32.totalorder %s28, 1
      %p261 = por %p259, %p260
      %p263 = scmp.ne.s32.totalorder %s248, %s262
      %p264 = scmp.eq.s32.totalorder %s28, 0
      %p265 = por %p263, %p264
      %s267 = sadd.s32 %s266, 1
      %p270 = scmp.eq.s32.totalorder %s22, 1
      %p271 = scmp.ne.s32.totalorder %s266, %s268
      %p272 = scmp.eq.s32.totalorder %s22, 0
      %p273 = por %p271, %p272
      %p274 = scmp.ne.s32.totalorder %s266, %s268
      %p275 = scmp.eq.s32.totalorder %s27, 1
      %p276 = por %p274, %p275
      %p277 = scmp.ne.s32.totalorder %s268, %s269
      %p278 = scmp.eq.s32.totalorder %s27, 0
      %p279 = por %p277, %p278
      %p280 = scmp.ne.s32.totalorder %s268, %s269
      %p281 = scmp.eq.s32.totalorder %s28, 1
      %p282 = por %p280, %p281
      %p284 = scmp.ne.s32.totalorder %s269, %s283
      %p285 = scmp.eq.s32.totalorder %s28, 0
      %p286 = por %p284, %p285
      %s288 = sadd.s32 %s287, 1
      %p291 = scmp.eq.s32.totalorder %s22, 1
      %p292 = scmp.ne.s32.totalorder %s287, %s289
      %p293 = scmp.eq.s32.totalorder %s22, 0
      %p294 = por %p292, %p293
      %p295 = scmp.ne.s32.totalorder %s287, %s289
      %p296 = scmp.eq.s32.totalorder %s27, 1
      %p297 = por %p295, %p296
      %p298 = scmp.ne.s32.totalorder %s289, %s290
      %p299 = scmp.eq.s32.totalorder %s27, 0
      %p300 = por %p298, %p299
      %p301 = scmp.ne.s32.totalorder %s289, %s290
      %p302 = scmp.eq.s32.totalorder %s28, 1
      %p303 = por %p301, %p302
      %p305 = scmp.ne.s32.totalorder %s290, %s304
      %p306 = scmp.eq.s32.totalorder %s28, 0
      %p307 = por %p305, %p306
      %s308 = ssub.s32 %s22, %s29
      %p309 = scmp.eq.s32.totalorder %s308, 0
      %s311 = sadd.s32 %s310, 1
      %s312 = scalar_select %p309, %s310, %s311
      %p315 = pneg %p309
      %p316 = scmp.eq.s32.totalorder %s22, 1
      %p317 = por %p315, %p316
      %p318 = scmp.ne.s32.totalorder %s310, %s313
      %p319 = scmp.eq.s32.totalorder %s22, 0
      %p320 = por %p318, %p319
      %p321 = scmp.ne.s32.totalorder %s310, %s313
      %p322 = scmp.eq.s32.totalorder %s27, 1
      %p323 = por %p321, %p322
      %p324 = scmp.ne.s32.totalorder %s313, %s314
      %p325 = scmp.eq.s32.totalorder %s27, 0
      %p326 = por %p324, %p325
      %p327 = scmp.ne.s32.totalorder %s313, %s314
      %p328 = scmp.eq.s32.totalorder %s28, 1
      %p329 = por %p327, %p328
      %p331 = scmp.ne.s32.totalorder %s314, %s330
      %p332 = scmp.eq.s32.totalorder %s28, 0
      %p333 = por %p331, %p332
      %p334 = scmp.le.s32.totalorder 1, %s22
      %p335 = scmp.lt.s32.totalorder %s22, 3
      %p336 = pnand %p334, %p335
      %p337 = pneg %p336
      // Predicated region
      $region9: #{vgg_forward.1} parent=5 // pred_check
        _
      $region10: #{vgg_forward.1} parent=5 // pred_check_branch
        %339 = sbr.rel (%p336) target = $region12
      $region11: #{vgg_forward.1} parent=5 // pred_region
        %s340 = ssub.s32 %s22, 1
        // Predicated region
        $region13: #{vgg_forward.1} parent=11 // pred_check
          %p341 = pneg %p69
        $region14: #{vgg_forward.1} parent=11 // pred_check_branch
          %343 = sbr.rel (%p341) target = $region16
        $region15: #{vgg_forward.1} parent=11 // pred_region
          _
        $region16: #{vgg_forward.1} parent=11 // pred_fallthru
          _
        // Predicated region
        $region17: #{vgg_forward.1} parent=11 // pred_check
          %p344 = pneg %p90
        $region18: #{vgg_forward.1} parent=11 // pred_check_branch
          %346 = sbr.rel (%p344) target = $region20
        $region19: #{vgg_forward.1} parent=11 // pred_region
          _
        $region20: #{vgg_forward.1} parent=11 // pred_fallthru
          _
        // Predicated region
        $region21: #{vgg_forward.1} parent=11 // pred_check
          %p347 = pneg %p111
        $region22: #{vgg_forward.1} parent=11 // pred_check_branch
          %349 = sbr.rel (%p347) target = $region24
        $region23: #{vgg_forward.1} parent=11 // pred_region
          _
        $region24: #{vgg_forward.1} parent=11 // pred_fallthru
          _
        // Predicated region
        $region25: #{vgg_forward.1} parent=11 // pred_check
          %p350 = pneg %p132
        $region26: #{vgg_forward.1} parent=11 // pred_check_branch
          %352 = sbr.rel (%p350) target = $region28
        $region27: #{vgg_forward.1} parent=11 // pred_region
          _
        $region28: #{vgg_forward.1} parent=11 // pred_fallthru
          _
        // Predicated region
        $region29: #{vgg_forward.1} parent=11 // pred_check
          %p353 = pneg %p153
        $region30: #{vgg_forward.1} parent=11 // pred_check_branch
          %355 = sbr.rel (%p353) target = $region32
        $region31: #{vgg_forward.1} parent=11 // pred_region
          _
        $region32: #{vgg_forward.1} parent=11 // pred_fallthru
          _
        // Predicated region
        $region33: #{vgg_forward.1} parent=11 // pred_check
          %p356 = pneg %p174
        $region34: #{vgg_forward.1} parent=11 // pred_check_branch
          %358 = sbr.rel (%p356) target = $region36
        $region35: #{vgg_forward.1} parent=11 // pred_region
          _
        $region36: #{vgg_forward.1} parent=11 // pred_fallthru
          _
        // Predicated region
        $region37: #{vgg_forward.1} parent=11 // pred_check
          %p359 = pneg %p195
        $region38: #{vgg_forward.1} parent=11 // pred_check_branch
          %361 = sbr.rel (%p359) target = $region40
        $region39: #{vgg_forward.1} parent=11 // pred_region
          _
        $region40: #{vgg_forward.1} parent=11 // pred_fallthru
          _
        // Predicated region
        $region41: #{vgg_forward.1} parent=11 // pred_check
          %p362 = pneg %p216
        $region42: #{vgg_forward.1} parent=11 // pred_check_branch
          %364 = sbr.rel (%p362) target = $region44
        $region43: #{vgg_forward.1} parent=11 // pred_region
          _
        $region44: #{vgg_forward.1} parent=11 // pred_fallthru
          _
        // Predicated region
        $region45: #{vgg_forward.1} parent=11 // pred_check
          %p365 = pneg %p237
        $region46: #{vgg_forward.1} parent=11 // pred_check_branch
          %367 = sbr.rel (%p365) target = $region48
        $region47: #{vgg_forward.1} parent=11 // pred_region
          _
        $region48: #{vgg_forward.1} parent=11 // pred_fallthru
          _
        // Predicated region
        $region49: #{vgg_forward.1} parent=11 // pred_check
          %p368 = pneg %p258
        $region50: #{vgg_forward.1} parent=11 // pred_check_branch
          %370 = sbr.rel (%p368) target = $region52
        $region51: #{vgg_forward.1} parent=11 // pred_region
          _
        $region52: #{vgg_forward.1} parent=11 // pred_fallthru
          _
        // Predicated region
        $region53: #{vgg_forward.1} parent=11 // pred_check
          %p371 = pneg %p279
        $region54: #{vgg_forward.1} parent=11 // pred_check_branch
          %373 = sbr.rel (%p371) target = $region56
        $region55: #{vgg_forward.1} parent=11 // pred_region
          _
        $region56: #{vgg_forward.1} parent=11 // pred_fallthru
          _
        // Predicated region
        $region57: #{vgg_forward.1} parent=11 // pred_check
          %p374 = pneg %p300
        $region58: #{vgg_forward.1} parent=11 // pred_check_branch
          %376 = sbr.rel (%p374) target = $region60
        $region59: #{vgg_forward.1} parent=11 // pred_region
          _
        $region60: #{vgg_forward.1} parent=11 // pred_fallthru
          _
      $region12: #{vgg_forward.1} parent=5 // pred_fallthru
        _
      %p377 = scmp.lt.s32.totalorder %s22, 2
      // Predicated region
      $region61: #{vgg_forward.1} parent=5 // pred_check
        %p378 = pneg %p377
      $region62: #{vgg_forward.1} parent=5 // pred_check_branch
        %380 = sbr.rel (%p378) target = $region64
      $region63: #{vgg_forward.1} parent=5 // pred_region
        // Predicated region
        $region65: #{vgg_forward.1} parent=63 // pred_check
          %p381 = pneg %p42
        $region66: #{vgg_forward.1} parent=63 // pred_check_branch
          %383 = sbr.rel (%p381) target = $region68
        $region67: #{vgg_forward.1} parent=63 // pred_region
          %p384 = scmp.lt.s32.totalorder %s22, 1
          %s385 = scalar_select %p384, %s22, 1
          %s386 = smul.addr %s385, 128
          %s387 = smul.addr %s386, 4
          %s388 = scalar_lea.vmem %s0, %s387
        $region68: #{vgg_forward.1} parent=63 // pred_fallthru
          _
      $region64: #{vgg_forward.1} parent=5 // pred_fallthru
        _
      %p389 = scmp.le.s32.totalorder 1, %s22
      %p390 = scmp.lt.s32.totalorder %s22, 3
      %p391 = pnand %p389, %p390
      %p392 = pneg %p391
      // Predicated region
      $region69: #{vgg_forward.1} parent=5 // pred_check
        _
      $region70: #{vgg_forward.1} parent=5 // pred_check_branch
        %394 = sbr.rel (%p391) target = $region72
      $region71: #{vgg_forward.1} parent=5 // pred_region
        %s395 = ssub.s32 %s22, 1
        %p396 = scmp.lt.s32.totalorder %s27, 1
        %s397 = scalar_select %p396, %s27, 1
        %s398 = smul.addr %s397, 128
        %s399 = smul.addr %s398, 4
        %s400 = scalar_lea.vmem %s0, %s399
        %p401 = pneg %p48
        %p402 = pneg %p45
        %p403 = pneg %p69
        %p404 = pneg %p66
        %p405 = pneg %p90
        %p406 = pneg %p87
        %p407 = pneg %p111
        %p408 = pneg %p108
        %p409 = pneg %p132
        %p410 = pneg %p129
        %p411 = pneg %p153
        %p412 = pneg %p150
        %p413 = pneg %p174
        %p414 = pneg %p171
        %p415 = pneg %p195
        %p416 = pneg %p192
        %p417 = pneg %p216
        %p418 = pneg %p213
        %p419 = pneg %p237
        %p420 = pneg %p234
        %p421 = pneg %p258
        %p422 = pneg %p255
        %p423 = pneg %p279
        %p424 = pneg %p276
        %p425 = pneg %p300
        %p426 = pneg %p297
        %p427 = pneg %p326
        %p428 = pneg %p323
        %s429 = sand.u32 %s313, 1
        %s430 = scalar_lea.sflag [#allocation9], %s429
        %s431 = sand.u32 %s313, 1
        %s432 = scalar_lea.vmem [#allocation8], %s431
        %p433 = scmp.lt.s32.totalorder %s27, 1
        %s434 = scalar_select %p433, %s27, 1
        %s435 = smul.addr %s434, 128
        %s436 = smul.addr %s435, 4
        %s437 = scalar_lea.vmem %s0, %s436
        %v439 = vld [vmem:[%s437] sm:$0xf]
        %v440 = vld [vmem:[%s437 + $0x4] sm:$0xf]
        %v441 = vld [vmem:[%s437 + $0x8] sm:$0xf]
        %v442 = vld [vmem:[%s437 + $0xc] sm:$0xf]
        %v443 = vld [vmem:[%s437 + $0x10] sm:$0xf]
        %v444 = vld [vmem:[%s437 + $0x14] sm:$0xf]
        %v445 = vld [vmem:[%s437 + $0x18] sm:$0xf]
        %v446 = vld [vmem:[%s437 + $0x1c] sm:$0xf]
        %v447 = vld [vmem:[%s437 + $0x20] sm:$0xf]
        %v448 = vld [vmem:[%s437 + $0x24] sm:$0xf]
        %v449 = vld [vmem:[%s437 + $0x28] sm:$0xf]
        %v450 = vld [vmem:[%s437 + $0x2c] sm:$0xf]
        %v451 = vld [vmem:[%s437 + $0x30] sm:$0xf]
        %v452 = vld [vmem:[%s437 + $0x34] sm:$0xf]
        %v453 = vld [vmem:[%s437 + $0x38] sm:$0xf]
        %v454 = vld [vmem:[%s437 + $0x3c] sm:$0xf]
        %v455 = vld [vmem:[%s437 + $0x40] sm:$0xf]
        %v456 = vld [vmem:[%s437 + $0x44] sm:$0xf]
        %v457 = vld [vmem:[%s437 + $0x48] sm:$0xf]
        %v458 = vld [vmem:[%s437 + $0x4c] sm:$0xf]
        %v459 = vld [vmem:[%s437 + $0x50] sm:$0xf]
        %v460 = vld [vmem:[%s437 + $0x54] sm:$0xf]
        %v461 = vld [vmem:[%s437 + $0x58] sm:$0xf]
        %v462 = vld [vmem:[%s437 + $0x5c] sm:$0xf]
        %v463 = vld [vmem:[%s437 + $0x60] sm:$0xf]
        %v464 = vld [vmem:[%s437 + $0x64] sm:$0xf]
        %v465 = vld [vmem:[%s437 + $0x68] sm:$0xf]
        %v466 = vld [vmem:[%s437 + $0x6c] sm:$0xf]
        %v467 = vld [vmem:[%s437 + $0x70] sm:$0xf]
        %v468 = vld [vmem:[%s437 + $0x74] sm:$0xf]
        %v469 = vld [vmem:[%s437 + $0x78] sm:$0xf]
        %v470 = vld [vmem:[%s437 + $0x7c] sm:$0xf]
        %v471 = vld [vmem:[%s437 + $0x80] sm:$0xf]
        %v472 = vld [vmem:[%s437 + $0x84] sm:$0xf]
        %v473 = vld [vmem:[%s437 + $0x88] sm:$0xf]
        %v474 = vld [vmem:[%s437 + $0x8c] sm:$0xf]
        %v475 = vld [vmem:[%s437 + $0x90] sm:$0xf]
        %v476 = vld [vmem:[%s437 + $0x94] sm:$0xf]
        %v477 = vld [vmem:[%s437 + $0x98] sm:$0xf]
        %v478 = vld [vmem:[%s437 + $0x9c] sm:$0xf]
        %v479 = vld [vmem:[%s437 + $0xa0] sm:$0xf]
        %v480 = vld [vmem:[%s437 + $0xa4] sm:$0xf]
        %v481 = vld [vmem:[%s437 + $0xa8] sm:$0xf]
        %v482 = vld [vmem:[%s437 + $0xac] sm:$0xf]
        %v483 = vld [vmem:[%s437 + $0xb0] sm:$0xf]
        %v484 = vld [vmem:[%s437 + $0xb4] sm:$0xf]
        %v485 = vld [vmem:[%s437 + $0xb8] sm:$0xf]
        %v486 = vld [vmem:[%s437 + $0xbc] sm:$0xf]
        %v487 = vld [vmem:[%s437 + $0xc0] sm:$0xf]
        %v488 = vld [vmem:[%s437 + $0xc4] sm:$0xf]
        %v489 = vld [vmem:[%s437 + $0xc8] sm:$0xf]
        %v490 = vld [vmem:[%s437 + $0xcc] sm:$0xf]
        %v491 = vld [vmem:[%s437 + $0xd0] sm:$0xf]
        %v492 = vld [vmem:[%s437 + $0xd4] sm:$0xf]
        %v493 = vld [vmem:[%s437 + $0xd8] sm:$0xf]
        %v494 = vld [vmem:[%s437 + $0xdc] sm:$0xf]
        %v495 = vld [vmem:[%s437 + $0xe0] sm:$0xf]
        %v496 = vld [vmem:[%s437 + $0xe4] sm:$0xf]
        %v497 = vld [vmem:[%s437 + $0xe8] sm:$0xf]
        %v498 = vld [vmem:[%s437 + $0xec] sm:$0xf]
        %v499 = vld [vmem:[%s437 + $0xf0] sm:$0xf]
        %v500 = vld [vmem:[%s437 + $0xf4] sm:$0xf]
        %v501 = vld [vmem:[%s437 + $0xf8] sm:$0xf]
        %v502 = vld [vmem:[%s437 + $0xfc] sm:$0xf]
        %v503 = vld [vmem:[%s437 + $0x100] sm:$0xf]
        %v504 = vld [vmem:[%s437 + $0x104] sm:$0xf]
        %v505 = vld [vmem:[%s437 + $0x108] sm:$0xf]
        %v506 = vld [vmem:[%s437 + $0x10c] sm:$0xf]
        %v507 = vld [vmem:[%s437 + $0x110] sm:$0xf]
        %v508 = vld [vmem:[%s437 + $0x114] sm:$0xf]
        %v509 = vld [vmem:[%s437 + $0x118] sm:$0xf]
        %v510 = vld [vmem:[%s437 + $0x11c] sm:$0xf]
        %v511 = vld [vmem:[%s437 + $0x120] sm:$0xf]
        %v512 = vld [vmem:[%s437 + $0x124] sm:$0xf]
        %v513 = vld [vmem:[%s437 + $0x128] sm:$0xf]
        %v514 = vld [vmem:[%s437 + $0x12c] sm:$0xf]
        %v515 = vld [vmem:[%s437 + $0x130] sm:$0xf]
        %v516 = vld [vmem:[%s437 + $0x134] sm:$0xf]
        %v517 = vld [vmem:[%s437 + $0x138] sm:$0xf]
        %v518 = vld [vmem:[%s437 + $0x13c] sm:$0xf]
        %v519 = vld [vmem:[%s437 + $0x140] sm:$0xf]
        %v520 = vld [vmem:[%s437 + $0x144] sm:$0xf]
        %v521 = vld [vmem:[%s437 + $0x148] sm:$0xf]
        %v522 = vld [vmem:[%s437 + $0x14c] sm:$0xf]
        %v523 = vld [vmem:[%s437 + $0x150] sm:$0xf]
        %v524 = vld [vmem:[%s437 + $0x154] sm:$0xf]
        %v525 = vld [vmem:[%s437 + $0x158] sm:$0xf]
        %v526 = vld [vmem:[%s437 + $0x15c] sm:$0xf]
        %v527 = vld [vmem:[%s437 + $0x160] sm:$0xf]
        %v528 = vld [vmem:[%s437 + $0x164] sm:$0xf]
        %v529 = vld [vmem:[%s437 + $0x168] sm:$0xf]
        %v530 = vld [vmem:[%s437 + $0x16c] sm:$0xf]
        %v531 = vld [vmem:[%s437 + $0x170] sm:$0xf]
        %v532 = vld [vmem:[%s437 + $0x174] sm:$0xf]
        %v533 = vld [vmem:[%s437 + $0x178] sm:$0xf]
        %v534 = vld [vmem:[%s437 + $0x17c] sm:$0xf]
        %v535 = vld [vmem:[%s437 + $0x180] sm:$0xf]
        %v536 = vld [vmem:[%s437 + $0x184] sm:$0xf]
        %v537 = vld [vmem:[%s437 + $0x188] sm:$0xf]
        %v538 = vld [vmem:[%s437 + $0x18c] sm:$0xf]
        %v539 = vld [vmem:[%s437 + $0x190] sm:$0xf]
        %v540 = vld [vmem:[%s437 + $0x194] sm:$0xf]
        %v541 = vld [vmem:[%s437 + $0x198] sm:$0xf]
        %v542 = vld [vmem:[%s437 + $0x19c] sm:$0xf]
        %v543 = vld [vmem:[%s437 + $0x1a0] sm:$0xf]
        %v544 = vld [vmem:[%s437 + $0x1a4] sm:$0xf]
        %v545 = vld [vmem:[%s437 + $0x1a8] sm:$0xf]
        %v546 = vld [vmem:[%s437 + $0x1ac] sm:$0xf]
        %v547 = vld [vmem:[%s437 + $0x1b0] sm:$0xf]
        %v548 = vld [vmem:[%s437 + $0x1b4] sm:$0xf]
        %v549 = vld [vmem:[%s437 + $0x1b8] sm:$0xf]
        %v550 = vld [vmem:[%s437 + $0x1bc] sm:$0xf]
        %v551 = vld [vmem:[%s437 + $0x1c0] sm:$0xf]
        %v552 = vld [vmem:[%s437 + $0x1c4] sm:$0xf]
        %v553 = vld [vmem:[%s437 + $0x1c8] sm:$0xf]
        %v554 = vld [vmem:[%s437 + $0x1cc] sm:$0xf]
        %v555 = vld [vmem:[%s437 + $0x1d0] sm:$0xf]
        %v556 = vld [vmem:[%s437 + $0x1d4] sm:$0xf]
        %v557 = vld [vmem:[%s437 + $0x1d8] sm:$0xf]
        %v558 = vld [vmem:[%s437 + $0x1dc] sm:$0xf]
        %v559 = vld [vmem:[%s437 + $0x1e0] sm:$0xf]
        %v560 = vld [vmem:[%s437 + $0x1e4] sm:$0xf]
        %v561 = vld [vmem:[%s437 + $0x1e8] sm:$0xf]
        %v562 = vld [vmem:[%s437 + $0x1ec] sm:$0xf]
        %v563 = vld [vmem:[%s437 + $0x1f0] sm:$0xf]
        %v564 = vld [vmem:[%s437 + $0x1f4] sm:$0xf]
        %v565 = vld [vmem:[%s437 + $0x1f8] sm:$0xf]
        %v566 = vld [vmem:[%s437 + $0x1fc] sm:$0xf]
        %v567 = vld [vmem:[%s1] sm:$0xf]
        %v568 = vld [vmem:[%s1 + $0x4] sm:$0xf]
        %v569 = vld [vmem:[%s1 + $0x8] sm:$0xf]
        %v570 = vld [vmem:[%s1 + $0xc] sm:$0x3]
        %v571 = vld [vmem:[%s2] sm:$0x1]
        %v573 = vlaneseq
        %v574 = vshrl.u32 %v573, 7
        %v575 = vsub.s32 0, %v574
        %v576 = vrot.slane %v571, %v575
        %v706 = vunpack.c.l.b16 %v439
        %v707 = vunpack.c.l.b16 %v440
        %v708 = vunpack.c.l.b16 %v441
        %v709 = vunpack.c.l.b16 %v442
        %v710 = vunpack.c.l.b16 %v443
        %v711 = vunpack.c.l.b16 %v444
        %v712 = vunpack.c.l.b16 %v445
        %v713 = vunpack.c.l.b16 %v446
        %v714 = vunpack.c.l.b16 %v447
        %v715 = vunpack.c.l.b16 %v448
        %v716 = vunpack.c.l.b16 %v449
        %v717 = vunpack.c.l.b16 %v450
        %v718 = vunpack.c.l.b16 %v451
        %v719 = vunpack.c.l.b16 %v452
        %v720 = vunpack.c.l.b16 %v453
        %v721 = vunpack.c.l.b16 %v454
        %v722 = vunpack.c.l.b16 %v455
        %v723 = vunpack.c.l.b16 %v456
        %v724 = vunpack.c.l.b16 %v457
        %v725 = vunpack.c.l.b16 %v458
        %v726 = vunpack.c.l.b16 %v459
        %v727 = vunpack.c.l.b16 %v460
        %v728 = vunpack.c.l.b16 %v461
        %v729 = vunpack.c.l.b16 %v462
        %v730 = vunpack.c.l.b16 %v463
        %v731 = vunpack.c.l.b16 %v464
        %v732 = vunpack.c.l.b16 %v465
        %v733 = vunpack.c.l.b16 %v466
        %v734 = vunpack.c.l.b16 %v467
        %v735 = vunpack.c.l.b16 %v468
        %v736 = vunpack.c.l.b16 %v469
        %v737 = vunpack.c.l.b16 %v470
        %v738 = vunpack.c.l.b16 %v471
        %v739 = vunpack.c.l.b16 %v472
        %v740 = vunpack.c.l.b16 %v473
        %v741 = vunpack.c.l.b16 %v474
        %v742 = vunpack.c.l.b16 %v475
        %v743 = vunpack.c.l.b16 %v476
        %v744 = vunpack.c.l.b16 %v477
        %v745 = vunpack.c.l.b16 %v478
        %v746 = vunpack.c.l.b16 %v479
        %v747 = vunpack.c.l.b16 %v480
        %v748 = vunpack.c.l.b16 %v481
        %v749 = vunpack.c.l.b16 %v482
        %v750 = vunpack.c.l.b16 %v483
        %v751 = vunpack.c.l.b16 %v484
        %v752 = vunpack.c.l.b16 %v485
        %v753 = vunpack.c.l.b16 %v486
        %v754 = vunpack.c.l.b16 %v487
        %v755 = vunpack.c.l.b16 %v488
        %v756 = vunpack.c.l.b16 %v489
        %v757 = vunpack.c.l.b16 %v490
        %v758 = vunpack.c.l.b16 %v491
        %v759 = vunpack.c.l.b16 %v492
        %v760 = vunpack.c.l.b16 %v493
        %v761 = vunpack.c.l.b16 %v494
        %v762 = vunpack.c.l.b16 %v495
        %v763 = vunpack.c.l.b16 %v496
        %v764 = vunpack.c.l.b16 %v497
        %v765 = vunpack.c.l.b16 %v498
        %v766 = vunpack.c.l.b16 %v499
        %v767 = vunpack.c.l.b16 %v500
        %v768 = vunpack.c.l.b16 %v501
        %v769 = vunpack.c.l.b16 %v502
        %v770 = vunpack.c.l.b16 %v503
        %v771 = vunpack.c.l.b16 %v504
        %v772 = vunpack.c.l.b16 %v505
        %v773 = vunpack.c.l.b16 %v506
        %v774 = vunpack.c.l.b16 %v507
        %v775 = vunpack.c.l.b16 %v508
        %v776 = vunpack.c.l.b16 %v509
        %v777 = vunpack.c.l.b16 %v510
        %v778 = vunpack.c.l.b16 %v511
        %v779 = vunpack.c.l.b16 %v512
        %v780 = vunpack.c.l.b16 %v513
        %v781 = vunpack.c.l.b16 %v514
        %v782 = vunpack.c.l.b16 %v515
        %v783 = vunpack.c.l.b16 %v516
        %v784 = vunpack.c.l.b16 %v517
        %v785 = vunpack.c.l.b16 %v518
        %v786 = vunpack.c.l.b16 %v519
        %v787 = vunpack.c.l.b16 %v520
        %v788 = vunpack.c.l.b16 %v521
        %v789 = vunpack.c.l.b16 %v522
        %v790 = vunpack.c.l.b16 %v523
        %v791 = vunpack.c.l.b16 %v524
        %v792 = vunpack.c.l.b16 %v525
        %v793 = vunpack.c.l.b16 %v526
        %v794 = vunpack.c.l.b16 %v527
        %v795 = vunpack.c.l.b16 %v528
        %v796 = vunpack.c.l.b16 %v529
        %v797 = vunpack.c.l.b16 %v530
        %v798 = vunpack.c.l.b16 %v531
        %v799 = vunpack.c.l.b16 %v532
        %v800 = vunpack.c.l.b16 %v533
        %v801 = vunpack.c.l.b16 %v534
        %v802 = vunpack.c.l.b16 %v535
        %v803 = vunpack.c.l.b16 %v536
        %v804 = vunpack.c.l.b16 %v537
        %v805 = vunpack.c.l.b16 %v538
        %v806 = vunpack.c.l.b16 %v539
        %v807 = vunpack.c.l.b16 %v540
        %v808 = vunpack.c.l.b16 %v541
        %v809 = vunpack.c.l.b16 %v542
        %v810 = vunpack.c.l.b16 %v543
        %v811 = vunpack.c.l.b16 %v544
        %v812 = vunpack.c.l.b16 %v545
        %v813 = vunpack.c.l.b16 %v546
        %v814 = vunpack.c.l.b16 %v547
        %v815 = vunpack.c.l.b16 %v548
        %v816 = vunpack.c.l.b16 %v549
        %v817 = vunpack.c.l.b16 %v550
        %v818 = vunpack.c.l.b16 %v551
        %v819 = vunpack.c.l.b16 %v552
        %v820 = vunpack.c.l.b16 %v553
        %v821 = vunpack.c.l.b16 %v554
        %v822 = vunpack.c.l.b16 %v555
        %v823 = vunpack.c.l.b16 %v556
        %v824 = vunpack.c.l.b16 %v557
        %v825 = vunpack.c.l.b16 %v558
        %v826 = vunpack.c.l.b16 %v559
        %v827 = vunpack.c.l.b16 %v560
        %v828 = vunpack.c.l.b16 %v561
        %v829 = vunpack.c.l.b16 %v562
        %v830 = vunpack.c.l.b16 %v563
        %v831 = vunpack.c.l.b16 %v564
        %v832 = vunpack.c.l.b16 %v565
        %v833 = vunpack.c.l.b16 %v566
        %v834 = vpack.c.b16 %v707, %v706
        %v835 = vpack.c.b16 %v709, %v708
        %v836 = vpack.c.b16 %v711, %v710
        %v837 = vpack.c.b16 %v713, %v712
        %v838 = vpack.c.b16 %v715, %v714
        %v839 = vpack.c.b16 %v717, %v716
        %v840 = vpack.c.b16 %v719, %v718
        %v841 = vpack.c.b16 %v721, %v720
        %v842 = vpack.c.b16 %v723, %v722
        %v843 = vpack.c.b16 %v725, %v724
        %v844 = vpack.c.b16 %v727, %v726
        %v845 = vpack.c.b16 %v729, %v728
        %v846 = vpack.c.b16 %v731, %v730
        %v847 = vpack.c.b16 %v733, %v732
        %v848 = vpack.c.b16 %v735, %v734
        %v849 = vpack.c.b16 %v737, %v736
        %v850 = vpack.c.b16 %v739, %v738
        %v851 = vpack.c.b16 %v741, %v740
        %v852 = vpack.c.b16 %v743, %v742
        %v853 = vpack.c.b16 %v745, %v744
        %v854 = vpack.c.b16 %v747, %v746
        %v855 = vpack.c.b16 %v749, %v748
        %v856 = vpack.c.b16 %v751, %v750
        %v857 = vpack.c.b16 %v753, %v752
        %v858 = vpack.c.b16 %v755, %v754
        %v859 = vpack.c.b16 %v757, %v756
        %v860 = vpack.c.b16 %v759, %v758
        %v861 = vpack.c.b16 %v761, %v760
        %v862 = vpack.c.b16 %v763, %v762
        %v863 = vpack.c.b16 %v765, %v764
        %v864 = vpack.c.b16 %v767, %v766
        %v865 = vpack.c.b16 %v769, %v768
        %v866 = vpack.c.b16 %v771, %v770
        %v867 = vpack.c.b16 %v773, %v772
        %v868 = vpack.c.b16 %v775, %v774
        %v869 = vpack.c.b16 %v777, %v776
        %v870 = vpack.c.b16 %v779, %v778
        %v871 = vpack.c.b16 %v781, %v780
        %v872 = vpack.c.b16 %v783, %v782
        %v873 = vpack.c.b16 %v785, %v784
        %v874 = vpack.c.b16 %v787, %v786
        %v875 = vpack.c.b16 %v789, %v788
        %v876 = vpack.c.b16 %v791, %v790
        %v877 = vpack.c.b16 %v793, %v792
        %v878 = vpack.c.b16 %v795, %v794
        %v879 = vpack.c.b16 %v797, %v796
        %v880 = vpack.c.b16 %v799, %v798
        %v881 = vpack.c.b16 %v801, %v800
        %v882 = vpack.c.b16 %v803, %v802
        %v883 = vpack.c.b16 %v805, %v804
        %v884 = vpack.c.b16 %v807, %v806
        %v885 = vpack.c.b16 %v809, %v808
        %v886 = vpack.c.b16 %v811, %v810
        %v887 = vpack.c.b16 %v813, %v812
        %v888 = vpack.c.b16 %v815, %v814
        %v889 = vpack.c.b16 %v817, %v816
        %v890 = vpack.c.b16 %v819, %v818
        %v891 = vpack.c.b16 %v821, %v820
        %v892 = vpack.c.b16 %v823, %v822
        %v893 = vpack.c.b16 %v825, %v824
        %v894 = vpack.c.b16 %v827, %v826
        %v895 = vpack.c.b16 %v829, %v828
        %v896 = vpack.c.b16 %v831, %v830
        %v897 = vpack.c.b16 %v833, %v832
        %v902 = vunpack.c.l.b16 %v567
        %v903 = vunpack.c.l.b16 %v568
        %v904 = vunpack.c.l.b16 %v569
        %v905 = vunpack.c.l.b16 %v570
        %v906 = vpack.c.b16 %v903, %v902
        %v907 = vpack.c.b16 %v905, %v904
        %vm909 = vcmask 220160
        %v911 = vsel %vm909, %v834, 0
        %v914 = vsel %vm909, %v835, 0
        %v917 = vsel %vm909, %v836, 0
        %v920 = vsel %vm909, %v837, 0
        %v923 = vsel %vm909, %v838, 0
        %v926 = vsel %vm909, %v839, 0
        %v929 = vsel %vm909, %v840, 0
        %v932 = vsel %vm909, %v841, 0
        %v935 = vsel %vm909, %v842, 0
        %v938 = vsel %vm909, %v843, 0
        %v941 = vsel %vm909, %v844, 0
        %v944 = vsel %vm909, %v845, 0
        %v947 = vsel %vm909, %v846, 0
        %v950 = vsel %vm909, %v847, 0
        %v953 = vsel %vm909, %v848, 0
        %v956 = vsel %vm909, %v849, 0
        %v959 = vsel %vm909, %v850, 0
        %v962 = vsel %vm909, %v851, 0
        %v965 = vsel %vm909, %v852, 0
        %v968 = vsel %vm909, %v853, 0
        %v971 = vsel %vm909, %v854, 0
        %v974 = vsel %vm909, %v855, 0
        %v977 = vsel %vm909, %v856, 0
        %v980 = vsel %vm909, %v857, 0
        %v983 = vsel %vm909, %v858, 0
        %v986 = vsel %vm909, %v859, 0
        %v989 = vsel %vm909, %v860, 0
        %v992 = vsel %vm909, %v861, 0
        %v995 = vsel %vm909, %v862, 0
        %v998 = vsel %vm909, %v863, 0
        %v1001 = vsel %vm909, %v864, 0
        %v1004 = vsel %vm909, %v865, 0
        %v1007 = vsel %vm909, %v866, 0
        %v1010 = vsel %vm909, %v867, 0
        %v1013 = vsel %vm909, %v868, 0
        %v1016 = vsel %vm909, %v869, 0
        %v1019 = vsel %vm909, %v870, 0
        %v1022 = vsel %vm909, %v871, 0
        %v1025 = vsel %vm909, %v872, 0
        %v1028 = vsel %vm909, %v873, 0
        %v1031 = vsel %vm909, %v874, 0
        %v1034 = vsel %vm909, %v875, 0
        %v1037 = vsel %vm909, %v876, 0
        %v1040 = vsel %vm909, %v877, 0
        %v1043 = vsel %vm909, %v878, 0
        %v1046 = vsel %vm909, %v879, 0
        %v1049 = vsel %vm909, %v880, 0
        %v1052 = vsel %vm909, %v881, 0
        %v1055 = vsel %vm909, %v882, 0
        %v1058 = vsel %vm909, %v883, 0
        %v1061 = vsel %vm909, %v884, 0
        %v1064 = vsel %vm909, %v885, 0
        %v1067 = vsel %vm909, %v886, 0
        %v1070 = vsel %vm909, %v887, 0
        %v1073 = vsel %vm909, %v888, 0
        %v1076 = vsel %vm909, %v889, 0
        %v1079 = vsel %vm909, %v890, 0
        %v1082 = vsel %vm909, %v891, 0
        %v1085 = vsel %vm909, %v892, 0
        %v1088 = vsel %vm909, %v893, 0
        %v1091 = vsel %vm909, %v894, 0
        %v1094 = vsel %vm909, %v895, 0
        %v1097 = vsel %vm909, %v896, 0
        %v1100 = vsel %vm909, %v897, 0
        %vm1102 = vcmask 1044480
        %vm1103 = vcmask 1045504
        %v1104 = vsel %vm1102, 4294967295, 65535
        %v1105 = vsel %vm1103, %v1104, 0
        %v1107 = vand.u32 %v907, %v1105
        %1109 = vmatprep.subr.bf16.mxu0 0
        %1110 = vmatpush1.bf16.msra.mxu0 %v906
        %1111 = vmatprep.subr.bf16.mxu0 0
        %1112 = vmatpush1.bf16.msra.mxu0 %v1107
        %1113 = vmatprep.subr.bf16.mxu0 0
        %1114 = vmatpush1.bf16.msra.mxu0 0
        %1115 = vmatprep.subr.bf16.mxu0 0
        %1116 = vmatpush1.bf16.msra.mxu0 0
        %1117 = vmatprep.subr.bf16.mxu0 0
        %1118 = vmatpush1.bf16.msra.mxu0 0
        %1119 = vmatprep.subr.bf16.mxu0 0
        %1120 = vmatpush1.bf16.msra.mxu0 0
        %1121 = vmatprep.subr.bf16.mxu0 0
        %1122 = vmatpush1.bf16.msra.mxu0 0
        %1123 = vmatprep.subr.bf16.mxu0 0
        %1124 = vmatpush1.bf16.msra.mxu0 0
        %1125 = vmatprep.subr.bf16.mxu0 0
        %1126 = vmatpush1.bf16.msra.mxu0 0
        %1127 = vmatprep.subr.bf16.mxu0 0
        %1128 = vmatpush1.bf16.msra.mxu0 0
        %1129 = vmatprep.subr.bf16.mxu0 0
        %1130 = vmatpush1.bf16.msra.mxu0 0
        %1131 = vmatprep.subr.bf16.mxu0 0
        %1132 = vmatpush1.bf16.msra.mxu0 0
        %1133 = vmatprep.subr.bf16.mxu0 0
        %1134 = vmatpush1.bf16.msra.mxu0 0
        %1135 = vmatprep.subr.bf16.mxu0 0
        %1136 = vmatpush1.bf16.msra.mxu0 0
        %1137 = vmatprep.subr.bf16.mxu0 0
        %1138 = vmatpush1.bf16.msra.mxu0 0
        %1139 = vmatprep.subr.bf16.mxu0 0
        %1140 = vmatpush1.bf16.msra.mxu0 0
        %1141 = vmatprep.mubr.bf16.mxu0 0
        %1142 = vmatmul.mubr.bf16.gmra.mrb[0].mxu0 %v911
        %v1143 = vpop.f32.mrb[0].mxu0
        %v1144 = vadd.f32 %v576, %v1143
        %v1145 = vpop.f32.mrb[0].mxu0
        %v1146 = vpop.f32.mrb[0].mxu0
        %v1147 = vadd.f32 %v576, %v1146
        %v1148 = vpop.f32.mrb[0].mxu0
        %1149 = vmatprep.mubr.bf16.mxu0 0
        %1150 = vmatmul.mubr.bf16.gmra.mrb[0].mxu0 %v914
        %v1151 = vpop.f32.mrb[0].mxu0
        %v1152 = vadd.f32 %v576, %v1151
        %v1153 = vpop.f32.mrb[0].mxu0
        %v1154 = vpop.f32.mrb[0].mxu0
        %v1155 = vadd.f32 %v576, %v1154
        %v1156 = vpop.f32.mrb[0].mxu0
        %1157 = vmatprep.mubr.bf16.mxu0 0
        %1158 = vmatmul.mubr.bf16.gmra.mrb[0].mxu0 %v917
        %v1159 = vpop.f32.mrb[0].mxu0
        %v1160 = vadd.f32 %v576, %v1159
        %v1161 = vpop.f32.mrb[0].mxu0
        %v1162 = vpop.f32.mrb[0].mxu0
        %v1163 = vadd.f32 %v576, %v1162
        %v1164 = vpop.f32.mrb[0].mxu0
        %1165 = vmatprep.mubr.bf16.mxu0 0
        %1166 = vmatmul.mubr.bf16.gmra.mrb[0].mxu0 %v920
        %v1167 = vpop.f32.mrb[0].mxu0
        %v1168 = vadd.f32 %v576, %v1167
        %v1169 = vpop.f32.mrb[0].mxu0
        %v1170 = vpop.f32.mrb[0].mxu0
        %v1171 = vadd.f32 %v576, %v1170
        %v1172 = vpop.f32.mrb[0].mxu0
        %1173 = vmatprep.mubr.bf16.mxu0 0
        %1174 = vmatmul.mubr.bf16.gmra.mrb[0].mxu0 %v923
        %v1175 = vpop.f32.mrb[0].mxu0
        %v1176 = vadd.f32 %v576, %v1175
        %v1177 = vpop.f32.mrb[0].mxu0
        %v1178 = vpop.f32.mrb[0].mxu0
        %v1179 = vadd.f32 %v576, %v1178
        %v1180 = vpop.f32.mrb[0].mxu0
        %1181 = vmatprep.mubr.bf16.mxu0 0
        %1182 = vmatmul.mubr.bf16.gmra.mrb[0].mxu0 %v926
        %v1183 = vpop.f32.mrb[0].mxu0
        %v1184 = vadd.f32 %v576, %v1183
        %v1185 = vpop.f32.mrb[0].mxu0
        %v1186 = vpop.f32.mrb[0].mxu0
        %v1187 = vadd.f32 %v576, %v1186
        %v1188 = vpop.f32.mrb[0].mxu0
        %1189 = vmatprep.mubr.bf16.mxu0 0
        %1190 = vmatmul.mubr.bf16.gmra.mrb[0].mxu0 %v929
        %v1191 = vpop.f32.mrb[0].mxu0
        %v1192 = vadd.f32 %v576, %v1191
        %v1193 = vpop.f32.mrb[0].mxu0
        %v1194 = vpop.f32.mrb[0].mxu0
        %v1195 = vadd.f32 %v576, %v1194
        %v1196 = vpop.f32.mrb[0].mxu0
        %1197 = vmatprep.mubr.bf16.mxu0 0
        %1198 = vmatmul.mubr.bf16.gmra.mrb[0].mxu0 %v932
        %v1199 = vpop.f32.mrb[0].mxu0
        %v1200 = vadd.f32 %v576, %v1199
        %v1201 = vpop.f32.mrb[0].mxu0
        %v1202 = vpop.f32.mrb[0].mxu0
        %v1203 = vadd.f32 %v576, %v1202
        %v1204 = vpop.f32.mrb[0].mxu0
        %1205 = vmatprep.mubr.bf16.mxu0 0
        %1206 = vmatmul.mubr.bf16.gmra.mrb[0].mxu0 %v935
        %v1207 = vpop.f32.mrb[0].mxu0
        %v1208 = vadd.f32 %v576, %v1207
        %v1209 = vpop.f32.mrb[0].mxu0
        %v1210 = vpop.f32.mrb[0].mxu0
        %v1211 = vadd.f32 %v576, %v1210
        %v1212 = vpop.f32.mrb[0].mxu0
        %1213 = vmatprep.mubr.bf16.mxu0 0
        %1214 = vmatmul.mubr.bf16.gmra.mrb[0].mxu0 %v938
        %v1215 = vpop.f32.mrb[0].mxu0
        %v1216 = vadd.f32 %v576, %v1215
        %v1217 = vpop.f32.mrb[0].mxu0
        %v1218 = vpop.f32.mrb[0].mxu0
        %v1219 = vadd.f32 %v576, %v1218
        %v1220 = vpop.f32.mrb[0].mxu0
        %1221 = vmatprep.mubr.bf16.mxu0 0
        %1222 = vmatmul.mubr.bf16.gmra.mrb[0].mxu0 %v941
        %v1223 = vpop.f32.mrb[0].mxu0
        %v1224 = vadd.f32 %v576, %v1223
        %v1225 = vpop.f32.mrb[0].mxu0
        %v1226 = vpop.f32.mrb[0].mxu0
        %v1227 = vadd.f32 %v576, %v1226
        %v1228 = vpop.f32.mrb[0].mxu0
        %1229 = vmatprep.mubr.bf16.mxu0 0
        %1230 = vmatmul.mubr.bf16.gmra.mrb[0].mxu0 %v944
        %v1231 = vpop.f32.mrb[0].mxu0
        %v1232 = vadd.f32 %v576, %v1231
        %v1233 = vpop.f32.mrb[0].mxu0
        %v1234 = vpop.f32.mrb[0].mxu0
        %v1235 = vadd.f32 %v576, %v1234
        %v1236 = vpop.f32.mrb[0].mxu0
        %1237 = vmatprep.mubr.bf16.mxu0 0
        %1238 = vmatmul.mubr.bf16.gmra.mrb[0].mxu0 %v947
        %v1239 = vpop.f32.mrb[0].mxu0
        %v1240 = vadd.f32 %v576, %v1239
        %v1241 = vpop.f32.mrb[0].mxu0
        %v1242 = vpop.f32.mrb[0].mxu0
        %v1243 = vadd.f32 %v576, %v1242
        %v1244 = vpop.f32.mrb[0].mxu0
        %1245 = vmatprep.mubr.bf16.mxu0 0
        %1246 = vmatmul.mubr.bf16.gmra.mrb[0].mxu0 %v950
        %v1247 = vpop.f32.mrb[0].mxu0
        %v1248 = vadd.f32 %v576, %v1247
        %v1249 = vpop.f32.mrb[0].mxu0
        %v1250 = vpop.f32.mrb[0].mxu0
        %v1251 = vadd.f32 %v576, %v1250
        %v1252 = vpop.f32.mrb[0].mxu0
        %1253 = vmatprep.mubr.bf16.mxu0 0
        %1254 = vmatmul.mubr.bf16.gmra.mrb[0].mxu0 %v953
        %v1255 = vpop.f32.mrb[0].mxu0
        %v1256 = vadd.f32 %v576, %v1255
        %v1257 = vpop.f32.mrb[0].mxu0
        %v1258 = vpop.f32.mrb[0].mxu0
        %v1259 = vadd.f32 %v576, %v1258
        %v1260 = vpop.f32.mrb[0].mxu0
        %1261 = vmatprep.mubr.bf16.mxu0 0
        %1262 = vmatmul.mubr.bf16.gmra.mrb[0].mxu0 %v956
        %v1263 = vpop.f32.mrb[0].mxu0
        %v1264 = vadd.f32 %v576, %v1263
        %v1265 = vpop.f32.mrb[0].mxu0
        %v1266 = vpop.f32.mrb[0].mxu0
        %v1267 = vadd.f32 %v576, %v1266
        %v1268 = vpop.f32.mrb[0].mxu0
        %1269 = vmatprep.mubr.bf16.mxu0 0
        %1270 = vmatmul.mubr.bf16.gmra.mrb[0].mxu0 %v959
        %v1271 = vpop.f32.mrb[0].mxu0
        %v1272 = vadd.f32 %v576, %v1271
        %v1273 = vpop.f32.mrb[0].mxu0
        %v1274 = vpop.f32.mrb[0].mxu0
        %v1275 = vadd.f32 %v576, %v1274
        %v1276 = vpop.f32.mrb[0].mxu0
        %1277 = vmatprep.mubr.bf16.mxu0 0
        %1278 = vmatmul.mubr.bf16.gmra.mrb[0].mxu0 %v962
        %v1279 = vpop.f32.mrb[0].mxu0
        %v1280 = vadd.f32 %v576, %v1279
        %v1281 = vpop.f32.mrb[0].mxu0
        %v1282 = vpop.f32.mrb[0].mxu0
        %v1283 = vadd.f32 %v576, %v1282
        %v1284 = vpop.f32.mrb[0].mxu0
        %1285 = vmatprep.mubr.bf16.mxu0 0
        %1286 = vmatmul.mubr.bf16.gmra.mrb[0].mxu0 %v965
        %v1287 = vpop.f32.mrb[0].mxu0
        %v1288 = vadd.f32 %v576, %v1287
        %v1289 = vpop.f32.mrb[0].mxu0
        %v1290 = vpop.f32.mrb[0].mxu0
        %v1291 = vadd.f32 %v576, %v1290
        %v1292 = vpop.f32.mrb[0].mxu0
        %1293 = vmatprep.mubr.bf16.mxu0 0
        %1294 = vmatmul.mubr.bf16.gmra.mrb[0].mxu0 %v968
        %v1295 = vpop.f32.mrb[0].mxu0
        %v1296 = vadd.f32 %v576, %v1295
        %v1297 = vpop.f32.mrb[0].mxu0
        %v1298 = vpop.f32.mrb[0].mxu0
        %v1299 = vadd.f32 %v576, %v1298
        %v1300 = vpop.f32.mrb[0].mxu0
        %1301 = vmatprep.mubr.bf16.mxu0 0
        %1302 = vmatmul.mubr.bf16.gmra.mrb[0].mxu0 %v971
        %v1303 = vpop.f32.mrb[0].mxu0
        %v1304 = vadd.f32 %v576, %v1303
        %v1305 = vpop.f32.mrb[0].mxu0
        %v1306 = vpop.f32.mrb[0].mxu0
        %v1307 = vadd.f32 %v576, %v1306
        %v1308 = vpop.f32.mrb[0].mxu0
        %1309 = vmatprep.mubr.bf16.mxu0 0
        %1310 = vmatmul.mubr.bf16.gmra.mrb[0].mxu0 %v974
        %v1311 = vpop.f32.mrb[0].mxu0
        %v1312 = vadd.f32 %v576, %v1311
        %v1313 = vpop.f32.mrb[0].mxu0
        %v1314 = vpop.f32.mrb[0].mxu0
        %v1315 = vadd.f32 %v576, %v1314
        %v1316 = vpop.f32.mrb[0].mxu0
        %1317 = vmatprep.mubr.bf16.mxu0 0
        %1318 = vmatmul.mubr.bf16.gmra.mrb[0].mxu0 %v977
        %v1319 = vpop.f32.mrb[0].mxu0
        %v1320 = vadd.f32 %v576, %v1319
        %v1321 = vpop.f32.mrb[0].mxu0
        %v1322 = vpop.f32.mrb[0].mxu0
        %v1323 = vadd.f32 %v576, %v1322
        %v1324 = vpop.f32.mrb[0].mxu0
        %1325 = vmatprep.mubr.bf16.mxu0 0
        %1326 = vmatmul.mubr.bf16.gmra.mrb[0].mxu0 %v980
        %v1327 = vpop.f32.mrb[0].mxu0
        %v1328 = vadd.f32 %v576, %v1327
        %v1329 = vpop.f32.mrb[0].mxu0
        %v1330 = vpop.f32.mrb[0].mxu0
        %v1331 = vadd.f32 %v576, %v1330
        %v1332 = vpop.f32.mrb[0].mxu0
        %1333 = vmatprep.mubr.bf16.mxu0 0
        %1334 = vmatmul.mubr.bf16.gmra.mrb[0].mxu0 %v983
        %v1335 = vpop.f32.mrb[0].mxu0
        %v1336 = vadd.f32 %v576, %v1335
        %v1337 = vpop.f32.mrb[0].mxu0
        %v1338 = vpop.f32.mrb[0].mxu0
        %v1339 = vadd.f32 %v576, %v1338
        %v1340 = vpop.f32.mrb[0].mxu0
        %1341 = vmatprep.mubr.bf16.mxu0 0
        %1342 = vmatmul.mubr.bf16.gmra.mrb[0].mxu0 %v986
        %v1343 = vpop.f32.mrb[0].mxu0
        %v1344 = vadd.f32 %v576, %v1343
        %v1345 = vpop.f32.mrb[0].mxu0
        %v1346 = vpop.f32.mrb[0].mxu0
        %v1347 = vadd.f32 %v576, %v1346
        %v1348 = vpop.f32.mrb[0].mxu0
        %1349 = vmatprep.mubr.bf16.mxu0 0
        %1350 = vmatmul.mubr.bf16.gmra.mrb[0].mxu0 %v989
        %v1351 = vpop.f32.mrb[0].mxu0
        %v1352 = vadd.f32 %v576, %v1351
        %v1353 = vpop.f32.mrb[0].mxu0
        %v1354 = vpop.f32.mrb[0].mxu0
        %v1355 = vadd.f32 %v576, %v1354
        %v1356 = vpop.f32.mrb[0].mxu0
        %1357 = vmatprep.mubr.bf16.mxu0 0
        %1358 = vmatmul.mubr.bf16.gmra.mrb[0].mxu0 %v992
        %v1359 = vpop.f32.mrb[0].mxu0
        %v1360 = vadd.f32 %v576, %v1359
        %v1361 = vpop.f32.mrb[0].mxu0
        %v1362 = vpop.f32.mrb[0].mxu0
        %v1363 = vadd.f32 %v576, %v1362
        %v1364 = vpop.f32.mrb[0].mxu0
        %1365 = vmatprep.mubr.bf16.mxu0 0
        %1366 = vmatmul.mubr.bf16.gmra.mrb[0].mxu0 %v995
        %v1367 = vpop.f32.mrb[0].mxu0
        %v1368 = vadd.f32 %v576, %v1367
        %v1369 = vpop.f32.mrb[0].mxu0
        %v1370 = vpop.f32.mrb[0].mxu0
        %v1371 = vadd.f32 %v576, %v1370
        %v1372 = vpop.f32.mrb[0].mxu0
        %1373 = vmatprep.mubr.bf16.mxu0 0
        %1374 = vmatmul.mubr.bf16.gmra.mrb[0].mxu0 %v998
        %v1375 = vpop.f32.mrb[0].mxu0
        %v1376 = vadd.f32 %v576, %v1375
        %v1377 = vpop.f32.mrb[0].mxu0
        %v1378 = vpop.f32.mrb[0].mxu0
        %v1379 = vadd.f32 %v576, %v1378
        %v1380 = vpop.f32.mrb[0].mxu0
        %1381 = vmatprep.mubr.bf16.mxu0 0
        %1382 = vmatmul.mubr.bf16.gmra.mrb[0].mxu0 %v1001
        %v1383 = vpop.f32.mrb[0].mxu0
        %v1384 = vadd.f32 %v576, %v1383
        %v1385 = vpop.f32.mrb[0].mxu0
        %v1386 = vpop.f32.mrb[0].mxu0
        %v1387 = vadd.f32 %v576, %v1386
        %v1388 = vpop.f32.mrb[0].mxu0
        %1389 = vmatprep.mubr.bf16.mxu0 0
        %1390 = vmatmul.mubr.bf16.gmra.mrb[0].mxu0 %v1004
        %v1391 = vpop.f32.mrb[0].mxu0
        %v1392 = vadd.f32 %v576, %v1391
        %v1393 = vpop.f32.mrb[0].mxu0
        %v1394 = vpop.f32.mrb[0].mxu0
        %v1395 = vadd.f32 %v576, %v1394
        %v1396 = vpop.f32.mrb[0].mxu0
        %1397 = vmatprep.mubr.bf16.mxu0 0
        %1398 = vmatmul.mubr.bf16.gmra.mrb[0].mxu0 %v1007
        %v1399 = vpop.f32.mrb[0].mxu0
        %v1400 = vadd.f32 %v576, %v1399
        %v1401 = vpop.f32.mrb[0].mxu0
        %v1402 = vpop.f32.mrb[0].mxu0
        %v1403 = vadd.f32 %v576, %v1402
        %v1404 = vpop.f32.mrb[0].mxu0
        %1405 = vmatprep.mubr.bf16.mxu0 0
        %1406 = vmatmul.mubr.bf16.gmra.mrb[0].mxu0 %v1010
        %v1407 = vpop.f32.mrb[0].mxu0
        %v1408 = vadd.f32 %v576, %v1407
        %v1409 = vpop.f32.mrb[0].mxu0
        %v1410 = vpop.f32.mrb[0].mxu0
        %v1411 = vadd.f32 %v576, %v1410
        %v1412 = vpop.f32.mrb[0].mxu0
        %1413 = vmatprep.mubr.bf16.mxu0 0
        %1414 = vmatmul.mubr.bf16.gmra.mrb[0].mxu0 %v1013
        %v1415 = vpop.f32.mrb[0].mxu0
        %v1416 = vadd.f32 %v576, %v1415
        %v1417 = vpop.f32.mrb[0].mxu0
        %v1418 = vpop.f32.mrb[0].mxu0
        %v1419 = vadd.f32 %v576, %v1418
        %v1420 = vpop.f32.mrb[0].mxu0
        %1421 = vmatprep.mubr.bf16.mxu0 0
        %1422 = vmatmul.mubr.bf16.gmra.mrb[0].mxu0 %v1016
        %v1423 = vpop.f32.mrb[0].mxu0
        %v1424 = vadd.f32 %v576, %v1423
        %v1425 = vpop.f32.mrb[0].mxu0
        %v1426 = vpop.f32.mrb[0].mxu0
        %v1427 = vadd.f32 %v576, %v1426
        %v1428 = vpop.f32.mrb[0].mxu0
        %1429 = vmatprep.mubr.bf16.mxu0 0
        %1430 = vmatmul.mubr.bf16.gmra.mrb[0].mxu0 %v1019
        %v1431 = vpop.f32.mrb[0].mxu0
        %v1432 = vadd.f32 %v576, %v1431
        %v1433 = vpop.f32.mrb[0].mxu0
        %v1434 = vpop.f32.mrb[0].mxu0
        %v1435 = vadd.f32 %v576, %v1434
        %v1436 = vpop.f32.mrb[0].mxu0
        %1437 = vmatprep.mubr.bf16.mxu0 0
        %1438 = vmatmul.mubr.bf16.gmra.mrb[0].mxu0 %v1022
        %v1439 = vpop.f32.mrb[0].mxu0
        %v1440 = vadd.f32 %v576, %v1439
        %v1441 = vpop.f32.mrb[0].mxu0
        %v1442 = vpop.f32.mrb[0].mxu0
        %v1443 = vadd.f32 %v576, %v1442
        %v1444 = vpop.f32.mrb[0].mxu0
        %1445 = vmatprep.mubr.bf16.mxu0 0
        %1446 = vmatmul.mubr.bf16.gmra.mrb[0].mxu0 %v1025
        %v1447 = vpop.f32.mrb[0].mxu0
        %v1448 = vadd.f32 %v576, %v1447
        %v1449 = vpop.f32.mrb[0].mxu0
        %v1450 = vpop.f32.mrb[0].mxu0
        %v1451 = vadd.f32 %v576, %v1450
        %v1452 = vpop.f32.mrb[0].mxu0
        %1453 = vmatprep.mubr.bf16.mxu0 0
        %1454 = vmatmul.mubr.bf16.gmra.mrb[0].mxu0 %v1028
        %v1455 = vpop.f32.mrb[0].mxu0
        %v1456 = vadd.f32 %v576, %v1455
        %v1457 = vpop.f32.mrb[0].mxu0
        %v1458 = vpop.f32.mrb[0].mxu0
        %v1459 = vadd.f32 %v576, %v1458
        %v1460 = vpop.f32.mrb[0].mxu0
        %1461 = vmatprep.mubr.bf16.mxu0 0
        %1462 = vmatmul.mubr.bf16.gmra.mrb[0].mxu0 %v1031
        %v1463 = vpop.f32.mrb[0].mxu0
        %v1464 = vadd.f32 %v576, %v1463
        %v1465 = vpop.f32.mrb[0].mxu0
        %v1466 = vpop.f32.mrb[0].mxu0
        %v1467 = vadd.f32 %v576, %v1466
        %v1468 = vpop.f32.mrb[0].mxu0
        %1469 = vmatprep.mubr.bf16.mxu0 0
        %1470 = vmatmul.mubr.bf16.gmra.mrb[0].mxu0 %v1034
        %v1471 = vpop.f32.mrb[0].mxu0
        %v1472 = vadd.f32 %v576, %v1471
        %v1473 = vpop.f32.mrb[0].mxu0
        %v1474 = vpop.f32.mrb[0].mxu0
        %v1475 = vadd.f32 %v576, %v1474
        %v1476 = vpop.f32.mrb[0].mxu0
        %1477 = vmatprep.mubr.bf16.mxu0 0
        %1478 = vmatmul.mubr.bf16.gmra.mrb[0].mxu0 %v1037
        %v1479 = vpop.f32.mrb[0].mxu0
        %v1480 = vadd.f32 %v576, %v1479
        %v1481 = vpop.f32.mrb[0].mxu0
        %v1482 = vpop.f32.mrb[0].mxu0
        %v1483 = vadd.f32 %v576, %v1482
        %v1484 = vpop.f32.mrb[0].mxu0
        %1485 = vmatprep.mubr.bf16.mxu0 0
        %1486 = vmatmul.mubr.bf16.gmra.mrb[0].mxu0 %v1040
        %v1487 = vpop.f32.mrb[0].mxu0
        %v1488 = vadd.f32 %v576, %v1487
        %v1489 = vpop.f32.mrb[0].mxu0
        %v1490 = vpop.f32.mrb[0].mxu0
        %v1491 = vadd.f32 %v576, %v1490
        %v1492 = vpop.f32.mrb[0].mxu0
        %1493 = vmatprep.mubr.bf16.mxu0 0
        %1494 = vmatmul.mubr.bf16.gmra.mrb[0].mxu0 %v1043
        %v1495 = vpop.f32.mrb[0].mxu0
        %v1496 = vadd.f32 %v576, %v1495
        %v1497 = vpop.f32.mrb[0].mxu0
        %v1498 = vpop.f32.mrb[0].mxu0
        %v1499 = vadd.f32 %v576, %v1498
        %v1500 = vpop.f32.mrb[0].mxu0
        %1501 = vmatprep.mubr.bf16.mxu0 0
        %1502 = vmatmul.mubr.bf16.gmra.mrb[0].mxu0 %v1046
        %v1503 = vpop.f32.mrb[0].mxu0
        %v1504 = vadd.f32 %v576, %v1503
        %v1505 = vpop.f32.mrb[0].mxu0
        %v1506 = vpop.f32.mrb[0].mxu0
        %v1507 = vadd.f32 %v576, %v1506
        %v1508 = vpop.f32.mrb[0].mxu0
        %1509 = vmatprep.mubr.bf16.mxu0 0
        %1510 = vmatmul.mubr.bf16.gmra.mrb[0].mxu0 %v1049
        %v1511 = vpop.f32.mrb[0].mxu0
        %v1512 = vadd.f32 %v576, %v1511
        %v1513 = vpop.f32.mrb[0].mxu0
        %v1514 = vpop.f32.mrb[0].mxu0
        %v1515 = vadd.f32 %v576, %v1514
        %v1516 = vpop.f32.mrb[0].mxu0
        %1517 = vmatprep.mubr.bf16.mxu0 0
        %1518 = vmatmul.mubr.bf16.gmra.mrb[0].mxu0 %v1052
        %v1519 = vpop.f32.mrb[0].mxu0
        %v1520 = vadd.f32 %v576, %v1519
        %v1521 = vpop.f32.mrb[0].mxu0
        %v1522 = vpop.f32.mrb[0].mxu0
        %v1523 = vadd.f32 %v576, %v1522
        %v1524 = vpop.f32.mrb[0].mxu0
        %1525 = vmatprep.mubr.bf16.mxu0 0
        %1526 = vmatmul.mubr.bf16.gmra.mrb[0].mxu0 %v1055
        %v1527 = vpop.f32.mrb[0].mxu0
        %v1528 = vadd.f32 %v576, %v1527
        %v1529 = vpop.f32.mrb[0].mxu0
        %v1530 = vpop.f32.mrb[0].mxu0
        %v1531 = vadd.f32 %v576, %v1530
        %v1532 = vpop.f32.mrb[0].mxu0
        %1533 = vmatprep.mubr.bf16.mxu0 0
        %1534 = vmatmul.mubr.bf16.gmra.mrb[0].mxu0 %v1058
        %v1535 = vpop.f32.mrb[0].mxu0
        %v1536 = vadd.f32 %v576, %v1535
        %v1537 = vpop.f32.mrb[0].mxu0
        %v1538 = vpop.f32.mrb[0].mxu0
        %v1539 = vadd.f32 %v576, %v1538
        %v1540 = vpop.f32.mrb[0].mxu0
        %1541 = vmatprep.mubr.bf16.mxu0 0
        %1542 = vmatmul.mubr.bf16.gmra.mrb[0].mxu0 %v1061
        %v1543 = vpop.f32.mrb[0].mxu0
        %v1544 = vadd.f32 %v576, %v1543
        %v1545 = vpop.f32.mrb[0].mxu0
        %v1546 = vpop.f32.mrb[0].mxu0
        %v1547 = vadd.f32 %v576, %v1546
        %v1548 = vpop.f32.mrb[0].mxu0
        %1549 = vmatprep.mubr.bf16.mxu0 0
        %1550 = vmatmul.mubr.bf16.gmra.mrb[0].mxu0 %v1064
        %v1551 = vpop.f32.mrb[0].mxu0
        %v1552 = vadd.f32 %v576, %v1551
        %v1553 = vpop.f32.mrb[0].mxu0
        %v1554 = vpop.f32.mrb[0].mxu0
        %v1555 = vadd.f32 %v576, %v1554
        %v1556 = vpop.f32.mrb[0].mxu0
        %1557 = vmatprep.mubr.bf16.mxu0 0
        %1558 = vmatmul.mubr.bf16.gmra.mrb[0].mxu0 %v1067
        %v1559 = vpop.f32.mrb[0].mxu0
        %v1560 = vadd.f32 %v576, %v1559
        %v1561 = vpop.f32.mrb[0].mxu0
        %v1562 = vpop.f32.mrb[0].mxu0
        %v1563 = vadd.f32 %v576, %v1562
        %v1564 = vpop.f32.mrb[0].mxu0
        %1565 = vmatprep.mubr.bf16.mxu0 0
        %1566 = vmatmul.mubr.bf16.gmra.mrb[0].mxu0 %v1070
        %v1567 = vpop.f32.mrb[0].mxu0
        %v1568 = vadd.f32 %v576, %v1567
        %v1569 = vpop.f32.mrb[0].mxu0
        %v1570 = vpop.f32.mrb[0].mxu0
        %v1571 = vadd.f32 %v576, %v1570
        %v1572 = vpop.f32.mrb[0].mxu0
        %1573 = vmatprep.mubr.bf16.mxu0 0
        %1574 = vmatmul.mubr.bf16.gmra.mrb[0].mxu0 %v1073
        %v1575 = vpop.f32.mrb[0].mxu0
        %v1576 = vadd.f32 %v576, %v1575
        %v1577 = vpop.f32.mrb[0].mxu0
        %v1578 = vpop.f32.mrb[0].mxu0
        %v1579 = vadd.f32 %v576, %v1578
        %v1580 = vpop.f32.mrb[0].mxu0
        %1581 = vmatprep.mubr.bf16.mxu0 0
        %1582 = vmatmul.mubr.bf16.gmra.mrb[0].mxu0 %v1076
        %v1583 = vpop.f32.mrb[0].mxu0
        %v1584 = vadd.f32 %v576, %v1583
        %v1585 = vpop.f32.mrb[0].mxu0
        %v1586 = vpop.f32.mrb[0].mxu0
        %v1587 = vadd.f32 %v576, %v1586
        %v1588 = vpop.f32.mrb[0].mxu0
        %1589 = vmatprep.mubr.bf16.mxu0 0
        %1590 = vmatmul.mubr.bf16.gmra.mrb[0].mxu0 %v1079
        %v1591 = vpop.f32.mrb[0].mxu0
        %v1592 = vadd.f32 %v576, %v1591
        %v1593 = vpop.f32.mrb[0].mxu0
        %v1594 = vpop.f32.mrb[0].mxu0
        %v1595 = vadd.f32 %v576, %v1594
        %v1596 = vpop.f32.mrb[0].mxu0
        %1597 = vmatprep.mubr.bf16.mxu0 0
        %1598 = vmatmul.mubr.bf16.gmra.mrb[0].mxu0 %v1082
        %v1599 = vpop.f32.mrb[0].mxu0
        %v1600 = vadd.f32 %v576, %v1599
        %v1601 = vpop.f32.mrb[0].mxu0
        %v1602 = vpop.f32.mrb[0].mxu0
        %v1603 = vadd.f32 %v576, %v1602
        %v1604 = vpop.f32.mrb[0].mxu0
        %1605 = vmatprep.mubr.bf16.mxu0 0
        %1606 = vmatmul.mubr.bf16.gmra.mrb[0].mxu0 %v1085
        %v1607 = vpop.f32.mrb[0].mxu0
        %v1608 = vadd.f32 %v576, %v1607
        %v1609 = vpop.f32.mrb[0].mxu0
        %v1610 = vpop.f32.mrb[0].mxu0
        %v1611 = vadd.f32 %v576, %v1610
        %v1612 = vpop.f32.mrb[0].mxu0
        %1613 = vmatprep.mubr.bf16.mxu0 0
        %1614 = vmatmul.mubr.bf16.gmra.mrb[0].mxu0 %v1088
        %v1615 = vpop.f32.mrb[0].mxu0
        %v1616 = vadd.f32 %v576, %v1615
        %v1617 = vpop.f32.mrb[0].mxu0
        %v1618 = vpop.f32.mrb[0].mxu0
        %v1619 = vadd.f32 %v576, %v1618
        %v1620 = vpop.f32.mrb[0].mxu0
        %1621 = vmatprep.mubr.bf16.mxu0 0
        %1622 = vmatmul.mubr.bf16.gmra.mrb[0].mxu0 %v1091
        %v1623 = vpop.f32.mrb[0].mxu0
        %v1624 = vadd.f32 %v576, %v1623
        %v1625 = vpop.f32.mrb[0].mxu0
        %v1626 = vpop.f32.mrb[0].mxu0
        %v1627 = vadd.f32 %v576, %v1626
        %v1628 = vpop.f32.mrb[0].mxu0
        %1629 = vmatprep.mubr.bf16.mxu0 0
        %1630 = vmatmul.mubr.bf16.gmra.mrb[0].mxu0 %v1094
        %v1631 = vpop.f32.mrb[0].mxu0
        %v1632 = vadd.f32 %v576, %v1631
        %v1633 = vpop.f32.mrb[0].mxu0
        %v1634 = vpop.f32.mrb[0].mxu0
        %v1635 = vadd.f32 %v576, %v1634
        %v1636 = vpop.f32.mrb[0].mxu0
        %1637 = vmatprep.mubr.bf16.mxu0 0
        %1638 = vmatmul.mubr.bf16.gmra.mrb[0].mxu0 %v1097
        %v1639 = vpop.f32.mrb[0].mxu0
        %v1640 = vadd.f32 %v576, %v1639
        %v1641 = vpop.f32.mrb[0].mxu0
        %v1642 = vpop.f32.mrb[0].mxu0
        %v1643 = vadd.f32 %v576, %v1642
        %v1644 = vpop.f32.mrb[0].mxu0
        %1645 = vmatprep.mubr.bf16.mxu0 0
        %1646 = vmatmul.mubr.bf16.gmra.mrb[0].mxu0 %v1100
        %v1647 = vpop.f32.mrb[0].mxu0
        %v1648 = vadd.f32 %v576, %v1647
        %v1649 = vpop.f32.mrb[0].mxu0
        %v1650 = vpop.f32.mrb[0].mxu0
        %v1651 = vadd.f32 %v576, %v1650
        %v1652 = vpop.f32.mrb[0].mxu0
        %1653 = vdwg.mxu0
        %v1654 = vmax.f32 %v1144, 0.0
        %v1655 = vmax.f32 %v1147, 0.0
        %v1656 = vmax.f32 %v1152, 0.0
        %v1657 = vmax.f32 %v1155, 0.0
        %v1658 = vmax.f32 %v1160, 0.0
        %v1659 = vmax.f32 %v1163, 0.0
        %v1660 = vmax.f32 %v1168, 0.0
        %v1661 = vmax.f32 %v1171, 0.0
        %v1662 = vmax.f32 %v1176, 0.0
        %v1663 = vmax.f32 %v1179, 0.0
        %v1664 = vmax.f32 %v1184, 0.0
        %v1665 = vmax.f32 %v1187, 0.0
        %v1666 = vmax.f32 %v1192, 0.0
        %v1667 = vmax.f32 %v1195, 0.0
        %v1668 = vmax.f32 %v1200, 0.0
        %v1669 = vmax.f32 %v1203, 0.0
        %v1670 = vmax.f32 %v1208, 0.0
        %v1671 = vmax.f32 %v1211, 0.0
        %v1672 = vmax.f32 %v1216, 0.0
        %v1673 = vmax.f32 %v1219, 0.0
        %v1674 = vmax.f32 %v1224, 0.0
        %v1675 = vmax.f32 %v1227, 0.0
        %v1676 = vmax.f32 %v1232, 0.0
        %v1677 = vmax.f32 %v1235, 0.0
        %v1678 = vmax.f32 %v1240, 0.0
        %v1679 = vmax.f32 %v1243, 0.0
        %v1680 = vmax.f32 %v1248, 0.0
        %v1681 = vmax.f32 %v1251, 0.0
        %v1682 = vmax.f32 %v1256, 0.0
        %v1683 = vmax.f32 %v1259, 0.0
        %v1684 = vmax.f32 %v1264, 0.0
        %v1685 = vmax.f32 %v1267, 0.0
        %v1686 = vmax.f32 %v1272, 0.0
        %v1687 = vmax.f32 %v1275, 0.0
        %v1688 = vmax.f32 %v1280, 0.0
        %v1689 = vmax.f32 %v1283, 0.0
        %v1690 = vmax.f32 %v1288, 0.0
        %v1691 = vmax.f32 %v1291, 0.0
        %v1692 = vmax.f32 %v1296, 0.0
        %v1693 = vmax.f32 %v1299, 0.0
        %v1694 = vmax.f32 %v1304, 0.0
        %v1695 = vmax.f32 %v1307, 0.0
        %v1696 = vmax.f32 %v1312, 0.0
        %v1697 = vmax.f32 %v1315, 0.0
        %v1698 = vmax.f32 %v1320, 0.0
        %v1699 = vmax.f32 %v1323, 0.0
        %v1700 = vmax.f32 %v1328, 0.0
        %v1701 = vmax.f32 %v1331, 0.0
        %v1702 = vmax.f32 %v1336, 0.0
        %v1703 = vmax.f32 %v1339, 0.0
        %v1704 = vmax.f32 %v1344, 0.0
        %v1705 = vmax.f32 %v1347, 0.0
        %v1706 = vmax.f32 %v1352, 0.0
        %v1707 = vmax.f32 %v1355, 0.0
        %v1708 = vmax.f32 %v1360, 0.0
        %v1709 = vmax.f32 %v1363, 0.0
        %v1710 = vmax.f32 %v1368, 0.0
        %v1711 = vmax.f32 %v1371, 0.0
        %v1712 = vmax.f32 %v1376, 0.0
        %v1713 = vmax.f32 %v1379, 0.0
        %v1714 = vmax.f32 %v1384, 0.0
        %v1715 = vmax.f32 %v1387, 0.0
        %v1716 = vmax.f32 %v1392, 0.0
        %v1717 = vmax.f32 %v1395, 0.0
        %v1718 = vmax.f32 %v1400, 0.0
        %v1719 = vmax.f32 %v1403, 0.0
        %v1720 = vmax.f32 %v1408, 0.0
        %v1721 = vmax.f32 %v1411, 0.0
        %v1722 = vmax.f32 %v1416, 0.0
        %v1723 = vmax.f32 %v1419, 0.0
        %v1724 = vmax.f32 %v1424, 0.0
        %v1725 = vmax.f32 %v1427, 0.0
        %v1726 = vmax.f32 %v1432, 0.0
        %v1727 = vmax.f32 %v1435, 0.0
        %v1728 = vmax.f32 %v1440, 0.0
        %v1729 = vmax.f32 %v1443, 0.0
        %v1730 = vmax.f32 %v1448, 0.0
        %v1731 = vmax.f32 %v1451, 0.0
        %v1732 = vmax.f32 %v1456, 0.0
        %v1733 = vmax.f32 %v1459, 0.0
        %v1734 = vmax.f32 %v1464, 0.0
        %v1735 = vmax.f32 %v1467, 0.0
        %v1736 = vmax.f32 %v1472, 0.0
        %v1737 = vmax.f32 %v1475, 0.0
        %v1738 = vmax.f32 %v1480, 0.0
        %v1739 = vmax.f32 %v1483, 0.0
        %v1740 = vmax.f32 %v1488, 0.0
        %v1741 = vmax.f32 %v1491, 0.0
        %v1742 = vmax.f32 %v1496, 0.0
        %v1743 = vmax.f32 %v1499, 0.0
        %v1744 = vmax.f32 %v1504, 0.0
        %v1745 = vmax.f32 %v1507, 0.0
        %v1746 = vmax.f32 %v1512, 0.0
        %v1747 = vmax.f32 %v1515, 0.0
        %v1748 = vmax.f32 %v1520, 0.0
        %v1749 = vmax.f32 %v1523, 0.0
        %v1750 = vmax.f32 %v1528, 0.0
        %v1751 = vmax.f32 %v1531, 0.0
        %v1752 = vmax.f32 %v1536, 0.0
        %v1753 = vmax.f32 %v1539, 0.0
        %v1754 = vmax.f32 %v1544, 0.0
        %v1755 = vmax.f32 %v1547, 0.0
        %v1756 = vmax.f32 %v1552, 0.0
        %v1757 = vmax.f32 %v1555, 0.0
        %v1758 = vmax.f32 %v1560, 0.0
        %v1759 = vmax.f32 %v1563, 0.0
        %v1760 = vmax.f32 %v1568, 0.0
        %v1761 = vmax.f32 %v1571, 0.0
        %v1762 = vmax.f32 %v1576, 0.0
        %v1763 = vmax.f32 %v1579, 0.0
        %v1764 = vmax.f32 %v1584, 0.0
        %v1765 = vmax.f32 %v1587, 0.0
        %v1766 = vmax.f32 %v1592, 0.0
        %v1767 = vmax.f32 %v1595, 0.0
        %v1768 = vmax.f32 %v1600, 0.0
        %v1769 = vmax.f32 %v1603, 0.0
        %v1770 = vmax.f32 %v1608, 0.0
        %v1771 = vmax.f32 %v1611, 0.0
        %v1772 = vmax.f32 %v1616, 0.0
        %v1773 = vmax.f32 %v1619, 0.0
        %v1774 = vmax.f32 %v1624, 0.0
        %v1775 = vmax.f32 %v1627, 0.0
        %v1776 = vmax.f32 %v1632, 0.0
        %v1777 = vmax.f32 %v1635, 0.0
        %v1778 = vmax.f32 %v1640, 0.0
        %v1779 = vmax.f32 %v1643, 0.0
        %v1780 = vmax.f32 %v1648, 0.0
        %v1781 = vmax.f32 %v1651, 0.0
        %vm1782 = vcmask 130048
        %1783 = vst.msk [vmem:[#allocation4] sm:$0xff] %vm1782, %v1654
        %1784 = vst.msk [vmem:[#allocation4 + $0x8] sm:$0xff] %vm1782, %v1655
        %1785 = vst.msk [vmem:[#allocation4 + $0x10] sm:$0xff] %vm1782, %v1656
        %1786 = vst.msk [vmem:[#allocation4 + $0x18] sm:$0xff] %vm1782, %v1657
        %1787 = vst.msk [vmem:[#allocation4 + $0x20] sm:$0xff] %vm1782, %v1658
        %1788 = vst.msk [vmem:[#allocation4 + $0x28] sm:$0xff] %vm1782, %v1659
        %1789 = vst.msk [vmem:[#allocation4 + $0x30] sm:$0xff] %vm1782, %v1660
        %1790 = vst.msk [vmem:[#allocation4 + $0x38] sm:$0xff] %vm1782, %v1661
        %1791 = vst.msk [vmem:[#allocation4 + $0x40] sm:$0xff] %vm1782, %v1662
        %1792 = vst.msk [vmem:[#allocation4 + $0x48] sm:$0xff] %vm1782, %v1663
        %1793 = vst.msk [vmem:[#allocation4 + $0x50] sm:$0xff] %vm1782, %v1664
        %1794 = vst.msk [vmem:[#allocation4 + $0x58] sm:$0xff] %vm1782, %v1665
        %1795 = vst.msk [vmem:[#allocation4 + $0x60] sm:$0xff] %vm1782, %v1666
        %1796 = vst.msk [vmem:[#allocation4 + $0x68] sm:$0xff] %vm1782, %v1667
        %1797 = vst.msk [vmem:[#allocation4 + $0x70] sm:$0xff] %vm1782, %v1668
        %1798 = vst.msk [vmem:[#allocation4 + $0x78] sm:$0xff] %vm1782, %v1669
        %1799 = vst.msk [vmem:[#allocation4 + $0x80] sm:$0xff] %vm1782, %v1670
        %1800 = vst.msk [vmem:[#allocation4 + $0x88] sm:$0xff] %vm1782, %v1671
        %1801 = vst.msk [vmem:[#allocation4 + $0x90] sm:$0xff] %vm1782, %v1672
        %1802 = vst.msk [vmem:[#allocation4 + $0x98] sm:$0xff] %vm1782, %v1673
        %1803 = vst.msk [vmem:[#allocation4 + $0xa0] sm:$0xff] %vm1782, %v1674
        %1804 = vst.msk [vmem:[#allocation4 + $0xa8] sm:$0xff] %vm1782, %v1675
        %1805 = vst.msk [vmem:[#allocation4 + $0xb0] sm:$0xff] %vm1782, %v1676
        %1806 = vst.msk [vmem:[#allocation4 + $0xb8] sm:$0xff] %vm1782, %v1677
        %1807 = vst.msk [vmem:[#allocation4 + $0xc0] sm:$0xff] %vm1782, %v1678
        %1808 = vst.msk [vmem:[#allocation4 + $0xc8] sm:$0xff] %vm1782, %v1679
        %1809 = vst.msk [vmem:[#allocation4 + $0xd0] sm:$0xff] %vm1782, %v1680
        %1810 = vst.msk [vmem:[#allocation4 + $0xd8] sm:$0xff] %vm1782, %v1681
        %1811 = vst.msk [vmem:[#allocation4 + $0xe0] sm:$0xff] %vm1782, %v1682
        %1812 = vst.msk [vmem:[#allocation4 + $0xe8] sm:$0xff] %vm1782, %v1683
        %1813 = vst.msk [vmem:[#allocation4 + $0xf0] sm:$0xff] %vm1782, %v1684
        %1814 = vst.msk [vmem:[#allocation4 + $0xf8] sm:$0xff] %vm1782, %v1685
        %1815 = vst.msk [vmem:[#allocation4 + $0x100] sm:$0xff] %vm1782, %v1686
        %1816 = vst.msk [vmem:[#allocation4 + $0x108] sm:$0xff] %vm1782, %v1687
        %1817 = vst.msk [vmem:[#allocation4 + $0x110] sm:$0xff] %vm1782, %v1688
        %1818 = vst.msk [vmem:[#allocation4 + $0x118] sm:$0xff] %vm1782, %v1689
        %1819 = vst.msk [vmem:[#allocation4 + $0x120] sm:$0xff] %vm1782, %v1690
        %1820 = vst.msk [vmem:[#allocation4 + $0x128] sm:$0xff] %vm1782, %v1691
        %1821 = vst.msk [vmem:[#allocation4 + $0x130] sm:$0xff] %vm1782, %v1692
        %1822 = vst.msk [vmem:[#allocation4 + $0x138] sm:$0xff] %vm1782, %v1693
        %1823 = vst.msk [vmem:[#allocation4 + $0x140] sm:$0xff] %vm1782, %v1694
        %1824 = vst.msk [vmem:[#allocation4 + $0x148] sm:$0xff] %vm1782, %v1695
        %1825 = vst.msk [vmem:[#allocation4 + $0x150] sm:$0xff] %vm1782, %v1696
        %1826 = vst.msk [vmem:[#allocation4 + $0x158] sm:$0xff] %vm1782, %v1697
        %1827 = vst.msk [vmem:[#allocation4 + $0x160] sm:$0xff] %vm1782, %v1698
        %1828 = vst.msk [vmem:[#allocation4 + $0x168] sm:$0xff] %vm1782, %v1699
        %1829 = vst.msk [vmem:[#allocation4 + $0x170] sm:$0xff] %vm1782, %v1700
        %1830 = vst.msk [vmem:[#allocation4 + $0x178] sm:$0xff] %vm1782, %v1701
        %1831 = vst.msk [vmem:[#allocation4 + $0x180] sm:$0xff] %vm1782, %v1702
        %1832 = vst.msk [vmem:[#allocation4 + $0x188] sm:$0xff] %vm1782, %v1703
        %1833 = vst.msk [vmem:[#allocation4 + $0x190] sm:$0xff] %vm1782, %v1704
        %1834 = vst.msk [vmem:[#allocation4 + $0x198] sm:$0xff] %vm1782, %v1705
        %1835 = vst.msk [vmem:[#allocation4 + $0x1a0] sm:$0xff] %vm1782, %v1706
        %1836 = vst.msk [vmem:[#allocation4 + $0x1a8] sm:$0xff] %vm1782, %v1707
        %1837 = vst.msk [vmem:[#allocation4 + $0x1b0] sm:$0xff] %vm1782, %v1708
        %1838 = vst.msk [vmem:[#allocation4 + $0x1b8] sm:$0xff] %vm1782, %v1709
        %1839 = vst.msk [vmem:[#allocation4 + $0x1c0] sm:$0xff] %vm1782, %v1710
        %1840 = vst.msk [vmem:[#allocation4 + $0x1c8] sm:$0xff] %vm1782, %v1711
        %1841 = vst.msk [vmem:[#allocation4 + $0x1d0] sm:$0xff] %vm1782, %v1712
        %1842 = vst.msk [vmem:[#allocation4 + $0x1d8] sm:$0xff] %vm1782, %v1713
        %1843 = vst.msk [vmem:[#allocation4 + $0x1e0] sm:$0xff] %vm1782, %v1714
        %1844 = vst.msk [vmem:[#allocation4 + $0x1e8] sm:$0xff] %vm1782, %v1715
        %1845 = vst.msk [vmem:[#allocation4 + $0x1f0] sm:$0xff] %vm1782, %v1716
        %1846 = vst.msk [vmem:[#allocation4 + $0x1f8] sm:$0xff] %vm1782, %v1717
        %1847 = vst.msk [vmem:[#allocation4 + $0x200] sm:$0xff] %vm1782, %v1718
        %1848 = vst.msk [vmem:[#allocation4 + $0x208] sm:$0xff] %vm1782, %v1719
        %1849 = vst.msk [vmem:[#allocation4 + $0x210] sm:$0xff] %vm1782, %v1720
        %1850 = vst.msk [vmem:[#allocation4 + $0x218] sm:$0xff] %vm1782, %v1721
        %1851 = vst.msk [vmem:[#allocation4 + $0x220] sm:$0xff] %vm1782, %v1722
        %1852 = vst.msk [vmem:[#allocation4 + $0x228] sm:$0xff] %vm1782, %v1723
        %1853 = vst.msk [vmem:[#allocation4 + $0x230] sm:$0xff] %vm1782, %v1724
        %1854 = vst.msk [vmem:[#allocation4 + $0x238] sm:$0xff] %vm1782, %v1725
        %1855 = vst.msk [vmem:[#allocation4 + $0x240] sm:$0xff] %vm1782, %v1726
        %1856 = vst.msk [vmem:[#allocation4 + $0x248] sm:$0xff] %vm1782, %v1727
        %1857 = vst.msk [vmem:[#allocation4 + $0x250] sm:$0xff] %vm1782, %v1728
        %1858 = vst.msk [vmem:[#allocation4 + $0x258] sm:$0xff] %vm1782, %v1729
        %1859 = vst.msk [vmem:[#allocation4 + $0x260] sm:$0xff] %vm1782, %v1730
        %1860 = vst.msk [vmem:[#allocation4 + $0x268] sm:$0xff] %vm1782, %v1731
        %1861 = vst.msk [vmem:[#allocation4 + $0x270] sm:$0xff] %vm1782, %v1732
        %1862 = vst.msk [vmem:[#allocation4 + $0x278] sm:$0xff] %vm1782, %v1733
        %1863 = vst.msk [vmem:[#allocation4 + $0x280] sm:$0xff] %vm1782, %v1734
        %1864 = vst.msk [vmem:[#allocation4 + $0x288] sm:$0xff] %vm1782, %v1735
        %1865 = vst.msk [vmem:[#allocation4 + $0x290] sm:$0xff] %vm1782, %v1736
        %1866 = vst.msk [vmem:[#allocation4 + $0x298] sm:$0xff] %vm1782, %v1737
        %1867 = vst.msk [vmem:[#allocation4 + $0x2a0] sm:$0xff] %vm1782, %v1738
        %1868 = vst.msk [vmem:[#allocation4 + $0x2a8] sm:$0xff] %vm1782, %v1739
        %1869 = vst.msk [vmem:[#allocation4 + $0x2b0] sm:$0xff] %vm1782, %v1740
        %1870 = vst.msk [vmem:[#allocation4 + $0x2b8] sm:$0xff] %vm1782, %v1741
        %1871 = vst.msk [vmem:[#allocation4 + $0x2c0] sm:$0xff] %vm1782, %v1742
        %1872 = vst.msk [vmem:[#allocation4 + $0x2c8] sm:$0xff] %vm1782, %v1743
        %1873 = vst.msk [vmem:[#allocation4 + $0x2d0] sm:$0xff] %vm1782, %v1744
        %1874 = vst.msk [vmem:[#allocation4 + $0x2d8] sm:$0xff] %vm1782, %v1745
        %1875 = vst.msk [vmem:[#allocation4 + $0x2e0] sm:$0xff] %vm1782, %v1746
        %1876 = vst.msk [vmem:[#allocation4 + $0x2e8] sm:$0xff] %vm1782, %v1747
        %1877 = vst.msk [vmem:[#allocation4 + $0x2f0] sm:$0xff] %vm1782, %v1748
        %1878 = vst.msk [vmem:[#allocation4 + $0x2f8] sm:$0xff] %vm1782, %v1749
        %1879 = vst.msk [vmem:[#allocation4 + $0x300] sm:$0xff] %vm1782, %v1750
        %1880 = vst.msk [vmem:[#allocation4 + $0x308] sm:$0xff] %vm1782, %v1751
        %1881 = vst.msk [vmem:[#allocation4 + $0x310] sm:$0xff] %vm1782, %v1752
        %1882 = vst.msk [vmem:[#allocation4 + $0x318] sm:$0xff] %vm1782, %v1753
        %1883 = vst.msk [vmem:[#allocation4 + $0x320] sm:$0xff] %vm1782, %v1754
        %1884 = vst.msk [vmem:[#allocation4 + $0x328] sm:$0xff] %vm1782, %v1755
        %1885 = vst.msk [vmem:[#allocation4 + $0x330] sm:$0xff] %vm1782, %v1756
        %1886 = vst.msk [vmem:[#allocation4 + $0x338] sm:$0xff] %vm1782, %v1757
        %1887 = vst.msk [vmem:[#allocation4 + $0x340] sm:$0xff] %vm1782, %v1758
        %1888 = vst.msk [vmem:[#allocation4 + $0x348] sm:$0xff] %vm1782, %v1759
        %1889 = vst.msk [vmem:[#allocation4 + $0x350] sm:$0xff] %vm1782, %v1760
        %1890 = vst.msk [vmem:[#allocation4 + $0x358] sm:$0xff] %vm1782, %v1761
        %1891 = vst.msk [vmem:[#allocation4 + $0x360] sm:$0xff] %vm1782, %v1762
        %1892 = vst.msk [vmem:[#allocation4 + $0x368] sm:$0xff] %vm1782, %v1763
        %1893 = vst.msk [vmem:[#allocation4 + $0x370] sm:$0xff] %vm1782, %v1764
        %1894 = vst.msk [vmem:[#allocation4 + $0x378] sm:$0xff] %vm1782, %v1765
        %1895 = vst.msk [vmem:[#allocation4 + $0x380] sm:$0xff] %vm1782, %v1766
        %1896 = vst.msk [vmem:[#allocation4 + $0x388] sm:$0xff] %vm1782, %v1767
        %1897 = vst.msk [vmem:[#allocation4 + $0x390] sm:$0xff] %vm1782, %v1768
        %1898 = vst.msk [vmem:[#allocation4 + $0x398] sm:$0xff] %vm1782, %v1769
        %1899 = vst.msk [vmem:[#allocation4 + $0x3a0] sm:$0xff] %vm1782, %v1770
        %1900 = vst.msk [vmem:[#allocation4 + $0x3a8] sm:$0xff] %vm1782, %v1771
        %1901 = vst.msk [vmem:[#allocation4 + $0x3b0] sm:$0xff] %vm1782, %v1772
        %1902 = vst.msk [vmem:[#allocation4 + $0x3b8] sm:$0xff] %vm1782, %v1773
        %1903 = vst.msk [vmem:[#allocation4 + $0x3c0] sm:$0xff] %vm1782, %v1774
        %1904 = vst.msk [vmem:[#allocation4 + $0x3c8] sm:$0xff] %vm1782, %v1775
        %1905 = vst.msk [vmem:[#allocation4 + $0x3d0] sm:$0xff] %vm1782, %v1776
        %1906 = vst.msk [vmem:[#allocation4 + $0x3d8] sm:$0xff] %vm1782, %v1777
        %1907 = vst.msk [vmem:[#allocation4 + $0x3e0] sm:$0xff] %vm1782, %v1778
        %1908 = vst.msk [vmem:[#allocation4 + $0x3e8] sm:$0xff] %vm1782, %v1779
        %1909 = vst.msk [vmem:[#allocation4 + $0x3f0] sm:$0xff] %vm1782, %v1780
        %1910 = vst.msk [vmem:[#allocation4 + $0x3f8] sm:$0xff] %vm1782, %v1781
        %v1911 = vld [vmem:[#allocation4] ss:$2 sm:$0xff]
        %s1912 = scalar_lea.vmem [#allocation4], 16
        %v1913 = vld [vmem:[%s1912] ss:$2 sm:$0xff]
        %s1914 = scalar_lea.vmem [#allocation4], 32
        %v1915 = vld [vmem:[%s1914] ss:$2 sm:$0xff]
        %s1916 = scalar_lea.vmem [#allocation4], 48
        %v1917 = vld [vmem:[%s1916] ss:$2 sm:$0xff]
        %s1918 = scalar_lea.vmem [#allocation4], 64
        %v1919 = vld [vmem:[%s1918] ss:$2 sm:$0xff]
        %s1920 = scalar_lea.vmem [#allocation4], 80
        %v1921 = vld [vmem:[%s1920] ss:$2 sm:$0xff]
        %s1922 = scalar_lea.vmem [#allocation4], 96
        %v1923 = vld [vmem:[%s1922] ss:$2 sm:$0xff]
        %s1924 = scalar_lea.vmem [#allocation4], 112
        %v1925 = vld [vmem:[%s1924] ss:$2 sm:$0xff]
        %s1926 = scalar_lea.vmem [#allocation4], 128
        %v1927 = vld [vmem:[%s1926] ss:$2 sm:$0xff]
        %s1928 = scalar_lea.vmem [#allocation4], 144
        %v1929 = vld [vmem:[%s1928] ss:$2 sm:$0xff]
        %s1930 = scalar_lea.vmem [#allocation4], 160
        %v1931 = vld [vmem:[%s1930] ss:$2 sm:$0xff]
        %s1932 = scalar_lea.vmem [#allocation4], 176
        %v1933 = vld [vmem:[%s1932] ss:$2 sm:$0xff]
        %s1934 = scalar_lea.vmem [#allocation4], 192
        %v1935 = vld [vmem:[%s1934] ss:$2 sm:$0xff]
        %s1936 = scalar_lea.vmem [#allocation4], 208
        %v1937 = vld [vmem:[%s1936] ss:$2 sm:$0xff]
        %s1938 = scalar_lea.vmem [#allocation4], 224
        %v1939 = vld [vmem:[%s1938] ss:$2 sm:$0xff]
        %s1940 = scalar_lea.vmem [#allocation4], 240
        %v1941 = vld [vmem:[%s1940] ss:$2 sm:$0xff]
        %s1942 = scalar_lea.vmem [#allocation4], 256
        %v1943 = vld [vmem:[%s1942] ss:$2 sm:$0xff]
        %s1944 = scalar_lea.vmem [#allocation4], 272
        %v1945 = vld [vmem:[%s1944] ss:$2 sm:$0xff]
        %s1946 = scalar_lea.vmem [#allocation4], 288
        %v1947 = vld [vmem:[%s1946] ss:$2 sm:$0xff]
        %s1948 = scalar_lea.vmem [#allocation4], 304
        %v1949 = vld [vmem:[%s1948] ss:$2 sm:$0xff]
        %s1950 = scalar_lea.vmem [#allocation4], 320
        %v1951 = vld [vmem:[%s1950] ss:$2 sm:$0xff]
        %s1952 = scalar_lea.vmem [#allocation4], 336
        %v1953 = vld [vmem:[%s1952] ss:$2 sm:$0xff]
        %s1954 = scalar_lea.vmem [#allocation4], 352
        %v1955 = vld [vmem:[%s1954] ss:$2 sm:$0xff]
        %s1956 = scalar_lea.vmem [#allocation4], 368
        %v1957 = vld [vmem:[%s1956] ss:$2 sm:$0xff]
        %s1958 = scalar_lea.vmem [#allocation4], 384
        %v1959 = vld [vmem:[%s1958] ss:$2 sm:$0xff]
        %s1960 = scalar_lea.vmem [#allocation4], 400
        %v1961 = vld [vmem:[%s1960] ss:$2 sm:$0xff]
        %s1962 = scalar_lea.vmem [#allocation4], 416
        %v1963 = vld [vmem:[%s1962] ss:$2 sm:$0xff]
        %s1964 = scalar_lea.vmem [#allocation4], 432
        %v1965 = vld [vmem:[%s1964] ss:$2 sm:$0xff]
        %s1966 = scalar_lea.vmem [#allocation4], 448
        %v1967 = vld [vmem:[%s1966] ss:$2 sm:$0xff]
        %s1968 = scalar_lea.vmem [#allocation4], 464
        %v1969 = vld [vmem:[%s1968] ss:$2 sm:$0xff]
        %s1970 = scalar_lea.vmem [#allocation4], 480
        %v1971 = vld [vmem:[%s1970] ss:$2 sm:$0xff]
        %s1972 = scalar_lea.vmem [#allocation4], 496
        %v1973 = vld [vmem:[%s1972] ss:$2 sm:$0xff]
        %s1974 = scalar_lea.vmem [#allocation4], 512
        %v1975 = vld [vmem:[%s1974] ss:$2 sm:$0xff]
        %s1976 = scalar_lea.vmem [#allocation4], 528
        %v1977 = vld [vmem:[%s1976] ss:$2 sm:$0xff]
        %s1978 = scalar_lea.vmem [#allocation4], 544
        %v1979 = vld [vmem:[%s1978] ss:$2 sm:$0xff]
        %s1980 = scalar_lea.vmem [#allocation4], 560
        %v1981 = vld [vmem:[%s1980] ss:$2 sm:$0xff]
        %s1982 = scalar_lea.vmem [#allocation4], 576
        %v1983 = vld [vmem:[%s1982] ss:$2 sm:$0xff]
        %s1984 = scalar_lea.vmem [#allocation4], 592
        %v1985 = vld [vmem:[%s1984] ss:$2 sm:$0xff]
        %s1986 = scalar_lea.vmem [#allocation4], 608
        %v1987 = vld [vmem:[%s1986] ss:$2 sm:$0xff]
        %s1988 = scalar_lea.vmem [#allocation4], 624
        %v1989 = vld [vmem:[%s1988] ss:$2 sm:$0xff]
        %s1990 = scalar_lea.vmem [#allocation4], 640
        %v1991 = vld [vmem:[%s1990] ss:$2 sm:$0xff]
        %s1992 = scalar_lea.vmem [#allocation4], 656
        %v1993 = vld [vmem:[%s1992] ss:$2 sm:$0xff]
        %s1994 = scalar_lea.vmem [#allocation4], 672
        %v1995 = vld [vmem:[%s1994] ss:$2 sm:$0xff]
        %s1996 = scalar_lea.vmem [#allocation4], 688
        %v1997 = vld [vmem:[%s1996] ss:$2 sm:$0xff]
        %s1998 = scalar_lea.vmem [#allocation4], 704
        %v1999 = vld [vmem:[%s1998] ss:$2 sm:$0xff]
        %s2000 = scalar_lea.vmem [#allocation4], 720
        %v2001 = vld [vmem:[%s2000] ss:$2 sm:$0xff]
        %s2002 = scalar_lea.vmem [#allocation4], 736
        %v2003 = vld [vmem:[%s2002] ss:$2 sm:$0xff]
        %s2004 = scalar_lea.vmem [#allocation4], 752
        %v2005 = vld [vmem:[%s2004] ss:$2 sm:$0xff]
        %s2006 = scalar_lea.vmem [#allocation4], 768
        %v2007 = vld [vmem:[%s2006] ss:$2 sm:$0xff]
        %s2008 = scalar_lea.vmem [#allocation4], 784
        %v2009 = vld [vmem:[%s2008] ss:$2 sm:$0xff]
        %s2010 = scalar_lea.vmem [#allocation4], 800
        %v2011 = vld [vmem:[%s2010] ss:$2 sm:$0xff]
        %s2012 = scalar_lea.vmem [#allocation4], 816
        %v2013 = vld [vmem:[%s2012] ss:$2 sm:$0xff]
        %s2014 = scalar_lea.vmem [#allocation4], 832
        %v2015 = vld [vmem:[%s2014] ss:$2 sm:$0xff]
        %s2016 = scalar_lea.vmem [#allocation4], 848
        %v2017 = vld [vmem:[%s2016] ss:$2 sm:$0xff]
        %s2018 = scalar_lea.vmem [#allocation4], 864
        %v2019 = vld [vmem:[%s2018] ss:$2 sm:$0xff]
        %s2020 = scalar_lea.vmem [#allocation4], 880
        %v2021 = vld [vmem:[%s2020] ss:$2 sm:$0xff]
        %s2022 = scalar_lea.vmem [#allocation4], 896
        %v2023 = vld [vmem:[%s2022] ss:$2 sm:$0xff]
        %s2024 = scalar_lea.vmem [#allocation4], 912
        %v2025 = vld [vmem:[%s2024] ss:$2 sm:$0xff]
        %s2026 = scalar_lea.vmem [#allocation4], 928
        %v2027 = vld [vmem:[%s2026] ss:$2 sm:$0xff]
        %s2028 = scalar_lea.vmem [#allocation4], 944
        %v2029 = vld [vmem:[%s2028] ss:$2 sm:$0xff]
        %s2030 = scalar_lea.vmem [#allocation4], 960
        %v2031 = vld [vmem:[%s2030] ss:$2 sm:$0xff]
        %s2032 = scalar_lea.vmem [#allocation4], 976
        %v2033 = vld [vmem:[%s2032] ss:$2 sm:$0xff]
        %s2034 = scalar_lea.vmem [#allocation4], 992
        %v2035 = vld [vmem:[%s2034] ss:$2 sm:$0xff]
        %s2036 = scalar_lea.vmem [#allocation4], 1008
        %v2037 = vld [vmem:[%s2036] ss:$2 sm:$0xff]
        %s2038 = scalar_lea.vmem [#allocation4], 1
        %v2039 = vld [vmem:[%s2038] ss:$2 sm:$0xff]
        %s2040 = scalar_lea.vmem [#allocation4], 17
        %v2041 = vld [vmem:[%s2040] ss:$2 sm:$0xff]
        %s2042 = scalar_lea.vmem [#allocation4], 33
        %v2043 = vld [vmem:[%s2042] ss:$2 sm:$0xff]
        %s2044 = scalar_lea.vmem [#allocation4], 49
        %v2045 = vld [vmem:[%s2044] ss:$2 sm:$0xff]
        %s2046 = scalar_lea.vmem [#allocation4], 65
        %v2047 = vld [vmem:[%s2046] ss:$2 sm:$0xff]
        %s2048 = scalar_lea.vmem [#allocation4], 81
        %v2049 = vld [vmem:[%s2048] ss:$2 sm:$0xff]
        %s2050 = scalar_lea.vmem [#allocation4], 97
        %v2051 = vld [vmem:[%s2050] ss:$2 sm:$0xff]
        %s2052 = scalar_lea.vmem [#allocation4], 113
        %v2053 = vld [vmem:[%s2052] ss:$2 sm:$0xff]
        %s2054 = scalar_lea.vmem [#allocation4], 129
        %v2055 = vld [vmem:[%s2054] ss:$2 sm:$0xff]
        %s2056 = scalar_lea.vmem [#allocation4], 145
        %v2057 = vld [vmem:[%s2056] ss:$2 sm:$0xff]
        %s2058 = scalar_lea.vmem [#allocation4], 161
        %v2059 = vld [vmem:[%s2058] ss:$2 sm:$0xff]
        %s2060 = scalar_lea.vmem [#allocation4], 177
        %v2061 = vld [vmem:[%s2060] ss:$2 sm:$0xff]
        %s2062 = scalar_lea.vmem [#allocation4], 193
        %v2063 = vld [vmem:[%s2062] ss:$2 sm:$0xff]
        %s2064 = scalar_lea.vmem [#allocation4], 209
        %v2065 = vld [vmem:[%s2064] ss:$2 sm:$0xff]
        %s2066 = scalar_lea.vmem [#allocation4], 225
        %v2067 = vld [vmem:[%s2066] ss:$2 sm:$0xff]
        %s2068 = scalar_lea.vmem [#allocation4], 241
        %v2069 = vld [vmem:[%s2068] ss:$2 sm:$0xff]
        %s2070 = scalar_lea.vmem [#allocation4], 257
        %v2071 = vld [vmem:[%s2070] ss:$2 sm:$0xff]
        %s2072 = scalar_lea.vmem [#allocation4], 273
        %v2073 = vld [vmem:[%s2072] ss:$2 sm:$0xff]
        %s2074 = scalar_lea.vmem [#allocation4], 289
        %v2075 = vld [vmem:[%s2074] ss:$2 sm:$0xff]
        %s2076 = scalar_lea.vmem [#allocation4], 305
        %v2077 = vld [vmem:[%s2076] ss:$2 sm:$0xff]
        %s2078 = scalar_lea.vmem [#allocation4], 321
        %v2079 = vld [vmem:[%s2078] ss:$2 sm:$0xff]
        %s2080 = scalar_lea.vmem [#allocation4], 337
        %v2081 = vld [vmem:[%s2080] ss:$2 sm:$0xff]
        %s2082 = scalar_lea.vmem [#allocation4], 353
        %v2083 = vld [vmem:[%s2082] ss:$2 sm:$0xff]
        %s2084 = scalar_lea.vmem [#allocation4], 369
        %v2085 = vld [vmem:[%s2084] ss:$2 sm:$0xff]
        %s2086 = scalar_lea.vmem [#allocation4], 385
        %v2087 = vld [vmem:[%s2086] ss:$2 sm:$0xff]
        %s2088 = scalar_lea.vmem [#allocation4], 401
        %v2089 = vld [vmem:[%s2088] ss:$2 sm:$0xff]
        %s2090 = scalar_lea.vmem [#allocation4], 417
        %v2091 = vld [vmem:[%s2090] ss:$2 sm:$0xff]
        %s2092 = scalar_lea.vmem [#allocation4], 433
        %v2093 = vld [vmem:[%s2092] ss:$2 sm:$0xff]
        %s2094 = scalar_lea.vmem [#allocation4], 449
        %v2095 = vld [vmem:[%s2094] ss:$2 sm:$0xff]
        %s2096 = scalar_lea.vmem [#allocation4], 465
        %v2097 = vld [vmem:[%s2096] ss:$2 sm:$0xff]
        %s2098 = scalar_lea.vmem [#allocation4], 481
        %v2099 = vld [vmem:[%s2098] ss:$2 sm:$0xff]
        %s2100 = scalar_lea.vmem [#allocation4], 497
        %v2101 = vld [vmem:[%s2100] ss:$2 sm:$0xff]
        %s2102 = scalar_lea.vmem [#allocation4], 513
        %v2103 = vld [vmem:[%s2102] ss:$2 sm:$0xff]
        %s2104 = scalar_lea.vmem [#allocation4], 529
        %v2105 = vld [vmem:[%s2104] ss:$2 sm:$0xff]
        %s2106 = scalar_lea.vmem [#allocation4], 545
        %v2107 = vld [vmem:[%s2106] ss:$2 sm:$0xff]
        %s2108 = scalar_lea.vmem [#allocation4], 561
        %v2109 = vld [vmem:[%s2108] ss:$2 sm:$0xff]
        %s2110 = scalar_lea.vmem [#allocation4], 577
        %v2111 = vld [vmem:[%s2110] ss:$2 sm:$0xff]
        %s2112 = scalar_lea.vmem [#allocation4], 593
        %v2113 = vld [vmem:[%s2112] ss:$2 sm:$0xff]
        %s2114 = scalar_lea.vmem [#allocation4], 609
        %v2115 = vld [vmem:[%s2114] ss:$2 sm:$0xff]
        %s2116 = scalar_lea.vmem [#allocation4], 625
        %v2117 = vld [vmem:[%s2116] ss:$2 sm:$0xff]
        %s2118 = scalar_lea.vmem [#allocation4], 641
        %v2119 = vld [vmem:[%s2118] ss:$2 sm:$0xff]
        %s2120 = scalar_lea.vmem [#allocation4], 657
        %v2121 = vld [vmem:[%s2120] ss:$2 sm:$0xff]
        %s2122 = scalar_lea.vmem [#allocation4], 673
        %v2123 = vld [vmem:[%s2122] ss:$2 sm:$0xff]
        %s2124 = scalar_lea.vmem [#allocation4], 689
        %v2125 = vld [vmem:[%s2124] ss:$2 sm:$0xff]
        %s2126 = scalar_lea.vmem [#allocation4], 705
        %v2127 = vld [vmem:[%s2126] ss:$2 sm:$0xff]
        %s2128 = scalar_lea.vmem [#allocation4], 721
        %v2129 = vld [vmem:[%s2128] ss:$2 sm:$0xff]
        %s2130 = scalar_lea.vmem [#allocation4], 737
        %v2131 = vld [vmem:[%s2130] ss:$2 sm:$0xff]
        %s2132 = scalar_lea.vmem [#allocation4], 753
        %v2133 = vld [vmem:[%s2132] ss:$2 sm:$0xff]
        %s2134 = scalar_lea.vmem [#allocation4], 769
        %v2135 = vld [vmem:[%s2134] ss:$2 sm:$0xff]
        %s2136 = scalar_lea.vmem [#allocation4], 785
        %v2137 = vld [vmem:[%s2136] ss:$2 sm:$0xff]
        %s2138 = scalar_lea.vmem [#allocation4], 801
        %v2139 = vld [vmem:[%s2138] ss:$2 sm:$0xff]
        %s2140 = scalar_lea.vmem [#allocation4], 817
        %v2141 = vld [vmem:[%s2140] ss:$2 sm:$0xff]
        %s2142 = scalar_lea.vmem [#allocation4], 833
        %v2143 = vld [vmem:[%s2142] ss:$2 sm:$0xff]
        %s2144 = scalar_lea.vmem [#allocation4], 849
        %v2145 = vld [vmem:[%s2144] ss:$2 sm:$0xff]
        %s2146 = scalar_lea.vmem [#allocation4], 865
        %v2147 = vld [vmem:[%s2146] ss:$2 sm:$0xff]
        %s2148 = scalar_lea.vmem [#allocation4], 881
        %v2149 = vld [vmem:[%s2148] ss:$2 sm:$0xff]
        %s2150 = scalar_lea.vmem [#allocation4], 897
        %v2151 = vld [vmem:[%s2150] ss:$2 sm:$0xff]
        %s2152 = scalar_lea.vmem [#allocation4], 913
        %v2153 = vld [vmem:[%s2152] ss:$2 sm:$0xff]
        %s2154 = scalar_lea.vmem [#allocation4], 929
        %v2155 = vld [vmem:[%s2154] ss:$2 sm:$0xff]
        %s2156 = scalar_lea.vmem [#allocation4], 945
        %v2157 = vld [vmem:[%s2156] ss:$2 sm:$0xff]
        %s2158 = scalar_lea.vmem [#allocation4], 961
        %v2159 = vld [vmem:[%s2158] ss:$2 sm:$0xff]
        %s2160 = scalar_lea.vmem [#allocation4], 977
        %v2161 = vld [vmem:[%s2160] ss:$2 sm:$0xff]
        %s2162 = scalar_lea.vmem [#allocation4], 993
        %v2163 = vld [vmem:[%s2162] ss:$2 sm:$0xff]
        %s2164 = scalar_lea.vmem [#allocation4], 1009
        %v2165 = vld [vmem:[%s2164] ss:$2 sm:$0xff]
        %v2166 = vmax.f32 %v1911, %v2039
        %v2167 = vmax.f32 %v1913, %v2041
        %v2168 = vmax.f32 %v1915, %v2043
        %v2169 = vmax.f32 %v1917, %v2045
        %v2170 = vmax.f32 %v1919, %v2047
        %v2171 = vmax.f32 %v1921, %v2049
        %v2172 = vmax.f32 %v1923, %v2051
        %v2173 = vmax.f32 %v1925, %v2053
        %v2174 = vmax.f32 %v1927, %v2055
        %v2175 = vmax.f32 %v1929, %v2057
        %v2176 = vmax.f32 %v1931, %v2059
        %v2177 = vmax.f32 %v1933, %v2061
        %v2178 = vmax.f32 %v1935, %v2063
        %v2179 = vmax.f32 %v1937, %v2065
        %v2180 = vmax.f32 %v1939, %v2067
        %v2181 = vmax.f32 %v1941, %v2069
        %v2182 = vmax.f32 %v1943, %v2071
        %v2183 = vmax.f32 %v1945, %v2073
        %v2184 = vmax.f32 %v1947, %v2075
        %v2185 = vmax.f32 %v1949, %v2077
        %v2186 = vmax.f32 %v1951, %v2079
        %v2187 = vmax.f32 %v1953, %v2081
        %v2188 = vmax.f32 %v1955, %v2083
        %v2189 = vmax.f32 %v1957, %v2085
        %v2190 = vmax.f32 %v1959, %v2087
        %v2191 = vmax.f32 %v1961, %v2089
        %v2192 = vmax.f32 %v1963, %v2091
        %v2193 = vmax.f32 %v1965, %v2093
        %v2194 = vmax.f32 %v1967, %v2095
        %v2195 = vmax.f32 %v1969, %v2097
        %v2196 = vmax.f32 %v1971, %v2099
        %v2197 = vmax.f32 %v1973, %v2101
        %v2198 = vmax.f32 %v1975, %v2103
        %v2199 = vmax.f32 %v1977, %v2105
        %v2200 = vmax.f32 %v1979, %v2107
        %v2201 = vmax.f32 %v1981, %v2109
        %v2202 = vmax.f32 %v1983, %v2111
        %v2203 = vmax.f32 %v1985, %v2113
        %v2204 = vmax.f32 %v1987, %v2115
        %v2205 = vmax.f32 %v1989, %v2117
        %v2206 = vmax.f32 %v1991, %v2119
        %v2207 = vmax.f32 %v1993, %v2121
        %v2208 = vmax.f32 %v1995, %v2123
        %v2209 = vmax.f32 %v1997, %v2125
        %v2210 = vmax.f32 %v1999, %v2127
        %v2211 = vmax.f32 %v2001, %v2129
        %v2212 = vmax.f32 %v2003, %v2131
        %v2213 = vmax.f32 %v2005, %v2133
        %v2214 = vmax.f32 %v2007, %v2135
        %v2215 = vmax.f32 %v2009, %v2137
        %v2216 = vmax.f32 %v2011, %v2139
        %v2217 = vmax.f32 %v2013, %v2141
        %v2218 = vmax.f32 %v2015, %v2143
        %v2219 = vmax.f32 %v2017, %v2145
        %v2220 = vmax.f32 %v2019, %v2147
        %v2221 = vmax.f32 %v2021, %v2149
        %v2222 = vmax.f32 %v2023, %v2151
        %v2223 = vmax.f32 %v2025, %v2153
        %v2224 = vmax.f32 %v2027, %v2155
        %v2225 = vmax.f32 %v2029, %v2157
        %v2226 = vmax.f32 %v2031, %v2159
        %v2227 = vmax.f32 %v2033, %v2161
        %v2228 = vmax.f32 %v2035, %v2163
        %v2229 = vmax.f32 %v2037, %v2165
        %v2230 = vmax.f32 %v2166, %v2168
        %v2231 = vmax.f32 %v2167, %v2169
        %v2232 = vmax.f32 %v2170, %v2172
        %v2233 = vmax.f32 %v2171, %v2173
        %v2234 = vmax.f32 %v2174, %v2176
        %v2235 = vmax.f32 %v2175, %v2177
        %v2236 = vmax.f32 %v2178, %v2180
        %v2237 = vmax.f32 %v2179, %v2181
        %v2238 = vmax.f32 %v2182, %v2184
        %v2239 = vmax.f32 %v2183, %v2185
        %v2240 = vmax.f32 %v2186, %v2188
        %v2241 = vmax.f32 %v2187, %v2189
        %v2242 = vmax.f32 %v2190, %v2192
        %v2243 = vmax.f32 %v2191, %v2193
        %v2244 = vmax.f32 %v2194, %v2196
        %v2245 = vmax.f32 %v2195, %v2197
        %v2246 = vmax.f32 %v2198, %v2200
        %v2247 = vmax.f32 %v2199, %v2201
        %v2248 = vmax.f32 %v2202, %v2204
        %v2249 = vmax.f32 %v2203, %v2205
        %v2250 = vmax.f32 %v2206, %v2208
        %v2251 = vmax.f32 %v2207, %v2209
        %v2252 = vmax.f32 %v2210, %v2212
        %v2253 = vmax.f32 %v2211, %v2213
        %v2254 = vmax.f32 %v2214, %v2216
        %v2255 = vmax.f32 %v2215, %v2217
        %v2256 = vmax.f32 %v2218, %v2220
        %v2257 = vmax.f32 %v2219, %v2221
        %v2258 = vmax.f32 %v2222, %v2224
        %v2259 = vmax.f32 %v2223, %v2225
        %v2260 = vmax.f32 %v2226, %v2228
        %v2261 = vmax.f32 %v2227, %v2229
        %2262 = vst.msk [vmem:[#allocation2] sm:$0xff] %vm1782, 0.0
        %2263 = vst.msk [vmem:[#allocation2 + $0x8] sm:$0xff] %vm1782, 0.0
        %vm2264 = vcmask 123904
        %2265 = vst.msk [vmem:[#allocation2 + $0x10] sm:$0x3] %vm2264, 0.0
        %2266 = vst.msk [vmem:[#allocation2 + $0x18] sm:$0xff] %vm1782, 0.0
        %2267 = vst.msk [vmem:[#allocation2 + $0x20] sm:$0xff] %vm1782, 0.0
        %2268 = vst.msk [vmem:[#allocation2 + $0x28] sm:$0x3] %vm2264, 0.0
        %2269 = vst.msk [vmem:[#allocation2 + $0x30] sm:$0xff] %vm1782, 0.0
        %2270 = vst.msk [vmem:[#allocation2 + $0x38] sm:$0xff] %vm1782, 0.0
        %2271 = vst.msk [vmem:[#allocation2 + $0x40] sm:$0x3] %vm2264, 0.0
        %2272 = vst.msk [vmem:[#allocation2 + $0x48] sm:$0xff] %vm1782, 0.0
        %2273 = vst.msk [vmem:[#allocation2 + $0x50] sm:$0xff] %vm1782, 0.0
        %2274 = vst.msk [vmem:[#allocation2 + $0x58] sm:$0x3] %vm2264, 0.0
        %2275 = vst.msk [vmem:[#allocation2 + $0x60] sm:$0xff] %vm1782, 0.0
        %2276 = vst.msk [vmem:[#allocation2 + $0x68] sm:$0xff] %vm1782, 0.0
        %2277 = vst.msk [vmem:[#allocation2 + $0x70] sm:$0x3] %vm2264, 0.0
        %2278 = vst.msk [vmem:[#allocation2 + $0x78] sm:$0xff] %vm1782, 0.0
        %2279 = vst.msk [vmem:[#allocation2 + $0x80] sm:$0xff] %vm1782, 0.0
        %2280 = vst.msk [vmem:[#allocation2 + $0x88] sm:$0x3] %vm2264, 0.0
        %2281 = vst.msk [vmem:[#allocation2 + $0x90] sm:$0xff] %vm1782, 0.0
        %2282 = vst.msk [vmem:[#allocation2 + $0x98] sm:$0xff] %vm1782, 0.0
        %2283 = vst.msk [vmem:[#allocation2 + $0xa0] sm:$0x3] %vm2264, 0.0
        %2284 = vst.msk [vmem:[#allocation2 + $0xa8] sm:$0xff] %vm1782, 0.0
        %2285 = vst.msk [vmem:[#allocation2 + $0xb0] sm:$0xff] %vm1782, 0.0
        %2286 = vst.msk [vmem:[#allocation2 + $0xb8] sm:$0x3] %vm2264, 0.0
        %2287 = vst.msk [vmem:[#allocation2 + $0xc0] sm:$0xff] %vm1782, 0.0
        %2288 = vst.msk [vmem:[#allocation2 + $0xc8] sm:$0xff] %vm1782, 0.0
        %2289 = vst.msk [vmem:[#allocation2 + $0xd0] sm:$0x3] %vm2264, 0.0
        %2290 = vst.msk [vmem:[#allocation2 + $0xd8] sm:$0xff] %vm1782, 0.0
        %2291 = vst.msk [vmem:[#allocation2 + $0xe0] sm:$0xff] %vm1782, 0.0
        %2292 = vst.msk [vmem:[#allocation2 + $0xe8] sm:$0x3] %vm2264, 0.0
        %2293 = vst.msk [vmem:[#allocation2 + $0xf0] sm:$0xff] %vm1782, 0.0
        %2294 = vst.msk [vmem:[#allocation2 + $0xf8] sm:$0xff] %vm1782, 0.0
        %2295 = vst.msk [vmem:[#allocation2 + $0x100] sm:$0x3] %vm2264, 0.0
        %2296 = vst.msk [vmem:[#allocation2 + $0x108] sm:$0xff] %vm1782, 0.0
        %2297 = vst.msk [vmem:[#allocation2 + $0x110] sm:$0xff] %vm1782, 0.0
        %2298 = vst.msk [vmem:[#allocation2 + $0x118] sm:$0x3] %vm2264, 0.0
        %2299 = vst.msk [vmem:[#allocation2 + $0x120] sm:$0xff] %vm1782, 0.0
        %2300 = vst.msk [vmem:[#allocation2 + $0x128] sm:$0xff] %vm1782, 0.0
        %2301 = vst.msk [vmem:[#allocation2 + $0x130] sm:$0x3] %vm2264, 0.0
        %2302 = vst.msk [vmem:[#allocation2 + $0x138] sm:$0xff] %vm1782, 0.0
        %2303 = vst.msk [vmem:[#allocation2 + $0x140] sm:$0xff] %vm1782, 0.0
        %2304 = vst.msk [vmem:[#allocation2 + $0x148] sm:$0x3] %vm2264, 0.0
        %2305 = vst.msk [vmem:[#allocation2 + $0x150] sm:$0xff] %vm1782, 0.0
        %2306 = vst.msk [vmem:[#allocation2 + $0x158] sm:$0xff] %vm1782, 0.0
        %2307 = vst.msk [vmem:[#allocation2 + $0x160] sm:$0x3] %vm2264, 0.0
        %2308 = vst.msk [vmem:[#allocation2 + $0x168] sm:$0xff] %vm1782, 0.0
        %2309 = vst.msk [vmem:[#allocation2 + $0x170] sm:$0xff] %vm1782, 0.0
        %2310 = vst.msk [vmem:[#allocation2 + $0x178] sm:$0x3] %vm2264, 0.0
        %2311 = vst.msk [vmem:[#allocation2 + $0x180] sm:$0xff] %vm1782, 0.0
        %2312 = vst.msk [vmem:[#allocation2 + $0x188] sm:$0xff] %vm1782, 0.0
        %2313 = vst.msk [vmem:[#allocation2 + $0x190] sm:$0x3] %vm2264, 0.0
        %2314 = vst.msk [vmem:[#allocation2 + $0x198] sm:$0xff] %vm1782, 0.0
        %2315 = vst.msk [vmem:[#allocation2 + $0x1a0] sm:$0xff] %vm1782, 0.0
        %2316 = vst.msk [vmem:[#allocation2 + $0x1a8] sm:$0x3] %vm2264, 0.0
        %s2317 = scalar_lea.vmem [#allocation2], 24
        %2318 = vst.msk [vmem:[%s2317 + $0x1] sm:$0xff] %vm1782, %v2230
        %2319 = vst.msk [vmem:[%s2317 + $0x9] sm:$0xff] %vm1782, %v2231
        %2320 = vst.msk [vmem:[%s2317 + $0x19] sm:$0xff] %vm1782, %v2232
        %2321 = vst.msk [vmem:[%s2317 + $0x21] sm:$0xff] %vm1782, %v2233
        %2322 = vst.msk [vmem:[%s2317 + $0x31] sm:$0xff] %vm1782, %v2234
        %2323 = vst.msk [vmem:[%s2317 + $0x39] sm:$0xff] %vm1782, %v2235
        %2324 = vst.msk [vmem:[%s2317 + $0x49] sm:$0xff] %vm1782, %v2236
        %2325 = vst.msk [vmem:[%s2317 + $0x51] sm:$0xff] %vm1782, %v2237
        %2326 = vst.msk [vmem:[%s2317 + $0x61] sm:$0xff] %vm1782, %v2238
        %2327 = vst.msk [vmem:[%s2317 + $0x69] sm:$0xff] %vm1782, %v2239
        %2328 = vst.msk [vmem:[%s2317 + $0x79] sm:$0xff] %vm1782, %v2240
        %2329 = vst.msk [vmem:[%s2317 + $0x81] sm:$0xff] %vm1782, %v2241
        %2330 = vst.msk [vmem:[%s2317 + $0x91] sm:$0xff] %vm1782, %v2242
        %2331 = vst.msk [vmem:[%s2317 + $0x99] sm:$0xff] %vm1782, %v2243
        %2332 = vst.msk [vmem:[%s2317 + $0xa9] sm:$0xff] %vm1782, %v2244
        %2333 = vst.msk [vmem:[%s2317 + $0xb1] sm:$0xff] %vm1782, %v2245
        %2334 = vst.msk [vmem:[%s2317 + $0xc1] sm:$0xff] %vm1782, %v2246
        %2335 = vst.msk [vmem:[%s2317 + $0xc9] sm:$0xff] %vm1782, %v2247
        %2336 = vst.msk [vmem:[%s2317 + $0xd9] sm:$0xff] %vm1782, %v2248
        %2337 = vst.msk [vmem:[%s2317 + $0xe1] sm:$0xff] %vm1782, %v2249
        %2338 = vst.msk [vmem:[%s2317 + $0xf1] sm:$0xff] %vm1782, %v2250
        %2339 = vst.msk [vmem:[%s2317 + $0xf9] sm:$0xff] %vm1782, %v2251
        %2340 = vst.msk [vmem:[%s2317 + $0x109] sm:$0xff] %vm1782, %v2252
        %2341 = vst.msk [vmem:[%s2317 + $0x111] sm:$0xff] %vm1782, %v2253
        %2342 = vst.msk [vmem:[%s2317 + $0x121] sm:$0xff] %vm1782, %v2254
        %2343 = vst.msk [vmem:[%s2317 + $0x129] sm:$0xff] %vm1782, %v2255
        %2344 = vst.msk [vmem:[%s2317 + $0x139] sm:$0xff] %vm1782, %v2256
        %2345 = vst.msk [vmem:[%s2317 + $0x141] sm:$0xff] %vm1782, %v2257
        %2346 = vst.msk [vmem:[%s2317 + $0x151] sm:$0xff] %vm1782, %v2258
        %2347 = vst.msk [vmem:[%s2317 + $0x159] sm:$0xff] %vm1782, %v2259
        %2348 = vst.msk [vmem:[%s2317 + $0x169] sm:$0xff] %vm1782, %v2260
        %2349 = vst.msk [vmem:[%s2317 + $0x171] sm:$0xff] %vm1782, %v2261
        %v2350 = vld [vmem:[#allocation2] sm:$0xff]
        %v2351 = vld [vmem:[#allocation2 + $0x8] sm:$0xff]
        %v2352 = vld [vmem:[#allocation2 + $0x18] sm:$0xff]
        %v2353 = vld [vmem:[#allocation2 + $0x20] sm:$0xff]
        %v2354 = vld [vmem:[#allocation2 + $0x30] sm:$0xff]
        %v2355 = vld [vmem:[#allocation2 + $0x38] sm:$0xff]
        %v2356 = vld [vmem:[#allocation2 + $0x48] sm:$0xff]
        %v2357 = vld [vmem:[#allocation2 + $0x50] sm:$0xff]
        %v2358 = vld [vmem:[#allocation2 + $0x60] sm:$0xff]
        %v2359 = vld [vmem:[#allocation2 + $0x68] sm:$0xff]
        %v2360 = vld [vmem:[#allocation2 + $0x78] sm:$0xff]
        %v2361 = vld [vmem:[#allocation2 + $0x80] sm:$0xff]
        %v2362 = vld [vmem:[#allocation2 + $0x90] sm:$0xff]
        %v2363 = vld [vmem:[#allocation2 + $0x98] sm:$0xff]
        %v2364 = vld [vmem:[#allocation2 + $0xa8] sm:$0xff]
        %v2365 = vld [vmem:[#allocation2 + $0xb0] sm:$0xff]
        %v2366 = vld [vmem:[#allocation2 + $0xc0] sm:$0xff]
        %v2367 = vld [vmem:[#allocation2 + $0xc8] sm:$0xff]
        %v2368 = vld [vmem:[#allocation2 + $0xd8] sm:$0xff]
        %v2369 = vld [vmem:[#allocation2 + $0xe0] sm:$0xff]
        %v2370 = vld [vmem:[#allocation2 + $0xf0] sm:$0xff]
        %v2371 = vld [vmem:[#allocation2 + $0xf8] sm:$0xff]
        %v2372 = vld [vmem:[#allocation2 + $0x108] sm:$0xff]
        %v2373 = vld [vmem:[#allocation2 + $0x110] sm:$0xff]
        %v2374 = vld [vmem:[#allocation2 + $0x120] sm:$0xff]
        %v2375 = vld [vmem:[#allocation2 + $0x128] sm:$0xff]
        %v2376 = vld [vmem:[#allocation2 + $0x138] sm:$0xff]
        %v2377 = vld [vmem:[#allocation2 + $0x140] sm:$0xff]
        %v2378 = vld [vmem:[#allocation2 + $0x150] sm:$0xff]
        %v2379 = vld [vmem:[#allocation2 + $0x158] sm:$0xff]
        %v2380 = vld [vmem:[#allocation2 + $0x168] sm:$0xff]
        %v2381 = vld [vmem:[#allocation2 + $0x170] sm:$0xff]
        %v2382 = vld [vmem:[#allocation2 + $0x180] sm:$0xff]
        %v2383 = vld [vmem:[#allocation2 + $0x188] sm:$0xff]
        %v2384 = vld [vmem:[#allocation2 + $0x198] sm:$0xff]
        %v2385 = vld [vmem:[#allocation2 + $0x1a0] sm:$0xff]
        %v2386 = vld [vmem:[#allocation2 + $0x1] sm:$0xff]
        %v2387 = vld [vmem:[#allocation2 + $0x9] sm:$0xff]
        %v2388 = vld [vmem:[#allocation2 + $0x19] sm:$0xff]
        %v2389 = vld [vmem:[#allocation2 + $0x21] sm:$0xff]
        %v2390 = vld [vmem:[#allocation2 + $0x31] sm:$0xff]
        %v2391 = vld [vmem:[#allocation2 + $0x39] sm:$0xff]
        %v2392 = vld [vmem:[#allocation2 + $0x49] sm:$0xff]
        %v2393 = vld [vmem:[#allocation2 + $0x51] sm:$0xff]
        %v2394 = vld [vmem:[#allocation2 + $0x61] sm:$0xff]
        %v2395 = vld [vmem:[#allocation2 + $0x69] sm:$0xff]
        %v2396 = vld [vmem:[#allocation2 + $0x79] sm:$0xff]
        %v2397 = vld [vmem:[#allocation2 + $0x81] sm:$0xff]
        %v2398 = vld [vmem:[#allocation2 + $0x91] sm:$0xff]
        %v2399 = vld [vmem:[#allocation2 + $0x99] sm:$0xff]
        %v2400 = vld [vmem:[#allocation2 + $0xa9] sm:$0xff]
        %v2401 = vld [vmem:[#allocation2 + $0xb1] sm:$0xff]
        %v2402 = vld [vmem:[#allocation2 + $0xc1] sm:$0xff]
        %v2403 = vld [vmem:[#allocation2 + $0xc9] sm:$0xff]
        %v2404 = vld [vmem:[#allocation2 + $0xd9] sm:$0xff]
        %v2405 = vld [vmem:[#allocation2 + $0xe1] sm:$0xff]
        %v2406 = vld [vmem:[#allocation2 + $0xf1] sm:$0xff]
        %v2407 = vld [vmem:[#allocation2 + $0xf9] sm:$0xff]
        %v2408 = vld [vmem:[#allocation2 + $0x109] sm:$0xff]
        %v2409 = vld [vmem:[#allocation2 + $0x111] sm:$0xff]
        %v2410 = vld [vmem:[#allocation2 + $0x121] sm:$0xff]
        %v2411 = vld [vmem:[#allocation2 + $0x129] sm:$0xff]
        %v2412 = vld [vmem:[#allocation2 + $0x139] sm:$0xff]
        %v2413 = vld [vmem:[#allocation2 + $0x141] sm:$0xff]
        %v2414 = vld [vmem:[#allocation2 + $0x151] sm:$0xff]
        %v2415 = vld [vmem:[#allocation2 + $0x159] sm:$0xff]
        %v2416 = vld [vmem:[#allocation2 + $0x169] sm:$0xff]
        %v2417 = vld [vmem:[#allocation2 + $0x171] sm:$0xff]
        %v2418 = vld [vmem:[#allocation2 + $0x181] sm:$0xff]
        %v2419 = vld [vmem:[#allocation2 + $0x189] sm:$0xff]
        %v2420 = vld [vmem:[#allocation2 + $0x199] sm:$0xff]
        %v2421 = vld [vmem:[#allocation2 + $0x1a1] sm:$0xff]
        %v2422 = vld [vmem:[#allocation2 + $0x2] sm:$0xff]
        %v2423 = vld [vmem:[#allocation2 + $0xa] sm:$0xff]
        %v2424 = vld [vmem:[#allocation2 + $0x1a] sm:$0xff]
        %v2425 = vld [vmem:[#allocation2 + $0x22] sm:$0xff]
        %v2426 = vld [vmem:[#allocation2 + $0x32] sm:$0xff]
        %v2427 = vld [vmem:[#allocation2 + $0x3a] sm:$0xff]
        %v2428 = vld [vmem:[#allocation2 + $0x4a] sm:$0xff]
        %v2429 = vld [vmem:[#allocation2 + $0x52] sm:$0xff]
        %v2430 = vld [vmem:[#allocation2 + $0x62] sm:$0xff]
        %v2431 = vld [vmem:[#allocation2 + $0x6a] sm:$0xff]
        %v2432 = vld [vmem:[#allocation2 + $0x7a] sm:$0xff]
        %v2433 = vld [vmem:[#allocation2 + $0x82] sm:$0xff]
        %v2434 = vld [vmem:[#allocation2 + $0x92] sm:$0xff]
        %v2435 = vld [vmem:[#allocation2 + $0x9a] sm:$0xff]
        %v2436 = vld [vmem:[#allocation2 + $0xaa] sm:$0xff]
        %v2437 = vld [vmem:[#allocation2 + $0xb2] sm:$0xff]
        %v2438 = vld [vmem:[#allocation2 + $0xc2] sm:$0xff]
        %v2439 = vld [vmem:[#allocation2 + $0xca] sm:$0xff]
        %v2440 = vld [vmem:[#allocation2 + $0xda] sm:$0xff]
        %v2441 = vld [vmem:[#allocation2 + $0xe2] sm:$0xff]
        %v2442 = vld [vmem:[#allocation2 + $0xf2] sm:$0xff]
        %v2443 = vld [vmem:[#allocation2 + $0xfa] sm:$0xff]
        %v2444 = vld [vmem:[#allocation2 + $0x10a] sm:$0xff]
        %v2445 = vld [vmem:[#allocation2 + $0x112] sm:$0xff]
        %v2446 = vld [vmem:[#allocation2 + $0x122] sm:$0xff]
        %v2447 = vld [vmem:[#allocation2 + $0x12a] sm:$0xff]
        %v2448 = vld [vmem:[#allocation2 + $0x13a] sm:$0xff]
        %v2449 = vld [vmem:[#allocation2 + $0x142] sm:$0xff]
        %v2450 = vld [vmem:[#allocation2 + $0x152] sm:$0xff]
        %v2451 = vld [vmem:[#allocation2 + $0x15a] sm:$0xff]
        %v2452 = vld [vmem:[#allocation2 + $0x16a] sm:$0xff]
        %v2453 = vld [vmem:[#allocation2 + $0x172] sm:$0xff]
        %v2454 = vld [vmem:[#allocation2 + $0x182] sm:$0xff]
        %v2455 = vld [vmem:[#allocation2 + $0x18a] sm:$0xff]
        %v2456 = vld [vmem:[#allocation2 + $0x19a] sm:$0xff]
        %v2457 = vld [vmem:[#allocation2 + $0x1a2] sm:$0xff]
        %v2458 = vpack.c.bf16 %v2351, %v2350
        %v2459 = vpack.c.bf16 %v2353, %v2352
        %v2460 = vpack.c.bf16 %v2355, %v2354
        %v2461 = vpack.c.bf16 %v2357, %v2356
        %v2462 = vpack.c.bf16 %v2359, %v2358
        %v2463 = vpack.c.bf16 %v2361, %v2360
        %v2464 = vpack.c.bf16 %v2363, %v2362
        %v2465 = vpack.c.bf16 %v2365, %v2364
        %v2466 = vpack.c.bf16 %v2367, %v2366
        %v2467 = vpack.c.bf16 %v2369, %v2368
        %v2468 = vpack.c.bf16 %v2371, %v2370
        %v2469 = vpack.c.bf16 %v2373, %v2372
        %v2470 = vpack.c.bf16 %v2375, %v2374
        %v2471 = vpack.c.bf16 %v2377, %v2376
        %v2472 = vpack.c.bf16 %v2379, %v2378
        %v2473 = vpack.c.bf16 %v2381, %v2380
        %v2474 = vld [vmem:[%s3] sm:$0xf]
        %v2475 = vld [vmem:[%s3 + $0x4] sm:$0xf]
        %v2476 = vpack.c.bf16 %v2387, %v2386
        %v2477 = vpack.c.bf16 %v2389, %v2388
        %v2478 = vpack.c.bf16 %v2391, %v2390
        %v2479 = vpack.c.bf16 %v2393, %v2392
        %v2480 = vpack.c.bf16 %v2395, %v2394
        %v2481 = vpack.c.bf16 %v2397, %v2396
        %v2482 = vpack.c.bf16 %v2399, %v2398
        %v2483 = vpack.c.bf16 %v2401, %v2400
        %v2484 = vpack.c.bf16 %v2403, %v2402
        %v2485 = vpack.c.bf16 %v2405, %v2404
        %v2486 = vpack.c.bf16 %v2407, %v2406
        %v2487 = vpack.c.bf16 %v2409, %v2408
        %v2488 = vpack.c.bf16 %v2411, %v2410
        %v2489 = vpack.c.bf16 %v2413, %v2412
        %v2490 = vpack.c.bf16 %v2415, %v2414
        %v2491 = vpack.c.bf16 %v2417, %v2416
        %s2492 = scalar_lea.vmem %s3, 8
        %v2493 = vld [vmem:[%s2492] sm:$0xf]
        %v2494 = vld [vmem:[%s2492 + $0x4] sm:$0xf]
        %v2497 = vunpack.c.l.b16 %v2493
        %v2498 = vunpack.c.l.b16 %v2494
        %v2499 = vpack.c.b16 %v2498, %v2497
        %v2502 = vsel %vm1782, %v2476, 0
        %v2505 = vsel %vm1782, %v2477, 0
        %v2508 = vsel %vm1782, %v2478, 0
        %v2511 = vsel %vm1782, %v2479, 0
        %v2514 = vsel %vm1782, %v2480, 0
        %v2517 = vsel %vm1782, %v2481, 0
        %v2520 = vsel %vm1782, %v2482, 0
        %v2523 = vsel %vm1782, %v2483, 0
        %v2526 = vsel %vm1782, %v2484, 0
        %v2529 = vsel %vm1782, %v2485, 0
        %v2532 = vsel %vm1782, %v2486, 0
        %v2535 = vsel %vm1782, %v2487, 0
        %v2538 = vsel %vm1782, %v2488, 0
        %v2541 = vsel %vm1782, %v2489, 0
        %v2544 = vsel %vm1782, %v2490, 0
        %v2547 = vsel %vm1782, %v2491, 0
        %2549 = vmatprep.subr.bf16.mxu0 0
        %2550 = vmatpush1.bf16.msra.mxu0 %v2499
        %2551 = vmatprep.subr.bf16.mxu0 0
        %2552 = vmatpush1.bf16.msra.mxu0 0
        %2553 = vmatprep.subr.bf16.mxu0 0
        %2554 = vmatpush1.bf16.msra.mxu0 0
        %2555 = vmatprep.subr.bf16.mxu0 0
        %2556 = vmatpush1.bf16.msra.mxu0 0
        %2557 = vmatprep.subr.bf16.mxu0 0
        %2558 = vmatpush1.bf16.msra.mxu0 0
        %2559 = vmatprep.subr.bf16.mxu0 0
        %2560 = vmatpush1.bf16.msra.mxu0 0
        %2561 = vmatprep.subr.bf16.mxu0 0
        %2562 = vmatpush1.bf16.msra.mxu0 0
        %2563 = vmatprep.subr.bf16.mxu0 0
        %2564 = vmatpush1.bf16.msra.mxu0 0
        %2565 = vmatprep.subr.bf16.mxu0 0
        %2566 = vmatpush1.bf16.msra.mxu0 0
        %2567 = vmatprep.subr.bf16.mxu0 0
        %2568 = vmatpush1.bf16.msra.mxu0 0
        %2569 = vmatprep.subr.bf16.mxu0 0
        %2570 = vmatpush1.bf16.msra.mxu0 0
        %2571 = vmatprep.subr.bf16.mxu0 0
        %2572 = vmatpush1.bf16.msra.mxu0 0
        %2573 = vmatprep.subr.bf16.mxu0 0
        %2574 = vmatpush1.bf16.msra.mxu0 0
        %2575 = vmatprep.subr.bf16.mxu0 0
        %2576 = vmatpush1.bf16.msra.mxu0 0
        %2577 = vmatprep.subr.bf16.mxu0 0
        %2578 = vmatpush1.bf16.msra.mxu0 0
        %2579 = vmatprep.subr.bf16.mxu0 0
        %2580 = vmatpush1.bf16.msra.mxu0 0
        %2581 = vmatprep.mubr.bf16.mxu0 0
        %2582 = vmatmul.mubr.bf16.gmra.mrb[0].mxu0 %v2502
        %v2583 = vpop.f32.mrb[0].mxu0
        %v2584 = vadd.f32 0.0, %v2583
        %v2585 = vpop.f32.mrb[0].mxu0
        %v2586 = vpop.f32.mrb[0].mxu0
        %v2587 = vadd.f32 0.0, %v2586
        %v2588 = vpop.f32.mrb[0].mxu0
        %2589 = vmatprep.mubr.bf16.mxu0 0
        %2590 = vmatmul.mubr.bf16.gmra.mrb[0].mxu0 %v2505
        %v2591 = vpop.f32.mrb[0].mxu0
        %v2592 = vadd.f32 0.0, %v2591
        %v2593 = vpop.f32.mrb[0].mxu0
        %v2594 = vpop.f32.mrb[0].mxu0
        %v2595 = vadd.f32 0.0, %v2594
        %v2596 = vpop.f32.mrb[0].mxu0
        %2597 = vmatprep.mubr.bf16.mxu0 0
        %2598 = vmatmul.mubr.bf16.gmra.mrb[0].mxu0 %v2508
        %v2599 = vpop.f32.mrb[0].mxu0
        %v2600 = vadd.f32 0.0, %v2599
        %v2601 = vpop.f32.mrb[0].mxu0
        %v2602 = vpop.f32.mrb[0].mxu0
        %v2603 = vadd.f32 0.0, %v2602
        %v2604 = vpop.f32.mrb[0].mxu0
        %2605 = vmatprep.mubr.bf16.mxu0 0
        %2606 = vmatmul.mubr.bf16.gmra.mrb[0].mxu0 %v2511
        %v2607 = vpop.f32.mrb[0].mxu0
        %v2608 = vadd.f32 0.0, %v2607
        %v2609 = vpop.f32.mrb[0].mxu0
        %v2610 = vpop.f32.mrb[0].mxu0
        %v2611 = vadd.f32 0.0, %v2610
        %v2612 = vpop.f32.mrb[0].mxu0
        %2613 = vmatprep.mubr.bf16.mxu0 0
        %2614 = vmatmul.mubr.bf16.gmra.mrb[0].mxu0 %v2514
        %v2615 = vpop.f32.mrb[0].mxu0
        %v2616 = vadd.f32 0.0, %v2615
        %v2617 = vpop.f32.mrb[0].mxu0
        %v2618 = vpop.f32.mrb[0].mxu0
        %v2619 = vadd.f32 0.0, %v2618
        %v2620 = vpop.f32.mrb[0].mxu0
        %2621 = vmatprep.mubr.bf16.mxu0 0
        %2622 = vmatmul.mubr.bf16.gmra.mrb[0].mxu0 %v2517
        %v2623 = vpop.f32.mrb[0].mxu0
        %v2624 = vadd.f32 0.0, %v2623
        %v2625 = vpop.f32.mrb[0].mxu0
        %v2626 = vpop.f32.mrb[0].mxu0
        %v2627 = vadd.f32 0.0, %v2626
        %v2628 = vpop.f32.mrb[0].mxu0
        %2629 = vmatprep.mubr.bf16.mxu0 0
        %2630 = vmatmul.mubr.bf16.gmra.mrb[0].mxu0 %v2520
        %v2631 = vpop.f32.mrb[0].mxu0
        %v2632 = vadd.f32 0.0, %v2631
        %v2633 = vpop.f32.mrb[0].mxu0
        %v2634 = vpop.f32.mrb[0].mxu0
        %v2635 = vadd.f32 0.0, %v2634
        %v2636 = vpop.f32.mrb[0].mxu0
        %2637 = vmatprep.mubr.bf16.mxu0 0
        %2638 = vmatmul.mubr.bf16.gmra.mrb[0].mxu0 %v2523
        %v2639 = vpop.f32.mrb[0].mxu0
        %v2640 = vadd.f32 0.0, %v2639
        %v2641 = vpop.f32.mrb[0].mxu0
        %v2642 = vpop.f32.mrb[0].mxu0
        %v2643 = vadd.f32 0.0, %v2642
        %v2644 = vpop.f32.mrb[0].mxu0
        %2645 = vmatprep.mubr.bf16.mxu0 0
        %2646 = vmatmul.mubr.bf16.gmra.mrb[0].mxu0 %v2526
        %v2647 = vpop.f32.mrb[0].mxu0
        %v2648 = vadd.f32 0.0, %v2647
        %v2649 = vpop.f32.mrb[0].mxu0
        %v2650 = vpop.f32.mrb[0].mxu0
        %v2651 = vadd.f32 0.0, %v2650
        %v2652 = vpop.f32.mrb[0].mxu0
        %2653 = vmatprep.mubr.bf16.mxu0 0
        %2654 = vmatmul.mubr.bf16.gmra.mrb[0].mxu0 %v2529
        %v2655 = vpop.f32.mrb[0].mxu0
        %v2656 = vadd.f32 0.0, %v2655
        %v2657 = vpop.f32.mrb[0].mxu0
        %v2658 = vpop.f32.mrb[0].mxu0
        %v2659 = vadd.f32 0.0, %v2658
        %v2660 = vpop.f32.mrb[0].mxu0
        %2661 = vmatprep.mubr.bf16.mxu0 0
        %2662 = vmatmul.mubr.bf16.gmra.mrb[0].mxu0 %v2532
        %v2663 = vpop.f32.mrb[0].mxu0
        %v2664 = vadd.f32 0.0, %v2663
        %v2665 = vpop.f32.mrb[0].mxu0
        %v2666 = vpop.f32.mrb[0].mxu0
        %v2667 = vadd.f32 0.0, %v2666
        %v2668 = vpop.f32.mrb[0].mxu0
        %2669 = vmatprep.mubr.bf16.mxu0 0
        %2670 = vmatmul.mubr.bf16.gmra.mrb[0].mxu0 %v2535
        %v2671 = vpop.f32.mrb[0].mxu0
        %v2672 = vadd.f32 0.0, %v2671
        %v2673 = vpop.f32.mrb[0].mxu0
        %v2674 = vpop.f32.mrb[0].mxu0
        %v2675 = vadd.f32 0.0, %v2674
        %v2676 = vpop.f32.mrb[0].mxu0
        %2677 = vmatprep.mubr.bf16.mxu0 0
        %2678 = vmatmul.mubr.bf16.gmra.mrb[0].mxu0 %v2538
        %v2679 = vpop.f32.mrb[0].mxu0
        %v2680 = vadd.f32 0.0, %v2679
        %v2681 = vpop.f32.mrb[0].mxu0
        %v2682 = vpop.f32.mrb[0].mxu0
        %v2683 = vadd.f32 0.0, %v2682
        %v2684 = vpop.f32.mrb[0].mxu0
        %2685 = vmatprep.mubr.bf16.mxu0 0
        %2686 = vmatmul.mubr.bf16.gmra.mrb[0].mxu0 %v2541
        %v2687 = vpop.f32.mrb[0].mxu0
        %v2688 = vadd.f32 0.0, %v2687
        %v2689 = vpop.f32.mrb[0].mxu0
        %v2690 = vpop.f32.mrb[0].mxu0
        %v2691 = vadd.f32 0.0, %v2690
        %v2692 = vpop.f32.mrb[0].mxu0
        %2693 = vmatprep.mubr.bf16.mxu0 0
        %2694 = vmatmul.mubr.bf16.gmra.mrb[0].mxu0 %v2544
        %v2695 = vpop.f32.mrb[0].mxu0
        %v2696 = vadd.f32 0.0, %v2695
        %v2697 = vpop.f32.mrb[0].mxu0
        %v2698 = vpop.f32.mrb[0].mxu0
        %v2699 = vadd.f32 0.0, %v2698
        %v2700 = vpop.f32.mrb[0].mxu0
        %2701 = vmatprep.mubr.bf16.mxu0 0
        %2702 = vmatmul.mubr.bf16.gmra.mrb[0].mxu0 %v2547
        %v2703 = vpop.f32.mrb[0].mxu0
        %v2704 = vadd.f32 0.0, %v2703
        %v2705 = vpop.f32.mrb[0].mxu0
        %v2706 = vpop.f32.mrb[0].mxu0
        %v2707 = vadd.f32 0.0, %v2706
        %v2708 = vpop.f32.mrb[0].mxu0
        %2709 = vdwg.mxu0
        %v2712 = vunpack.c.l.b16 %v2474
        %v2713 = vunpack.c.l.b16 %v2475
        %v2714 = vpack.c.b16 %v2713, %v2712
        %v2717 = vsel %vm1782, %v2458, 0
        %v2720 = vsel %vm1782, %v2459, 0
        %v2723 = vsel %vm1782, %v2460, 0
        %v2726 = vsel %vm1782, %v2461, 0
        %v2729 = vsel %vm1782, %v2462, 0
        %v2732 = vsel %vm1782, %v2463, 0
        %v2735 = vsel %vm1782, %v2464, 0
        %v2738 = vsel %vm1782, %v2465, 0
        %v2741 = vsel %vm1782, %v2466, 0
        %v2744 = vsel %vm1782, %v2467, 0
        %v2747 = vsel %vm1782, %v2468, 0
        %v2750 = vsel %vm1782, %v2469, 0
        %v2753 = vsel %vm1782, %v2470, 0
        %v2756 = vsel %vm1782, %v2471, 0
        %v2759 = vsel %vm1782, %v2472, 0
        %v2762 = vsel %vm1782, %v2473, 0
        %2764 = vmatprep.subr.bf16.mxu0 0
        %2765 = vmatpush1.bf16.msra.mxu0 %v2714
        %2766 = vmatprep.subr.bf16.mxu0 0
        %2767 = vmatpush1.bf16.msra.mxu0 0
        %2768 = vmatprep.subr.bf16.mxu0 0
        %2769 = vmatpush1.bf16.msra.mxu0 0
        %2770 = vmatprep.subr.bf16.mxu0 0
        %2771 = vmatpush1.bf16.msra.mxu0 0
        %2772 = vmatprep.subr.bf16.mxu0 0
        %2773 = vmatpush1.bf16.msra.mxu0 0
        %2774 = vmatprep.subr.bf16.mxu0 0
        %2775 = vmatpush1.bf16.msra.mxu0 0
        %2776 = vmatprep.subr.bf16.mxu0 0
        %2777 = vmatpush1.bf16.msra.mxu0 0
        %2778 = vmatprep.subr.bf16.mxu0 0
        %2779 = vmatpush1.bf16.msra.mxu0 0
        %2780 = vmatprep.subr.bf16.mxu0 0
        %2781 = vmatpush1.bf16.msra.mxu0 0
        %2782 = vmatprep.subr.bf16.mxu0 0
        %2783 = vmatpush1.bf16.msra.mxu0 0
        %2784 = vmatprep.subr.bf16.mxu0 0
        %2785 = vmatpush1.bf16.msra.mxu0 0
        %2786 = vmatprep.subr.bf16.mxu0 0
        %2787 = vmatpush1.bf16.msra.mxu0 0
        %2788 = vmatprep.subr.bf16.mxu0 0
        %2789 = vmatpush1.bf16.msra.mxu0 0
        %2790 = vmatprep.subr.bf16.mxu0 0
        %2791 = vmatpush1.bf16.msra.mxu0 0
        %2792 = vmatprep.subr.bf16.mxu0 0
        %2793 = vmatpush1.bf16.msra.mxu0 0
        %2794 = vmatprep.subr.bf16.mxu0 0
        %2795 = vmatpush1.bf16.msra.mxu0 0
        %2796 = vmatprep.mubr.bf16.mxu0 0
        %2797 = vmatmul.mubr.bf16.gmra.mrb[0].mxu0 %v2717
        %v2798 = vpop.f32.mrb[0].mxu0
        %v2799 = vadd.f32 %v2584, %v2798
        %v2800 = vpop.f32.mrb[0].mxu0
        %v2801 = vpop.f32.mrb[0].mxu0
        %v2802 = vadd.f32 %v2587, %v2801
        %v2803 = vpop.f32.mrb[0].mxu0
        %2804 = vmatprep.mubr.bf16.mxu0 0
        %2805 = vmatmul.mubr.bf16.gmra.mrb[0].mxu0 %v2720
        %v2806 = vpop.f32.mrb[0].mxu0
        %v2807 = vadd.f32 %v2592, %v2806
        %v2808 = vpop.f32.mrb[0].mxu0
        %v2809 = vpop.f32.mrb[0].mxu0
        %v2810 = vadd.f32 %v2595, %v2809
        %v2811 = vpop.f32.mrb[0].mxu0
        %2812 = vmatprep.mubr.bf16.mxu0 0
        %2813 = vmatmul.mubr.bf16.gmra.mrb[0].mxu0 %v2723
        %v2814 = vpop.f32.mrb[0].mxu0
        %v2815 = vadd.f32 %v2600, %v2814
        %v2816 = vpop.f32.mrb[0].mxu0
        %v2817 = vpop.f32.mrb[0].mxu0
        %v2818 = vadd.f32 %v2603, %v2817
        %v2819 = vpop.f32.mrb[0].mxu0
        %2820 = vmatprep.mubr.bf16.mxu0 0
        %2821 = vmatmul.mubr.bf16.gmra.mrb[0].mxu0 %v2726
        %v2822 = vpop.f32.mrb[0].mxu0
        %v2823 = vadd.f32 %v2608, %v2822
        %v2824 = vpop.f32.mrb[0].mxu0
        %v2825 = vpop.f32.mrb[0].mxu0
        %v2826 = vadd.f32 %v2611, %v2825
        %v2827 = vpop.f32.mrb[0].mxu0
        %2828 = vmatprep.mubr.bf16.mxu0 0
        %2829 = vmatmul.mubr.bf16.gmra.mrb[0].mxu0 %v2729
        %v2830 = vpop.f32.mrb[0].mxu0
        %v2831 = vadd.f32 %v2616, %v2830
        %v2832 = vpop.f32.mrb[0].mxu0
        %v2833 = vpop.f32.mrb[0].mxu0
        %v2834 = vadd.f32 %v2619, %v2833
        %v2835 = vpop.f32.mrb[0].mxu0
        %2836 = vmatprep.mubr.bf16.mxu0 0
        %2837 = vmatmul.mubr.bf16.gmra.mrb[0].mxu0 %v2732
        %v2838 = vpop.f32.mrb[0].mxu0
        %v2839 = vadd.f32 %v2624, %v2838
        %v2840 = vpop.f32.mrb[0].mxu0
        %v2841 = vpop.f32.mrb[0].mxu0
        %v2842 = vadd.f32 %v2627, %v2841
        %v2843 = vpop.f32.mrb[0].mxu0
        %2844 = vmatprep.mubr.bf16.mxu0 0
        %2845 = vmatmul.mubr.bf16.gmra.mrb[0].mxu0 %v2735
        %v2846 = vpop.f32.mrb[0].mxu0
        %v2847 = vadd.f32 %v2632, %v2846
        %v2848 = vpop.f32.mrb[0].mxu0
        %v2849 = vpop.f32.mrb[0].mxu0
        %v2850 = vadd.f32 %v2635, %v2849
        %v2851 = vpop.f32.mrb[0].mxu0
        %2852 = vmatprep.mubr.bf16.mxu0 0
        %2853 = vmatmul.mubr.bf16.gmra.mrb[0].mxu0 %v2738
        %v2854 = vpop.f32.mrb[0].mxu0
        %v2855 = vadd.f32 %v2640, %v2854
        %v2856 = vpop.f32.mrb[0].mxu0
        %v2857 = vpop.f32.mrb[0].mxu0
        %v2858 = vadd.f32 %v2643, %v2857
        %v2859 = vpop.f32.mrb[0].mxu0
        %2860 = vmatprep.mubr.bf16.mxu0 0
        %2861 = vmatmul.mubr.bf16.gmra.mrb[0].mxu0 %v2741
        %v2862 = vpop.f32.mrb[0].mxu0
        %v2863 = vadd.f32 %v2648, %v2862
        %v2864 = vpop.f32.mrb[0].mxu0
        %v2865 = vpop.f32.mrb[0].mxu0
        %v2866 = vadd.f32 %v2651, %v2865
        %v2867 = vpop.f32.mrb[0].mxu0
        %2868 = vmatprep.mubr.bf16.mxu0 0
        %2869 = vmatmul.mubr.bf16.gmra.mrb[0].mxu0 %v2744
        %v2870 = vpop.f32.mrb[0].mxu0
        %v2871 = vadd.f32 %v2656, %v2870
        %v2872 = vpop.f32.mrb[0].mxu0
        %v2873 = vpop.f32.mrb[0].mxu0
        %v2874 = vadd.f32 %v2659, %v2873
        %v2875 = vpop.f32.mrb[0].mxu0
        %2876 = vmatprep.mubr.bf16.mxu0 0
        %2877 = vmatmul.mubr.bf16.gmra.mrb[0].mxu0 %v2747
        %v2878 = vpop.f32.mrb[0].mxu0
        %v2879 = vadd.f32 %v2664, %v2878
        %v2880 = vpop.f32.mrb[0].mxu0
        %v2881 = vpop.f32.mrb[0].mxu0
        %v2882 = vadd.f32 %v2667, %v2881
        %v2883 = vpop.f32.mrb[0].mxu0
        %2884 = vmatprep.mubr.bf16.mxu0 0
        %2885 = vmatmul.mubr.bf16.gmra.mrb[0].mxu0 %v2750
        %v2886 = vpop.f32.mrb[0].mxu0
        %v2887 = vadd.f32 %v2672, %v2886
        %v2888 = vpop.f32.mrb[0].mxu0
        %v2889 = vpop.f32.mrb[0].mxu0
        %v2890 = vadd.f32 %v2675, %v2889
        %v2891 = vpop.f32.mrb[0].mxu0
        %2892 = vmatprep.mubr.bf16.mxu0 0
        %2893 = vmatmul.mubr.bf16.gmra.mrb[0].mxu0 %v2753
        %v2894 = vpop.f32.mrb[0].mxu0
        %v2895 = vadd.f32 %v2680, %v2894
        %v2896 = vpop.f32.mrb[0].mxu0
        %v2897 = vpop.f32.mrb[0].mxu0
        %v2898 = vadd.f32 %v2683, %v2897
        %v2899 = vpop.f32.mrb[0].mxu0
        %2900 = vmatprep.mubr.bf16.mxu0 0
        %2901 = vmatmul.mubr.bf16.gmra.mrb[0].mxu0 %v2756
        %v2902 = vpop.f32.mrb[0].mxu0
        %v2903 = vadd.f32 %v2688, %v2902
        %v2904 = vpop.f32.mrb[0].mxu0
        %v2905 = vpop.f32.mrb[0].mxu0
        %v2906 = vadd.f32 %v2691, %v2905
        %v2907 = vpop.f32.mrb[0].mxu0
        %2908 = vmatprep.mubr.bf16.mxu0 0
        %2909 = vmatmul.mubr.bf16.gmra.mrb[0].mxu0 %v2759
        %v2910 = vpop.f32.mrb[0].mxu0
        %v2911 = vadd.f32 %v2696, %v2910
        %v2912 = vpop.f32.mrb[0].mxu0
        %v2913 = vpop.f32.mrb[0].mxu0
        %v2914 = vadd.f32 %v2699, %v2913
        %v2915 = vpop.f32.mrb[0].mxu0
        %2916 = vmatprep.mubr.bf16.mxu0 0
        %2917 = vmatmul.mubr.bf16.gmra.mrb[0].mxu0 %v2762
        %v2918 = vpop.f32.mrb[0].mxu0
        %v2919 = vadd.f32 %v2704, %v2918
        %v2920 = vpop.f32.mrb[0].mxu0
        %v2921 = vpop.f32.mrb[0].mxu0
        %v2922 = vadd.f32 %v2707, %v2921
        %v2923 = vpop.f32.mrb[0].mxu0
        %2924 = vdwg.mxu0
        %v2925 = vpack.c.bf16 %v2423, %v2422
        %v2926 = vpack.c.bf16 %v2425, %v2424
        %v2927 = vpack.c.bf16 %v2427, %v2426
        %v2928 = vpack.c.bf16 %v2429, %v2428
        %v2929 = vpack.c.bf16 %v2431, %v2430
        %v2930 = vpack.c.bf16 %v2433, %v2432
        %v2931 = vpack.c.bf16 %v2435, %v2434
        %v2932 = vpack.c.bf16 %v2437, %v2436
        %v2933 = vpack.c.bf16 %v2439, %v2438
        %v2934 = vpack.c.bf16 %v2441, %v2440
        %v2935 = vpack.c.bf16 %v2443, %v2442
        %v2936 = vpack.c.bf16 %v2445, %v2444
        %v2937 = vpack.c.bf16 %v2447, %v2446
        %v2938 = vpack.c.bf16 %v2449, %v2448
        %v2939 = vpack.c.bf16 %v2451, %v2450
        %v2940 = vpack.c.bf16 %v2453, %v2452
        %s2941 = scalar_lea.vmem %s3, 16
        %v2942 = vld [vmem:[%s2941] sm:$0xf]
        %v2943 = vld [vmem:[%s2941 + $0x4] sm:$0xf]
        %v2946 = vunpack.c.l.b16 %v2942
        %v2947 = vunpack.c.l.b16 %v2943
        %v2948 = vpack.c.b16 %v2947, %v2946
        %v2951 = vsel %vm1782, %v2925, 0
        %v2954 = vsel %vm1782, %v2926, 0
        %v2957 = vsel %vm1782, %v2927, 0
        %v2960 = vsel %vm1782, %v2928, 0
        %v2963 = vsel %vm1782, %v2929, 0
        %v2966 = vsel %vm1782, %v2930, 0
        %v2969 = vsel %vm1782, %v2931, 0
        %v2972 = vsel %vm1782, %v2932, 0
        %v2975 = vsel %vm1782, %v2933, 0
        %v2978 = vsel %vm1782, %v2934, 0
        %v2981 = vsel %vm1782, %v2935, 0
        %v2984 = vsel %vm1782, %v2936, 0
        %v2987 = vsel %vm1782, %v2937, 0
        %v2990 = vsel %vm1782, %v2938, 0
        %v2993 = vsel %vm1782, %v2939, 0
        %v2996 = vsel %vm1782, %v2940, 0
        %2998 = vmatprep.subr.bf16.mxu0 0
        %2999 = vmatpush1.bf16.msra.mxu0 %v2948
        %3000 = vmatprep.subr.bf16.mxu0 0
        %3001 = vmatpush1.bf16.msra.mxu0 0
        %3002 = vmatprep.subr.bf16.mxu0 0
        %3003 = vmatpush1.bf16.msra.mxu0 0
        %3004 = vmatprep.subr.bf16.mxu0 0
        %3005 = vmatpush1.bf16.msra.mxu0 0
        %3006 = vmatprep.subr.bf16.mxu0 0
        %3007 = vmatpush1.bf16.msra.mxu0 0
        %3008 = vmatprep.subr.bf16.mxu0 0
        %3009 = vmatpush1.bf16.msra.mxu0 0
        %3010 = vmatprep.subr.bf16.mxu0 0
        %3011 = vmatpush1.bf16.msra.mxu0 0
        %3012 = vmatprep.subr.bf16.mxu0 0
        %3013 = vmatpush1.bf16.msra.mxu0 0
        %3014 = vmatprep.subr.bf16.mxu0 0
        %3015 = vmatpush1.bf16.msra.mxu0 0
        %3016 = vmatprep.subr.bf16.mxu0 0
        %3017 = vmatpush1.bf16.msra.mxu0 0
        %3018 = vmatprep.subr.bf16.mxu0 0
        %3019 = vmatpush1.bf16.msra.mxu0 0
        %3020 = vmatprep.subr.bf16.mxu0 0
        %3021 = vmatpush1.bf16.msra.mxu0 0
        %3022 = vmatprep.subr.bf16.mxu0 0
        %3023 = vmatpush1.bf16.msra.mxu0 0
        %3024 = vmatprep.subr.bf16.mxu0 0
        %3025 = vmatpush1.bf16.msra.mxu0 0
        %3026 = vmatprep.subr.bf16.mxu0 0
        %3027 = vmatpush1.bf16.msra.mxu0 0
        %3028 = vmatprep.subr.bf16.mxu0 0
        %3029 = vmatpush1.bf16.msra.mxu0 0
        %3030 = vmatprep.mubr.bf16.mxu0 0
        %3031 = vmatmul.mubr.bf16.gmra.mrb[0].mxu0 %v2951
        %v3032 = vpop.f32.mrb[0].mxu0
        %v3033 = vadd.f32 0.0, %v3032
        %v3034 = vpop.f32.mrb[0].mxu0
        %v3035 = vpop.f32.mrb[0].mxu0
        %v3036 = vadd.f32 0.0, %v3035
        %v3037 = vpop.f32.mrb[0].mxu0
        %3038 = vmatprep.mubr.bf16.mxu0 0
        %3039 = vmatmul.mubr.bf16.gmra.mrb[0].mxu0 %v2954
        %v3040 = vpop.f32.mrb[0].mxu0
        %v3041 = vadd.f32 0.0, %v3040
        %v3042 = vpop.f32.mrb[0].mxu0
        %v3043 = vpop.f32.mrb[0].mxu0
        %v3044 = vadd.f32 0.0, %v3043
        %v3045 = vpop.f32.mrb[0].mxu0
        %3046 = vmatprep.mubr.bf16.mxu0 0
        %3047 = vmatmul.mubr.bf16.gmra.mrb[0].mxu0 %v2957
        %v3048 = vpop.f32.mrb[0].mxu0
        %v3049 = vadd.f32 0.0, %v3048
        %v3050 = vpop.f32.mrb[0].mxu0
        %v3051 = vpop.f32.mrb[0].mxu0
        %v3052 = vadd.f32 0.0, %v3051
        %v3053 = vpop.f32.mrb[0].mxu0
        %3054 = vmatprep.mubr.bf16.mxu0 0
        %3055 = vmatmul.mubr.bf16.gmra.mrb[0].mxu0 %v2960
        %v3056 = vpop.f32.mrb[0].mxu0
        %v3057 = vadd.f32 0.0, %v3056
        %v3058 = vpop.f32.mrb[0].mxu0
        %v3059 = vpop.f32.mrb[0].mxu0
        %v3060 = vadd.f32 0.0, %v3059
        %v3061 = vpop.f32.mrb[0].mxu0
        %3062 = vmatprep.mubr.bf16.mxu0 0
        %3063 = vmatmul.mubr.bf16.gmra.mrb[0].mxu0 %v2963
        %v3064 = vpop.f32.mrb[0].mxu0
        %v3065 = vadd.f32 0.0, %v3064
        %v3066 = vpop.f32.mrb[0].mxu0
        %v3067 = vpop.f32.mrb[0].mxu0
        %v3068 = vadd.f32 0.0, %v3067
        %v3069 = vpop.f32.mrb[0].mxu0
        %3070 = vmatprep.mubr.bf16.mxu0 0
        %3071 = vmatmul.mubr.bf16.gmra.mrb[0].mxu0 %v2966
        %v3072 = vpop.f32.mrb[0].mxu0
        %v3073 = vadd.f32 0.0, %v3072
        %v3074 = vpop.f32.mrb[0].mxu0
        %v3075 = vpop.f32.mrb[0].mxu0
        %v3076 = vadd.f32 0.0, %v3075
        %v3077 = vpop.f32.mrb[0].mxu0
        %3078 = vmatprep.mubr.bf16.mxu0 0
        %3079 = vmatmul.mubr.bf16.gmra.mrb[0].mxu0 %v2969
        %v3080 = vpop.f32.mrb[0].mxu0
        %v3081 = vadd.f32 0.0, %v3080
        %v3082 = vpop.f32.mrb[0].mxu0
        %v3083 = vpop.f32.mrb[0].mxu0
        %v3084 = vadd.f32 0.0, %v3083
        %v3085 = vpop.f32.mrb[0].mxu0
        %3086 = vmatprep.mubr.bf16.mxu0 0
        %3087 = vmatmul.mubr.bf16.gmra.mrb[0].mxu0 %v2972
        %v3088 = vpop.f32.mrb[0].mxu0
        %v3089 = vadd.f32 0.0, %v3088
        %v3090 = vpop.f32.mrb[0].mxu0
        %v3091 = vpop.f32.mrb[0].mxu0
        %v3092 = vadd.f32 0.0, %v3091
        %v3093 = vpop.f32.mrb[0].mxu0
        %3094 = vmatprep.mubr.bf16.mxu0 0
        %3095 = vmatmul.mubr.bf16.gmra.mrb[0].mxu0 %v2975
        %v3096 = vpop.f32.mrb[0].mxu0
        %v3097 = vadd.f32 0.0, %v3096
        %v3098 = vpop.f32.mrb[0].mxu0
        %v3099 = vpop.f32.mrb[0].mxu0
        %v3100 = vadd.f32 0.0, %v3099
        %v3101 = vpop.f32.mrb[0].mxu0
        %3102 = vmatprep.mubr.bf16.mxu0 0
        %3103 = vmatmul.mubr.bf16.gmra.mrb[0].mxu0 %v2978
        %v3104 = vpop.f32.mrb[0].mxu0
        %v3105 = vadd.f32 0.0, %v3104
        %v3106 = vpop.f32.mrb[0].mxu0
        %v3107 = vpop.f32.mrb[0].mxu0
        %v3108 = vadd.f32 0.0, %v3107
        %v3109 = vpop.f32.mrb[0].mxu0
        %3110 = vmatprep.mubr.bf16.mxu0 0
        %3111 = vmatmul.mubr.bf16.gmra.mrb[0].mxu0 %v2981
        %v3112 = vpop.f32.mrb[0].mxu0
        %v3113 = vadd.f32 0.0, %v3112
        %v3114 = vpop.f32.mrb[0].mxu0
        %v3115 = vpop.f32.mrb[0].mxu0
        %v3116 = vadd.f32 0.0, %v3115
        %v3117 = vpop.f32.mrb[0].mxu0
        %3118 = vmatprep.mubr.bf16.mxu0 0
        %3119 = vmatmul.mubr.bf16.gmra.mrb[0].mxu0 %v2984
        %v3120 = vpop.f32.mrb[0].mxu0
        %v3121 = vadd.f32 0.0, %v3120
        %v3122 = vpop.f32.mrb[0].mxu0
        %v3123 = vpop.f32.mrb[0].mxu0
        %v3124 = vadd.f32 0.0, %v3123
        %v3125 = vpop.f32.mrb[0].mxu0
        %3126 = vmatprep.mubr.bf16.mxu0 0
        %3127 = vmatmul.mubr.bf16.gmra.mrb[0].mxu0 %v2987
        %v3128 = vpop.f32.mrb[0].mxu0
        %v3129 = vadd.f32 0.0, %v3128
        %v3130 = vpop.f32.mrb[0].mxu0
        %v3131 = vpop.f32.mrb[0].mxu0
        %v3132 = vadd.f32 0.0, %v3131
        %v3133 = vpop.f32.mrb[0].mxu0
        %3134 = vmatprep.mubr.bf16.mxu0 0
        %3135 = vmatmul.mubr.bf16.gmra.mrb[0].mxu0 %v2990
        %v3136 = vpop.f32.mrb[0].mxu0
        %v3137 = vadd.f32 0.0, %v3136
        %v3138 = vpop.f32.mrb[0].mxu0
        %v3139 = vpop.f32.mrb[0].mxu0
        %v3140 = vadd.f32 0.0, %v3139
        %v3141 = vpop.f32.mrb[0].mxu0
        %3142 = vmatprep.mubr.bf16.mxu0 0
        %3143 = vmatmul.mubr.bf16.gmra.mrb[0].mxu0 %v2993
        %v3144 = vpop.f32.mrb[0].mxu0
        %v3145 = vadd.f32 0.0, %v3144
        %v3146 = vpop.f32.mrb[0].mxu0
        %v3147 = vpop.f32.mrb[0].mxu0
        %v3148 = vadd.f32 0.0, %v3147
        %v3149 = vpop.f32.mrb[0].mxu0
        %3150 = vmatprep.mubr.bf16.mxu0 0
        %3151 = vmatmul.mubr.bf16.gmra.mrb[0].mxu0 %v2996
        %v3152 = vpop.f32.mrb[0].mxu0
        %v3153 = vadd.f32 0.0, %v3152
        %v3154 = vpop.f32.mrb[0].mxu0
        %v3155 = vpop.f32.mrb[0].mxu0
        %v3156 = vadd.f32 0.0, %v3155
        %v3157 = vpop.f32.mrb[0].mxu0
        %3158 = vdwg.mxu0
        %v3159 = vadd.f32 %v2799, %v3033
        %v3160 = vadd.f32 %v2802, %v3036
        %v3161 = vadd.f32 %v2807, %v3041
        %v3162 = vadd.f32 %v2810, %v3044
        %v3163 = vadd.f32 %v2815, %v3049
        %v3164 = vadd.f32 %v2818, %v3052
        %v3165 = vadd.f32 %v2823, %v3057
        %v3166 = vadd.f32 %v2826, %v3060
        %v3167 = vadd.f32 %v2831, %v3065
        %v3168 = vadd.f32 %v2834, %v3068
        %v3169 = vadd.f32 %v2839, %v3073
        %v3170 = vadd.f32 %v2842, %v3076
        %v3171 = vadd.f32 %v2847, %v3081
        %v3172 = vadd.f32 %v2850, %v3084
        %v3173 = vadd.f32 %v2855, %v3089
        %v3174 = vadd.f32 %v2858, %v3092
        %v3175 = vadd.f32 %v2863, %v3097
        %v3176 = vadd.f32 %v2866, %v3100
        %v3177 = vadd.f32 %v2871, %v3105
        %v3178 = vadd.f32 %v2874, %v3108
        %v3179 = vadd.f32 %v2879, %v3113
        %v3180 = vadd.f32 %v2882, %v3116
        %v3181 = vadd.f32 %v2887, %v3121
        %v3182 = vadd.f32 %v2890, %v3124
        %v3183 = vadd.f32 %v2895, %v3129
        %v3184 = vadd.f32 %v2898, %v3132
        %v3185 = vadd.f32 %v2903, %v3137
        %v3186 = vadd.f32 %v2906, %v3140
        %v3187 = vadd.f32 %v2911, %v3145
        %v3188 = vadd.f32 %v2914, %v3148
        %v3189 = vadd.f32 %v2919, %v3153
        %v3190 = vadd.f32 %v2922, %v3156
        %v3191 = vpack.c.bf16 %v2383, %v2382
        %s3192 = scalar_lea.vmem %s3, 24
        %v3193 = vld [vmem:[%s3192] sm:$0xf]
        %v3194 = vld [vmem:[%s3192 + $0x4] sm:$0xf]
        %v3197 = vunpack.c.l.b16 %v3193
        %v3198 = vunpack.c.l.b16 %v3194
        %v3199 = vpack.c.b16 %v3198, %v3197
        %v3202 = vsel %vm1782, %v3191, 0
        %3204 = vmatprep.subr.bf16.mxu0 0
        %3205 = vmatpush1.bf16.msra.mxu0 %v3199
        %3206 = vmatprep.subr.bf16.mxu0 0
        %3207 = vmatpush1.bf16.msra.mxu0 0
        %3208 = vmatprep.subr.bf16.mxu0 0
        %3209 = vmatpush1.bf16.msra.mxu0 0
        %3210 = vmatprep.subr.bf16.mxu0 0
        %3211 = vmatpush1.bf16.msra.mxu0 0
        %3212 = vmatprep.subr.bf16.mxu0 0
        %3213 = vmatpush1.bf16.msra.mxu0 0
        %3214 = vmatprep.subr.bf16.mxu0 0
        %3215 = vmatpush1.bf16.msra.mxu0 0
        %3216 = vmatprep.subr.bf16.mxu0 0
        %3217 = vmatpush1.bf16.msra.mxu0 0
        %3218 = vmatprep.subr.bf16.mxu0 0
        %3219 = vmatpush1.bf16.msra.mxu0 0
        %3220 = vmatprep.subr.bf16.mxu0 0
        %3221 = vmatpush1.bf16.msra.mxu0 0
        %3222 = vmatprep.subr.bf16.mxu0 0
        %3223 = vmatpush1.bf16.msra.mxu0 0
        %3224 = vmatprep.subr.bf16.mxu0 0
        %3225 = vmatpush1.bf16.msra.mxu0 0
        %3226 = vmatprep.subr.bf16.mxu0 0
        %3227 = vmatpush1.bf16.msra.mxu0 0
        %3228 = vmatprep.subr.bf16.mxu0 0
        %3229 = vmatpush1.bf16.msra.mxu0 0
        %3230 = vmatprep.subr.bf16.mxu0 0
        %3231 = vmatpush1.bf16.msra.mxu0 0
        %3232 = vmatprep.subr.bf16.mxu0 0
        %3233 = vmatpush1.bf16.msra.mxu0 0
        %3234 = vmatprep.subr.bf16.mxu0 0
        %3235 = vmatpush1.bf16.msra.mxu0 0
        %3236 = vmatprep.mubr.bf16.mxu0 0
        %3237 = vmatmul.mubr.bf16.gmra.mrb[0].mxu0 %v2720
        %v3238 = vpop.f32.mrb[0].mxu0
        %v3239 = vadd.f32 0.0, %v3238
        %v3240 = vpop.f32.mrb[0].mxu0
        %v3241 = vpop.f32.mrb[0].mxu0
        %v3242 = vadd.f32 0.0, %v3241
        %v3243 = vpop.f32.mrb[0].mxu0
        %3244 = vmatprep.mubr.bf16.mxu0 0
        %3245 = vmatmul.mubr.bf16.gmra.mrb[0].mxu0 %v2723
        %v3246 = vpop.f32.mrb[0].mxu0
        %v3247 = vadd.f32 0.0, %v3246
        %v3248 = vpop.f32.mrb[0].mxu0
        %v3249 = vpop.f32.mrb[0].mxu0
        %v3250 = vadd.f32 0.0, %v3249
        %v3251 = vpop.f32.mrb[0].mxu0
        %3252 = vmatprep.mubr.bf16.mxu0 0
        %3253 = vmatmul.mubr.bf16.gmra.mrb[0].mxu0 %v2726
        %v3254 = vpop.f32.mrb[0].mxu0
        %v3255 = vadd.f32 0.0, %v3254
        %v3256 = vpop.f32.mrb[0].mxu0
        %v3257 = vpop.f32.mrb[0].mxu0
        %v3258 = vadd.f32 0.0, %v3257
        %v3259 = vpop.f32.mrb[0].mxu0
        %3260 = vmatprep.mubr.bf16.mxu0 0
        %3261 = vmatmul.mubr.bf16.gmra.mrb[0].mxu0 %v2729
        %v3262 = vpop.f32.mrb[0].mxu0
        %v3263 = vadd.f32 0.0, %v3262
        %v3264 = vpop.f32.mrb[0].mxu0
        %v3265 = vpop.f32.mrb[0].mxu0
        %v3266 = vadd.f32 0.0, %v3265
        %v3267 = vpop.f32.mrb[0].mxu0
        %3268 = vmatprep.mubr.bf16.mxu0 0
        %3269 = vmatmul.mubr.bf16.gmra.mrb[0].mxu0 %v2732
        %v3270 = vpop.f32.mrb[0].mxu0
        %v3271 = vadd.f32 0.0, %v3270
        %v3272 = vpop.f32.mrb[0].mxu0
        %v3273 = vpop.f32.mrb[0].mxu0
        %v3274 = vadd.f32 0.0, %v3273
        %v3275 = vpop.f32.mrb[0].mxu0
        %3276 = vmatprep.mubr.bf16.mxu0 0
        %3277 = vmatmul.mubr.bf16.gmra.mrb[0].mxu0 %v2735
        %v3278 = vpop.f32.mrb[0].mxu0
        %v3279 = vadd.f32 0.0, %v3278
        %v3280 = vpop.f32.mrb[0].mxu0
        %v3281 = vpop.f32.mrb[0].mxu0
        %v3282 = vadd.f32 0.0, %v3281
        %v3283 = vpop.f32.mrb[0].mxu0
        %3284 = vmatprep.mubr.bf16.mxu0 0
        %3285 = vmatmul.mubr.bf16.gmra.mrb[0].mxu0 %v2738
        %v3286 = vpop.f32.mrb[0].mxu0
        %v3287 = vadd.f32 0.0, %v3286
        %v3288 = vpop.f32.mrb[0].mxu0
        %v3289 = vpop.f32.mrb[0].mxu0
        %v3290 = vadd.f32 0.0, %v3289
        %v3291 = vpop.f32.mrb[0].mxu0
        %3292 = vmatprep.mubr.bf16.mxu0 0
        %3293 = vmatmul.mubr.bf16.gmra.mrb[0].mxu0 %v2741
        %v3294 = vpop.f32.mrb[0].mxu0
        %v3295 = vadd.f32 0.0, %v3294
        %v3296 = vpop.f32.mrb[0].mxu0
        %v3297 = vpop.f32.mrb[0].mxu0
        %v3298 = vadd.f32 0.0, %v3297
        %v3299 = vpop.f32.mrb[0].mxu0
        %3300 = vmatprep.mubr.bf16.mxu0 0
        %3301 = vmatmul.mubr.bf16.gmra.mrb[0].mxu0 %v2744
        %v3302 = vpop.f32.mrb[0].mxu0
        %v3303 = vadd.f32 0.0, %v3302
        %v3304 = vpop.f32.mrb[0].mxu0
        %v3305 = vpop.f32.mrb[0].mxu0
        %v3306 = vadd.f32 0.0, %v3305
        %v3307 = vpop.f32.mrb[0].mxu0
        %3308 = vmatprep.mubr.bf16.mxu0 0
        %3309 = vmatmul.mubr.bf16.gmra.mrb[0].mxu0 %v2747
        %v3310 = vpop.f32.mrb[0].mxu0
        %v3311 = vadd.f32 0.0, %v3310
        %v3312 = vpop.f32.mrb[0].mxu0
        %v3313 = vpop.f32.mrb[0].mxu0
        %v3314 = vadd.f32 0.0, %v3313
        %v3315 = vpop.f32.mrb[0].mxu0
        %3316 = vmatprep.mubr.bf16.mxu0 0
        %3317 = vmatmul.mubr.bf16.gmra.mrb[0].mxu0 %v2750
        %v3318 = vpop.f32.mrb[0].mxu0
        %v3319 = vadd.f32 0.0, %v3318
        %v3320 = vpop.f32.mrb[0].mxu0
        %v3321 = vpop.f32.mrb[0].mxu0
        %v3322 = vadd.f32 0.0, %v3321
        %v3323 = vpop.f32.mrb[0].mxu0
        %3324 = vmatprep.mubr.bf16.mxu0 0
        %3325 = vmatmul.mubr.bf16.gmra.mrb[0].mxu0 %v2753
        %v3326 = vpop.f32.mrb[0].mxu0
        %v3327 = vadd.f32 0.0, %v3326
        %v3328 = vpop.f32.mrb[0].mxu0
        %v3329 = vpop.f32.mrb[0].mxu0
        %v3330 = vadd.f32 0.0, %v3329
        %v3331 = vpop.f32.mrb[0].mxu0
        %3332 = vmatprep.mubr.bf16.mxu0 0
        %3333 = vmatmul.mubr.bf16.gmra.mrb[0].mxu0 %v2756
        %v3334 = vpop.f32.mrb[0].mxu0
        %v3335 = vadd.f32 0.0, %v3334
        %v3336 = vpop.f32.mrb[0].mxu0
        %v3337 = vpop.f32.mrb[0].mxu0
        %v3338 = vadd.f32 0.0, %v3337
        %v3339 = vpop.f32.mrb[0].mxu0
        %3340 = vmatprep.mubr.bf16.mxu0 0
        %3341 = vmatmul.mubr.bf16.gmra.mrb[0].mxu0 %v2759
        %v3342 = vpop.f32.mrb[0].mxu0
        %v3343 = vadd.f32 0.0, %v3342
        %v3344 = vpop.f32.mrb[0].mxu0
        %v3345 = vpop.f32.mrb[0].mxu0
        %v3346 = vadd.f32 0.0, %v3345
        %v3347 = vpop.f32.mrb[0].mxu0
        %3348 = vmatprep.mubr.bf16.mxu0 0
        %3349 = vmatmul.mubr.bf16.gmra.mrb[0].mxu0 %v2762
        %v3350 = vpop.f32.mrb[0].mxu0
        %v3351 = vadd.f32 0.0, %v3350
        %v3352 = vpop.f32.mrb[0].mxu0
        %v3353 = vpop.f32.mrb[0].mxu0
        %v3354 = vadd.f32 0.0, %v3353
        %v3355 = vpop.f32.mrb[0].mxu0
        %3356 = vmatprep.mubr.bf16.mxu0 0
        %3357 = vmatmul.mubr.bf16.gmra.mrb[0].mxu0 %v3202
        %v3358 = vpop.f32.mrb[0].mxu0
        %v3359 = vadd.f32 0.0, %v3358
        %v3360 = vpop.f32.mrb[0].mxu0
        %v3361 = vpop.f32.mrb[0].mxu0
        %v3362 = vadd.f32 0.0, %v3361
        %v3363 = vpop.f32.mrb[0].mxu0
        %3364 = vdwg.mxu0
        %v3365 = vadd.f32 %v3159, %v3239
        %v3366 = vadd.f32 %v3160, %v3242
        %v3367 = vadd.f32 %v3161, %v3247
        %v3368 = vadd.f32 %v3162, %v3250
        %v3369 = vadd.f32 %v3163, %v3255
        %v3370 = vadd.f32 %v3164, %v3258
        %v3371 = vadd.f32 %v3165, %v3263
        %v3372 = vadd.f32 %v3166, %v3266
        %v3373 = vadd.f32 %v3167, %v3271
        %v3374 = vadd.f32 %v3168, %v3274
        %v3375 = vadd.f32 %v3169, %v3279
        %v3376 = vadd.f32 %v3170, %v3282
        %v3377 = vadd.f32 %v3171, %v3287
        %v3378 = vadd.f32 %v3172, %v3290
        %v3379 = vadd.f32 %v3173, %v3295
        %v3380 = vadd.f32 %v3174, %v3298
        %v3381 = vadd.f32 %v3175, %v3303
        %v3382 = vadd.f32 %v3176, %v3306
        %v3383 = vadd.f32 %v3177, %v3311
        %v3384 = vadd.f32 %v3178, %v3314
        %v3385 = vadd.f32 %v3179, %v3319
        %v3386 = vadd.f32 %v3180, %v3322
        %v3387 = vadd.f32 %v3181, %v3327
        %v3388 = vadd.f32 %v3182, %v3330
        %v3389 = vadd.f32 %v3183, %v3335
        %v3390 = vadd.f32 %v3184, %v3338
        %v3391 = vadd.f32 %v3185, %v3343
        %v3392 = vadd.f32 %v3186, %v3346
        %v3393 = vadd.f32 %v3187, %v3351
        %v3394 = vadd.f32 %v3188, %v3354
        %v3395 = vadd.f32 %v3189, %v3359
        %v3396 = vadd.f32 %v3190, %v3362
        %v3397 = vpack.c.bf16 %v2419, %v2418
        %s3398 = scalar_lea.vmem %s3, 32
        %v3399 = vld [vmem:[%s3398] sm:$0xf]
        %v3400 = vld [vmem:[%s3398 + $0x4] sm:$0xf]
        %v3403 = vunpack.c.l.b16 %v3399
        %v3404 = vunpack.c.l.b16 %v3400
        %v3405 = vpack.c.b16 %v3404, %v3403
        %v3408 = vsel %vm1782, %v3397, 0
        %3410 = vmatprep.subr.bf16.mxu0 0
        %3411 = vmatpush1.bf16.msra.mxu0 %v3405
        %3412 = vmatprep.subr.bf16.mxu0 0
        %3413 = vmatpush1.bf16.msra.mxu0 0
        %3414 = vmatprep.subr.bf16.mxu0 0
        %3415 = vmatpush1.bf16.msra.mxu0 0
        %3416 = vmatprep.subr.bf16.mxu0 0
        %3417 = vmatpush1.bf16.msra.mxu0 0
        %3418 = vmatprep.subr.bf16.mxu0 0
        %3419 = vmatpush1.bf16.msra.mxu0 0
        %3420 = vmatprep.subr.bf16.mxu0 0
        %3421 = vmatpush1.bf16.msra.mxu0 0
        %3422 = vmatprep.subr.bf16.mxu0 0
        %3423 = vmatpush1.bf16.msra.mxu0 0
        %3424 = vmatprep.subr.bf16.mxu0 0
        %3425 = vmatpush1.bf16.msra.mxu0 0
        %3426 = vmatprep.subr.bf16.mxu0 0
        %3427 = vmatpush1.bf16.msra.mxu0 0
        %3428 = vmatprep.subr.bf16.mxu0 0
        %3429 = vmatpush1.bf16.msra.mxu0 0
        %3430 = vmatprep.subr.bf16.mxu0 0
        %3431 = vmatpush1.bf16.msra.mxu0 0
        %3432 = vmatprep.subr.bf16.mxu0 0
        %3433 = vmatpush1.bf16.msra.mxu0 0
        %3434 = vmatprep.subr.bf16.mxu0 0
        %3435 = vmatpush1.bf16.msra.mxu0 0
        %3436 = vmatprep.subr.bf16.mxu0 0
        %3437 = vmatpush1.bf16.msra.mxu0 0
        %3438 = vmatprep.subr.bf16.mxu0 0
        %3439 = vmatpush1.bf16.msra.mxu0 0
        %3440 = vmatprep.subr.bf16.mxu0 0
        %3441 = vmatpush1.bf16.msra.mxu0 0
        %3442 = vmatprep.mubr.bf16.mxu0 0
        %3443 = vmatmul.mubr.bf16.gmra.mrb[0].mxu0 %v2505
        %v3444 = vpop.f32.mrb[0].mxu0
        %v3445 = vadd.f32 0.0, %v3444
        %v3446 = vpop.f32.mrb[0].mxu0
        %v3447 = vpop.f32.mrb[0].mxu0
        %v3448 = vadd.f32 0.0, %v3447
        %v3449 = vpop.f32.mrb[0].mxu0
        %3450 = vmatprep.mubr.bf16.mxu0 0
        %3451 = vmatmul.mubr.bf16.gmra.mrb[0].mxu0 %v2508
        %v3452 = vpop.f32.mrb[0].mxu0
        %v3453 = vadd.f32 0.0, %v3452
        %v3454 = vpop.f32.mrb[0].mxu0
        %v3455 = vpop.f32.mrb[0].mxu0
        %v3456 = vadd.f32 0.0, %v3455
        %v3457 = vpop.f32.mrb[0].mxu0
        %3458 = vmatprep.mubr.bf16.mxu0 0
        %3459 = vmatmul.mubr.bf16.gmra.mrb[0].mxu0 %v2511
        %v3460 = vpop.f32.mrb[0].mxu0
        %v3461 = vadd.f32 0.0, %v3460
        %v3462 = vpop.f32.mrb[0].mxu0
        %v3463 = vpop.f32.mrb[0].mxu0
        %v3464 = vadd.f32 0.0, %v3463
        %v3465 = vpop.f32.mrb[0].mxu0
        %3466 = vmatprep.mubr.bf16.mxu0 0
        %3467 = vmatmul.mubr.bf16.gmra.mrb[0].mxu0 %v2514
        %v3468 = vpop.f32.mrb[0].mxu0
        %v3469 = vadd.f32 0.0, %v3468
        %v3470 = vpop.f32.mrb[0].mxu0
        %v3471 = vpop.f32.mrb[0].mxu0
        %v3472 = vadd.f32 0.0, %v3471
        %v3473 = vpop.f32.mrb[0].mxu0
        %3474 = vmatprep.mubr.bf16.mxu0 0
        %3475 = vmatmul.mubr.bf16.gmra.mrb[0].mxu0 %v2517
        %v3476 = vpop.f32.mrb[0].mxu0
        %v3477 = vadd.f32 0.0, %v3476
        %v3478 = vpop.f32.mrb[0].mxu0
        %v3479 = vpop.f32.mrb[0].mxu0
        %v3480 = vadd.f32 0.0, %v3479
        %v3481 = vpop.f32.mrb[0].mxu0
        %3482 = vmatprep.mubr.bf16.mxu0 0
        %3483 = vmatmul.mubr.bf16.gmra.mrb[0].mxu0 %v2520
        %v3484 = vpop.f32.mrb[0].mxu0
        %v3485 = vadd.f32 0.0, %v3484
        %v3486 = vpop.f32.mrb[0].mxu0
        %v3487 = vpop.f32.mrb[0].mxu0
        %v3488 = vadd.f32 0.0, %v3487
        %v3489 = vpop.f32.mrb[0].mxu0
        %3490 = vmatprep.mubr.bf16.mxu0 0
        %3491 = vmatmul.mubr.bf16.gmra.mrb[0].mxu0 %v2523
        %v3492 = vpop.f32.mrb[0].mxu0
        %v3493 = vadd.f32 0.0, %v3492
        %v3494 = vpop.f32.mrb[0].mxu0
        %v3495 = vpop.f32.mrb[0].mxu0
        %v3496 = vadd.f32 0.0, %v3495
        %v3497 = vpop.f32.mrb[0].mxu0
        %3498 = vmatprep.mubr.bf16.mxu0 0
        %3499 = vmatmul.mubr.bf16.gmra.mrb[0].mxu0 %v2526
        %v3500 = vpop.f32.mrb[0].mxu0
        %v3501 = vadd.f32 0.0, %v3500
        %v3502 = vpop.f32.mrb[0].mxu0
        %v3503 = vpop.f32.mrb[0].mxu0
        %v3504 = vadd.f32 0.0, %v3503
        %v3505 = vpop.f32.mrb[0].mxu0
        %3506 = vmatprep.mubr.bf16.mxu0 0
        %3507 = vmatmul.mubr.bf16.gmra.mrb[0].mxu0 %v2529
        %v3508 = vpop.f32.mrb[0].mxu0
        %v3509 = vadd.f32 0.0, %v3508
        %v3510 = vpop.f32.mrb[0].mxu0
        %v3511 = vpop.f32.mrb[0].mxu0
        %v3512 = vadd.f32 0.0, %v3511
        %v3513 = vpop.f32.mrb[0].mxu0
        %3514 = vmatprep.mubr.bf16.mxu0 0
        %3515 = vmatmul.mubr.bf16.gmra.mrb[0].mxu0 %v2532
        %v3516 = vpop.f32.mrb[0].mxu0
        %v3517 = vadd.f32 0.0, %v3516
        %v3518 = vpop.f32.mrb[0].mxu0
        %v3519 = vpop.f32.mrb[0].mxu0
        %v3520 = vadd.f32 0.0, %v3519
        %v3521 = vpop.f32.mrb[0].mxu0
        %3522 = vmatprep.mubr.bf16.mxu0 0
        %3523 = vmatmul.mubr.bf16.gmra.mrb[0].mxu0 %v2535
        %v3524 = vpop.f32.mrb[0].mxu0
        %v3525 = vadd.f32 0.0, %v3524
        %v3526 = vpop.f32.mrb[0].mxu0
        %v3527 = vpop.f32.mrb[0].mxu0
        %v3528 = vadd.f32 0.0, %v3527
        %v3529 = vpop.f32.mrb[0].mxu0
        %3530 = vmatprep.mubr.bf16.mxu0 0
        %3531 = vmatmul.mubr.bf16.gmra.mrb[0].mxu0 %v2538
        %v3532 = vpop.f32.mrb[0].mxu0
        %v3533 = vadd.f32 0.0, %v3532
        %v3534 = vpop.f32.mrb[0].mxu0
        %v3535 = vpop.f32.mrb[0].mxu0
        %v3536 = vadd.f32 0.0, %v3535
        %v3537 = vpop.f32.mrb[0].mxu0
        %3538 = vmatprep.mubr.bf16.mxu0 0
        %3539 = vmatmul.mubr.bf16.gmra.mrb[0].mxu0 %v2541
        %v3540 = vpop.f32.mrb[0].mxu0
        %v3541 = vadd.f32 0.0, %v3540
        %v3542 = vpop.f32.mrb[0].mxu0
        %v3543 = vpop.f32.mrb[0].mxu0
        %v3544 = vadd.f32 0.0, %v3543
        %v3545 = vpop.f32.mrb[0].mxu0
        %3546 = vmatprep.mubr.bf16.mxu0 0
        %3547 = vmatmul.mubr.bf16.gmra.mrb[0].mxu0 %v2544
        %v3548 = vpop.f32.mrb[0].mxu0
        %v3549 = vadd.f32 0.0, %v3548
        %v3550 = vpop.f32.mrb[0].mxu0
        %v3551 = vpop.f32.mrb[0].mxu0
        %v3552 = vadd.f32 0.0, %v3551
        %v3553 = vpop.f32.mrb[0].mxu0
        %3554 = vmatprep.mubr.bf16.mxu0 0
        %3555 = vmatmul.mubr.bf16.gmra.mrb[0].mxu0 %v2547
        %v3556 = vpop.f32.mrb[0].mxu0
        %v3557 = vadd.f32 0.0, %v3556
        %v3558 = vpop.f32.mrb[0].mxu0
        %v3559 = vpop.f32.mrb[0].mxu0
        %v3560 = vadd.f32 0.0, %v3559
        %v3561 = vpop.f32.mrb[0].mxu0
        %3562 = vmatprep.mubr.bf16.mxu0 0
        %3563 = vmatmul.mubr.bf16.gmra.mrb[0].mxu0 %v3408
        %v3564 = vpop.f32.mrb[0].mxu0
        %v3565 = vadd.f32 0.0, %v3564
        %v3566 = vpop.f32.mrb[0].mxu0
        %v3567 = vpop.f32.mrb[0].mxu0
        %v3568 = vadd.f32 0.0, %v3567
        %v3569 = vpop.f32.mrb[0].mxu0
        %3570 = vdwg.mxu0
        %v3571 = vadd.f32 %v3365, %v3445
        %v3572 = vadd.f32 %v3366, %v3448
        %v3573 = vadd.f32 %v3367, %v3453
        %v3574 = vadd.f32 %v3368, %v3456
        %v3575 = vadd.f32 %v3369, %v3461
        %v3576 = vadd.f32 %v3370, %v3464
        %v3577 = vadd.f32 %v3371, %v3469
        %v3578 = vadd.f32 %v3372, %v3472
        %v3579 = vadd.f32 %v3373, %v3477
        %v3580 = vadd.f32 %v3374, %v3480
        %v3581 = vadd.f32 %v3375, %v3485
        %v3582 = vadd.f32 %v3376, %v3488
        %v3583 = vadd.f32 %v3377, %v3493
        %v3584 = vadd.f32 %v3378, %v3496
        %v3585 = vadd.f32 %v3379, %v3501
        %v3586 = vadd.f32 %v3380, %v3504
        %v3587 = vadd.f32 %v3381, %v3509
        %v3588 = vadd.f32 %v3382, %v3512
        %v3589 = vadd.f32 %v3383, %v3517
        %v3590 = vadd.f32 %v3384, %v3520
        %v3591 = vadd.f32 %v3385, %v3525
        %v3592 = vadd.f32 %v3386, %v3528
        %v3593 = vadd.f32 %v3387, %v3533
        %v3594 = vadd.f32 %v3388, %v3536
        %v3595 = vadd.f32 %v3389, %v3541
        %v3596 = vadd.f32 %v3390, %v3544
        %v3597 = vadd.f32 %v3391, %v3549
        %v3598 = vadd.f32 %v3392, %v3552
        %v3599 = vadd.f32 %v3393, %v3557
        %v3600 = vadd.f32 %v3394, %v3560
        %v3601 = vadd.f32 %v3395, %v3565
        %v3602 = vadd.f32 %v3396, %v3568
        %v3603 = vpack.c.bf16 %v2455, %v2454
        %s3604 = scalar_lea.vmem %s3, 40
        %v3605 = vld [vmem:[%s3604] sm:$0xf]
        %v3606 = vld [vmem:[%s3604 + $0x4] sm:$0xf]
        %v3609 = vunpack.c.l.b16 %v3605
        %v3610 = vunpack.c.l.b16 %v3606
        %v3611 = vpack.c.b16 %v3610, %v3609
        %v3614 = vsel %vm1782, %v3603, 0
        %3616 = vmatprep.subr.bf16.mxu0 0
        %3617 = vmatpush1.bf16.msra.mxu0 %v3611
        %3618 = vmatprep.subr.bf16.mxu0 0
        %3619 = vmatpush1.bf16.msra.mxu0 0
        %3620 = vmatprep.subr.bf16.mxu0 0
        %3621 = vmatpush1.bf16.msra.mxu0 0
        %3622 = vmatprep.subr.bf16.mxu0 0
        %3623 = vmatpush1.bf16.msra.mxu0 0
        %3624 = vmatprep.subr.bf16.mxu0 0
        %3625 = vmatpush1.bf16.msra.mxu0 0
        %3626 = vmatprep.subr.bf16.mxu0 0
        %3627 = vmatpush1.bf16.msra.mxu0 0
        %3628 = vmatprep.subr.bf16.mxu0 0
        %3629 = vmatpush1.bf16.msra.mxu0 0
        %3630 = vmatprep.subr.bf16.mxu0 0
        %3631 = vmatpush1.bf16.msra.mxu0 0
        %3632 = vmatprep.subr.bf16.mxu0 0
        %3633 = vmatpush1.bf16.msra.mxu0 0
        %3634 = vmatprep.subr.bf16.mxu0 0
        %3635 = vmatpush1.bf16.msra.mxu0 0
        %3636 = vmatprep.subr.bf16.mxu0 0
        %3637 = vmatpush1.bf16.msra.mxu0 0
        %3638 = vmatprep.subr.bf16.mxu0 0
        %3639 = vmatpush1.bf16.msra.mxu0 0
        %3640 = vmatprep.subr.bf16.mxu0 0
        %3641 = vmatpush1.bf16.msra.mxu0 0
        %3642 = vmatprep.subr.bf16.mxu0 0
        %3643 = vmatpush1.bf16.msra.mxu0 0
        %3644 = vmatprep.subr.bf16.mxu0 0
        %3645 = vmatpush1.bf16.msra.mxu0 0
        %3646 = vmatprep.subr.bf16.mxu0 0
        %3647 = vmatpush1.bf16.msra.mxu0 0
        %3648 = vmatprep.mubr.bf16.mxu0 0
        %3649 = vmatmul.mubr.bf16.gmra.mrb[0].mxu0 %v2954
        %v3650 = vpop.f32.mrb[0].mxu0
        %v3651 = vadd.f32 0.0, %v3650
        %v3652 = vpop.f32.mrb[0].mxu0
        %v3653 = vpop.f32.mrb[0].mxu0
        %v3654 = vadd.f32 0.0, %v3653
        %v3655 = vpop.f32.mrb[0].mxu0
        %3656 = vmatprep.mubr.bf16.mxu0 0
        %3657 = vmatmul.mubr.bf16.gmra.mrb[0].mxu0 %v2957
        %v3658 = vpop.f32.mrb[0].mxu0
        %v3659 = vadd.f32 0.0, %v3658
        %v3660 = vpop.f32.mrb[0].mxu0
        %v3661 = vpop.f32.mrb[0].mxu0
        %v3662 = vadd.f32 0.0, %v3661
        %v3663 = vpop.f32.mrb[0].mxu0
        %3664 = vmatprep.mubr.bf16.mxu0 0
        %3665 = vmatmul.mubr.bf16.gmra.mrb[0].mxu0 %v2960
        %v3666 = vpop.f32.mrb[0].mxu0
        %v3667 = vadd.f32 0.0, %v3666
        %v3668 = vpop.f32.mrb[0].mxu0
        %v3669 = vpop.f32.mrb[0].mxu0
        %v3670 = vadd.f32 0.0, %v3669
        %v3671 = vpop.f32.mrb[0].mxu0
        %3672 = vmatprep.mubr.bf16.mxu0 0
        %3673 = vmatmul.mubr.bf16.gmra.mrb[0].mxu0 %v2963
        %v3674 = vpop.f32.mrb[0].mxu0
        %v3675 = vadd.f32 0.0, %v3674
        %v3676 = vpop.f32.mrb[0].mxu0
        %v3677 = vpop.f32.mrb[0].mxu0
        %v3678 = vadd.f32 0.0, %v3677
        %v3679 = vpop.f32.mrb[0].mxu0
        %3680 = vmatprep.mubr.bf16.mxu0 0
        %3681 = vmatmul.mubr.bf16.gmra.mrb[0].mxu0 %v2966
        %v3682 = vpop.f32.mrb[0].mxu0
        %v3683 = vadd.f32 0.0, %v3682
        %v3684 = vpop.f32.mrb[0].mxu0
        %v3685 = vpop.f32.mrb[0].mxu0
        %v3686 = vadd.f32 0.0, %v3685
        %v3687 = vpop.f32.mrb[0].mxu0
        %3688 = vmatprep.mubr.bf16.mxu0 0
        %3689 = vmatmul.mubr.bf16.gmra.mrb[0].mxu0 %v2969
        %v3690 = vpop.f32.mrb[0].mxu0
        %v3691 = vadd.f32 0.0, %v3690
        %v3692 = vpop.f32.mrb[0].mxu0
        %v3693 = vpop.f32.mrb[0].mxu0
        %v3694 = vadd.f32 0.0, %v3693
        %v3695 = vpop.f32.mrb[0].mxu0
        %3696 = vmatprep.mubr.bf16.mxu0 0
        %3697 = vmatmul.mubr.bf16.gmra.mrb[0].mxu0 %v2972
        %v3698 = vpop.f32.mrb[0].mxu0
        %v3699 = vadd.f32 0.0, %v3698
        %v3700 = vpop.f32.mrb[0].mxu0
        %v3701 = vpop.f32.mrb[0].mxu0
        %v3702 = vadd.f32 0.0, %v3701
        %v3703 = vpop.f32.mrb[0].mxu0
        %3704 = vmatprep.mubr.bf16.mxu0 0
        %3705 = vmatmul.mubr.bf16.gmra.mrb[0].mxu0 %v2975
        %v3706 = vpop.f32.mrb[0].mxu0
        %v3707 = vadd.f32 0.0, %v3706
        %v3708 = vpop.f32.mrb[0].mxu0
        %v3709 = vpop.f32.mrb[0].mxu0
        %v3710 = vadd.f32 0.0, %v3709
        %v3711 = vpop.f32.mrb[0].mxu0
        %3712 = vmatprep.mubr.bf16.mxu0 0
        %3713 = vmatmul.mubr.bf16.gmra.mrb[0].mxu0 %v2978
        %v3714 = vpop.f32.mrb[0].mxu0
        %v3715 = vadd.f32 0.0, %v3714
        %v3716 = vpop.f32.mrb[0].mxu0
        %v3717 = vpop.f32.mrb[0].mxu0
        %v3718 = vadd.f32 0.0, %v3717
        %v3719 = vpop.f32.mrb[0].mxu0
        %3720 = vmatprep.mubr.bf16.mxu0 0
        %3721 = vmatmul.mubr.bf16.gmra.mrb[0].mxu0 %v2981
        %v3722 = vpop.f32.mrb[0].mxu0
        %v3723 = vadd.f32 0.0, %v3722
        %v3724 = vpop.f32.mrb[0].mxu0
        %v3725 = vpop.f32.mrb[0].mxu0
        %v3726 = vadd.f32 0.0, %v3725
        %v3727 = vpop.f32.mrb[0].mxu0
        %3728 = vmatprep.mubr.bf16.mxu0 0
        %3729 = vmatmul.mubr.bf16.gmra.mrb[0].mxu0 %v2984
        %v3730 = vpop.f32.mrb[0].mxu0
        %v3731 = vadd.f32 0.0, %v3730
        %v3732 = vpop.f32.mrb[0].mxu0
        %v3733 = vpop.f32.mrb[0].mxu0
        %v3734 = vadd.f32 0.0, %v3733
        %v3735 = vpop.f32.mrb[0].mxu0
        %3736 = vmatprep.mubr.bf16.mxu0 0
        %3737 = vmatmul.mubr.bf16.gmra.mrb[0].mxu0 %v2987
        %v3738 = vpop.f32.mrb[0].mxu0
        %v3739 = vadd.f32 0.0, %v3738
        %v3740 = vpop.f32.mrb[0].mxu0
        %v3741 = vpop.f32.mrb[0].mxu0
        %v3742 = vadd.f32 0.0, %v3741
        %v3743 = vpop.f32.mrb[0].mxu0
        %3744 = vmatprep.mubr.bf16.mxu0 0
        %3745 = vmatmul.mubr.bf16.gmra.mrb[0].mxu0 %v2990
        %v3746 = vpop.f32.mrb[0].mxu0
        %v3747 = vadd.f32 0.0, %v3746
        %v3748 = vpop.f32.mrb[0].mxu0
        %v3749 = vpop.f32.mrb[0].mxu0
        %v3750 = vadd.f32 0.0, %v3749
        %v3751 = vpop.f32.mrb[0].mxu0
        %3752 = vmatprep.mubr.bf16.mxu0 0
        %3753 = vmatmul.mubr.bf16.gmra.mrb[0].mxu0 %v2993
        %v3754 = vpop.f32.mrb[0].mxu0
        %v3755 = vadd.f32 0.0, %v3754
        %v3756 = vpop.f32.mrb[0].mxu0
        %v3757 = vpop.f32.mrb[0].mxu0
        %v3758 = vadd.f32 0.0, %v3757
        %v3759 = vpop.f32.mrb[0].mxu0
        %3760 = vmatprep.mubr.bf16.mxu0 0
        %3761 = vmatmul.mubr.bf16.gmra.mrb[0].mxu0 %v2996
        %v3762 = vpop.f32.mrb[0].mxu0
        %v3763 = vadd.f32 0.0, %v3762
        %v3764 = vpop.f32.mrb[0].mxu0
        %v3765 = vpop.f32.mrb[0].mxu0
        %v3766 = vadd.f32 0.0, %v3765
        %v3767 = vpop.f32.mrb[0].mxu0
        %3768 = vmatprep.mubr.bf16.mxu0 0
        %3769 = vmatmul.mubr.bf16.gmra.mrb[0].mxu0 %v3614
        %v3770 = vpop.f32.mrb[0].mxu0
        %v3771 = vadd.f32 0.0, %v3770
        %v3772 = vpop.f32.mrb[0].mxu0
        %v3773 = vpop.f32.mrb[0].mxu0
        %v3774 = vadd.f32 0.0, %v3773
        %v3775 = vpop.f32.mrb[0].mxu0
        %3776 = vdwg.mxu0
        %v3777 = vadd.f32 %v3571, %v3651
        %v3778 = vadd.f32 %v3572, %v3654
        %v3779 = vadd.f32 %v3573, %v3659
        %v3780 = vadd.f32 %v3574, %v3662
        %v3781 = vadd.f32 %v3575, %v3667
        %v3782 = vadd.f32 %v3576, %v3670
        %v3783 = vadd.f32 %v3577, %v3675
        %v3784 = vadd.f32 %v3578, %v3678
        %v3785 = vadd.f32 %v3579, %v3683
        %v3786 = vadd.f32 %v3580, %v3686
        %v3787 = vadd.f32 %v3581, %v3691
        %v3788 = vadd.f32 %v3582, %v3694
        %v3789 = vadd.f32 %v3583, %v3699
        %v3790 = vadd.f32 %v3584, %v3702
        %v3791 = vadd.f32 %v3585, %v3707
        %v3792 = vadd.f32 %v3586, %v3710
        %v3793 = vadd.f32 %v3587, %v3715
        %v3794 = vadd.f32 %v3588, %v3718
        %v3795 = vadd.f32 %v3589, %v3723
        %v3796 = vadd.f32 %v3590, %v3726
        %v3797 = vadd.f32 %v3591, %v3731
        %v3798 = vadd.f32 %v3592, %v3734
        %v3799 = vadd.f32 %v3593, %v3739
        %v3800 = vadd.f32 %v3594, %v3742
        %v3801 = vadd.f32 %v3595, %v3747
        %v3802 = vadd.f32 %v3596, %v3750
        %v3803 = vadd.f32 %v3597, %v3755
        %v3804 = vadd.f32 %v3598, %v3758
        %v3805 = vadd.f32 %v3599, %v3763
        %v3806 = vadd.f32 %v3600, %v3766
        %v3807 = vadd.f32 %v3601, %v3771
        %v3808 = vadd.f32 %v3602, %v3774
        %v3809 = vpack.c.bf16 %v2385, %v2384
        %s3810 = scalar_lea.vmem %s3, 48
        %v3811 = vld [vmem:[%s3810] sm:$0xf]
        %v3812 = vld [vmem:[%s3810 + $0x4] sm:$0xf]
        %v3815 = vunpack.c.l.b16 %v3811
        %v3816 = vunpack.c.l.b16 %v3812
        %v3817 = vpack.c.b16 %v3816, %v3815
        %v3820 = vsel %vm1782, %v3809, 0
        %3822 = vmatprep.subr.bf16.mxu0 0
        %3823 = vmatpush1.bf16.msra.mxu0 %v3817
        %3824 = vmatprep.subr.bf16.mxu0 0
        %3825 = vmatpush1.bf16.msra.mxu0 0
        %3826 = vmatprep.subr.bf16.mxu0 0
        %3827 = vmatpush1.bf16.msra.mxu0 0
        %3828 = vmatprep.subr.bf16.mxu0 0
        %3829 = vmatpush1.bf16.msra.mxu0 0
        %3830 = vmatprep.subr.bf16.mxu0 0
        %3831 = vmatpush1.bf16.msra.mxu0 0
        %3832 = vmatprep.subr.bf16.mxu0 0
        %3833 = vmatpush1.bf16.msra.mxu0 0
        %3834 = vmatprep.subr.bf16.mxu0 0
        %3835 = vmatpush1.bf16.msra.mxu0 0
        %3836 = vmatprep.subr.bf16.mxu0 0
        %3837 = vmatpush1.bf16.msra.mxu0 0
        %3838 = vmatprep.subr.bf16.mxu0 0
        %3839 = vmatpush1.bf16.msra.mxu0 0
        %3840 = vmatprep.subr.bf16.mxu0 0
        %3841 = vmatpush1.bf16.msra.mxu0 0
        %3842 = vmatprep.subr.bf16.mxu0 0
        %3843 = vmatpush1.bf16.msra.mxu0 0
        %3844 = vmatprep.subr.bf16.mxu0 0
        %3845 = vmatpush1.bf16.msra.mxu0 0
        %3846 = vmatprep.subr.bf16.mxu0 0
        %3847 = vmatpush1.bf16.msra.mxu0 0
        %3848 = vmatprep.subr.bf16.mxu0 0
        %3849 = vmatpush1.bf16.msra.mxu0 0
        %3850 = vmatprep.subr.bf16.mxu0 0
        %3851 = vmatpush1.bf16.msra.mxu0 0
        %3852 = vmatprep.subr.bf16.mxu0 0
        %3853 = vmatpush1.bf16.msra.mxu0 0
        %3854 = vmatprep.mubr.bf16.mxu0 0
        %3855 = vmatmul.mubr.bf16.gmra.mrb[0].mxu0 %v2723
        %v3856 = vpop.f32.mrb[0].mxu0
        %v3857 = vadd.f32 0.0, %v3856
        %v3858 = vpop.f32.mrb[0].mxu0
        %v3859 = vpop.f32.mrb[0].mxu0
        %v3860 = vadd.f32 0.0, %v3859
        %v3861 = vpop.f32.mrb[0].mxu0
        %3862 = vmatprep.mubr.bf16.mxu0 0
        %3863 = vmatmul.mubr.bf16.gmra.mrb[0].mxu0 %v2726
        %v3864 = vpop.f32.mrb[0].mxu0
        %v3865 = vadd.f32 0.0, %v3864
        %v3866 = vpop.f32.mrb[0].mxu0
        %v3867 = vpop.f32.mrb[0].mxu0
        %v3868 = vadd.f32 0.0, %v3867
        %v3869 = vpop.f32.mrb[0].mxu0
        %3870 = vmatprep.mubr.bf16.mxu0 0
        %3871 = vmatmul.mubr.bf16.gmra.mrb[0].mxu0 %v2729
        %v3872 = vpop.f32.mrb[0].mxu0
        %v3873 = vadd.f32 0.0, %v3872
        %v3874 = vpop.f32.mrb[0].mxu0
        %v3875 = vpop.f32.mrb[0].mxu0
        %v3876 = vadd.f32 0.0, %v3875
        %v3877 = vpop.f32.mrb[0].mxu0
        %3878 = vmatprep.mubr.bf16.mxu0 0
        %3879 = vmatmul.mubr.bf16.gmra.mrb[0].mxu0 %v2732
        %v3880 = vpop.f32.mrb[0].mxu0
        %v3881 = vadd.f32 0.0, %v3880
        %v3882 = vpop.f32.mrb[0].mxu0
        %v3883 = vpop.f32.mrb[0].mxu0
        %v3884 = vadd.f32 0.0, %v3883
        %v3885 = vpop.f32.mrb[0].mxu0
        %3886 = vmatprep.mubr.bf16.mxu0 0
        %3887 = vmatmul.mubr.bf16.gmra.mrb[0].mxu0 %v2735
        %v3888 = vpop.f32.mrb[0].mxu0
        %v3889 = vadd.f32 0.0, %v3888
        %v3890 = vpop.f32.mrb[0].mxu0
        %v3891 = vpop.f32.mrb[0].mxu0
        %v3892 = vadd.f32 0.0, %v3891
        %v3893 = vpop.f32.mrb[0].mxu0
        %3894 = vmatprep.mubr.bf16.mxu0 0
        %3895 = vmatmul.mubr.bf16.gmra.mrb[0].mxu0 %v2738
        %v3896 = vpop.f32.mrb[0].mxu0
        %v3897 = vadd.f32 0.0, %v3896
        %v3898 = vpop.f32.mrb[0].mxu0
        %v3899 = vpop.f32.mrb[0].mxu0
        %v3900 = vadd.f32 0.0, %v3899
        %v3901 = vpop.f32.mrb[0].mxu0
        %3902 = vmatprep.mubr.bf16.mxu0 0
        %3903 = vmatmul.mubr.bf16.gmra.mrb[0].mxu0 %v2741
        %v3904 = vpop.f32.mrb[0].mxu0
        %v3905 = vadd.f32 0.0, %v3904
        %v3906 = vpop.f32.mrb[0].mxu0
        %v3907 = vpop.f32.mrb[0].mxu0
        %v3908 = vadd.f32 0.0, %v3907
        %v3909 = vpop.f32.mrb[0].mxu0
        %3910 = vmatprep.mubr.bf16.mxu0 0
        %3911 = vmatmul.mubr.bf16.gmra.mrb[0].mxu0 %v2744
        %v3912 = vpop.f32.mrb[0].mxu0
        %v3913 = vadd.f32 0.0, %v3912
        %v3914 = vpop.f32.mrb[0].mxu0
        %v3915 = vpop.f32.mrb[0].mxu0
        %v3916 = vadd.f32 0.0, %v3915
        %v3917 = vpop.f32.mrb[0].mxu0
        %3918 = vmatprep.mubr.bf16.mxu0 0
        %3919 = vmatmul.mubr.bf16.gmra.mrb[0].mxu0 %v2747
        %v3920 = vpop.f32.mrb[0].mxu0
        %v3921 = vadd.f32 0.0, %v3920
        %v3922 = vpop.f32.mrb[0].mxu0
        %v3923 = vpop.f32.mrb[0].mxu0
        %v3924 = vadd.f32 0.0, %v3923
        %v3925 = vpop.f32.mrb[0].mxu0
        %3926 = vmatprep.mubr.bf16.mxu0 0
        %3927 = vmatmul.mubr.bf16.gmra.mrb[0].mxu0 %v2750
        %v3928 = vpop.f32.mrb[0].mxu0
        %v3929 = vadd.f32 0.0, %v3928
        %v3930 = vpop.f32.mrb[0].mxu0
        %v3931 = vpop.f32.mrb[0].mxu0
        %v3932 = vadd.f32 0.0, %v3931
        %v3933 = vpop.f32.mrb[0].mxu0
        %3934 = vmatprep.mubr.bf16.mxu0 0
        %3935 = vmatmul.mubr.bf16.gmra.mrb[0].mxu0 %v2753
        %v3936 = vpop.f32.mrb[0].mxu0
        %v3937 = vadd.f32 0.0, %v3936
        %v3938 = vpop.f32.mrb[0].mxu0
        %v3939 = vpop.f32.mrb[0].mxu0
        %v3940 = vadd.f32 0.0, %v3939
        %v3941 = vpop.f32.mrb[0].mxu0
        %3942 = vmatprep.mubr.bf16.mxu0 0
        %3943 = vmatmul.mubr.bf16.gmra.mrb[0].mxu0 %v2756
        %v3944 = vpop.f32.mrb[0].mxu0
        %v3945 = vadd.f32 0.0, %v3944
        %v3946 = vpop.f32.mrb[0].mxu0
        %v3947 = vpop.f32.mrb[0].mxu0
        %v3948 = vadd.f32 0.0, %v3947
        %v3949 = vpop.f32.mrb[0].mxu0
        %3950 = vmatprep.mubr.bf16.mxu0 0
        %3951 = vmatmul.mubr.bf16.gmra.mrb[0].mxu0 %v2759
        %v3952 = vpop.f32.mrb[0].mxu0
        %v3953 = vadd.f32 0.0, %v3952
        %v3954 = vpop.f32.mrb[0].mxu0
        %v3955 = vpop.f32.mrb[0].mxu0
        %v3956 = vadd.f32 0.0, %v3955
        %v3957 = vpop.f32.mrb[0].mxu0
        %3958 = vmatprep.mubr.bf16.mxu0 0
        %3959 = vmatmul.mubr.bf16.gmra.mrb[0].mxu0 %v2762
        %v3960 = vpop.f32.mrb[0].mxu0
        %v3961 = vadd.f32 0.0, %v3960
        %v3962 = vpop.f32.mrb[0].mxu0
        %v3963 = vpop.f32.mrb[0].mxu0
        %v3964 = vadd.f32 0.0, %v3963
        %v3965 = vpop.f32.mrb[0].mxu0
        %3966 = vmatprep.mubr.bf16.mxu0 0
        %3967 = vmatmul.mubr.bf16.gmra.mrb[0].mxu0 %v3202
        %v3968 = vpop.f32.mrb[0].mxu0
        %v3969 = vadd.f32 0.0, %v3968
        %v3970 = vpop.f32.mrb[0].mxu0
        %v3971 = vpop.f32.mrb[0].mxu0
        %v3972 = vadd.f32 0.0, %v3971
        %v3973 = vpop.f32.mrb[0].mxu0
        %3974 = vmatprep.mubr.bf16.mxu0 0
        %3975 = vmatmul.mubr.bf16.gmra.mrb[0].mxu0 %v3820
        %v3976 = vpop.f32.mrb[0].mxu0
        %v3977 = vadd.f32 0.0, %v3976
        %v3978 = vpop.f32.mrb[0].mxu0
        %v3979 = vpop.f32.mrb[0].mxu0
        %v3980 = vadd.f32 0.0, %v3979
        %v3981 = vpop.f32.mrb[0].mxu0
        %3982 = vdwg.mxu0
        %v3983 = vadd.f32 %v3777, %v3857
        %v3984 = vadd.f32 %v3778, %v3860
        %v3985 = vadd.f32 %v3779, %v3865
        %v3986 = vadd.f32 %v3780, %v3868
        %v3987 = vadd.f32 %v3781, %v3873
        %v3988 = vadd.f32 %v3782, %v3876
        %v3989 = vadd.f32 %v3783, %v3881
        %v3990 = vadd.f32 %v3784, %v3884
        %v3991 = vadd.f32 %v3785, %v3889
        %v3992 = vadd.f32 %v3786, %v3892
        %v3993 = vadd.f32 %v3787, %v3897
        %v3994 = vadd.f32 %v3788, %v3900
        %v3995 = vadd.f32 %v3789, %v3905
        %v3996 = vadd.f32 %v3790, %v3908
        %v3997 = vadd.f32 %v3791, %v3913
        %v3998 = vadd.f32 %v3792, %v3916
        %v3999 = vadd.f32 %v3793, %v3921
        %v4000 = vadd.f32 %v3794, %v3924
        %v4001 = vadd.f32 %v3795, %v3929
        %v4002 = vadd.f32 %v3796, %v3932
        %v4003 = vadd.f32 %v3797, %v3937
        %v4004 = vadd.f32 %v3798, %v3940
        %v4005 = vadd.f32 %v3799, %v3945
        %v4006 = vadd.f32 %v3800, %v3948
        %v4007 = vadd.f32 %v3801, %v3953
        %v4008 = vadd.f32 %v3802, %v3956
        %v4009 = vadd.f32 %v3803, %v3961
        %v4010 = vadd.f32 %v3804, %v3964
        %v4011 = vadd.f32 %v3805, %v3969
        %v4012 = vadd.f32 %v3806, %v3972
        %v4013 = vadd.f32 %v3807, %v3977
        %v4014 = vadd.f32 %v3808, %v3980
        %v4015 = vpack.c.bf16 %v2421, %v2420
        %s4016 = scalar_lea.vmem %s3, 56
        %v4017 = vld [vmem:[%s4016] sm:$0xf]
        %v4018 = vld [vmem:[%s4016 + $0x4] sm:$0xf]
        %v4021 = vunpack.c.l.b16 %v4017
        %v4022 = vunpack.c.l.b16 %v4018
        %v4023 = vpack.c.b16 %v4022, %v4021
        %v4026 = vsel %vm1782, %v4015, 0
        %4028 = vmatprep.subr.bf16.mxu0 0
        %4029 = vmatpush1.bf16.msra.mxu0 %v4023
        %4030 = vmatprep.subr.bf16.mxu0 0
        %4031 = vmatpush1.bf16.msra.mxu0 0
        %4032 = vmatprep.subr.bf16.mxu0 0
        %4033 = vmatpush1.bf16.msra.mxu0 0
        %4034 = vmatprep.subr.bf16.mxu0 0
        %4035 = vmatpush1.bf16.msra.mxu0 0
        %4036 = vmatprep.subr.bf16.mxu0 0
        %4037 = vmatpush1.bf16.msra.mxu0 0
        %4038 = vmatprep.subr.bf16.mxu0 0
        %4039 = vmatpush1.bf16.msra.mxu0 0
        %4040 = vmatprep.subr.bf16.mxu0 0
        %4041 = vmatpush1.bf16.msra.mxu0 0
        %4042 = vmatprep.subr.bf16.mxu0 0
        %4043 = vmatpush1.bf16.msra.mxu0 0
        %4044 = vmatprep.subr.bf16.mxu0 0
        %4045 = vmatpush1.bf16.msra.mxu0 0
        %4046 = vmatprep.subr.bf16.mxu0 0
        %4047 = vmatpush1.bf16.msra.mxu0 0
        %4048 = vmatprep.subr.bf16.mxu0 0
        %4049 = vmatpush1.bf16.msra.mxu0 0
        %4050 = vmatprep.subr.bf16.mxu0 0
        %4051 = vmatpush1.bf16.msra.mxu0 0
        %4052 = vmatprep.subr.bf16.mxu0 0
        %4053 = vmatpush1.bf16.msra.mxu0 0
        %4054 = vmatprep.subr.bf16.mxu0 0
        %4055 = vmatpush1.bf16.msra.mxu0 0
        %4056 = vmatprep.subr.bf16.mxu0 0
        %4057 = vmatpush1.bf16.msra.mxu0 0
        %4058 = vmatprep.subr.bf16.mxu0 0
        %4059 = vmatpush1.bf16.msra.mxu0 0
        %4060 = vmatprep.mubr.bf16.mxu0 0
        %4061 = vmatmul.mubr.bf16.gmra.mrb[0].mxu0 %v2508
        %v4062 = vpop.f32.mrb[0].mxu0
        %v4063 = vadd.f32 0.0, %v4062
        %v4064 = vpop.f32.mrb[0].mxu0
        %v4065 = vpop.f32.mrb[0].mxu0
        %v4066 = vadd.f32 0.0, %v4065
        %v4067 = vpop.f32.mrb[0].mxu0
        %4068 = vmatprep.mubr.bf16.mxu0 0
        %4069 = vmatmul.mubr.bf16.gmra.mrb[0].mxu0 %v2511
        %v4070 = vpop.f32.mrb[0].mxu0
        %v4071 = vadd.f32 0.0, %v4070
        %v4072 = vpop.f32.mrb[0].mxu0
        %v4073 = vpop.f32.mrb[0].mxu0
        %v4074 = vadd.f32 0.0, %v4073
        %v4075 = vpop.f32.mrb[0].mxu0
        %4076 = vmatprep.mubr.bf16.mxu0 0
        %4077 = vmatmul.mubr.bf16.gmra.mrb[0].mxu0 %v2514
        %v4078 = vpop.f32.mrb[0].mxu0
        %v4079 = vadd.f32 0.0, %v4078
        %v4080 = vpop.f32.mrb[0].mxu0
        %v4081 = vpop.f32.mrb[0].mxu0
        %v4082 = vadd.f32 0.0, %v4081
        %v4083 = vpop.f32.mrb[0].mxu0
        %4084 = vmatprep.mubr.bf16.mxu0 0
        %4085 = vmatmul.mubr.bf16.gmra.mrb[0].mxu0 %v2517
        %v4086 = vpop.f32.mrb[0].mxu0
        %v4087 = vadd.f32 0.0, %v4086
        %v4088 = vpop.f32.mrb[0].mxu0
        %v4089 = vpop.f32.mrb[0].mxu0
        %v4090 = vadd.f32 0.0, %v4089
        %v4091 = vpop.f32.mrb[0].mxu0
        %4092 = vmatprep.mubr.bf16.mxu0 0
        %4093 = vmatmul.mubr.bf16.gmra.mrb[0].mxu0 %v2520
        %v4094 = vpop.f32.mrb[0].mxu0
        %v4095 = vadd.f32 0.0, %v4094
        %v4096 = vpop.f32.mrb[0].mxu0
        %v4097 = vpop.f32.mrb[0].mxu0
        %v4098 = vadd.f32 0.0, %v4097
        %v4099 = vpop.f32.mrb[0].mxu0
        %4100 = vmatprep.mubr.bf16.mxu0 0
        %4101 = vmatmul.mubr.bf16.gmra.mrb[0].mxu0 %v2523
        %v4102 = vpop.f32.mrb[0].mxu0
        %v4103 = vadd.f32 0.0, %v4102
        %v4104 = vpop.f32.mrb[0].mxu0
        %v4105 = vpop.f32.mrb[0].mxu0
        %v4106 = vadd.f32 0.0, %v4105
        %v4107 = vpop.f32.mrb[0].mxu0
        %4108 = vmatprep.mubr.bf16.mxu0 0
        %4109 = vmatmul.mubr.bf16.gmra.mrb[0].mxu0 %v2526
        %v4110 = vpop.f32.mrb[0].mxu0
        %v4111 = vadd.f32 0.0, %v4110
        %v4112 = vpop.f32.mrb[0].mxu0
        %v4113 = vpop.f32.mrb[0].mxu0
        %v4114 = vadd.f32 0.0, %v4113
        %v4115 = vpop.f32.mrb[0].mxu0
        %4116 = vmatprep.mubr.bf16.mxu0 0
        %4117 = vmatmul.mubr.bf16.gmra.mrb[0].mxu0 %v2529
        %v4118 = vpop.f32.mrb[0].mxu0
        %v4119 = vadd.f32 0.0, %v4118
        %v4120 = vpop.f32.mrb[0].mxu0
        %v4121 = vpop.f32.mrb[0].mxu0
        %v4122 = vadd.f32 0.0, %v4121
        %v4123 = vpop.f32.mrb[0].mxu0
        %4124 = vmatprep.mubr.bf16.mxu0 0
        %4125 = vmatmul.mubr.bf16.gmra.mrb[0].mxu0 %v2532
        %v4126 = vpop.f32.mrb[0].mxu0
        %v4127 = vadd.f32 0.0, %v4126
        %v4128 = vpop.f32.mrb[0].mxu0
        %v4129 = vpop.f32.mrb[0].mxu0
        %v4130 = vadd.f32 0.0, %v4129
        %v4131 = vpop.f32.mrb[0].mxu0
        %4132 = vmatprep.mubr.bf16.mxu0 0
        %4133 = vmatmul.mubr.bf16.gmra.mrb[0].mxu0 %v2535
        %v4134 = vpop.f32.mrb[0].mxu0
        %v4135 = vadd.f32 0.0, %v4134
        %v4136 = vpop.f32.mrb[0].mxu0
        %v4137 = vpop.f32.mrb[0].mxu0
        %v4138 = vadd.f32 0.0, %v4137
        %v4139 = vpop.f32.mrb[0].mxu0
        %4140 = vmatprep.mubr.bf16.mxu0 0
        %4141 = vmatmul.mubr.bf16.gmra.mrb[0].mxu0 %v2538
        %v4142 = vpop.f32.mrb[0].mxu0
        %v4143 = vadd.f32 0.0, %v4142
        %v4144 = vpop.f32.mrb[0].mxu0
        %v4145 = vpop.f32.mrb[0].mxu0
        %v4146 = vadd.f32 0.0, %v4145
        %v4147 = vpop.f32.mrb[0].mxu0
        %4148 = vmatprep.mubr.bf16.mxu0 0
        %4149 = vmatmul.mubr.bf16.gmra.mrb[0].mxu0 %v2541
        %v4150 = vpop.f32.mrb[0].mxu0
        %v4151 = vadd.f32 0.0, %v4150
        %v4152 = vpop.f32.mrb[0].mxu0
        %v4153 = vpop.f32.mrb[0].mxu0
        %v4154 = vadd.f32 0.0, %v4153
        %v4155 = vpop.f32.mrb[0].mxu0
        %4156 = vmatprep.mubr.bf16.mxu0 0
        %4157 = vmatmul.mubr.bf16.gmra.mrb[0].mxu0 %v2544
        %v4158 = vpop.f32.mrb[0].mxu0
        %v4159 = vadd.f32 0.0, %v4158
        %v4160 = vpop.f32.mrb[0].mxu0
        %v4161 = vpop.f32.mrb[0].mxu0
        %v4162 = vadd.f32 0.0, %v4161
        %v4163 = vpop.f32.mrb[0].mxu0
        %4164 = vmatprep.mubr.bf16.mxu0 0
        %4165 = vmatmul.mubr.bf16.gmra.mrb[0].mxu0 %v2547
        %v4166 = vpop.f32.mrb[0].mxu0
        %v4167 = vadd.f32 0.0, %v4166
        %v4168 = vpop.f32.mrb[0].mxu0
        %v4169 = vpop.f32.mrb[0].mxu0
        %v4170 = vadd.f32 0.0, %v4169
        %v4171 = vpop.f32.mrb[0].mxu0
        %4172 = vmatprep.mubr.bf16.mxu0 0
        %4173 = vmatmul.mubr.bf16.gmra.mrb[0].mxu0 %v3408
        %v4174 = vpop.f32.mrb[0].mxu0
        %v4175 = vadd.f32 0.0, %v4174
        %v4176 = vpop.f32.mrb[0].mxu0
        %v4177 = vpop.f32.mrb[0].mxu0
        %v4178 = vadd.f32 0.0, %v4177
        %v4179 = vpop.f32.mrb[0].mxu0
        %4180 = vmatprep.mubr.bf16.mxu0 0
        %4181 = vmatmul.mubr.bf16.gmra.mrb[0].mxu0 %v4026
        %v4182 = vpop.f32.mrb[0].mxu0
        %v4183 = vadd.f32 0.0, %v4182
        %v4184 = vpop.f32.mrb[0].mxu0
        %v4185 = vpop.f32.mrb[0].mxu0
        %v4186 = vadd.f32 0.0, %v4185
        %v4187 = vpop.f32.mrb[0].mxu0
        %4188 = vdwg.mxu0
        %v4189 = vadd.f32 %v3983, %v4063
        %v4190 = vadd.f32 %v3984, %v4066
        %v4191 = vadd.f32 %v3985, %v4071
        %v4192 = vadd.f32 %v3986, %v4074
        %v4193 = vadd.f32 %v3987, %v4079
        %v4194 = vadd.f32 %v3988, %v4082
        %v4195 = vadd.f32 %v3989, %v4087
        %v4196 = vadd.f32 %v3990, %v4090
        %v4197 = vadd.f32 %v3991, %v4095
        %v4198 = vadd.f32 %v3992, %v4098
        %v4199 = vadd.f32 %v3993, %v4103
        %v4200 = vadd.f32 %v3994, %v4106
        %v4201 = vadd.f32 %v3995, %v4111
        %v4202 = vadd.f32 %v3996, %v4114
        %v4203 = vadd.f32 %v3997, %v4119
        %v4204 = vadd.f32 %v3998, %v4122
        %v4205 = vadd.f32 %v3999, %v4127
        %v4206 = vadd.f32 %v4000, %v4130
        %v4207 = vadd.f32 %v4001, %v4135
        %v4208 = vadd.f32 %v4002, %v4138
        %v4209 = vadd.f32 %v4003, %v4143
        %v4210 = vadd.f32 %v4004, %v4146
        %v4211 = vadd.f32 %v4005, %v4151
        %v4212 = vadd.f32 %v4006, %v4154
        %v4213 = vadd.f32 %v4007, %v4159
        %v4214 = vadd.f32 %v4008, %v4162
        %v4215 = vadd.f32 %v4009, %v4167
        %v4216 = vadd.f32 %v4010, %v4170
        %v4217 = vadd.f32 %v4011, %v4175
        %v4218 = vadd.f32 %v4012, %v4178
        %v4219 = vadd.f32 %v4013, %v4183
        %v4220 = vadd.f32 %v4014, %v4186
        %v4221 = vpack.c.bf16 %v2457, %v2456
        %s4222 = scalar_lea.vmem %s3, 64
        %v4223 = vld [vmem:[%s4222] sm:$0xf]
        %v4224 = vld [vmem:[%s4222 + $0x4] sm:$0xf]
        %v4227 = vunpack.c.l.b16 %v4223
        %v4228 = vunpack.c.l.b16 %v4224
        %v4229 = vpack.c.b16 %v4228, %v4227
        %v4232 = vsel %vm1782, %v4221, 0
        %4234 = vmatprep.subr.bf16.mxu0 0
        %4235 = vmatpush1.bf16.msra.mxu0 %v4229
        %4236 = vmatprep.subr.bf16.mxu0 0
        %4237 = vmatpush1.bf16.msra.mxu0 0
        %4238 = vmatprep.subr.bf16.mxu0 0
        %4239 = vmatpush1.bf16.msra.mxu0 0
        %4240 = vmatprep.subr.bf16.mxu0 0
        %4241 = vmatpush1.bf16.msra.mxu0 0
        %4242 = vmatprep.subr.bf16.mxu0 0
        %4243 = vmatpush1.bf16.msra.mxu0 0
        %4244 = vmatprep.subr.bf16.mxu0 0
        %4245 = vmatpush1.bf16.msra.mxu0 0
        %4246 = vmatprep.subr.bf16.mxu0 0
        %4247 = vmatpush1.bf16.msra.mxu0 0
        %4248 = vmatprep.subr.bf16.mxu0 0
        %4249 = vmatpush1.bf16.msra.mxu0 0
        %4250 = vmatprep.subr.bf16.mxu0 0
        %4251 = vmatpush1.bf16.msra.mxu0 0
        %4252 = vmatprep.subr.bf16.mxu0 0
        %4253 = vmatpush1.bf16.msra.mxu0 0
        %4254 = vmatprep.subr.bf16.mxu0 0
        %4255 = vmatpush1.bf16.msra.mxu0 0
        %4256 = vmatprep.subr.bf16.mxu0 0
        %4257 = vmatpush1.bf16.msra.mxu0 0
        %4258 = vmatprep.subr.bf16.mxu0 0
        %4259 = vmatpush1.bf16.msra.mxu0 0
        %4260 = vmatprep.subr.bf16.mxu0 0
        %4261 = vmatpush1.bf16.msra.mxu0 0
        %4262 = vmatprep.subr.bf16.mxu0 0
        %4263 = vmatpush1.bf16.msra.mxu0 0
        %4264 = vmatprep.subr.bf16.mxu0 0
        %4265 = vmatpush1.bf16.msra.mxu0 0
        %4266 = vmatprep.mubr.bf16.mxu0 0
        %4267 = vmatmul.mubr.bf16.gmra.mrb[0].mxu0 %v2957
        %v4268 = vpop.f32.mrb[0].mxu0
        %v4269 = vadd.f32 0.0, %v4268
        %v4270 = vpop.f32.mrb[0].mxu0
        %v4271 = vpop.f32.mrb[0].mxu0
        %v4272 = vadd.f32 0.0, %v4271
        %v4273 = vpop.f32.mrb[0].mxu0
        %4274 = vmatprep.mubr.bf16.mxu0 0
        %4275 = vmatmul.mubr.bf16.gmra.mrb[0].mxu0 %v2960
        %v4276 = vpop.f32.mrb[0].mxu0
        %v4277 = vadd.f32 0.0, %v4276
        %v4278 = vpop.f32.mrb[0].mxu0
        %v4279 = vpop.f32.mrb[0].mxu0
        %v4280 = vadd.f32 0.0, %v4279
        %v4281 = vpop.f32.mrb[0].mxu0
        %4282 = vmatprep.mubr.bf16.mxu0 0
        %4283 = vmatmul.mubr.bf16.gmra.mrb[0].mxu0 %v2963
        %v4284 = vpop.f32.mrb[0].mxu0
        %v4285 = vadd.f32 0.0, %v4284
        %v4286 = vpop.f32.mrb[0].mxu0
        %v4287 = vpop.f32.mrb[0].mxu0
        %v4288 = vadd.f32 0.0, %v4287
        %v4289 = vpop.f32.mrb[0].mxu0
        %4290 = vmatprep.mubr.bf16.mxu0 0
        %4291 = vmatmul.mubr.bf16.gmra.mrb[0].mxu0 %v2966
        %v4292 = vpop.f32.mrb[0].mxu0
        %v4293 = vadd.f32 0.0, %v4292
        %v4294 = vpop.f32.mrb[0].mxu0
        %v4295 = vpop.f32.mrb[0].mxu0
        %v4296 = vadd.f32 0.0, %v4295
        %v4297 = vpop.f32.mrb[0].mxu0
        %4298 = vmatprep.mubr.bf16.mxu0 0
        %4299 = vmatmul.mubr.bf16.gmra.mrb[0].mxu0 %v2969
        %v4300 = vpop.f32.mrb[0].mxu0
        %v4301 = vadd.f32 0.0, %v4300
        %v4302 = vpop.f32.mrb[0].mxu0
        %v4303 = vpop.f32.mrb[0].mxu0
        %v4304 = vadd.f32 0.0, %v4303
        %v4305 = vpop.f32.mrb[0].mxu0
        %4306 = vmatprep.mubr.bf16.mxu0 0
        %4307 = vmatmul.mubr.bf16.gmra.mrb[0].mxu0 %v2972
        %v4308 = vpop.f32.mrb[0].mxu0
        %v4309 = vadd.f32 0.0, %v4308
        %v4310 = vpop.f32.mrb[0].mxu0
        %v4311 = vpop.f32.mrb[0].mxu0
        %v4312 = vadd.f32 0.0, %v4311
        %v4313 = vpop.f32.mrb[0].mxu0
        %4314 = vmatprep.mubr.bf16.mxu0 0
        %4315 = vmatmul.mubr.bf16.gmra.mrb[0].mxu0 %v2975
        %v4316 = vpop.f32.mrb[0].mxu0
        %v4317 = vadd.f32 0.0, %v4316
        %v4318 = vpop.f32.mrb[0].mxu0
        %v4319 = vpop.f32.mrb[0].mxu0
        %v4320 = vadd.f32 0.0, %v4319
        %v4321 = vpop.f32.mrb[0].mxu0
        %4322 = vmatprep.mubr.bf16.mxu0 0
        %4323 = vmatmul.mubr.bf16.gmra.mrb[0].mxu0 %v2978
        %v4324 = vpop.f32.mrb[0].mxu0
        %v4325 = vadd.f32 0.0, %v4324
        %v4326 = vpop.f32.mrb[0].mxu0
        %v4327 = vpop.f32.mrb[0].mxu0
        %v4328 = vadd.f32 0.0, %v4327
        %v4329 = vpop.f32.mrb[0].mxu0
        %4330 = vmatprep.mubr.bf16.mxu0 0
        %4331 = vmatmul.mubr.bf16.gmra.mrb[0].mxu0 %v2981
        %v4332 = vpop.f32.mrb[0].mxu0
        %v4333 = vadd.f32 0.0, %v4332
        %v4334 = vpop.f32.mrb[0].mxu0
        %v4335 = vpop.f32.mrb[0].mxu0
        %v4336 = vadd.f32 0.0, %v4335
        %v4337 = vpop.f32.mrb[0].mxu0
        %4338 = vmatprep.mubr.bf16.mxu0 0
        %4339 = vmatmul.mubr.bf16.gmra.mrb[0].mxu0 %v2984
        %v4340 = vpop.f32.mrb[0].mxu0
        %v4341 = vadd.f32 0.0, %v4340
        %v4342 = vpop.f32.mrb[0].mxu0
        %v4343 = vpop.f32.mrb[0].mxu0
        %v4344 = vadd.f32 0.0, %v4343
        %v4345 = vpop.f32.mrb[0].mxu0
        %4346 = vmatprep.mubr.bf16.mxu0 0
        %4347 = vmatmul.mubr.bf16.gmra.mrb[0].mxu0 %v2987
        %v4348 = vpop.f32.mrb[0].mxu0
        %v4349 = vadd.f32 0.0, %v4348
        %v4350 = vpop.f32.mrb[0].mxu0
        %v4351 = vpop.f32.mrb[0].mxu0
        %v4352 = vadd.f32 0.0, %v4351
        %v4353 = vpop.f32.mrb[0].mxu0
        %4354 = vmatprep.mubr.bf16.mxu0 0
        %4355 = vmatmul.mubr.bf16.gmra.mrb[0].mxu0 %v2990
        %v4356 = vpop.f32.mrb[0].mxu0
        %v4357 = vadd.f32 0.0, %v4356
        %v4358 = vpop.f32.mrb[0].mxu0
        %v4359 = vpop.f32.mrb[0].mxu0
        %v4360 = vadd.f32 0.0, %v4359
        %v4361 = vpop.f32.mrb[0].mxu0
        %4362 = vmatprep.mubr.bf16.mxu0 0
        %4363 = vmatmul.mubr.bf16.gmra.mrb[0].mxu0 %v2993
        %v4364 = vpop.f32.mrb[0].mxu0
        %v4365 = vadd.f32 0.0, %v4364
        %v4366 = vpop.f32.mrb[0].mxu0
        %v4367 = vpop.f32.mrb[0].mxu0
        %v4368 = vadd.f32 0.0, %v4367
        %v4369 = vpop.f32.mrb[0].mxu0
        %4370 = vmatprep.mubr.bf16.mxu0 0
        %4371 = vmatmul.mubr.bf16.gmra.mrb[0].mxu0 %v2996
        %v4372 = vpop.f32.mrb[0].mxu0
        %v4373 = vadd.f32 0.0, %v4372
        %v4374 = vpop.f32.mrb[0].mxu0
        %v4375 = vpop.f32.mrb[0].mxu0
        %v4376 = vadd.f32 0.0, %v4375
        %v4377 = vpop.f32.mrb[0].mxu0
        %4378 = vmatprep.mubr.bf16.mxu0 0
        %4379 = vmatmul.mubr.bf16.gmra.mrb[0].mxu0 %v3614
        %v4380 = vpop.f32.mrb[0].mxu0
        %v4381 = vadd.f32 0.0, %v4380
        %v4382 = vpop.f32.mrb[0].mxu0
        %v4383 = vpop.f32.mrb[0].mxu0
        %v4384 = vadd.f32 0.0, %v4383
        %v4385 = vpop.f32.mrb[0].mxu0
        %4386 = vmatprep.mubr.bf16.mxu0 0
        %4387 = vmatmul.mubr.bf16.gmra.mrb[0].mxu0 %v4232
        %v4388 = vpop.f32.mrb[0].mxu0
        %v4389 = vadd.f32 0.0, %v4388
        %v4390 = vpop.f32.mrb[0].mxu0
        %v4391 = vpop.f32.mrb[0].mxu0
        %v4392 = vadd.f32 0.0, %v4391
        %v4393 = vpop.f32.mrb[0].mxu0
        %4394 = vdwg.mxu0
        %v4395 = vadd.f32 %v4189, %v4269
        %v4396 = vadd.f32 %v4190, %v4272
        %v4397 = vadd.f32 %v4191, %v4277
        %v4398 = vadd.f32 %v4192, %v4280
        %v4399 = vadd.f32 %v4193, %v4285
        %v4400 = vadd.f32 %v4194, %v4288
        %v4401 = vadd.f32 %v4195, %v4293
        %v4402 = vadd.f32 %v4196, %v4296
        %v4403 = vadd.f32 %v4197, %v4301
        %v4404 = vadd.f32 %v4198, %v4304
        %v4405 = vadd.f32 %v4199, %v4309
        %v4406 = vadd.f32 %v4200, %v4312
        %v4407 = vadd.f32 %v4201, %v4317
        %v4408 = vadd.f32 %v4202, %v4320
        %v4409 = vadd.f32 %v4203, %v4325
        %v4410 = vadd.f32 %v4204, %v4328
        %v4411 = vadd.f32 %v4205, %v4333
        %v4412 = vadd.f32 %v4206, %v4336
        %v4413 = vadd.f32 %v4207, %v4341
        %v4414 = vadd.f32 %v4208, %v4344
        %v4415 = vadd.f32 %v4209, %v4349
        %v4416 = vadd.f32 %v4210, %v4352
        %v4417 = vadd.f32 %v4211, %v4357
        %v4418 = vadd.f32 %v4212, %v4360
        %v4419 = vadd.f32 %v4213, %v4365
        %v4420 = vadd.f32 %v4214, %v4368
        %v4421 = vadd.f32 %v4215, %v4373
        %v4422 = vadd.f32 %v4216, %v4376
        %v4423 = vadd.f32 %v4217, %v4381
        %v4424 = vadd.f32 %v4218, %v4384
        %v4425 = vadd.f32 %v4219, %v4389
        %v4426 = vadd.f32 %v4220, %v4392
        %v4427 = vld [vmem:[%s4] sm:$0x1]
        %v4429 = vlaneseq
        %v4430 = vshrl.u32 %v4429, 7
        %v4431 = vsub.s32 0, %v4430
        %v4432 = vrot.slane %v4427, %v4431
        %v4434 = vadd.f32 %v4395, %v4432
        %v4435 = vadd.f32 %v4396, %v4432
        %v4436 = vadd.f32 %v4397, %v4432
        %v4437 = vadd.f32 %v4398, %v4432
        %v4438 = vadd.f32 %v4399, %v4432
        %v4439 = vadd.f32 %v4400, %v4432
        %v4440 = vadd.f32 %v4401, %v4432
        %v4441 = vadd.f32 %v4402, %v4432
        %v4442 = vadd.f32 %v4403, %v4432
        %v4443 = vadd.f32 %v4404, %v4432
        %v4444 = vadd.f32 %v4405, %v4432
        %v4445 = vadd.f32 %v4406, %v4432
        %v4446 = vadd.f32 %v4407, %v4432
        %v4447 = vadd.f32 %v4408, %v4432
        %v4448 = vadd.f32 %v4409, %v4432
        %v4449 = vadd.f32 %v4410, %v4432
        %v4450 = vadd.f32 %v4411, %v4432
        %v4451 = vadd.f32 %v4412, %v4432
        %v4452 = vadd.f32 %v4413, %v4432
        %v4453 = vadd.f32 %v4414, %v4432
        %v4454 = vadd.f32 %v4415, %v4432
        %v4455 = vadd.f32 %v4416, %v4432
        %v4456 = vadd.f32 %v4417, %v4432
        %v4457 = vadd.f32 %v4418, %v4432
        %v4458 = vadd.f32 %v4419, %v4432
        %v4459 = vadd.f32 %v4420, %v4432
        %v4460 = vadd.f32 %v4421, %v4432
        %v4461 = vadd.f32 %v4422, %v4432
        %v4462 = vadd.f32 %v4423, %v4432
        %v4463 = vadd.f32 %v4424, %v4432
        %v4464 = vadd.f32 %v4425, %v4432
        %v4465 = vadd.f32 %v4426, %v4432
        %v4466 = vmax.f32 %v4434, 0.0
        %v4467 = vmax.f32 %v4435, 0.0
        %v4468 = vmax.f32 %v4436, 0.0
        %v4469 = vmax.f32 %v4437, 0.0
        %v4470 = vmax.f32 %v4438, 0.0
        %v4471 = vmax.f32 %v4439, 0.0
        %v4472 = vmax.f32 %v4440, 0.0
        %v4473 = vmax.f32 %v4441, 0.0
        %v4474 = vmax.f32 %v4442, 0.0
        %v4475 = vmax.f32 %v4443, 0.0
        %v4476 = vmax.f32 %v4444, 0.0
        %v4477 = vmax.f32 %v4445, 0.0
        %v4478 = vmax.f32 %v4446, 0.0
        %v4479 = vmax.f32 %v4447, 0.0
        %v4480 = vmax.f32 %v4448, 0.0
        %v4481 = vmax.f32 %v4449, 0.0
        %v4482 = vmax.f32 %v4450, 0.0
        %v4483 = vmax.f32 %v4451, 0.0
        %v4484 = vmax.f32 %v4452, 0.0
        %v4485 = vmax.f32 %v4453, 0.0
        %v4486 = vmax.f32 %v4454, 0.0
        %v4487 = vmax.f32 %v4455, 0.0
        %v4488 = vmax.f32 %v4456, 0.0
        %v4489 = vmax.f32 %v4457, 0.0
        %v4490 = vmax.f32 %v4458, 0.0
        %v4491 = vmax.f32 %v4459, 0.0
        %v4492 = vmax.f32 %v4460, 0.0
        %v4493 = vmax.f32 %v4461, 0.0
        %v4494 = vmax.f32 %v4462, 0.0
        %v4495 = vmax.f32 %v4463, 0.0
        %v4496 = vmax.f32 %v4464, 0.0
        %v4497 = vmax.f32 %v4465, 0.0
        %vm4498 = vcmask 261120
        %4499 = vst.msk [vmem:[#allocation5] sm:$0xff] %vm4498, %v4466
        %4500 = vst.msk [vmem:[#allocation5 + $0x8] sm:$0xff] %vm4498, %v4467
        %4501 = vst.msk [vmem:[#allocation5 + $0x10] sm:$0xff] %vm4498, %v4468
        %4502 = vst.msk [vmem:[#allocation5 + $0x18] sm:$0xff] %vm4498, %v4469
        %4503 = vst.msk [vmem:[#allocation5 + $0x20] sm:$0xff] %vm4498, %v4470
        %4504 = vst.msk [vmem:[#allocation5 + $0x28] sm:$0xff] %vm4498, %v4471
        %4505 = vst.msk [vmem:[#allocation5 + $0x30] sm:$0xff] %vm4498, %v4472
        %4506 = vst.msk [vmem:[#allocation5 + $0x38] sm:$0xff] %vm4498, %v4473
        %4507 = vst.msk [vmem:[#allocation5 + $0x40] sm:$0xff] %vm4498, %v4474
        %4508 = vst.msk [vmem:[#allocation5 + $0x48] sm:$0xff] %vm4498, %v4475
        %4509 = vst.msk [vmem:[#allocation5 + $0x50] sm:$0xff] %vm4498, %v4476
        %4510 = vst.msk [vmem:[#allocation5 + $0x58] sm:$0xff] %vm4498, %v4477
        %4511 = vst.msk [vmem:[#allocation5 + $0x60] sm:$0xff] %vm4498, %v4478
        %4512 = vst.msk [vmem:[#allocation5 + $0x68] sm:$0xff] %vm4498, %v4479
        %4513 = vst.msk [vmem:[#allocation5 + $0x70] sm:$0xff] %vm4498, %v4480
        %4514 = vst.msk [vmem:[#allocation5 + $0x78] sm:$0xff] %vm4498, %v4481
        %4515 = vst.msk [vmem:[#allocation5 + $0x80] sm:$0xff] %vm4498, %v4482
        %4516 = vst.msk [vmem:[#allocation5 + $0x88] sm:$0xff] %vm4498, %v4483
        %4517 = vst.msk [vmem:[#allocation5 + $0x90] sm:$0xff] %vm4498, %v4484
        %4518 = vst.msk [vmem:[#allocation5 + $0x98] sm:$0xff] %vm4498, %v4485
        %4519 = vst.msk [vmem:[#allocation5 + $0xa0] sm:$0xff] %vm4498, %v4486
        %4520 = vst.msk [vmem:[#allocation5 + $0xa8] sm:$0xff] %vm4498, %v4487
        %4521 = vst.msk [vmem:[#allocation5 + $0xb0] sm:$0xff] %vm4498, %v4488
        %4522 = vst.msk [vmem:[#allocation5 + $0xb8] sm:$0xff] %vm4498, %v4489
        %4523 = vst.msk [vmem:[#allocation5 + $0xc0] sm:$0xff] %vm4498, %v4490
        %4524 = vst.msk [vmem:[#allocation5 + $0xc8] sm:$0xff] %vm4498, %v4491
        %4525 = vst.msk [vmem:[#allocation5 + $0xd0] sm:$0xff] %vm4498, %v4492
        %4526 = vst.msk [vmem:[#allocation5 + $0xd8] sm:$0xff] %vm4498, %v4493
        %4527 = vst.msk [vmem:[#allocation5 + $0xe0] sm:$0xff] %vm4498, %v4494
        %4528 = vst.msk [vmem:[#allocation5 + $0xe8] sm:$0xff] %vm4498, %v4495
        %4529 = vst.msk [vmem:[#allocation5 + $0xf0] sm:$0xff] %vm4498, %v4496
        %4530 = vst.msk [vmem:[#allocation5 + $0xf8] sm:$0xff] %vm4498, %v4497
        %v4531 = vld [vmem:[#allocation5] ss:$2 sm:$0xff]
        %s4532 = scalar_lea.vmem [#allocation5], 16
        %v4533 = vld [vmem:[%s4532] ss:$2 sm:$0xff]
        %s4534 = scalar_lea.vmem [#allocation5], 32
        %v4535 = vld [vmem:[%s4534] ss:$2 sm:$0xff]
        %s4536 = scalar_lea.vmem [#allocation5], 48
        %v4537 = vld [vmem:[%s4536] ss:$2 sm:$0xff]
        %s4538 = scalar_lea.vmem [#allocation5], 64
        %v4539 = vld [vmem:[%s4538] ss:$2 sm:$0xff]
        %s4540 = scalar_lea.vmem [#allocation5], 80
        %v4541 = vld [vmem:[%s4540] ss:$2 sm:$0xff]
        %s4542 = scalar_lea.vmem [#allocation5], 96
        %v4543 = vld [vmem:[%s4542] ss:$2 sm:$0xff]
        %s4544 = scalar_lea.vmem [#allocation5], 112
        %v4545 = vld [vmem:[%s4544] ss:$2 sm:$0xff]
        %s4546 = scalar_lea.vmem [#allocation5], 128
        %v4547 = vld [vmem:[%s4546] ss:$2 sm:$0xff]
        %s4548 = scalar_lea.vmem [#allocation5], 144
        %v4549 = vld [vmem:[%s4548] ss:$2 sm:$0xff]
        %s4550 = scalar_lea.vmem [#allocation5], 160
        %v4551 = vld [vmem:[%s4550] ss:$2 sm:$0xff]
        %s4552 = scalar_lea.vmem [#allocation5], 176
        %v4553 = vld [vmem:[%s4552] ss:$2 sm:$0xff]
        %s4554 = scalar_lea.vmem [#allocation5], 192
        %v4555 = vld [vmem:[%s4554] ss:$2 sm:$0xff]
        %s4556 = scalar_lea.vmem [#allocation5], 208
        %v4557 = vld [vmem:[%s4556] ss:$2 sm:$0xff]
        %s4558 = scalar_lea.vmem [#allocation5], 224
        %v4559 = vld [vmem:[%s4558] ss:$2 sm:$0xff]
        %s4560 = scalar_lea.vmem [#allocation5], 240
        %v4561 = vld [vmem:[%s4560] ss:$2 sm:$0xff]
        %s4562 = scalar_lea.vmem [#allocation5], 1
        %v4563 = vld [vmem:[%s4562] ss:$2 sm:$0xff]
        %s4564 = scalar_lea.vmem [#allocation5], 17
        %v4565 = vld [vmem:[%s4564] ss:$2 sm:$0xff]
        %s4566 = scalar_lea.vmem [#allocation5], 33
        %v4567 = vld [vmem:[%s4566] ss:$2 sm:$0xff]
        %s4568 = scalar_lea.vmem [#allocation5], 49
        %v4569 = vld [vmem:[%s4568] ss:$2 sm:$0xff]
        %s4570 = scalar_lea.vmem [#allocation5], 65
        %v4571 = vld [vmem:[%s4570] ss:$2 sm:$0xff]
        %s4572 = scalar_lea.vmem [#allocation5], 81
        %v4573 = vld [vmem:[%s4572] ss:$2 sm:$0xff]
        %s4574 = scalar_lea.vmem [#allocation5], 97
        %v4575 = vld [vmem:[%s4574] ss:$2 sm:$0xff]
        %s4576 = scalar_lea.vmem [#allocation5], 113
        %v4577 = vld [vmem:[%s4576] ss:$2 sm:$0xff]
        %s4578 = scalar_lea.vmem [#allocation5], 129
        %v4579 = vld [vmem:[%s4578] ss:$2 sm:$0xff]
        %s4580 = scalar_lea.vmem [#allocation5], 145
        %v4581 = vld [vmem:[%s4580] ss:$2 sm:$0xff]
        %s4582 = scalar_lea.vmem [#allocation5], 161
        %v4583 = vld [vmem:[%s4582] ss:$2 sm:$0xff]
        %s4584 = scalar_lea.vmem [#allocation5], 177
        %v4585 = vld [vmem:[%s4584] ss:$2 sm:$0xff]
        %s4586 = scalar_lea.vmem [#allocation5], 193
        %v4587 = vld [vmem:[%s4586] ss:$2 sm:$0xff]
        %s4588 = scalar_lea.vmem [#allocation5], 209
        %v4589 = vld [vmem:[%s4588] ss:$2 sm:$0xff]
        %s4590 = scalar_lea.vmem [#allocation5], 225
        %v4591 = vld [vmem:[%s4590] ss:$2 sm:$0xff]
        %s4592 = scalar_lea.vmem [#allocation5], 241
        %v4593 = vld [vmem:[%s4592] ss:$2 sm:$0xff]
        %v4594 = vmax.f32 %v4531, %v4563
        %v4595 = vmax.f32 %v4533, %v4565
        %v4596 = vmax.f32 %v4535, %v4567
        %v4597 = vmax.f32 %v4537, %v4569
        %v4598 = vmax.f32 %v4539, %v4571
        %v4599 = vmax.f32 %v4541, %v4573
        %v4600 = vmax.f32 %v4543, %v4575
        %v4601 = vmax.f32 %v4545, %v4577
        %v4602 = vmax.f32 %v4547, %v4579
        %v4603 = vmax.f32 %v4549, %v4581
        %v4604 = vmax.f32 %v4551, %v4583
        %v4605 = vmax.f32 %v4553, %v4585
        %v4606 = vmax.f32 %v4555, %v4587
        %v4607 = vmax.f32 %v4557, %v4589
        %v4608 = vmax.f32 %v4559, %v4591
        %v4609 = vmax.f32 %v4561, %v4593
        %v4610 = vmax.f32 %v4594, %v4595
        %v4611 = vmax.f32 %v4596, %v4597
        %v4612 = vmax.f32 %v4598, %v4599
        %v4613 = vmax.f32 %v4600, %v4601
        %v4614 = vmax.f32 %v4602, %v4603
        %v4615 = vmax.f32 %v4604, %v4605
        %v4616 = vmax.f32 %v4606, %v4607
        %v4617 = vmax.f32 %v4608, %v4609
        %4618 = vst.msk [vmem:[#allocation3] sm:$0xff] %vm4498, 0.0
        %vm4619 = vcmask 254976
        %4620 = vst.msk [vmem:[#allocation3 + $0x8] sm:$0x3] %vm4619, 0.0
        %4621 = vst.msk [vmem:[#allocation3 + $0x10] sm:$0xff] %vm4498, 0.0
        %4622 = vst.msk [vmem:[#allocation3 + $0x18] sm:$0x3] %vm4619, 0.0
        %4623 = vst.msk [vmem:[#allocation3 + $0x20] sm:$0xff] %vm4498, 0.0
        %4624 = vst.msk [vmem:[#allocation3 + $0x28] sm:$0x3] %vm4619, 0.0
        %4625 = vst.msk [vmem:[#allocation3 + $0x30] sm:$0xff] %vm4498, 0.0
        %4626 = vst.msk [vmem:[#allocation3 + $0x38] sm:$0x3] %vm4619, 0.0
        %4627 = vst.msk [vmem:[#allocation3 + $0x40] sm:$0xff] %vm4498, 0.0
        %4628 = vst.msk [vmem:[#allocation3 + $0x48] sm:$0x3] %vm4619, 0.0
        %4629 = vst.msk [vmem:[#allocation3 + $0x50] sm:$0xff] %vm4498, 0.0
        %4630 = vst.msk [vmem:[#allocation3 + $0x58] sm:$0x3] %vm4619, 0.0
        %4631 = vst.msk [vmem:[#allocation3 + $0x60] sm:$0xff] %vm4498, 0.0
        %4632 = vst.msk [vmem:[#allocation3 + $0x68] sm:$0x3] %vm4619, 0.0
        %4633 = vst.msk [vmem:[#allocation3 + $0x70] sm:$0xff] %vm4498, 0.0
        %4634 = vst.msk [vmem:[#allocation3 + $0x78] sm:$0x3] %vm4619, 0.0
        %4635 = vst.msk [vmem:[#allocation3 + $0x80] sm:$0xff] %vm4498, 0.0
        %4636 = vst.msk [vmem:[#allocation3 + $0x88] sm:$0x3] %vm4619, 0.0
        %4637 = vst.msk [vmem:[#allocation3 + $0x90] sm:$0xff] %vm4498, 0.0
        %4638 = vst.msk [vmem:[#allocation3 + $0x98] sm:$0x3] %vm4619, 0.0
        %s4639 = scalar_lea.vmem [#allocation3], 16
        %4640 = vst.msk [vmem:[%s4639 + $0x1] sm:$0xff] %vm4498, %v4610
        %4641 = vst.msk [vmem:[%s4639 + $0x11] sm:$0xff] %vm4498, %v4611
        %4642 = vst.msk [vmem:[%s4639 + $0x21] sm:$0xff] %vm4498, %v4612
        %4643 = vst.msk [vmem:[%s4639 + $0x31] sm:$0xff] %vm4498, %v4613
        %4644 = vst.msk [vmem:[%s4639 + $0x41] sm:$0xff] %vm4498, %v4614
        %4645 = vst.msk [vmem:[%s4639 + $0x51] sm:$0xff] %vm4498, %v4615
        %4646 = vst.msk [vmem:[%s4639 + $0x61] sm:$0xff] %vm4498, %v4616
        %4647 = vst.msk [vmem:[%s4639 + $0x71] sm:$0xff] %vm4498, %v4617
        %v4648 = vld [vmem:[#allocation3] sm:$0xff]
        %v4649 = vld [vmem:[#allocation3 + $0x10] sm:$0xff]
        %v4650 = vld [vmem:[#allocation3 + $0x20] sm:$0xff]
        %v4651 = vld [vmem:[#allocation3 + $0x30] sm:$0xff]
        %v4652 = vld [vmem:[#allocation3 + $0x40] sm:$0xff]
        %v4653 = vld [vmem:[#allocation3 + $0x50] sm:$0xff]
        %v4654 = vld [vmem:[#allocation3 + $0x60] sm:$0xff]
        %v4655 = vld [vmem:[#allocation3 + $0x70] sm:$0xff]
        %v4656 = vld [vmem:[#allocation3 + $0x80] sm:$0xff]
        %v4657 = vld [vmem:[#allocation3 + $0x90] sm:$0xff]
        %v4658 = vld [vmem:[#allocation3 + $0x1] sm:$0xff]
        %v4659 = vld [vmem:[#allocation3 + $0x11] sm:$0xff]
        %v4660 = vld [vmem:[#allocation3 + $0x21] sm:$0xff]
        %v4661 = vld [vmem:[#allocation3 + $0x31] sm:$0xff]
        %v4662 = vld [vmem:[#allocation3 + $0x41] sm:$0xff]
        %v4663 = vld [vmem:[#allocation3 + $0x51] sm:$0xff]
        %v4664 = vld [vmem:[#allocation3 + $0x61] sm:$0xff]
        %v4665 = vld [vmem:[#allocation3 + $0x71] sm:$0xff]
        %v4666 = vld [vmem:[#allocation3 + $0x81] sm:$0xff]
        %v4667 = vld [vmem:[#allocation3 + $0x91] sm:$0xff]
        %v4668 = vld [vmem:[#allocation3 + $0x2] sm:$0xff]
        %v4669 = vld [vmem:[#allocation3 + $0x12] sm:$0xff]
        %v4670 = vld [vmem:[#allocation3 + $0x22] sm:$0xff]
        %v4671 = vld [vmem:[#allocation3 + $0x32] sm:$0xff]
        %v4672 = vld [vmem:[#allocation3 + $0x42] sm:$0xff]
        %v4673 = vld [vmem:[#allocation3 + $0x52] sm:$0xff]
        %v4674 = vld [vmem:[#allocation3 + $0x62] sm:$0xff]
        %v4675 = vld [vmem:[#allocation3 + $0x72] sm:$0xff]
        %v4676 = vld [vmem:[#allocation3 + $0x82] sm:$0xff]
        %v4677 = vld [vmem:[#allocation3 + $0x92] sm:$0xff]
        %v4678 = vpack.c.bf16 %v4649, %v4648
        %v4679 = vpack.c.bf16 %v4651, %v4650
        %v4680 = vpack.c.bf16 %v4653, %v4652
        %v4681 = vpack.c.bf16 %v4655, %v4654
        %v4682 = vld [vmem:[%s5] sm:$0xf]
        %v4683 = vld [vmem:[%s5 + $0x4] sm:$0xf]
        %v4684 = vld [vmem:[%s5 + $0x8] sm:$0xf]
        %v4685 = vld [vmem:[%s5 + $0xc] sm:$0xf]
        %v4686 = vpack.c.bf16 %v4659, %v4658
        %v4687 = vpack.c.bf16 %v4661, %v4660
        %v4688 = vpack.c.bf16 %v4663, %v4662
        %v4689 = vpack.c.bf16 %v4665, %v4664
        %s4690 = scalar_lea.vmem %s5, 16
        %v4691 = vld [vmem:[%s4690] sm:$0xf]
        %v4692 = vld [vmem:[%s4690 + $0x4] sm:$0xf]
        %v4693 = vld [vmem:[%s4690 + $0x8] sm:$0xf]
        %v4694 = vld [vmem:[%s4690 + $0xc] sm:$0xf]
        %v4699 = vunpack.c.l.b16 %v4691
        %v4700 = vunpack.c.l.b16 %v4692
        %v4701 = vunpack.c.l.b16 %v4693
        %v4702 = vunpack.c.l.b16 %v4694
        %v4703 = vpack.c.b16 %v4700, %v4699
        %v4704 = vpack.c.b16 %v4702, %v4701
        %v4708 = vsel %vm4498, %v4686, 0
        %v4711 = vsel %vm4498, %v4687, 0
        %v4714 = vsel %vm4498, %v4688, 0
        %v4717 = vsel %vm4498, %v4689, 0
        %4719 = vmatprep.subr.bf16.mxu0 0
        %4720 = vmatpush1.bf16.msra.mxu0 %v4703
        %4721 = vmatprep.subr.bf16.mxu0 0
        %4722 = vmatpush1.bf16.msra.mxu0 %v4704
        %4723 = vmatprep.subr.bf16.mxu0 0
        %4724 = vmatpush1.bf16.msra.mxu0 0
        %4725 = vmatprep.subr.bf16.mxu0 0
        %4726 = vmatpush1.bf16.msra.mxu0 0
        %4727 = vmatprep.subr.bf16.mxu0 0
        %4728 = vmatpush1.bf16.msra.mxu0 0
        %4729 = vmatprep.subr.bf16.mxu0 0
        %4730 = vmatpush1.bf16.msra.mxu0 0
        %4731 = vmatprep.subr.bf16.mxu0 0
        %4732 = vmatpush1.bf16.msra.mxu0 0
        %4733 = vmatprep.subr.bf16.mxu0 0
        %4734 = vmatpush1.bf16.msra.mxu0 0
        %4735 = vmatprep.subr.bf16.mxu0 0
        %4736 = vmatpush1.bf16.msra.mxu0 0
        %4737 = vmatprep.subr.bf16.mxu0 0
        %4738 = vmatpush1.bf16.msra.mxu0 0
        %4739 = vmatprep.subr.bf16.mxu0 0
        %4740 = vmatpush1.bf16.msra.mxu0 0
        %4741 = vmatprep.subr.bf16.mxu0 0
        %4742 = vmatpush1.bf16.msra.mxu0 0
        %4743 = vmatprep.subr.bf16.mxu0 0
        %4744 = vmatpush1.bf16.msra.mxu0 0
        %4745 = vmatprep.subr.bf16.mxu0 0
        %4746 = vmatpush1.bf16.msra.mxu0 0
        %4747 = vmatprep.subr.bf16.mxu0 0
        %4748 = vmatpush1.bf16.msra.mxu0 0
        %4749 = vmatprep.subr.bf16.mxu0 0
        %4750 = vmatpush1.bf16.msra.mxu0 0
        %4751 = vmatprep.mubr.bf16.mxu0 0
        %4752 = vmatmul.mubr.bf16.gmra.mrb[0].mxu0 %v4708
        %v4753 = vpop.f32.mrb[0].mxu0
        %v4754 = vadd.f32 0.0, %v4753
        %v4755 = vpop.f32.mrb[0].mxu0
        %v4756 = vpop.f32.mrb[0].mxu0
        %v4757 = vadd.f32 0.0, %v4756
        %v4758 = vpop.f32.mrb[0].mxu0
        %4759 = vmatprep.mubr.bf16.mxu0 0
        %4760 = vmatmul.mubr.bf16.gmra.mrb[0].mxu0 %v4711
        %v4761 = vpop.f32.mrb[0].mxu0
        %v4762 = vadd.f32 0.0, %v4761
        %v4763 = vpop.f32.mrb[0].mxu0
        %v4764 = vpop.f32.mrb[0].mxu0
        %v4765 = vadd.f32 0.0, %v4764
        %v4766 = vpop.f32.mrb[0].mxu0
        %4767 = vmatprep.mubr.bf16.mxu0 0
        %4768 = vmatmul.mubr.bf16.gmra.mrb[0].mxu0 %v4714
        %v4769 = vpop.f32.mrb[0].mxu0
        %v4770 = vadd.f32 0.0, %v4769
        %v4771 = vpop.f32.mrb[0].mxu0
        %v4772 = vpop.f32.mrb[0].mxu0
        %v4773 = vadd.f32 0.0, %v4772
        %v4774 = vpop.f32.mrb[0].mxu0
        %4775 = vmatprep.mubr.bf16.mxu0 0
        %4776 = vmatmul.mubr.bf16.gmra.mrb[0].mxu0 %v4717
        %v4777 = vpop.f32.mrb[0].mxu0
        %v4778 = vadd.f32 0.0, %v4777
        %v4779 = vpop.f32.mrb[0].mxu0
        %v4780 = vpop.f32.mrb[0].mxu0
        %v4781 = vadd.f32 0.0, %v4780
        %v4782 = vpop.f32.mrb[0].mxu0
        %4783 = vdwg.mxu0
        %v4788 = vunpack.c.l.b16 %v4682
        %v4789 = vunpack.c.l.b16 %v4683
        %v4790 = vunpack.c.l.b16 %v4684
        %v4791 = vunpack.c.l.b16 %v4685
        %v4792 = vpack.c.b16 %v4789, %v4788
        %v4793 = vpack.c.b16 %v4791, %v4790
        %v4797 = vsel %vm4498, %v4678, 0
        %v4800 = vsel %vm4498, %v4679, 0
        %v4803 = vsel %vm4498, %v4680, 0
        %v4806 = vsel %vm4498, %v4681, 0
        %4808 = vmatprep.subr.bf16.mxu0 0
        %4809 = vmatpush1.bf16.msra.mxu0 %v4792
        %4810 = vmatprep.subr.bf16.mxu0 0
        %4811 = vmatpush1.bf16.msra.mxu0 %v4793
        %4812 = vmatprep.subr.bf16.mxu0 0
        %4813 = vmatpush1.bf16.msra.mxu0 0
        %4814 = vmatprep.subr.bf16.mxu0 0
        %4815 = vmatpush1.bf16.msra.mxu0 0
        %4816 = vmatprep.subr.bf16.mxu0 0
        %4817 = vmatpush1.bf16.msra.mxu0 0
        %4818 = vmatprep.subr.bf16.mxu0 0
        %4819 = vmatpush1.bf16.msra.mxu0 0
        %4820 = vmatprep.subr.bf16.mxu0 0
        %4821 = vmatpush1.bf16.msra.mxu0 0
        %4822 = vmatprep.subr.bf16.mxu0 0
        %4823 = vmatpush1.bf16.msra.mxu0 0
        %4824 = vmatprep.subr.bf16.mxu0 0
        %4825 = vmatpush1.bf16.msra.mxu0 0
        %4826 = vmatprep.subr.bf16.mxu0 0
        %4827 = vmatpush1.bf16.msra.mxu0 0
        %4828 = vmatprep.subr.bf16.mxu0 0
        %4829 = vmatpush1.bf16.msra.mxu0 0
        %4830 = vmatprep.subr.bf16.mxu0 0
        %4831 = vmatpush1.bf16.msra.mxu0 0
        %4832 = vmatprep.subr.bf16.mxu0 0
        %4833 = vmatpush1.bf16.msra.mxu0 0
        %4834 = vmatprep.subr.bf16.mxu0 0
        %4835 = vmatpush1.bf16.msra.mxu0 0
        %4836 = vmatprep.subr.bf16.mxu0 0
        %4837 = vmatpush1.bf16.msra.mxu0 0
        %4838 = vmatprep.subr.bf16.mxu0 0
        %4839 = vmatpush1.bf16.msra.mxu0 0
        %4840 = vmatprep.mubr.bf16.mxu0 0
        %4841 = vmatmul.mubr.bf16.gmra.mrb[0].mxu0 %v4797
        %v4842 = vpop.f32.mrb[0].mxu0
        %v4843 = vadd.f32 %v4754, %v4842
        %v4844 = vpop.f32.mrb[0].mxu0
        %v4845 = vpop.f32.mrb[0].mxu0
        %v4846 = vadd.f32 %v4757, %v4845
        %v4847 = vpop.f32.mrb[0].mxu0
        %4848 = vmatprep.mubr.bf16.mxu0 0
        %4849 = vmatmul.mubr.bf16.gmra.mrb[0].mxu0 %v4800
        %v4850 = vpop.f32.mrb[0].mxu0
        %v4851 = vadd.f32 %v4762, %v4850
        %v4852 = vpop.f32.mrb[0].mxu0
        %v4853 = vpop.f32.mrb[0].mxu0
        %v4854 = vadd.f32 %v4765, %v4853
        %v4855 = vpop.f32.mrb[0].mxu0
        %4856 = vmatprep.mubr.bf16.mxu0 0
        %4857 = vmatmul.mubr.bf16.gmra.mrb[0].mxu0 %v4803
        %v4858 = vpop.f32.mrb[0].mxu0
        %v4859 = vadd.f32 %v4770, %v4858
        %v4860 = vpop.f32.mrb[0].mxu0
        %v4861 = vpop.f32.mrb[0].mxu0
        %v4862 = vadd.f32 %v4773, %v4861
        %v4863 = vpop.f32.mrb[0].mxu0
        %4864 = vmatprep.mubr.bf16.mxu0 0
        %4865 = vmatmul.mubr.bf16.gmra.mrb[0].mxu0 %v4806
        %v4866 = vpop.f32.mrb[0].mxu0
        %v4867 = vadd.f32 %v4778, %v4866
        %v4868 = vpop.f32.mrb[0].mxu0
        %v4869 = vpop.f32.mrb[0].mxu0
        %v4870 = vadd.f32 %v4781, %v4869
        %v4871 = vpop.f32.mrb[0].mxu0
        %4872 = vdwg.mxu0
        %v4873 = vpack.c.bf16 %v4669, %v4668
        %v4874 = vpack.c.bf16 %v4671, %v4670
        %v4875 = vpack.c.bf16 %v4673, %v4672
        %v4876 = vpack.c.bf16 %v4675, %v4674
        %s4877 = scalar_lea.vmem %s5, 32
        %v4878 = vld [vmem:[%s4877] sm:$0xf]
        %v4879 = vld [vmem:[%s4877 + $0x4] sm:$0xf]
        %v4880 = vld [vmem:[%s4877 + $0x8] sm:$0xf]
        %v4881 = vld [vmem:[%s4877 + $0xc] sm:$0xf]
        %v4886 = vunpack.c.l.b16 %v4878
        %v4887 = vunpack.c.l.b16 %v4879
        %v4888 = vunpack.c.l.b16 %v4880
        %v4889 = vunpack.c.l.b16 %v4881
        %v4890 = vpack.c.b16 %v4887, %v4886
        %v4891 = vpack.c.b16 %v4889, %v4888
        %v4895 = vsel %vm4498, %v4873, 0
        %v4898 = vsel %vm4498, %v4874, 0
        %v4901 = vsel %vm4498, %v4875, 0
        %v4904 = vsel %vm4498, %v4876, 0
        %4906 = vmatprep.subr.bf16.mxu0 0
        %4907 = vmatpush1.bf16.msra.mxu0 %v4890
        %4908 = vmatprep.subr.bf16.mxu0 0
        %4909 = vmatpush1.bf16.msra.mxu0 %v4891
        %4910 = vmatprep.subr.bf16.mxu0 0
        %4911 = vmatpush1.bf16.msra.mxu0 0
        %4912 = vmatprep.subr.bf16.mxu0 0
        %4913 = vmatpush1.bf16.msra.mxu0 0
        %4914 = vmatprep.subr.bf16.mxu0 0
        %4915 = vmatpush1.bf16.msra.mxu0 0
        %4916 = vmatprep.subr.bf16.mxu0 0
        %4917 = vmatpush1.bf16.msra.mxu0 0
        %4918 = vmatprep.subr.bf16.mxu0 0
        %4919 = vmatpush1.bf16.msra.mxu0 0
        %4920 = vmatprep.subr.bf16.mxu0 0
        %4921 = vmatpush1.bf16.msra.mxu0 0
        %4922 = vmatprep.subr.bf16.mxu0 0
        %4923 = vmatpush1.bf16.msra.mxu0 0
        %4924 = vmatprep.subr.bf16.mxu0 0
        %4925 = vmatpush1.bf16.msra.mxu0 0
        %4926 = vmatprep.subr.bf16.mxu0 0
        %4927 = vmatpush1.bf16.msra.mxu0 0
        %4928 = vmatprep.subr.bf16.mxu0 0
        %4929 = vmatpush1.bf16.msra.mxu0 0
        %4930 = vmatprep.subr.bf16.mxu0 0
        %4931 = vmatpush1.bf16.msra.mxu0 0
        %4932 = vmatprep.subr.bf16.mxu0 0
        %4933 = vmatpush1.bf16.msra.mxu0 0
        %4934 = vmatprep.subr.bf16.mxu0 0
        %4935 = vmatpush1.bf16.msra.mxu0 0
        %4936 = vmatprep.subr.bf16.mxu0 0
        %4937 = vmatpush1.bf16.msra.mxu0 0
        %4938 = vmatprep.mubr.bf16.mxu0 0
        %4939 = vmatmul.mubr.bf16.gmra.mrb[0].mxu0 %v4895
        %v4940 = vpop.f32.mrb[0].mxu0
        %v4941 = vadd.f32 0.0, %v4940
        %v4942 = vpop.f32.mrb[0].mxu0
        %v4943 = vpop.f32.mrb[0].mxu0
        %v4944 = vadd.f32 0.0, %v4943
        %v4945 = vpop.f32.mrb[0].mxu0
        %4946 = vmatprep.mubr.bf16.mxu0 0
        %4947 = vmatmul.mubr.bf16.gmra.mrb[0].mxu0 %v4898
        %v4948 = vpop.f32.mrb[0].mxu0
        %v4949 = vadd.f32 0.0, %v4948
        %v4950 = vpop.f32.mrb[0].mxu0
        %v4951 = vpop.f32.mrb[0].mxu0
        %v4952 = vadd.f32 0.0, %v4951
        %v4953 = vpop.f32.mrb[0].mxu0
        %4954 = vmatprep.mubr.bf16.mxu0 0
        %4955 = vmatmul.mubr.bf16.gmra.mrb[0].mxu0 %v4901
        %v4956 = vpop.f32.mrb[0].mxu0
        %v4957 = vadd.f32 0.0, %v4956
        %v4958 = vpop.f32.mrb[0].mxu0
        %v4959 = vpop.f32.mrb[0].mxu0
        %v4960 = vadd.f32 0.0, %v4959
        %v4961 = vpop.f32.mrb[0].mxu0
        %4962 = vmatprep.mubr.bf16.mxu0 0
        %4963 = vmatmul.mubr.bf16.gmra.mrb[0].mxu0 %v4904
        %v4964 = vpop.f32.mrb[0].mxu0
        %v4965 = vadd.f32 0.0, %v4964
        %v4966 = vpop.f32.mrb[0].mxu0
        %v4967 = vpop.f32.mrb[0].mxu0
        %v4968 = vadd.f32 0.0, %v4967
        %v4969 = vpop.f32.mrb[0].mxu0
        %4970 = vdwg.mxu0
        %v4971 = vadd.f32 %v4843, %v4941
        %v4972 = vadd.f32 %v4846, %v4944
        %v4973 = vadd.f32 %v4851, %v4949
        %v4974 = vadd.f32 %v4854, %v4952
        %v4975 = vadd.f32 %v4859, %v4957
        %v4976 = vadd.f32 %v4862, %v4960
        %v4977 = vadd.f32 %v4867, %v4965
        %v4978 = vadd.f32 %v4870, %v4968
        %v4979 = vpack.c.bf16 %v4650, %v4649
        %v4980 = vpack.c.bf16 %v4652, %v4651
        %v4981 = vpack.c.bf16 %v4654, %v4653
        %v4982 = vpack.c.bf16 %v4656, %v4655
        %s4983 = scalar_lea.vmem %s5, 48
        %v4984 = vld [vmem:[%s4983] sm:$0xf]
        %v4985 = vld [vmem:[%s4983 + $0x4] sm:$0xf]
        %v4986 = vld [vmem:[%s4983 + $0x8] sm:$0xf]
        %v4987 = vld [vmem:[%s4983 + $0xc] sm:$0xf]
        %v4992 = vunpack.c.l.b16 %v4984
        %v4993 = vunpack.c.l.b16 %v4985
        %v4994 = vunpack.c.l.b16 %v4986
        %v4995 = vunpack.c.l.b16 %v4987
        %v4996 = vpack.c.b16 %v4993, %v4992
        %v4997 = vpack.c.b16 %v4995, %v4994
        %v5001 = vsel %vm4498, %v4979, 0
        %v5004 = vsel %vm4498, %v4980, 0
        %v5007 = vsel %vm4498, %v4981, 0
        %v5010 = vsel %vm4498, %v4982, 0
        %5012 = vmatprep.subr.bf16.mxu0 0
        %5013 = vmatpush1.bf16.msra.mxu0 %v4996
        %5014 = vmatprep.subr.bf16.mxu0 0
        %5015 = vmatpush1.bf16.msra.mxu0 %v4997
        %5016 = vmatprep.subr.bf16.mxu0 0
        %5017 = vmatpush1.bf16.msra.mxu0 0
        %5018 = vmatprep.subr.bf16.mxu0 0
        %5019 = vmatpush1.bf16.msra.mxu0 0
        %5020 = vmatprep.subr.bf16.mxu0 0
        %5021 = vmatpush1.bf16.msra.mxu0 0
        %5022 = vmatprep.subr.bf16.mxu0 0
        %5023 = vmatpush1.bf16.msra.mxu0 0
        %5024 = vmatprep.subr.bf16.mxu0 0
        %5025 = vmatpush1.bf16.msra.mxu0 0
        %5026 = vmatprep.subr.bf16.mxu0 0
        %5027 = vmatpush1.bf16.msra.mxu0 0
        %5028 = vmatprep.subr.bf16.mxu0 0
        %5029 = vmatpush1.bf16.msra.mxu0 0
        %5030 = vmatprep.subr.bf16.mxu0 0
        %5031 = vmatpush1.bf16.msra.mxu0 0
        %5032 = vmatprep.subr.bf16.mxu0 0
        %5033 = vmatpush1.bf16.msra.mxu0 0
        %5034 = vmatprep.subr.bf16.mxu0 0
        %5035 = vmatpush1.bf16.msra.mxu0 0
        %5036 = vmatprep.subr.bf16.mxu0 0
        %5037 = vmatpush1.bf16.msra.mxu0 0
        %5038 = vmatprep.subr.bf16.mxu0 0
        %5039 = vmatpush1.bf16.msra.mxu0 0
        %5040 = vmatprep.subr.bf16.mxu0 0
        %5041 = vmatpush1.bf16.msra.mxu0 0
        %5042 = vmatprep.subr.bf16.mxu0 0
        %5043 = vmatpush1.bf16.msra.mxu0 0
        %5044 = vmatprep.mubr.bf16.mxu0 0
        %5045 = vmatmul.mubr.bf16.gmra.mrb[0].mxu0 %v5001
        %v5046 = vpop.f32.mrb[0].mxu0
        %v5047 = vadd.f32 0.0, %v5046
        %v5048 = vpop.f32.mrb[0].mxu0
        %v5049 = vpop.f32.mrb[0].mxu0
        %v5050 = vadd.f32 0.0, %v5049
        %v5051 = vpop.f32.mrb[0].mxu0
        %5052 = vmatprep.mubr.bf16.mxu0 0
        %5053 = vmatmul.mubr.bf16.gmra.mrb[0].mxu0 %v5004
        %v5054 = vpop.f32.mrb[0].mxu0
        %v5055 = vadd.f32 0.0, %v5054
        %v5056 = vpop.f32.mrb[0].mxu0
        %v5057 = vpop.f32.mrb[0].mxu0
        %v5058 = vadd.f32 0.0, %v5057
        %v5059 = vpop.f32.mrb[0].mxu0
        %5060 = vmatprep.mubr.bf16.mxu0 0
        %5061 = vmatmul.mubr.bf16.gmra.mrb[0].mxu0 %v5007
        %v5062 = vpop.f32.mrb[0].mxu0
        %v5063 = vadd.f32 0.0, %v5062
        %v5064 = vpop.f32.mrb[0].mxu0
        %v5065 = vpop.f32.mrb[0].mxu0
        %v5066 = vadd.f32 0.0, %v5065
        %v5067 = vpop.f32.mrb[0].mxu0
        %5068 = vmatprep.mubr.bf16.mxu0 0
        %5069 = vmatmul.mubr.bf16.gmra.mrb[0].mxu0 %v5010
        %v5070 = vpop.f32.mrb[0].mxu0
        %v5071 = vadd.f32 0.0, %v5070
        %v5072 = vpop.f32.mrb[0].mxu0
        %v5073 = vpop.f32.mrb[0].mxu0
        %v5074 = vadd.f32 0.0, %v5073
        %v5075 = vpop.f32.mrb[0].mxu0
        %5076 = vdwg.mxu0
        %v5077 = vadd.f32 %v4971, %v5047
        %v5078 = vadd.f32 %v4972, %v5050
        %v5079 = vadd.f32 %v4973, %v5055
        %v5080 = vadd.f32 %v4974, %v5058
        %v5081 = vadd.f32 %v4975, %v5063
        %v5082 = vadd.f32 %v4976, %v5066
        %v5083 = vadd.f32 %v4977, %v5071
        %v5084 = vadd.f32 %v4978, %v5074
        %v5085 = vpack.c.bf16 %v4660, %v4659
        %v5086 = vpack.c.bf16 %v4662, %v4661
        %v5087 = vpack.c.bf16 %v4664, %v4663
        %v5088 = vpack.c.bf16 %v4666, %v4665
        %s5089 = scalar_lea.vmem %s5, 64
        %v5090 = vld [vmem:[%s5089] sm:$0xf]
        %v5091 = vld [vmem:[%s5089 + $0x4] sm:$0xf]
        %v5092 = vld [vmem:[%s5089 + $0x8] sm:$0xf]
        %v5093 = vld [vmem:[%s5089 + $0xc] sm:$0xf]
        %v5098 = vunpack.c.l.b16 %v5090
        %v5099 = vunpack.c.l.b16 %v5091
        %v5100 = vunpack.c.l.b16 %v5092
        %v5101 = vunpack.c.l.b16 %v5093
        %v5102 = vpack.c.b16 %v5099, %v5098
        %v5103 = vpack.c.b16 %v5101, %v5100
        %v5107 = vsel %vm4498, %v5085, 0
        %v5110 = vsel %vm4498, %v5086, 0
        %v5113 = vsel %vm4498, %v5087, 0
        %v5116 = vsel %vm4498, %v5088, 0
        %5118 = vmatprep.subr.bf16.mxu0 0
        %5119 = vmatpush1.bf16.msra.mxu0 %v5102
        %5120 = vmatprep.subr.bf16.mxu0 0
        %5121 = vmatpush1.bf16.msra.mxu0 %v5103
        %5122 = vmatprep.subr.bf16.mxu0 0
        %5123 = vmatpush1.bf16.msra.mxu0 0
        %5124 = vmatprep.subr.bf16.mxu0 0
        %5125 = vmatpush1.bf16.msra.mxu0 0
        %5126 = vmatprep.subr.bf16.mxu0 0
        %5127 = vmatpush1.bf16.msra.mxu0 0
        %5128 = vmatprep.subr.bf16.mxu0 0
        %5129 = vmatpush1.bf16.msra.mxu0 0
        %5130 = vmatprep.subr.bf16.mxu0 0
        %5131 = vmatpush1.bf16.msra.mxu0 0
        %5132 = vmatprep.subr.bf16.mxu0 0
        %5133 = vmatpush1.bf16.msra.mxu0 0
        %5134 = vmatprep.subr.bf16.mxu0 0
        %5135 = vmatpush1.bf16.msra.mxu0 0
        %5136 = vmatprep.subr.bf16.mxu0 0
        %5137 = vmatpush1.bf16.msra.mxu0 0
        %5138 = vmatprep.subr.bf16.mxu0 0
        %5139 = vmatpush1.bf16.msra.mxu0 0
        %5140 = vmatprep.subr.bf16.mxu0 0
        %5141 = vmatpush1.bf16.msra.mxu0 0
        %5142 = vmatprep.subr.bf16.mxu0 0
        %5143 = vmatpush1.bf16.msra.mxu0 0
        %5144 = vmatprep.subr.bf16.mxu0 0
        %5145 = vmatpush1.bf16.msra.mxu0 0
        %5146 = vmatprep.subr.bf16.mxu0 0
        %5147 = vmatpush1.bf16.msra.mxu0 0
        %5148 = vmatprep.subr.bf16.mxu0 0
        %5149 = vmatpush1.bf16.msra.mxu0 0
        %5150 = vmatprep.mubr.bf16.mxu0 0
        %5151 = vmatmul.mubr.bf16.gmra.mrb[0].mxu0 %v5107
        %v5152 = vpop.f32.mrb[0].mxu0
        %v5153 = vadd.f32 0.0, %v5152
        %v5154 = vpop.f32.mrb[0].mxu0
        %v5155 = vpop.f32.mrb[0].mxu0
        %v5156 = vadd.f32 0.0, %v5155
        %v5157 = vpop.f32.mrb[0].mxu0
        %5158 = vmatprep.mubr.bf16.mxu0 0
        %5159 = vmatmul.mubr.bf16.gmra.mrb[0].mxu0 %v5110
        %v5160 = vpop.f32.mrb[0].mxu0
        %v5161 = vadd.f32 0.0, %v5160
        %v5162 = vpop.f32.mrb[0].mxu0
        %v5163 = vpop.f32.mrb[0].mxu0
        %v5164 = vadd.f32 0.0, %v5163
        %v5165 = vpop.f32.mrb[0].mxu0
        %5166 = vmatprep.mubr.bf16.mxu0 0
        %5167 = vmatmul.mubr.bf16.gmra.mrb[0].mxu0 %v5113
        %v5168 = vpop.f32.mrb[0].mxu0
        %v5169 = vadd.f32 0.0, %v5168
        %v5170 = vpop.f32.mrb[0].mxu0
        %v5171 = vpop.f32.mrb[0].mxu0
        %v5172 = vadd.f32 0.0, %v5171
        %v5173 = vpop.f32.mrb[0].mxu0
        %5174 = vmatprep.mubr.bf16.mxu0 0
        %5175 = vmatmul.mubr.bf16.gmra.mrb[0].mxu0 %v5116
        %v5176 = vpop.f32.mrb[0].mxu0
        %v5177 = vadd.f32 0.0, %v5176
        %v5178 = vpop.f32.mrb[0].mxu0
        %v5179 = vpop.f32.mrb[0].mxu0
        %v5180 = vadd.f32 0.0, %v5179
        %v5181 = vpop.f32.mrb[0].mxu0
        %5182 = vdwg.mxu0
        %v5183 = vadd.f32 %v5077, %v5153
        %v5184 = vadd.f32 %v5078, %v5156
        %v5185 = vadd.f32 %v5079, %v5161
        %v5186 = vadd.f32 %v5080, %v5164
        %v5187 = vadd.f32 %v5081, %v5169
        %v5188 = vadd.f32 %v5082, %v5172
        %v5189 = vadd.f32 %v5083, %v5177
        %v5190 = vadd.f32 %v5084, %v5180
        %v5191 = vpack.c.bf16 %v4670, %v4669
        %v5192 = vpack.c.bf16 %v4672, %v4671
        %v5193 = vpack.c.bf16 %v4674, %v4673
        %v5194 = vpack.c.bf16 %v4676, %v4675
        %s5195 = scalar_lea.vmem %s5, 80
        %v5196 = vld [vmem:[%s5195] sm:$0xf]
        %v5197 = vld [vmem:[%s5195 + $0x4] sm:$0xf]
        %v5198 = vld [vmem:[%s5195 + $0x8] sm:$0xf]
        %v5199 = vld [vmem:[%s5195 + $0xc] sm:$0xf]
        %v5204 = vunpack.c.l.b16 %v5196
        %v5205 = vunpack.c.l.b16 %v5197
        %v5206 = vunpack.c.l.b16 %v5198
        %v5207 = vunpack.c.l.b16 %v5199
        %v5208 = vpack.c.b16 %v5205, %v5204
        %v5209 = vpack.c.b16 %v5207, %v5206
        %v5213 = vsel %vm4498, %v5191, 0
        %v5216 = vsel %vm4498, %v5192, 0
        %v5219 = vsel %vm4498, %v5193, 0
        %v5222 = vsel %vm4498, %v5194, 0
        %5224 = vmatprep.subr.bf16.mxu0 0
        %5225 = vmatpush1.bf16.msra.mxu0 %v5208
        %5226 = vmatprep.subr.bf16.mxu0 0
        %5227 = vmatpush1.bf16.msra.mxu0 %v5209
        %5228 = vmatprep.subr.bf16.mxu0 0
        %5229 = vmatpush1.bf16.msra.mxu0 0
        %5230 = vmatprep.subr.bf16.mxu0 0
        %5231 = vmatpush1.bf16.msra.mxu0 0
        %5232 = vmatprep.subr.bf16.mxu0 0
        %5233 = vmatpush1.bf16.msra.mxu0 0
        %5234 = vmatprep.subr.bf16.mxu0 0
        %5235 = vmatpush1.bf16.msra.mxu0 0
        %5236 = vmatprep.subr.bf16.mxu0 0
        %5237 = vmatpush1.bf16.msra.mxu0 0
        %5238 = vmatprep.subr.bf16.mxu0 0
        %5239 = vmatpush1.bf16.msra.mxu0 0
        %5240 = vmatprep.subr.bf16.mxu0 0
        %5241 = vmatpush1.bf16.msra.mxu0 0
        %5242 = vmatprep.subr.bf16.mxu0 0
        %5243 = vmatpush1.bf16.msra.mxu0 0
        %5244 = vmatprep.subr.bf16.mxu0 0
        %5245 = vmatpush1.bf16.msra.mxu0 0
        %5246 = vmatprep.subr.bf16.mxu0 0
        %5247 = vmatpush1.bf16.msra.mxu0 0
        %5248 = vmatprep.subr.bf16.mxu0 0
        %5249 = vmatpush1.bf16.msra.mxu0 0
        %5250 = vmatprep.subr.bf16.mxu0 0
        %5251 = vmatpush1.bf16.msra.mxu0 0
        %5252 = vmatprep.subr.bf16.mxu0 0
        %5253 = vmatpush1.bf16.msra.mxu0 0
        %5254 = vmatprep.subr.bf16.mxu0 0
        %5255 = vmatpush1.bf16.msra.mxu0 0
        %5256 = vmatprep.mubr.bf16.mxu0 0
        %5257 = vmatmul.mubr.bf16.gmra.mrb[0].mxu0 %v5213
        %v5258 = vpop.f32.mrb[0].mxu0
        %v5259 = vadd.f32 0.0, %v5258
        %v5260 = vpop.f32.mrb[0].mxu0
        %v5261 = vpop.f32.mrb[0].mxu0
        %v5262 = vadd.f32 0.0, %v5261
        %v5263 = vpop.f32.mrb[0].mxu0
        %5264 = vmatprep.mubr.bf16.mxu0 0
        %5265 = vmatmul.mubr.bf16.gmra.mrb[0].mxu0 %v5216
        %v5266 = vpop.f32.mrb[0].mxu0
        %v5267 = vadd.f32 0.0, %v5266
        %v5268 = vpop.f32.mrb[0].mxu0
        %v5269 = vpop.f32.mrb[0].mxu0
        %v5270 = vadd.f32 0.0, %v5269
        %v5271 = vpop.f32.mrb[0].mxu0
        %5272 = vmatprep.mubr.bf16.mxu0 0
        %5273 = vmatmul.mubr.bf16.gmra.mrb[0].mxu0 %v5219
        %v5274 = vpop.f32.mrb[0].mxu0
        %v5275 = vadd.f32 0.0, %v5274
        %v5276 = vpop.f32.mrb[0].mxu0
        %v5277 = vpop.f32.mrb[0].mxu0
        %v5278 = vadd.f32 0.0, %v5277
        %v5279 = vpop.f32.mrb[0].mxu0
        %5280 = vmatprep.mubr.bf16.mxu0 0
        %5281 = vmatmul.mubr.bf16.gmra.mrb[0].mxu0 %v5222
        %v5282 = vpop.f32.mrb[0].mxu0
        %v5283 = vadd.f32 0.0, %v5282
        %v5284 = vpop.f32.mrb[0].mxu0
        %v5285 = vpop.f32.mrb[0].mxu0
        %v5286 = vadd.f32 0.0, %v5285
        %v5287 = vpop.f32.mrb[0].mxu0
        %5288 = vdwg.mxu0
        %v5289 = vadd.f32 %v5183, %v5259
        %v5290 = vadd.f32 %v5184, %v5262
        %v5291 = vadd.f32 %v5185, %v5267
        %v5292 = vadd.f32 %v5186, %v5270
        %v5293 = vadd.f32 %v5187, %v5275
        %v5294 = vadd.f32 %v5188, %v5278
        %v5295 = vadd.f32 %v5189, %v5283
        %v5296 = vadd.f32 %v5190, %v5286
        %v5297 = vpack.c.bf16 %v4657, %v4656
        %s5298 = scalar_lea.vmem %s5, 96
        %v5299 = vld [vmem:[%s5298] sm:$0xf]
        %v5300 = vld [vmem:[%s5298 + $0x4] sm:$0xf]
        %v5301 = vld [vmem:[%s5298 + $0x8] sm:$0xf]
        %v5302 = vld [vmem:[%s5298 + $0xc] sm:$0xf]
        %v5307 = vunpack.c.l.b16 %v5299
        %v5308 = vunpack.c.l.b16 %v5300
        %v5309 = vunpack.c.l.b16 %v5301
        %v5310 = vunpack.c.l.b16 %v5302
        %v5311 = vpack.c.b16 %v5308, %v5307
        %v5312 = vpack.c.b16 %v5310, %v5309
        %v5316 = vsel %vm4498, %v5297, 0
        %5318 = vmatprep.subr.bf16.mxu0 0
        %5319 = vmatpush1.bf16.msra.mxu0 %v5311
        %5320 = vmatprep.subr.bf16.mxu0 0
        %5321 = vmatpush1.bf16.msra.mxu0 %v5312
        %5322 = vmatprep.subr.bf16.mxu0 0
        %5323 = vmatpush1.bf16.msra.mxu0 0
        %5324 = vmatprep.subr.bf16.mxu0 0
        %5325 = vmatpush1.bf16.msra.mxu0 0
        %5326 = vmatprep.subr.bf16.mxu0 0
        %5327 = vmatpush1.bf16.msra.mxu0 0
        %5328 = vmatprep.subr.bf16.mxu0 0
        %5329 = vmatpush1.bf16.msra.mxu0 0
        %5330 = vmatprep.subr.bf16.mxu0 0
        %5331 = vmatpush1.bf16.msra.mxu0 0
        %5332 = vmatprep.subr.bf16.mxu0 0
        %5333 = vmatpush1.bf16.msra.mxu0 0
        %5334 = vmatprep.subr.bf16.mxu0 0
        %5335 = vmatpush1.bf16.msra.mxu0 0
        %5336 = vmatprep.subr.bf16.mxu0 0
        %5337 = vmatpush1.bf16.msra.mxu0 0
        %5338 = vmatprep.subr.bf16.mxu0 0
        %5339 = vmatpush1.bf16.msra.mxu0 0
        %5340 = vmatprep.subr.bf16.mxu0 0
        %5341 = vmatpush1.bf16.msra.mxu0 0
        %5342 = vmatprep.subr.bf16.mxu0 0
        %5343 = vmatpush1.bf16.msra.mxu0 0
        %5344 = vmatprep.subr.bf16.mxu0 0
        %5345 = vmatpush1.bf16.msra.mxu0 0
        %5346 = vmatprep.subr.bf16.mxu0 0
        %5347 = vmatpush1.bf16.msra.mxu0 0
        %5348 = vmatprep.subr.bf16.mxu0 0
        %5349 = vmatpush1.bf16.msra.mxu0 0
        %5350 = vmatprep.mubr.bf16.mxu0 0
        %5351 = vmatmul.mubr.bf16.gmra.mrb[0].mxu0 %v4800
        %v5352 = vpop.f32.mrb[0].mxu0
        %v5353 = vadd.f32 0.0, %v5352
        %v5354 = vpop.f32.mrb[0].mxu0
        %v5355 = vpop.f32.mrb[0].mxu0
        %v5356 = vadd.f32 0.0, %v5355
        %v5357 = vpop.f32.mrb[0].mxu0
        %5358 = vmatprep.mubr.bf16.mxu0 0
        %5359 = vmatmul.mubr.bf16.gmra.mrb[0].mxu0 %v4803
        %v5360 = vpop.f32.mrb[0].mxu0
        %v5361 = vadd.f32 0.0, %v5360
        %v5362 = vpop.f32.mrb[0].mxu0
        %v5363 = vpop.f32.mrb[0].mxu0
        %v5364 = vadd.f32 0.0, %v5363
        %v5365 = vpop.f32.mrb[0].mxu0
        %5366 = vmatprep.mubr.bf16.mxu0 0
        %5367 = vmatmul.mubr.bf16.gmra.mrb[0].mxu0 %v4806
        %v5368 = vpop.f32.mrb[0].mxu0
        %v5369 = vadd.f32 0.0, %v5368
        %v5370 = vpop.f32.mrb[0].mxu0
        %v5371 = vpop.f32.mrb[0].mxu0
        %v5372 = vadd.f32 0.0, %v5371
        %v5373 = vpop.f32.mrb[0].mxu0
        %5374 = vmatprep.mubr.bf16.mxu0 0
        %5375 = vmatmul.mubr.bf16.gmra.mrb[0].mxu0 %v5316
        %v5376 = vpop.f32.mrb[0].mxu0
        %v5377 = vadd.f32 0.0, %v5376
        %v5378 = vpop.f32.mrb[0].mxu0
        %v5379 = vpop.f32.mrb[0].mxu0
        %v5380 = vadd.f32 0.0, %v5379
        %v5381 = vpop.f32.mrb[0].mxu0
        %5382 = vdwg.mxu0
        %v5383 = vadd.f32 %v5289, %v5353
        %v5384 = vadd.f32 %v5290, %v5356
        %v5385 = vadd.f32 %v5291, %v5361
        %v5386 = vadd.f32 %v5292, %v5364
        %v5387 = vadd.f32 %v5293, %v5369
        %v5388 = vadd.f32 %v5294, %v5372
        %v5389 = vadd.f32 %v5295, %v5377
        %v5390 = vadd.f32 %v5296, %v5380
        %v5391 = vpack.c.bf16 %v4667, %v4666
        %s5392 = scalar_lea.vmem %s5, 112
        %v5393 = vld [vmem:[%s5392] sm:$0xf]
        %v5394 = vld [vmem:[%s5392 + $0x4] sm:$0xf]
        %v5395 = vld [vmem:[%s5392 + $0x8] sm:$0xf]
        %v5396 = vld [vmem:[%s5392 + $0xc] sm:$0xf]
        %v5401 = vunpack.c.l.b16 %v5393
        %v5402 = vunpack.c.l.b16 %v5394
        %v5403 = vunpack.c.l.b16 %v5395
        %v5404 = vunpack.c.l.b16 %v5396
        %v5405 = vpack.c.b16 %v5402, %v5401
        %v5406 = vpack.c.b16 %v5404, %v5403
        %v5410 = vsel %vm4498, %v5391, 0
        %5412 = vmatprep.subr.bf16.mxu0 0
        %5413 = vmatpush1.bf16.msra.mxu0 %v5405
        %5414 = vmatprep.subr.bf16.mxu0 0
        %5415 = vmatpush1.bf16.msra.mxu0 %v5406
        %5416 = vmatprep.subr.bf16.mxu0 0
        %5417 = vmatpush1.bf16.msra.mxu0 0
        %5418 = vmatprep.subr.bf16.mxu0 0
        %5419 = vmatpush1.bf16.msra.mxu0 0
        %5420 = vmatprep.subr.bf16.mxu0 0
        %5421 = vmatpush1.bf16.msra.mxu0 0
        %5422 = vmatprep.subr.bf16.mxu0 0
        %5423 = vmatpush1.bf16.msra.mxu0 0
        %5424 = vmatprep.subr.bf16.mxu0 0
        %5425 = vmatpush1.bf16.msra.mxu0 0
        %5426 = vmatprep.subr.bf16.mxu0 0
        %5427 = vmatpush1.bf16.msra.mxu0 0
        %5428 = vmatprep.subr.bf16.mxu0 0
        %5429 = vmatpush1.bf16.msra.mxu0 0
        %5430 = vmatprep.subr.bf16.mxu0 0
        %5431 = vmatpush1.bf16.msra.mxu0 0
        %5432 = vmatprep.subr.bf16.mxu0 0
        %5433 = vmatpush1.bf16.msra.mxu0 0
        %5434 = vmatprep.subr.bf16.mxu0 0
        %5435 = vmatpush1.bf16.msra.mxu0 0
        %5436 = vmatprep.subr.bf16.mxu0 0
        %5437 = vmatpush1.bf16.msra.mxu0 0
        %5438 = vmatprep.subr.bf16.mxu0 0
        %5439 = vmatpush1.bf16.msra.mxu0 0
        %5440 = vmatprep.subr.bf16.mxu0 0
        %5441 = vmatpush1.bf16.msra.mxu0 0
        %5442 = vmatprep.subr.bf16.mxu0 0
        %5443 = vmatpush1.bf16.msra.mxu0 0
        %5444 = vmatprep.mubr.bf16.mxu0 0
        %5445 = vmatmul.mubr.bf16.gmra.mrb[0].mxu0 %v4711
        %v5446 = vpop.f32.mrb[0].mxu0
        %v5447 = vadd.f32 0.0, %v5446
        %v5448 = vpop.f32.mrb[0].mxu0
        %v5449 = vpop.f32.mrb[0].mxu0
        %v5450 = vadd.f32 0.0, %v5449
        %v5451 = vpop.f32.mrb[0].mxu0
        %5452 = vmatprep.mubr.bf16.mxu0 0
        %5453 = vmatmul.mubr.bf16.gmra.mrb[0].mxu0 %v4714
        %v5454 = vpop.f32.mrb[0].mxu0
        %v5455 = vadd.f32 0.0, %v5454
        %v5456 = vpop.f32.mrb[0].mxu0
        %v5457 = vpop.f32.mrb[0].mxu0
        %v5458 = vadd.f32 0.0, %v5457
        %v5459 = vpop.f32.mrb[0].mxu0
        %5460 = vmatprep.mubr.bf16.mxu0 0
        %5461 = vmatmul.mubr.bf16.gmra.mrb[0].mxu0 %v4717
        %v5462 = vpop.f32.mrb[0].mxu0
        %v5463 = vadd.f32 0.0, %v5462
        %v5464 = vpop.f32.mrb[0].mxu0
        %v5465 = vpop.f32.mrb[0].mxu0
        %v5466 = vadd.f32 0.0, %v5465
        %v5467 = vpop.f32.mrb[0].mxu0
        %5468 = vmatprep.mubr.bf16.mxu0 0
        %5469 = vmatmul.mubr.bf16.gmra.mrb[0].mxu0 %v5410
        %v5470 = vpop.f32.mrb[0].mxu0
        %v5471 = vadd.f32 0.0, %v5470
        %v5472 = vpop.f32.mrb[0].mxu0
        %v5473 = vpop.f32.mrb[0].mxu0
        %v5474 = vadd.f32 0.0, %v5473
        %v5475 = vpop.f32.mrb[0].mxu0
        %5476 = vdwg.mxu0
        %v5477 = vadd.f32 %v5383, %v5447
        %v5478 = vadd.f32 %v5384, %v5450
        %v5479 = vadd.f32 %v5385, %v5455
        %v5480 = vadd.f32 %v5386, %v5458
        %v5481 = vadd.f32 %v5387, %v5463
        %v5482 = vadd.f32 %v5388, %v5466
        %v5483 = vadd.f32 %v5389, %v5471
        %v5484 = vadd.f32 %v5390, %v5474
        %v5485 = vpack.c.bf16 %v4677, %v4676
        %s5486 = scalar_lea.vmem %s5, 128
        %v5487 = vld [vmem:[%s5486] sm:$0xf]
        %v5488 = vld [vmem:[%s5486 + $0x4] sm:$0xf]
        %v5489 = vld [vmem:[%s5486 + $0x8] sm:$0xf]
        %v5490 = vld [vmem:[%s5486 + $0xc] sm:$0xf]
        %v5495 = vunpack.c.l.b16 %v5487
        %v5496 = vunpack.c.l.b16 %v5488
        %v5497 = vunpack.c.l.b16 %v5489
        %v5498 = vunpack.c.l.b16 %v5490
        %v5499 = vpack.c.b16 %v5496, %v5495
        %v5500 = vpack.c.b16 %v5498, %v5497
        %v5504 = vsel %vm4498, %v5485, 0
        %5506 = vmatprep.subr.bf16.mxu0 0
        %5507 = vmatpush1.bf16.msra.mxu0 %v5499
        %5508 = vmatprep.subr.bf16.mxu0 0
        %5509 = vmatpush1.bf16.msra.mxu0 %v5500
        %5510 = vmatprep.subr.bf16.mxu0 0
        %5511 = vmatpush1.bf16.msra.mxu0 0
        %5512 = vmatprep.subr.bf16.mxu0 0
        %5513 = vmatpush1.bf16.msra.mxu0 0
        %5514 = vmatprep.subr.bf16.mxu0 0
        %5515 = vmatpush1.bf16.msra.mxu0 0
        %5516 = vmatprep.subr.bf16.mxu0 0
        %5517 = vmatpush1.bf16.msra.mxu0 0
        %5518 = vmatprep.subr.bf16.mxu0 0
        %5519 = vmatpush1.bf16.msra.mxu0 0
        %5520 = vmatprep.subr.bf16.mxu0 0
        %5521 = vmatpush1.bf16.msra.mxu0 0
        %5522 = vmatprep.subr.bf16.mxu0 0
        %5523 = vmatpush1.bf16.msra.mxu0 0
        %5524 = vmatprep.subr.bf16.mxu0 0
        %5525 = vmatpush1.bf16.msra.mxu0 0
        %5526 = vmatprep.subr.bf16.mxu0 0
        %5527 = vmatpush1.bf16.msra.mxu0 0
        %5528 = vmatprep.subr.bf16.mxu0 0
        %5529 = vmatpush1.bf16.msra.mxu0 0
        %5530 = vmatprep.subr.bf16.mxu0 0
        %5531 = vmatpush1.bf16.msra.mxu0 0
        %5532 = vmatprep.subr.bf16.mxu0 0
        %5533 = vmatpush1.bf16.msra.mxu0 0
        %5534 = vmatprep.subr.bf16.mxu0 0
        %5535 = vmatpush1.bf16.msra.mxu0 0
        %5536 = vmatprep.subr.bf16.mxu0 0
        %5537 = vmatpush1.bf16.msra.mxu0 0
        %5538 = vmatprep.mubr.bf16.mxu0 0
        %5539 = vmatmul.mubr.bf16.gmra.mrb[0].mxu0 %v4898
        %v5540 = vpop.f32.mrb[0].mxu0
        %v5541 = vadd.f32 0.0, %v5540
        %v5542 = vpop.f32.mrb[0].mxu0
        %v5543 = vpop.f32.mrb[0].mxu0
        %v5544 = vadd.f32 0.0, %v5543
        %v5545 = vpop.f32.mrb[0].mxu0
        %5546 = vmatprep.mubr.bf16.mxu0 0
        %5547 = vmatmul.mubr.bf16.gmra.mrb[0].mxu0 %v4901
        %v5548 = vpop.f32.mrb[0].mxu0
        %v5549 = vadd.f32 0.0, %v5548
        %v5550 = vpop.f32.mrb[0].mxu0
        %v5551 = vpop.f32.mrb[0].mxu0
        %v5552 = vadd.f32 0.0, %v5551
        %v5553 = vpop.f32.mrb[0].mxu0
        %5554 = vmatprep.mubr.bf16.mxu0 0
        %5555 = vmatmul.mubr.bf16.gmra.mrb[0].mxu0 %v4904
        %v5556 = vpop.f32.mrb[0].mxu0
        %v5557 = vadd.f32 0.0, %v5556
        %v5558 = vpop.f32.mrb[0].mxu0
        %v5559 = vpop.f32.mrb[0].mxu0
        %v5560 = vadd.f32 0.0, %v5559
        %v5561 = vpop.f32.mrb[0].mxu0
        %5562 = vmatprep.mubr.bf16.mxu0 0
        %5563 = vmatmul.mubr.bf16.gmra.mrb[0].mxu0 %v5504
        %v5564 = vpop.f32.mrb[0].mxu0
        %v5565 = vadd.f32 0.0, %v5564
        %v5566 = vpop.f32.mrb[0].mxu0
        %v5567 = vpop.f32.mrb[0].mxu0
        %v5568 = vadd.f32 0.0, %v5567
        %v5569 = vpop.f32.mrb[0].mxu0
        %5570 = vdwg.mxu0
        %v5571 = vadd.f32 %v5477, %v5541
        %v5572 = vadd.f32 %v5478, %v5544
        %v5573 = vadd.f32 %v5479, %v5549
        %v5574 = vadd.f32 %v5480, %v5552
        %v5575 = vadd.f32 %v5481, %v5557
        %v5576 = vadd.f32 %v5482, %v5560
        %v5577 = vadd.f32 %v5483, %v5565
        %v5578 = vadd.f32 %v5484, %v5568
        %v5579 = vld [vmem:[%s6] sm:$0x1]
        %v5581 = vlaneseq
        %v5582 = vshrl.u32 %v5581, 7
        %v5583 = vsub.s32 0, %v5582
        %v5584 = vrot.slane %v5579, %v5583
        %v5586 = vadd.f32 %v5571, %v5584
        %v5587 = vadd.f32 %v5572, %v5584
        %v5588 = vadd.f32 %v5573, %v5584
        %v5589 = vadd.f32 %v5574, %v5584
        %v5590 = vadd.f32 %v5575, %v5584
        %v5591 = vadd.f32 %v5576, %v5584
        %v5592 = vadd.f32 %v5577, %v5584
        %v5593 = vadd.f32 %v5578, %v5584
        %v5594 = vmax.f32 %v5586, 0.0
        %v5595 = vmax.f32 %v5587, 0.0
        %v5596 = vmax.f32 %v5588, 0.0
        %v5597 = vmax.f32 %v5589, 0.0
        %v5598 = vmax.f32 %v5590, 0.0
        %v5599 = vmax.f32 %v5591, 0.0
        %v5600 = vmax.f32 %v5592, 0.0
        %v5601 = vmax.f32 %v5593, 0.0
        %5602 = vst.msk [vmem:[#allocation6] sm:$0xff] %vm4498, %v5594
        %5603 = vst.msk [vmem:[#allocation6 + $0x8] sm:$0xff] %vm4498, %v5595
        %5604 = vst.msk [vmem:[#allocation6 + $0x10] sm:$0xff] %vm4498, %v5596
        %5605 = vst.msk [vmem:[#allocation6 + $0x18] sm:$0xff] %vm4498, %v5597
        %5606 = vst.msk [vmem:[#allocation6 + $0x20] sm:$0xff] %vm4498, %v5598
        %5607 = vst.msk [vmem:[#allocation6 + $0x28] sm:$0xff] %vm4498, %v5599
        %5608 = vst.msk [vmem:[#allocation6 + $0x30] sm:$0xff] %vm4498, %v5600
        %5609 = vst.msk [vmem:[#allocation6 + $0x38] sm:$0xff] %vm4498, %v5601
        %v5610 = vld [vmem:[#allocation6] ss:$2 sm:$0xf]
        %s5611 = scalar_lea.vmem [#allocation6], 8
        %v5612 = vld [vmem:[%s5611] ss:$2 sm:$0xf]
        %s5613 = scalar_lea.vmem [#allocation6], 16
        %v5614 = vld [vmem:[%s5613] ss:$2 sm:$0xf]
        %s5615 = scalar_lea.vmem [#allocation6], 24
        %v5616 = vld [vmem:[%s5615] ss:$2 sm:$0xf]
        %s5617 = scalar_lea.vmem [#allocation6], 32
        %v5618 = vld [vmem:[%s5617] ss:$2 sm:$0xf]
        %s5619 = scalar_lea.vmem [#allocation6], 40
        %v5620 = vld [vmem:[%s5619] ss:$2 sm:$0xf]
        %s5621 = scalar_lea.vmem [#allocation6], 48
        %v5622 = vld [vmem:[%s5621] ss:$2 sm:$0xf]
        %s5623 = scalar_lea.vmem [#allocation6], 56
        %v5624 = vld [vmem:[%s5623] ss:$2 sm:$0xf]
        %s5625 = scalar_lea.vmem [#allocation6], 1
        %v5626 = vld [vmem:[%s5625] ss:$2 sm:$0xf]
        %s5627 = scalar_lea.vmem [#allocation6], 9
        %v5628 = vld [vmem:[%s5627] ss:$2 sm:$0xf]
        %s5629 = scalar_lea.vmem [#allocation6], 17
        %v5630 = vld [vmem:[%s5629] ss:$2 sm:$0xf]
        %s5631 = scalar_lea.vmem [#allocation6], 25
        %v5632 = vld [vmem:[%s5631] ss:$2 sm:$0xf]
        %s5633 = scalar_lea.vmem [#allocation6], 33
        %v5634 = vld [vmem:[%s5633] ss:$2 sm:$0xf]
        %s5635 = scalar_lea.vmem [#allocation6], 41
        %v5636 = vld [vmem:[%s5635] ss:$2 sm:$0xf]
        %s5637 = scalar_lea.vmem [#allocation6], 49
        %v5638 = vld [vmem:[%s5637] ss:$2 sm:$0xf]
        %s5639 = scalar_lea.vmem [#allocation6], 57
        %v5640 = vld [vmem:[%s5639] ss:$2 sm:$0xf]
        %v5641 = vmax.f32 %v5610, %v5626
        %v5642 = vmax.f32 %v5612, %v5628
        %v5643 = vmax.f32 %v5614, %v5630
        %v5644 = vmax.f32 %v5616, %v5632
        %v5645 = vmax.f32 %v5618, %v5634
        %v5646 = vmax.f32 %v5620, %v5636
        %v5647 = vmax.f32 %v5622, %v5638
        %v5648 = vmax.f32 %v5624, %v5640
        %v5649 = vmax.f32 %v5641, %v5642
        %v5650 = vmax.f32 %v5643, %v5644
        %v5651 = vmax.f32 %v5645, %v5646
        %v5652 = vmax.f32 %v5647, %v5648
        %v5653 = vlaneseq
        %vm5654 = vcmp.ge.s32.totalorder %v5653, 0
        %vm5655 = vcmp.lt.s32.totalorder %v5653, 32
        %vm5656 = vmand %vm5654, %vm5655
        %5657 = vst.msk [vmem:[#allocation7] sm:$0x1] %vm5656, %v5649
        %v5660 = vunpack.c.l.s4 1966171168
        %v5661 = vunpack.c.0.s8 %v5660
        %v5662 = vlaneseq
        %v5663 = vshrl.u32 %v5662, 7
        %v5664 = vsub.s32 %v5661, %v5663
        %v5665 = vrot.slane %v5649, %v5664
        %v5666 = vcombine.high %v5665, %v5665
        %v5668 = vunpack.c.l.s4 1966171168
        %v5669 = vunpack.c.0.s8 %v5668
        %v5670 = vlaneseq
        %v5671 = vshrl.u32 %v5670, 7
        %v5672 = vsub.s32 %v5669, %v5671
        %v5673 = vrot.slane %v5665, %v5672
        %v5675 = vunpack.c.l.s4 1966171168
        %v5676 = vunpack.c.0.s8 %v5675
        %v5677 = vlaneseq
        %v5678 = vshrl.u32 %v5677, 7
        %v5679 = vsub.s32 %v5676, %v5678
        %v5680 = vrot.slane %v5666, %v5679
        %5681 = vrot.lane.b32.xlu0 %v5680, 32
        %v5682 = vpop.permute.xlu0 %5681
        %vm5684 = vcmp.ge.s32.totalorder %v5653, 32
        %vm5685 = vcmp.lt.s32.totalorder %v5653, 64
        %vm5686 = vmand %vm5684, %vm5685
        %5687 = vst.msk [vmem:[#allocation7] sm:$0x1] %vm5686, %v5682
        %v5688 = vcombine.high %v5673, %v5673
        %5689 = vrot.lane.b32.xlu0 %v5688, 64
        %v5690 = vpop.permute.xlu0 %5689
        %vm5692 = vcmp.ge.s32.totalorder %v5653, 64
        %vm5693 = vcmp.lt.s32.totalorder %v5653, 96
        %vm5694 = vmand %vm5692, %vm5693
        %5695 = vst.msk [vmem:[#allocation7] sm:$0x1] %vm5694, %v5690
        %v5696 = vcombine.high %v5680, %v5680
        %5697 = vrot.lane.b32.xlu0 %v5696, 96
        %v5698 = vpop.permute.xlu0 %5697
        %vm5700 = vcmp.ge.s32.totalorder %v5653, 96
        %vm5701 = vcmp.lt.s32.totalorder %v5653, 128
        %vm5702 = vmand %vm5700, %vm5701
        %5703 = vst.msk [vmem:[#allocation7] sm:$0x1] %vm5702, %v5698
        %5704 = vst.msk [vmem:[#allocation7 + $0x1] sm:$0x1] %vm5656, %v5650
        %v5707 = vunpack.c.l.s4 1966171168
        %v5708 = vunpack.c.0.s8 %v5707
        %v5709 = vlaneseq
        %v5710 = vshrl.u32 %v5709, 7
        %v5711 = vsub.s32 %v5708, %v5710
        %v5712 = vrot.slane %v5650, %v5711
        %v5713 = vcombine.high %v5712, %v5712
        %v5715 = vunpack.c.l.s4 1966171168
        %v5716 = vunpack.c.0.s8 %v5715
        %v5717 = vlaneseq
        %v5718 = vshrl.u32 %v5717, 7
        %v5719 = vsub.s32 %v5716, %v5718
        %v5720 = vrot.slane %v5712, %v5719
        %v5722 = vunpack.c.l.s4 1966171168
        %v5723 = vunpack.c.0.s8 %v5722
        %v5724 = vlaneseq
        %v5725 = vshrl.u32 %v5724, 7
        %v5726 = vsub.s32 %v5723, %v5725
        %v5727 = vrot.slane %v5713, %v5726
        %5728 = vrot.lane.b32.xlu0 %v5727, 32
        %v5729 = vpop.permute.xlu0 %5728
        %5731 = vst.msk [vmem:[#allocation7 + $0x1] sm:$0x1] %vm5686, %v5729
        %v5732 = vcombine.high %v5720, %v5720
        %5733 = vrot.lane.b32.xlu0 %v5732, 64
        %v5734 = vpop.permute.xlu0 %5733
        %5736 = vst.msk [vmem:[#allocation7 + $0x1] sm:$0x1] %vm5694, %v5734
        %v5737 = vcombine.high %v5727, %v5727
        %5738 = vrot.lane.b32.xlu0 %v5737, 96
        %v5739 = vpop.permute.xlu0 %5738
        %5741 = vst.msk [vmem:[#allocation7 + $0x1] sm:$0x1] %vm5702, %v5739
        %5742 = vst.msk [vmem:[#allocation7 + $0x2] sm:$0x1] %vm5656, %v5651
        %v5745 = vunpack.c.l.s4 1966171168
        %v5746 = vunpack.c.0.s8 %v5745
        %v5747 = vlaneseq
        %v5748 = vshrl.u32 %v5747, 7
        %v5749 = vsub.s32 %v5746, %v5748
        %v5750 = vrot.slane %v5651, %v5749
        %v5751 = vcombine.high %v5750, %v5750
        %v5753 = vunpack.c.l.s4 1966171168
        %v5754 = vunpack.c.0.s8 %v5753
        %v5755 = vlaneseq
        %v5756 = vshrl.u32 %v5755, 7
        %v5757 = vsub.s32 %v5754, %v5756
        %v5758 = vrot.slane %v5750, %v5757
        %v5760 = vunpack.c.l.s4 1966171168
        %v5761 = vunpack.c.0.s8 %v5760
        %v5762 = vlaneseq
        %v5763 = vshrl.u32 %v5762, 7
        %v5764 = vsub.s32 %v5761, %v5763
        %v5765 = vrot.slane %v5751, %v5764
        %5766 = vrot.lane.b32.xlu0 %v5765, 32
        %v5767 = vpop.permute.xlu0 %5766
        %5769 = vst.msk [vmem:[#allocation7 + $0x2] sm:$0x1] %vm5686, %v5767
        %v5770 = vcombine.high %v5758, %v5758
        %5771 = vrot.lane.b32.xlu0 %v5770, 64
        %v5772 = vpop.permute.xlu0 %5771
        %5774 = vst.msk [vmem:[#allocation7 + $0x2] sm:$0x1] %vm5694, %v5772
        %v5775 = vcombine.high %v5765, %v5765
        %5776 = vrot.lane.b32.xlu0 %v5775, 96
        %v5777 = vpop.permute.xlu0 %5776
        %5779 = vst.msk [vmem:[#allocation7 + $0x2] sm:$0x1] %vm5702, %v5777
        %5780 = vst.msk [vmem:[#allocation7 + $0x3] sm:$0x1] %vm5656, %v5652
        %v5783 = vunpack.c.l.s4 1966171168
        %v5784 = vunpack.c.0.s8 %v5783
        %v5785 = vlaneseq
        %v5786 = vshrl.u32 %v5785, 7
        %v5787 = vsub.s32 %v5784, %v5786
        %v5788 = vrot.slane %v5652, %v5787
        %v5789 = vcombine.high %v5788, %v5788
        %v5791 = vunpack.c.l.s4 1966171168
        %v5792 = vunpack.c.0.s8 %v5791
        %v5793 = vlaneseq
        %v5794 = vshrl.u32 %v5793, 7
        %v5795 = vsub.s32 %v5792, %v5794
        %v5796 = vrot.slane %v5788, %v5795
        %v5798 = vunpack.c.l.s4 1966171168
        %v5799 = vunpack.c.0.s8 %v5798
        %v5800 = vlaneseq
        %v5801 = vshrl.u32 %v5800, 7
        %v5802 = vsub.s32 %v5799, %v5801
        %v5803 = vrot.slane %v5789, %v5802
        %5804 = vrot.lane.b32.xlu0 %v5803, 32
        %v5805 = vpop.permute.xlu0 %5804
        %5807 = vst.msk [vmem:[#allocation7 + $0x3] sm:$0x1] %vm5686, %v5805
        %v5808 = vcombine.high %v5796, %v5796
        %5809 = vrot.lane.b32.xlu0 %v5808, 64
        %v5810 = vpop.permute.xlu0 %5809
        %5812 = vst.msk [vmem:[#allocation7 + $0x3] sm:$0x1] %vm5694, %v5810
        %v5813 = vcombine.high %v5803, %v5803
        %5814 = vrot.lane.b32.xlu0 %v5813, 96
        %v5815 = vpop.permute.xlu0 %5814
        %5817 = vst.msk [vmem:[#allocation7 + $0x3] sm:$0x1] %vm5702, %v5815
        %v5818 = vld [vmem:[#allocation7] sm:$0xf]
        %v5820 = vlaneseq
        %v5821 = vshrl.u32 %v5820, 7
        %v5822 = vsub.s32 0, %v5821
        %v5823 = vrot.slane %v5818, %v5822
        %v5824 = vlaneseq
        %v5825 = vshrl.u32 %v5824, 7
        %v5826 = vsub.s32 1, %v5825
        %v5827 = vrot.slane %v5818, %v5826
        %v5828 = vlaneseq
        %v5829 = vshrl.u32 %v5828, 7
        %v5830 = vsub.s32 2, %v5829
        %v5831 = vrot.slane %v5818, %v5830
        %v5832 = vlaneseq
        %v5833 = vshrl.u32 %v5832, 7
        %v5834 = vsub.s32 3, %v5833
        %v5835 = vrot.slane %v5818, %v5834
        %v5840 = vpack.c.bf16 %v5823, %v5823
        %v5841 = vpack.c.bf16 %v5827, %v5827
        %v5842 = vpack.c.bf16 %v5831, %v5831
        %v5843 = vpack.c.bf16 %v5835, %v5835
        %v5844 = vld [vmem:[%s7] sm:$0xff]
        %v5845 = vld [vmem:[%s7 + $0x8] sm:$0xff]
        %v5846 = vld [vmem:[%s7 + $0x10] sm:$0xff]
        %v5847 = vld [vmem:[%s7 + $0x18] sm:$0xff]
        %v5848 = vld [vmem:[%s7 + $0x20] sm:$0xff]
        %v5849 = vld [vmem:[%s7 + $0x28] sm:$0xff]
        %v5850 = vld [vmem:[%s7 + $0x30] sm:$0xff]
        %v5851 = vld [vmem:[%s7 + $0x38] sm:$0xff]
        %v5852 = vld [vmem:[%s7 + $0x40] sm:$0xff]
        %v5853 = vld [vmem:[%s7 + $0x48] sm:$0xff]
        %v5854 = vld [vmem:[%s7 + $0x50] sm:$0xff]
        %v5855 = vld [vmem:[%s7 + $0x58] sm:$0xff]
        %v5856 = vld [vmem:[%s7 + $0x60] sm:$0xff]
        %v5857 = vld [vmem:[%s7 + $0x68] sm:$0xff]
        %v5858 = vld [vmem:[%s7 + $0x70] sm:$0xff]
        %v5859 = vld [vmem:[%s7 + $0x78] sm:$0xff]
        %v5860 = vld [vmem:[%s7 + $0x80] sm:$0xff]
        %v5861 = vld [vmem:[%s7 + $0x88] sm:$0xff]
        %v5862 = vld [vmem:[%s7 + $0x90] sm:$0xff]
        %v5863 = vld [vmem:[%s7 + $0x98] sm:$0xff]
        %v5864 = vld [vmem:[%s7 + $0xa0] sm:$0xff]
        %v5865 = vld [vmem:[%s7 + $0xa8] sm:$0xff]
        %v5866 = vld [vmem:[%s7 + $0xb0] sm:$0xff]
        %v5867 = vld [vmem:[%s7 + $0xb8] sm:$0xff]
        %v5868 = vld [vmem:[%s7 + $0xc0] sm:$0xff]
        %v5869 = vld [vmem:[%s7 + $0xc8] sm:$0xff]
        %v5870 = vld [vmem:[%s7 + $0xd0] sm:$0xff]
        %v5871 = vld [vmem:[%s7 + $0xd8] sm:$0xff]
        %v5872 = vld [vmem:[%s7 + $0xe0] sm:$0xff]
        %v5873 = vld [vmem:[%s7 + $0xe8] sm:$0xff]
        %v5874 = vld [vmem:[%s7 + $0xf0] sm:$0xff]
        %v5875 = vld [vmem:[%s7 + $0xf8] sm:$0xff]
        %v5876 = vld [vmem:[%s7 + $0x100] sm:$0xff]
        %v5877 = vld [vmem:[%s7 + $0x108] sm:$0xff]
        %v5878 = vld [vmem:[%s7 + $0x110] sm:$0xff]
        %v5879 = vld [vmem:[%s7 + $0x118] sm:$0xff]
        %v5880 = vld [vmem:[%s7 + $0x120] sm:$0xff]
        %v5881 = vld [vmem:[%s7 + $0x128] sm:$0xff]
        %v5882 = vld [vmem:[%s7 + $0x130] sm:$0xff]
        %v5883 = vld [vmem:[%s7 + $0x138] sm:$0xff]
        %v5884 = vld [vmem:[%s7 + $0x140] sm:$0xff]
        %v5885 = vld [vmem:[%s7 + $0x148] sm:$0xff]
        %v5886 = vld [vmem:[%s7 + $0x150] sm:$0xff]
        %v5887 = vld [vmem:[%s7 + $0x158] sm:$0xff]
        %v5888 = vld [vmem:[%s7 + $0x160] sm:$0xff]
        %v5889 = vld [vmem:[%s7 + $0x168] sm:$0xff]
        %v5890 = vld [vmem:[%s7 + $0x170] sm:$0xff]
        %v5891 = vld [vmem:[%s7 + $0x178] sm:$0xff]
        %v5892 = vld [vmem:[%s7 + $0x180] sm:$0xff]
        %v5893 = vld [vmem:[%s7 + $0x188] sm:$0xff]
        %v5894 = vld [vmem:[%s7 + $0x190] sm:$0xff]
        %v5895 = vld [vmem:[%s7 + $0x198] sm:$0xff]
        %v5896 = vld [vmem:[%s7 + $0x1a0] sm:$0xff]
        %v5897 = vld [vmem:[%s7 + $0x1a8] sm:$0xff]
        %v5898 = vld [vmem:[%s7 + $0x1b0] sm:$0xff]
        %v5899 = vld [vmem:[%s7 + $0x1b8] sm:$0xff]
        %v5900 = vld [vmem:[%s7 + $0x1c0] sm:$0xff]
        %v5901 = vld [vmem:[%s7 + $0x1c8] sm:$0xff]
        %v5902 = vld [vmem:[%s7 + $0x1d0] sm:$0xff]
        %v5903 = vld [vmem:[%s7 + $0x1d8] sm:$0xff]
        %v5904 = vld [vmem:[%s7 + $0x1e0] sm:$0xff]
        %v5905 = vld [vmem:[%s7 + $0x1e8] sm:$0xff]
        %v5906 = vld [vmem:[%s7 + $0x1f0] sm:$0xff]
        %v5907 = vld [vmem:[%s7 + $0x1f8] sm:$0xff]
        %v5908 = vld [vmem:[%s7 + $0x200] sm:$0xff]
        %v5909 = vld [vmem:[%s7 + $0x208] sm:$0xff]
        %v5910 = vld [vmem:[%s7 + $0x210] sm:$0xff]
        %v5911 = vld [vmem:[%s7 + $0x218] sm:$0xff]
        %v5912 = vld [vmem:[%s7 + $0x220] sm:$0xff]
        %v5913 = vld [vmem:[%s7 + $0x228] sm:$0xff]
        %v5914 = vld [vmem:[%s7 + $0x230] sm:$0xff]
        %v5915 = vld [vmem:[%s7 + $0x238] sm:$0xff]
        %v5916 = vld [vmem:[%s7 + $0x240] sm:$0xff]
        %v5917 = vld [vmem:[%s7 + $0x248] sm:$0xff]
        %v5918 = vld [vmem:[%s7 + $0x250] sm:$0xff]
        %v5919 = vld [vmem:[%s7 + $0x258] sm:$0xff]
        %v5920 = vld [vmem:[%s7 + $0x260] sm:$0xff]
        %v5921 = vld [vmem:[%s7 + $0x268] sm:$0xff]
        %v5922 = vld [vmem:[%s7 + $0x270] sm:$0xff]
        %v5923 = vld [vmem:[%s7 + $0x278] sm:$0xff]
        %v5924 = vld [vmem:[%s7 + $0x280] sm:$0xff]
        %v5925 = vld [vmem:[%s7 + $0x288] sm:$0xff]
        %v5926 = vld [vmem:[%s7 + $0x290] sm:$0xff]
        %v5927 = vld [vmem:[%s7 + $0x298] sm:$0xff]
        %v5928 = vld [vmem:[%s7 + $0x2a0] sm:$0xff]
        %v5929 = vld [vmem:[%s7 + $0x2a8] sm:$0xff]
        %v5930 = vld [vmem:[%s7 + $0x2b0] sm:$0xff]
        %v5931 = vld [vmem:[%s7 + $0x2b8] sm:$0xff]
        %v5932 = vld [vmem:[%s7 + $0x2c0] sm:$0xff]
        %v5933 = vld [vmem:[%s7 + $0x2c8] sm:$0xff]
        %v5934 = vld [vmem:[%s7 + $0x2d0] sm:$0xff]
        %v5935 = vld [vmem:[%s7 + $0x2d8] sm:$0xff]
        %v5936 = vld [vmem:[%s7 + $0x2e0] sm:$0xff]
        %v5937 = vld [vmem:[%s7 + $0x2e8] sm:$0xff]
        %v5938 = vld [vmem:[%s7 + $0x2f0] sm:$0xff]
        %v5939 = vld [vmem:[%s7 + $0x2f8] sm:$0xff]
        %v5940 = vld [vmem:[%s7 + $0x300] sm:$0xff]
        %v5941 = vld [vmem:[%s7 + $0x308] sm:$0xff]
        %v5942 = vld [vmem:[%s7 + $0x310] sm:$0xff]
        %v5943 = vld [vmem:[%s7 + $0x318] sm:$0xff]
        %v5944 = vld [vmem:[%s7 + $0x320] sm:$0xff]
        %v5945 = vld [vmem:[%s7 + $0x328] sm:$0xff]
        %v5946 = vld [vmem:[%s7 + $0x330] sm:$0xff]
        %v5947 = vld [vmem:[%s7 + $0x338] sm:$0xff]
        %v5948 = vld [vmem:[%s7 + $0x340] sm:$0xff]
        %v5949 = vld [vmem:[%s7 + $0x348] sm:$0xff]
        %v5950 = vld [vmem:[%s7 + $0x350] sm:$0xff]
        %v5951 = vld [vmem:[%s7 + $0x358] sm:$0xff]
        %v5952 = vld [vmem:[%s7 + $0x360] sm:$0xff]
        %v5953 = vld [vmem:[%s7 + $0x368] sm:$0xff]
        %v5954 = vld [vmem:[%s7 + $0x370] sm:$0xff]
        %v5955 = vld [vmem:[%s7 + $0x378] sm:$0xff]
        %v5956 = vld [vmem:[%s7 + $0x380] sm:$0xff]
        %v5957 = vld [vmem:[%s7 + $0x388] sm:$0xff]
        %v5958 = vld [vmem:[%s7 + $0x390] sm:$0xff]
        %v5959 = vld [vmem:[%s7 + $0x398] sm:$0xff]
        %v5960 = vld [vmem:[%s7 + $0x3a0] sm:$0xff]
        %v5961 = vld [vmem:[%s7 + $0x3a8] sm:$0xff]
        %v5962 = vld [vmem:[%s7 + $0x3b0] sm:$0xff]
        %v5963 = vld [vmem:[%s7 + $0x3b8] sm:$0xff]
        %v5964 = vld [vmem:[%s7 + $0x3c0] sm:$0xff]
        %v5965 = vld [vmem:[%s7 + $0x3c8] sm:$0xff]
        %v5966 = vld [vmem:[%s7 + $0x3d0] sm:$0xff]
        %v5967 = vld [vmem:[%s7 + $0x3d8] sm:$0xff]
        %v5968 = vld [vmem:[%s7 + $0x3e0] sm:$0xff]
        %v5969 = vld [vmem:[%s7 + $0x3e8] sm:$0xff]
        %v5970 = vld [vmem:[%s7 + $0x3f0] sm:$0xff]
        %v5971 = vld [vmem:[%s7 + $0x3f8] sm:$0xff]
        %v5972 = vld [vmem:[%s8] sm:$0xf]
        %v6101 = vunpack.c.l.b16 %v5844
        %v6102 = vunpack.c.h.b16 %v5844
        %v6103 = vunpack.c.l.b16 %v5845
        %v6104 = vunpack.c.h.b16 %v5845
        %v6105 = vunpack.c.l.b16 %v5846
        %v6106 = vunpack.c.h.b16 %v5846
        %v6107 = vunpack.c.l.b16 %v5847
        %v6108 = vunpack.c.h.b16 %v5847
        %v6109 = vunpack.c.l.b16 %v5848
        %v6110 = vunpack.c.h.b16 %v5848
        %v6111 = vunpack.c.l.b16 %v5849
        %v6112 = vunpack.c.h.b16 %v5849
        %v6113 = vunpack.c.l.b16 %v5850
        %v6114 = vunpack.c.h.b16 %v5850
        %v6115 = vunpack.c.l.b16 %v5851
        %v6116 = vunpack.c.h.b16 %v5851
        %v6117 = vunpack.c.l.b16 %v5852
        %v6118 = vunpack.c.h.b16 %v5852
        %v6119 = vunpack.c.l.b16 %v5853
        %v6120 = vunpack.c.h.b16 %v5853
        %v6121 = vunpack.c.l.b16 %v5854
        %v6122 = vunpack.c.h.b16 %v5854
        %v6123 = vunpack.c.l.b16 %v5855
        %v6124 = vunpack.c.h.b16 %v5855
        %v6125 = vunpack.c.l.b16 %v5856
        %v6126 = vunpack.c.h.b16 %v5856
        %v6127 = vunpack.c.l.b16 %v5857
        %v6128 = vunpack.c.h.b16 %v5857
        %v6129 = vunpack.c.l.b16 %v5858
        %v6130 = vunpack.c.h.b16 %v5858
        %v6131 = vunpack.c.l.b16 %v5859
        %v6132 = vunpack.c.h.b16 %v5859
        %v6133 = vunpack.c.l.b16 %v5860
        %v6134 = vunpack.c.h.b16 %v5860
        %v6135 = vunpack.c.l.b16 %v5861
        %v6136 = vunpack.c.h.b16 %v5861
        %v6137 = vunpack.c.l.b16 %v5862
        %v6138 = vunpack.c.h.b16 %v5862
        %v6139 = vunpack.c.l.b16 %v5863
        %v6140 = vunpack.c.h.b16 %v5863
        %v6141 = vunpack.c.l.b16 %v5864
        %v6142 = vunpack.c.h.b16 %v5864
        %v6143 = vunpack.c.l.b16 %v5865
        %v6144 = vunpack.c.h.b16 %v5865
        %v6145 = vunpack.c.l.b16 %v5866
        %v6146 = vunpack.c.h.b16 %v5866
        %v6147 = vunpack.c.l.b16 %v5867
        %v6148 = vunpack.c.h.b16 %v5867
        %v6149 = vunpack.c.l.b16 %v5868
        %v6150 = vunpack.c.h.b16 %v5868
        %v6151 = vunpack.c.l.b16 %v5869
        %v6152 = vunpack.c.h.b16 %v5869
        %v6153 = vunpack.c.l.b16 %v5870
        %v6154 = vunpack.c.h.b16 %v5870
        %v6155 = vunpack.c.l.b16 %v5871
        %v6156 = vunpack.c.h.b16 %v5871
        %v6157 = vunpack.c.l.b16 %v5872
        %v6158 = vunpack.c.h.b16 %v5872
        %v6159 = vunpack.c.l.b16 %v5873
        %v6160 = vunpack.c.h.b16 %v5873
        %v6161 = vunpack.c.l.b16 %v5874
        %v6162 = vunpack.c.h.b16 %v5874
        %v6163 = vunpack.c.l.b16 %v5875
        %v6164 = vunpack.c.h.b16 %v5875
        %v6165 = vunpack.c.l.b16 %v5876
        %v6166 = vunpack.c.h.b16 %v5876
        %v6167 = vunpack.c.l.b16 %v5877
        %v6168 = vunpack.c.h.b16 %v5877
        %v6169 = vunpack.c.l.b16 %v5878
        %v6170 = vunpack.c.h.b16 %v5878
        %v6171 = vunpack.c.l.b16 %v5879
        %v6172 = vunpack.c.h.b16 %v5879
        %v6173 = vunpack.c.l.b16 %v5880
        %v6174 = vunpack.c.h.b16 %v5880
        %v6175 = vunpack.c.l.b16 %v5881
        %v6176 = vunpack.c.h.b16 %v5881
        %v6177 = vunpack.c.l.b16 %v5882
        %v6178 = vunpack.c.h.b16 %v5882
        %v6179 = vunpack.c.l.b16 %v5883
        %v6180 = vunpack.c.h.b16 %v5883
        %v6181 = vunpack.c.l.b16 %v5884
        %v6182 = vunpack.c.h.b16 %v5884
        %v6183 = vunpack.c.l.b16 %v5885
        %v6184 = vunpack.c.h.b16 %v5885
        %v6185 = vunpack.c.l.b16 %v5886
        %v6186 = vunpack.c.h.b16 %v5886
        %v6187 = vunpack.c.l.b16 %v5887
        %v6188 = vunpack.c.h.b16 %v5887
        %v6189 = vunpack.c.l.b16 %v5888
        %v6190 = vunpack.c.h.b16 %v5888
        %v6191 = vunpack.c.l.b16 %v5889
        %v6192 = vunpack.c.h.b16 %v5889
        %v6193 = vunpack.c.l.b16 %v5890
        %v6194 = vunpack.c.h.b16 %v5890
        %v6195 = vunpack.c.l.b16 %v5891
        %v6196 = vunpack.c.h.b16 %v5891
        %v6197 = vunpack.c.l.b16 %v5892
        %v6198 = vunpack.c.h.b16 %v5892
        %v6199 = vunpack.c.l.b16 %v5893
        %v6200 = vunpack.c.h.b16 %v5893
        %v6201 = vunpack.c.l.b16 %v5894
        %v6202 = vunpack.c.h.b16 %v5894
        %v6203 = vunpack.c.l.b16 %v5895
        %v6204 = vunpack.c.h.b16 %v5895
        %v6205 = vunpack.c.l.b16 %v5896
        %v6206 = vunpack.c.h.b16 %v5896
        %v6207 = vunpack.c.l.b16 %v5897
        %v6208 = vunpack.c.h.b16 %v5897
        %v6209 = vunpack.c.l.b16 %v5898
        %v6210 = vunpack.c.h.b16 %v5898
        %v6211 = vunpack.c.l.b16 %v5899
        %v6212 = vunpack.c.h.b16 %v5899
        %v6213 = vunpack.c.l.b16 %v5900
        %v6214 = vunpack.c.h.b16 %v5900
        %v6215 = vunpack.c.l.b16 %v5901
        %v6216 = vunpack.c.h.b16 %v5901
        %v6217 = vunpack.c.l.b16 %v5902
        %v6218 = vunpack.c.h.b16 %v5902
        %v6219 = vunpack.c.l.b16 %v5903
        %v6220 = vunpack.c.h.b16 %v5903
        %v6221 = vunpack.c.l.b16 %v5904
        %v6222 = vunpack.c.h.b16 %v5904
        %v6223 = vunpack.c.l.b16 %v5905
        %v6224 = vunpack.c.h.b16 %v5905
        %v6225 = vunpack.c.l.b16 %v5906
        %v6226 = vunpack.c.h.b16 %v5906
        %v6227 = vunpack.c.l.b16 %v5907
        %v6228 = vunpack.c.h.b16 %v5907
        %v6229 = vunpack.c.l.b16 %v5908
        %v6230 = vunpack.c.h.b16 %v5908
        %v6231 = vunpack.c.l.b16 %v5909
        %v6232 = vunpack.c.h.b16 %v5909
        %v6233 = vunpack.c.l.b16 %v5910
        %v6234 = vunpack.c.h.b16 %v5910
        %v6235 = vunpack.c.l.b16 %v5911
        %v6236 = vunpack.c.h.b16 %v5911
        %v6237 = vunpack.c.l.b16 %v5912
        %v6238 = vunpack.c.h.b16 %v5912
        %v6239 = vunpack.c.l.b16 %v5913
        %v6240 = vunpack.c.h.b16 %v5913
        %v6241 = vunpack.c.l.b16 %v5914
        %v6242 = vunpack.c.h.b16 %v5914
        %v6243 = vunpack.c.l.b16 %v5915
        %v6244 = vunpack.c.h.b16 %v5915
        %v6245 = vunpack.c.l.b16 %v5916
        %v6246 = vunpack.c.h.b16 %v5916
        %v6247 = vunpack.c.l.b16 %v5917
        %v6248 = vunpack.c.h.b16 %v5917
        %v6249 = vunpack.c.l.b16 %v5918
        %v6250 = vunpack.c.h.b16 %v5918
        %v6251 = vunpack.c.l.b16 %v5919
        %v6252 = vunpack.c.h.b16 %v5919
        %v6253 = vunpack.c.l.b16 %v5920
        %v6254 = vunpack.c.h.b16 %v5920
        %v6255 = vunpack.c.l.b16 %v5921
        %v6256 = vunpack.c.h.b16 %v5921
        %v6257 = vunpack.c.l.b16 %v5922
        %v6258 = vunpack.c.h.b16 %v5922
        %v6259 = vunpack.c.l.b16 %v5923
        %v6260 = vunpack.c.h.b16 %v5923
        %v6261 = vunpack.c.l.b16 %v5924
        %v6262 = vunpack.c.h.b16 %v5924
        %v6263 = vunpack.c.l.b16 %v5925
        %v6264 = vunpack.c.h.b16 %v5925
        %v6265 = vunpack.c.l.b16 %v5926
        %v6266 = vunpack.c.h.b16 %v5926
        %v6267 = vunpack.c.l.b16 %v5927
        %v6268 = vunpack.c.h.b16 %v5927
        %v6269 = vunpack.c.l.b16 %v5928
        %v6270 = vunpack.c.h.b16 %v5928
        %v6271 = vunpack.c.l.b16 %v5929
        %v6272 = vunpack.c.h.b16 %v5929
        %v6273 = vunpack.c.l.b16 %v5930
        %v6274 = vunpack.c.h.b16 %v5930
        %v6275 = vunpack.c.l.b16 %v5931
        %v6276 = vunpack.c.h.b16 %v5931
        %v6277 = vunpack.c.l.b16 %v5932
        %v6278 = vunpack.c.h.b16 %v5932
        %v6279 = vunpack.c.l.b16 %v5933
        %v6280 = vunpack.c.h.b16 %v5933
        %v6281 = vunpack.c.l.b16 %v5934
        %v6282 = vunpack.c.h.b16 %v5934
        %v6283 = vunpack.c.l.b16 %v5935
        %v6284 = vunpack.c.h.b16 %v5935
        %v6285 = vunpack.c.l.b16 %v5936
        %v6286 = vunpack.c.h.b16 %v5936
        %v6287 = vunpack.c.l.b16 %v5937
        %v6288 = vunpack.c.h.b16 %v5937
        %v6289 = vunpack.c.l.b16 %v5938
        %v6290 = vunpack.c.h.b16 %v5938
        %v6291 = vunpack.c.l.b16 %v5939
        %v6292 = vunpack.c.h.b16 %v5939
        %v6293 = vunpack.c.l.b16 %v5940
        %v6294 = vunpack.c.h.b16 %v5940
        %v6295 = vunpack.c.l.b16 %v5941
        %v6296 = vunpack.c.h.b16 %v5941
        %v6297 = vunpack.c.l.b16 %v5942
        %v6298 = vunpack.c.h.b16 %v5942
        %v6299 = vunpack.c.l.b16 %v5943
        %v6300 = vunpack.c.h.b16 %v5943
        %v6301 = vunpack.c.l.b16 %v5944
        %v6302 = vunpack.c.h.b16 %v5944
        %v6303 = vunpack.c.l.b16 %v5945
        %v6304 = vunpack.c.h.b16 %v5945
        %v6305 = vunpack.c.l.b16 %v5946
        %v6306 = vunpack.c.h.b16 %v5946
        %v6307 = vunpack.c.l.b16 %v5947
        %v6308 = vunpack.c.h.b16 %v5947
        %v6309 = vunpack.c.l.b16 %v5948
        %v6310 = vunpack.c.h.b16 %v5948
        %v6311 = vunpack.c.l.b16 %v5949
        %v6312 = vunpack.c.h.b16 %v5949
        %v6313 = vunpack.c.l.b16 %v5950
        %v6314 = vunpack.c.h.b16 %v5950
        %v6315 = vunpack.c.l.b16 %v5951
        %v6316 = vunpack.c.h.b16 %v5951
        %v6317 = vunpack.c.l.b16 %v5952
        %v6318 = vunpack.c.h.b16 %v5952
        %v6319 = vunpack.c.l.b16 %v5953
        %v6320 = vunpack.c.h.b16 %v5953
        %v6321 = vunpack.c.l.b16 %v5954
        %v6322 = vunpack.c.h.b16 %v5954
        %v6323 = vunpack.c.l.b16 %v5955
        %v6324 = vunpack.c.h.b16 %v5955
        %v6325 = vunpack.c.l.b16 %v5956
        %v6326 = vunpack.c.h.b16 %v5956
        %v6327 = vunpack.c.l.b16 %v5957
        %v6328 = vunpack.c.h.b16 %v5957
        %v6329 = vunpack.c.l.b16 %v5958
        %v6330 = vunpack.c.h.b16 %v5958
        %v6331 = vunpack.c.l.b16 %v5959
        %v6332 = vunpack.c.h.b16 %v5959
        %v6333 = vunpack.c.l.b16 %v5960
        %v6334 = vunpack.c.h.b16 %v5960
        %v6335 = vunpack.c.l.b16 %v5961
        %v6336 = vunpack.c.h.b16 %v5961
        %v6337 = vunpack.c.l.b16 %v5962
        %v6338 = vunpack.c.h.b16 %v5962
        %v6339 = vunpack.c.l.b16 %v5963
        %v6340 = vunpack.c.h.b16 %v5963
        %v6341 = vunpack.c.l.b16 %v5964
        %v6342 = vunpack.c.h.b16 %v5964
        %v6343 = vunpack.c.l.b16 %v5965
        %v6344 = vunpack.c.h.b16 %v5965
        %v6345 = vunpack.c.l.b16 %v5966
        %v6346 = vunpack.c.h.b16 %v5966
        %v6347 = vunpack.c.l.b16 %v5967
        %v6348 = vunpack.c.h.b16 %v5967
        %v6349 = vunpack.c.l.b16 %v5968
        %v6350 = vunpack.c.h.b16 %v5968
        %v6351 = vunpack.c.l.b16 %v5969
        %v6352 = vunpack.c.h.b16 %v5969
        %v6353 = vunpack.c.l.b16 %v5970
        %v6354 = vunpack.c.h.b16 %v5970
        %v6355 = vunpack.c.l.b16 %v5971
        %v6356 = vunpack.c.h.b16 %v5971
        %v6357 = vpack.c.b16 %v6105, %v6101
        %v6358 = vpack.c.b16 %v6106, %v6102
        %v6359 = vpack.c.b16 %v6107, %v6103
        %v6360 = vpack.c.b16 %v6108, %v6104
        %v6361 = vpack.c.b16 %v6113, %v6109
        %v6362 = vpack.c.b16 %v6114, %v6110
        %v6363 = vpack.c.b16 %v6115, %v6111
        %v6364 = vpack.c.b16 %v6116, %v6112
        %v6365 = vpack.c.b16 %v6121, %v6117
        %v6366 = vpack.c.b16 %v6122, %v6118
        %v6367 = vpack.c.b16 %v6123, %v6119
        %v6368 = vpack.c.b16 %v6124, %v6120
        %v6369 = vpack.c.b16 %v6129, %v6125
        %v6370 = vpack.c.b16 %v6130, %v6126
        %v6371 = vpack.c.b16 %v6131, %v6127
        %v6372 = vpack.c.b16 %v6132, %v6128
        %v6373 = vpack.c.b16 %v6137, %v6133
        %v6374 = vpack.c.b16 %v6138, %v6134
        %v6375 = vpack.c.b16 %v6139, %v6135
        %v6376 = vpack.c.b16 %v6140, %v6136
        %v6377 = vpack.c.b16 %v6145, %v6141
        %v6378 = vpack.c.b16 %v6146, %v6142
        %v6379 = vpack.c.b16 %v6147, %v6143
        %v6380 = vpack.c.b16 %v6148, %v6144
        %v6381 = vpack.c.b16 %v6153, %v6149
        %v6382 = vpack.c.b16 %v6154, %v6150
        %v6383 = vpack.c.b16 %v6155, %v6151
        %v6384 = vpack.c.b16 %v6156, %v6152
        %v6385 = vpack.c.b16 %v6161, %v6157
        %v6386 = vpack.c.b16 %v6162, %v6158
        %v6387 = vpack.c.b16 %v6163, %v6159
        %v6388 = vpack.c.b16 %v6164, %v6160
        %v6389 = vpack.c.b16 %v6169, %v6165
        %v6390 = vpack.c.b16 %v6170, %v6166
        %v6391 = vpack.c.b16 %v6171, %v6167
        %v6392 = vpack.c.b16 %v6172, %v6168
        %v6393 = vpack.c.b16 %v6177, %v6173
        %v6394 = vpack.c.b16 %v6178, %v6174
        %v6395 = vpack.c.b16 %v6179, %v6175
        %v6396 = vpack.c.b16 %v6180, %v6176
        %v6397 = vpack.c.b16 %v6185, %v6181
        %v6398 = vpack.c.b16 %v6186, %v6182
        %v6399 = vpack.c.b16 %v6187, %v6183
        %v6400 = vpack.c.b16 %v6188, %v6184
        %v6401 = vpack.c.b16 %v6193, %v6189
        %v6402 = vpack.c.b16 %v6194, %v6190
        %v6403 = vpack.c.b16 %v6195, %v6191
        %v6404 = vpack.c.b16 %v6196, %v6192
        %v6405 = vpack.c.b16 %v6201, %v6197
        %v6406 = vpack.c.b16 %v6202, %v6198
        %v6407 = vpack.c.b16 %v6203, %v6199
        %v6408 = vpack.c.b16 %v6204, %v6200
        %v6409 = vpack.c.b16 %v6209, %v6205
        %v6410 = vpack.c.b16 %v6210, %v6206
        %v6411 = vpack.c.b16 %v6211, %v6207
        %v6412 = vpack.c.b16 %v6212, %v6208
        %v6413 = vpack.c.b16 %v6217, %v6213
        %v6414 = vpack.c.b16 %v6218, %v6214
        %v6415 = vpack.c.b16 %v6219, %v6215
        %v6416 = vpack.c.b16 %v6220, %v6216
        %v6417 = vpack.c.b16 %v6225, %v6221
        %v6418 = vpack.c.b16 %v6226, %v6222
        %v6419 = vpack.c.b16 %v6227, %v6223
        %v6420 = vpack.c.b16 %v6228, %v6224
        %v6421 = vpack.c.b16 %v6233, %v6229
        %v6422 = vpack.c.b16 %v6234, %v6230
        %v6423 = vpack.c.b16 %v6235, %v6231
        %v6424 = vpack.c.b16 %v6236, %v6232
        %v6425 = vpack.c.b16 %v6241, %v6237
        %v6426 = vpack.c.b16 %v6242, %v6238
        %v6427 = vpack.c.b16 %v6243, %v6239
        %v6428 = vpack.c.b16 %v6244, %v6240
        %v6429 = vpack.c.b16 %v6249, %v6245
        %v6430 = vpack.c.b16 %v6250, %v6246
        %v6431 = vpack.c.b16 %v6251, %v6247
        %v6432 = vpack.c.b16 %v6252, %v6248
        %v6433 = vpack.c.b16 %v6257, %v6253
        %v6434 = vpack.c.b16 %v6258, %v6254
        %v6435 = vpack.c.b16 %v6259, %v6255
        %v6436 = vpack.c.b16 %v6260, %v6256
        %v6437 = vpack.c.b16 %v6265, %v6261
        %v6438 = vpack.c.b16 %v6266, %v6262
        %v6439 = vpack.c.b16 %v6267, %v6263
        %v6440 = vpack.c.b16 %v6268, %v6264
        %v6441 = vpack.c.b16 %v6273, %v6269
        %v6442 = vpack.c.b16 %v6274, %v6270
        %v6443 = vpack.c.b16 %v6275, %v6271
        %v6444 = vpack.c.b16 %v6276, %v6272
        %v6445 = vpack.c.b16 %v6281, %v6277
        %v6446 = vpack.c.b16 %v6282, %v6278
        %v6447 = vpack.c.b16 %v6283, %v6279
        %v6448 = vpack.c.b16 %v6284, %v6280
        %v6449 = vpack.c.b16 %v6289, %v6285
        %v6450 = vpack.c.b16 %v6290, %v6286
        %v6451 = vpack.c.b16 %v6291, %v6287
        %v6452 = vpack.c.b16 %v6292, %v6288
        %v6453 = vpack.c.b16 %v6297, %v6293
        %v6454 = vpack.c.b16 %v6298, %v6294
        %v6455 = vpack.c.b16 %v6299, %v6295
        %v6456 = vpack.c.b16 %v6300, %v6296
        %v6457 = vpack.c.b16 %v6305, %v6301
        %v6458 = vpack.c.b16 %v6306, %v6302
        %v6459 = vpack.c.b16 %v6307, %v6303
        %v6460 = vpack.c.b16 %v6308, %v6304
        %v6461 = vpack.c.b16 %v6313, %v6309
        %v6462 = vpack.c.b16 %v6314, %v6310
        %v6463 = vpack.c.b16 %v6315, %v6311
        %v6464 = vpack.c.b16 %v6316, %v6312
        %v6465 = vpack.c.b16 %v6321, %v6317
        %v6466 = vpack.c.b16 %v6322, %v6318
        %v6467 = vpack.c.b16 %v6323, %v6319
        %v6468 = vpack.c.b16 %v6324, %v6320
        %v6469 = vpack.c.b16 %v6329, %v6325
        %v6470 = vpack.c.b16 %v6330, %v6326
        %v6471 = vpack.c.b16 %v6331, %v6327
        %v6472 = vpack.c.b16 %v6332, %v6328
        %v6473 = vpack.c.b16 %v6337, %v6333
        %v6474 = vpack.c.b16 %v6338, %v6334
        %v6475 = vpack.c.b16 %v6339, %v6335
        %v6476 = vpack.c.b16 %v6340, %v6336
        %v6477 = vpack.c.b16 %v6345, %v6341
        %v6478 = vpack.c.b16 %v6346, %v6342
        %v6479 = vpack.c.b16 %v6347, %v6343
        %v6480 = vpack.c.b16 %v6348, %v6344
        %v6481 = vpack.c.b16 %v6353, %v6349
        %v6482 = vpack.c.b16 %v6354, %v6350
        %v6483 = vpack.c.b16 %v6355, %v6351
        %v6484 = vpack.c.b16 %v6356, %v6352
        %v6614 = vlaneseq
        %v6615 = vshrl.u32 %v6614, 7
        %v6616 = vsub.s32 0, %v6615
        %v6617 = vrot.slane %v5972, %v6616
        %v6618 = vlaneseq
        %v6619 = vshrl.u32 %v6618, 7
        %v6620 = vsub.s32 1, %v6619
        %v6621 = vrot.slane %v5972, %v6620
        %v6622 = vlaneseq
        %v6623 = vshrl.u32 %v6622, 7
        %v6624 = vsub.s32 2, %v6623
        %v6625 = vrot.slane %v5972, %v6624
        %v6626 = vlaneseq
        %v6627 = vshrl.u32 %v6626, 7
        %v6628 = vsub.s32 3, %v6627
        %v6629 = vrot.slane %v5972, %v6628
        %6634 = vmatprep.subr.bf16.mxu0 %v6358
        %6635 = vmatpush1.bf16.msra.mxu0 %v6357
        %6636 = vmatprep.subr.bf16.mxu0 %v6362
        %6637 = vmatpush1.bf16.msra.mxu0 %v6361
        %6638 = vmatprep.subr.bf16.mxu0 %v6366
        %6639 = vmatpush1.bf16.msra.mxu0 %v6365
        %6640 = vmatprep.subr.bf16.mxu0 %v6370
        %6641 = vmatpush1.bf16.msra.mxu0 %v6369
        %6642 = vmatprep.subr.bf16.mxu0 %v6374
        %6643 = vmatpush1.bf16.msra.mxu0 %v6373
        %6644 = vmatprep.subr.bf16.mxu0 %v6378
        %6645 = vmatpush1.bf16.msra.mxu0 %v6377
        %6646 = vmatprep.subr.bf16.mxu0 %v6382
        %6647 = vmatpush1.bf16.msra.mxu0 %v6381
        %6648 = vmatprep.subr.bf16.mxu0 %v6386
        %6649 = vmatpush1.bf16.msra.mxu0 %v6385
        %6650 = vmatprep.subr.bf16.mxu0 %v6390
        %6651 = vmatpush1.bf16.msra.mxu0 %v6389
        %6652 = vmatprep.subr.bf16.mxu0 %v6394
        %6653 = vmatpush1.bf16.msra.mxu0 %v6393
        %6654 = vmatprep.subr.bf16.mxu0 %v6398
        %6655 = vmatpush1.bf16.msra.mxu0 %v6397
        %6656 = vmatprep.subr.bf16.mxu0 %v6402
        %6657 = vmatpush1.bf16.msra.mxu0 %v6401
        %6658 = vmatprep.subr.bf16.mxu0 %v6406
        %6659 = vmatpush1.bf16.msra.mxu0 %v6405
        %6660 = vmatprep.subr.bf16.mxu0 %v6410
        %6661 = vmatpush1.bf16.msra.mxu0 %v6409
        %6662 = vmatprep.subr.bf16.mxu0 %v6414
        %6663 = vmatpush1.bf16.msra.mxu0 %v6413
        %6664 = vmatprep.subr.bf16.mxu0 %v6418
        %6665 = vmatpush1.bf16.msra.mxu0 %v6417
        %6666 = vmatprep.mubr.bf16.mxu0 %v5841
        %6667 = vmatmul.mubr.bf16.gmra.mrb[0].mxu0 %v5840
        %v6668 = vpop.f32.mrb[0].mxu0
        %v6669 = vadd.f32 %v6617, %v6668
        %v6670 = vpop.f32.mrb[0].mxu0
        %v6671 = vadd.f32 %v6621, %v6670
        %v6672 = vpop.f32.mrb[0].mxu0
        %v6673 = vpop.f32.mrb[0].mxu0
        %6674 = vdwg.mxu0
        %6675 = vmatprep.subr.bf16.mxu0 %v6422
        %6676 = vmatpush1.bf16.msra.mxu0 %v6421
        %6677 = vmatprep.subr.bf16.mxu0 %v6426
        %6678 = vmatpush1.bf16.msra.mxu0 %v6425
        %6679 = vmatprep.subr.bf16.mxu0 %v6430
        %6680 = vmatpush1.bf16.msra.mxu0 %v6429
        %6681 = vmatprep.subr.bf16.mxu0 %v6434
        %6682 = vmatpush1.bf16.msra.mxu0 %v6433
        %6683 = vmatprep.subr.bf16.mxu0 %v6438
        %6684 = vmatpush1.bf16.msra.mxu0 %v6437
        %6685 = vmatprep.subr.bf16.mxu0 %v6442
        %6686 = vmatpush1.bf16.msra.mxu0 %v6441
        %6687 = vmatprep.subr.bf16.mxu0 %v6446
        %6688 = vmatpush1.bf16.msra.mxu0 %v6445
        %6689 = vmatprep.subr.bf16.mxu0 %v6450
        %6690 = vmatpush1.bf16.msra.mxu0 %v6449
        %6691 = vmatprep.subr.bf16.mxu0 %v6454
        %6692 = vmatpush1.bf16.msra.mxu0 %v6453
        %6693 = vmatprep.subr.bf16.mxu0 %v6458
        %6694 = vmatpush1.bf16.msra.mxu0 %v6457
        %6695 = vmatprep.subr.bf16.mxu0 %v6462
        %6696 = vmatpush1.bf16.msra.mxu0 %v6461
        %6697 = vmatprep.subr.bf16.mxu0 %v6466
        %6698 = vmatpush1.bf16.msra.mxu0 %v6465
        %6699 = vmatprep.subr.bf16.mxu0 %v6470
        %6700 = vmatpush1.bf16.msra.mxu0 %v6469
        %6701 = vmatprep.subr.bf16.mxu0 %v6474
        %6702 = vmatpush1.bf16.msra.mxu0 %v6473
        %6703 = vmatprep.subr.bf16.mxu0 %v6478
        %6704 = vmatpush1.bf16.msra.mxu0 %v6477
        %6705 = vmatprep.subr.bf16.mxu0 %v6482
        %6706 = vmatpush1.bf16.msra.mxu0 %v6481
        %6707 = vmatprep.mubr.bf16.mxu0 %v5843
        %6708 = vmatmul.mubr.bf16.gmra.mrb[0].mxu0 %v5842
        %v6709 = vpop.f32.mrb[0].mxu0
        %v6710 = vadd.f32 %v6669, %v6709
        %v6711 = vpop.f32.mrb[0].mxu0
        %v6712 = vadd.f32 %v6671, %v6711
        %v6713 = vpop.f32.mrb[0].mxu0
        %v6714 = vpop.f32.mrb[0].mxu0
        %6715 = vdwg.mxu0
        %6716 = vmatprep.subr.bf16.mxu0 %v6360
        %6717 = vmatpush1.bf16.msra.mxu0 %v6359
        %6718 = vmatprep.subr.bf16.mxu0 %v6364
        %6719 = vmatpush1.bf16.msra.mxu0 %v6363
        %6720 = vmatprep.subr.bf16.mxu0 %v6368
        %6721 = vmatpush1.bf16.msra.mxu0 %v6367
        %6722 = vmatprep.subr.bf16.mxu0 %v6372
        %6723 = vmatpush1.bf16.msra.mxu0 %v6371
        %6724 = vmatprep.subr.bf16.mxu0 %v6376
        %6725 = vmatpush1.bf16.msra.mxu0 %v6375
        %6726 = vmatprep.subr.bf16.mxu0 %v6380
        %6727 = vmatpush1.bf16.msra.mxu0 %v6379
        %6728 = vmatprep.subr.bf16.mxu0 %v6384
        %6729 = vmatpush1.bf16.msra.mxu0 %v6383
        %6730 = vmatprep.subr.bf16.mxu0 %v6388
        %6731 = vmatpush1.bf16.msra.mxu0 %v6387
        %6732 = vmatprep.subr.bf16.mxu0 %v6392
        %6733 = vmatpush1.bf16.msra.mxu0 %v6391
        %6734 = vmatprep.subr.bf16.mxu0 %v6396
        %6735 = vmatpush1.bf16.msra.mxu0 %v6395
        %6736 = vmatprep.subr.bf16.mxu0 %v6400
        %6737 = vmatpush1.bf16.msra.mxu0 %v6399
        %6738 = vmatprep.subr.bf16.mxu0 %v6404
        %6739 = vmatpush1.bf16.msra.mxu0 %v6403
        %6740 = vmatprep.subr.bf16.mxu0 %v6408
        %6741 = vmatpush1.bf16.msra.mxu0 %v6407
        %6742 = vmatprep.subr.bf16.mxu0 %v6412
        %6743 = vmatpush1.bf16.msra.mxu0 %v6411
        %6744 = vmatprep.subr.bf16.mxu0 %v6416
        %6745 = vmatpush1.bf16.msra.mxu0 %v6415
        %6746 = vmatprep.subr.bf16.mxu0 %v6420
        %6747 = vmatpush1.bf16.msra.mxu0 %v6419
        %6748 = vmatprep.mubr.bf16.mxu0 %v5841
        %6749 = vmatmul.mubr.bf16.gmra.mrb[0].mxu0 %v5840
        %v6750 = vpop.f32.mrb[0].mxu0
        %v6751 = vadd.f32 %v6625, %v6750
        %v6752 = vpop.f32.mrb[0].mxu0
        %v6753 = vadd.f32 %v6629, %v6752
        %v6754 = vpop.f32.mrb[0].mxu0
        %v6755 = vpop.f32.mrb[0].mxu0
        %6756 = vdwg.mxu0
        %6757 = vmatprep.subr.bf16.mxu0 %v6424
        %6758 = vmatpush1.bf16.msra.mxu0 %v6423
        %6759 = vmatprep.subr.bf16.mxu0 %v6428
        %6760 = vmatpush1.bf16.msra.mxu0 %v6427
        %6761 = vmatprep.subr.bf16.mxu0 %v6432
        %6762 = vmatpush1.bf16.msra.mxu0 %v6431
        %6763 = vmatprep.subr.bf16.mxu0 %v6436
        %6764 = vmatpush1.bf16.msra.mxu0 %v6435
        %6765 = vmatprep.subr.bf16.mxu0 %v6440
        %6766 = vmatpush1.bf16.msra.mxu0 %v6439
        %6767 = vmatprep.subr.bf16.mxu0 %v6444
        %6768 = vmatpush1.bf16.msra.mxu0 %v6443
        %6769 = vmatprep.subr.bf16.mxu0 %v6448
        %6770 = vmatpush1.bf16.msra.mxu0 %v6447
        %6771 = vmatprep.subr.bf16.mxu0 %v6452
        %6772 = vmatpush1.bf16.msra.mxu0 %v6451
        %6773 = vmatprep.subr.bf16.mxu0 %v6456
        %6774 = vmatpush1.bf16.msra.mxu0 %v6455
        %6775 = vmatprep.subr.bf16.mxu0 %v6460
        %6776 = vmatpush1.bf16.msra.mxu0 %v6459
        %6777 = vmatprep.subr.bf16.mxu0 %v6464
        %6778 = vmatpush1.bf16.msra.mxu0 %v6463
        %6779 = vmatprep.subr.bf16.mxu0 %v6468
        %6780 = vmatpush1.bf16.msra.mxu0 %v6467
        %6781 = vmatprep.subr.bf16.mxu0 %v6472
        %6782 = vmatpush1.bf16.msra.mxu0 %v6471
        %6783 = vmatprep.subr.bf16.mxu0 %v6476
        %6784 = vmatpush1.bf16.msra.mxu0 %v6475
        %6785 = vmatprep.subr.bf16.mxu0 %v6480
        %6786 = vmatpush1.bf16.msra.mxu0 %v6479
        %6787 = vmatprep.subr.bf16.mxu0 %v6484
        %6788 = vmatpush1.bf16.msra.mxu0 %v6483
        %6789 = vmatprep.mubr.bf16.mxu0 %v5843
        %6790 = vmatmul.mubr.bf16.gmra.mrb[0].mxu0 %v5842
        %v6791 = vpop.f32.mrb[0].mxu0
        %v6792 = vadd.f32 %v6751, %v6791
        %v6793 = vpop.f32.mrb[0].mxu0
        %v6794 = vadd.f32 %v6753, %v6793
        %v6795 = vpop.f32.mrb[0].mxu0
        %v6796 = vpop.f32.mrb[0].mxu0
        %6797 = vdwg.mxu0
        %v6798 = vmax.f32 %v6710, 0.0
        %v6799 = vmax.f32 %v6712, 0.0
        %v6800 = vmax.f32 %v6792, 0.0
        %v6801 = vmax.f32 %v6794, 0.0
        %v6802 = vpack.c.bf16 %v6798, %v6798
        %v6803 = vpack.c.bf16 %v6799, %v6799
        %v6804 = vpack.c.bf16 %v6800, %v6800
        %v6805 = vpack.c.bf16 %v6801, %v6801
        %v6806 = vld [vmem:[%s9] sm:$0xff]
        %v6807 = vld [vmem:[%s9 + $0x8] sm:$0xff]
        %v6808 = vld [vmem:[%s9 + $0x10] sm:$0xff]
        %v6809 = vld [vmem:[%s9 + $0x18] sm:$0xff]
        %v6810 = vld [vmem:[%s9 + $0x20] sm:$0xff]
        %v6811 = vld [vmem:[%s9 + $0x28] sm:$0xff]
        %v6812 = vld [vmem:[%s9 + $0x30] sm:$0xff]
        %v6813 = vld [vmem:[%s9 + $0x38] sm:$0xff]
        %v6814 = vld [vmem:[%s9 + $0x40] sm:$0xff]
        %v6815 = vld [vmem:[%s9 + $0x48] sm:$0xff]
        %v6816 = vld [vmem:[%s9 + $0x50] sm:$0xff]
        %v6817 = vld [vmem:[%s9 + $0x58] sm:$0xff]
        %v6818 = vld [vmem:[%s9 + $0x60] sm:$0xff]
        %v6819 = vld [vmem:[%s9 + $0x68] sm:$0xff]
        %v6820 = vld [vmem:[%s9 + $0x70] sm:$0xff]
        %v6821 = vld [vmem:[%s9 + $0x78] sm:$0xff]
        %v6822 = vld [vmem:[%s9 + $0x80] sm:$0xff]
        %v6823 = vld [vmem:[%s9 + $0x88] sm:$0xff]
        %v6824 = vld [vmem:[%s9 + $0x90] sm:$0xff]
        %v6825 = vld [vmem:[%s9 + $0x98] sm:$0xff]
        %v6826 = vld [vmem:[%s9 + $0xa0] sm:$0xff]
        %v6827 = vld [vmem:[%s9 + $0xa8] sm:$0xff]
        %v6828 = vld [vmem:[%s9 + $0xb0] sm:$0xff]
        %v6829 = vld [vmem:[%s9 + $0xb8] sm:$0xff]
        %v6830 = vld [vmem:[%s9 + $0xc0] sm:$0xff]
        %v6831 = vld [vmem:[%s9 + $0xc8] sm:$0xff]
        %v6832 = vld [vmem:[%s9 + $0xd0] sm:$0xff]
        %v6833 = vld [vmem:[%s9 + $0xd8] sm:$0xff]
        %v6834 = vld [vmem:[%s9 + $0xe0] sm:$0xff]
        %v6835 = vld [vmem:[%s9 + $0xe8] sm:$0xff]
        %v6836 = vld [vmem:[%s9 + $0xf0] sm:$0xff]
        %v6837 = vld [vmem:[%s9 + $0xf8] sm:$0xff]
        %v6838 = vld [vmem:[%s9 + $0x100] sm:$0xff]
        %v6839 = vld [vmem:[%s9 + $0x108] sm:$0xff]
        %v6840 = vld [vmem:[%s9 + $0x110] sm:$0xff]
        %v6841 = vld [vmem:[%s9 + $0x118] sm:$0xff]
        %v6842 = vld [vmem:[%s9 + $0x120] sm:$0xff]
        %v6843 = vld [vmem:[%s9 + $0x128] sm:$0xff]
        %v6844 = vld [vmem:[%s9 + $0x130] sm:$0xff]
        %v6845 = vld [vmem:[%s9 + $0x138] sm:$0xff]
        %v6846 = vld [vmem:[%s9 + $0x140] sm:$0xff]
        %v6847 = vld [vmem:[%s9 + $0x148] sm:$0xff]
        %v6848 = vld [vmem:[%s9 + $0x150] sm:$0xff]
        %v6849 = vld [vmem:[%s9 + $0x158] sm:$0xff]
        %v6850 = vld [vmem:[%s9 + $0x160] sm:$0xff]
        %v6851 = vld [vmem:[%s9 + $0x168] sm:$0xff]
        %v6852 = vld [vmem:[%s9 + $0x170] sm:$0xff]
        %v6853 = vld [vmem:[%s9 + $0x178] sm:$0xff]
        %v6854 = vld [vmem:[%s9 + $0x180] sm:$0xff]
        %v6855 = vld [vmem:[%s9 + $0x188] sm:$0xff]
        %v6856 = vld [vmem:[%s9 + $0x190] sm:$0xff]
        %v6857 = vld [vmem:[%s9 + $0x198] sm:$0xff]
        %v6858 = vld [vmem:[%s9 + $0x1a0] sm:$0xff]
        %v6859 = vld [vmem:[%s9 + $0x1a8] sm:$0xff]
        %v6860 = vld [vmem:[%s9 + $0x1b0] sm:$0xff]
        %v6861 = vld [vmem:[%s9 + $0x1b8] sm:$0xff]
        %v6862 = vld [vmem:[%s9 + $0x1c0] sm:$0xff]
        %v6863 = vld [vmem:[%s9 + $0x1c8] sm:$0xff]
        %v6864 = vld [vmem:[%s9 + $0x1d0] sm:$0xff]
        %v6865 = vld [vmem:[%s9 + $0x1d8] sm:$0xff]
        %v6866 = vld [vmem:[%s9 + $0x1e0] sm:$0xff]
        %v6867 = vld [vmem:[%s9 + $0x1e8] sm:$0xff]
        %v6868 = vld [vmem:[%s9 + $0x1f0] sm:$0xff]
        %v6869 = vld [vmem:[%s9 + $0x1f8] sm:$0xff]
        %v6870 = vld [vmem:[%s9 + $0x200] sm:$0xff]
        %v6871 = vld [vmem:[%s9 + $0x208] sm:$0xff]
        %v6872 = vld [vmem:[%s9 + $0x210] sm:$0xff]
        %v6873 = vld [vmem:[%s9 + $0x218] sm:$0xff]
        %v6874 = vld [vmem:[%s9 + $0x220] sm:$0xff]
        %v6875 = vld [vmem:[%s9 + $0x228] sm:$0xff]
        %v6876 = vld [vmem:[%s9 + $0x230] sm:$0xff]
        %v6877 = vld [vmem:[%s9 + $0x238] sm:$0xff]
        %v6878 = vld [vmem:[%s9 + $0x240] sm:$0xff]
        %v6879 = vld [vmem:[%s9 + $0x248] sm:$0xff]
        %v6880 = vld [vmem:[%s9 + $0x250] sm:$0xff]
        %v6881 = vld [vmem:[%s9 + $0x258] sm:$0xff]
        %v6882 = vld [vmem:[%s9 + $0x260] sm:$0xff]
        %v6883 = vld [vmem:[%s9 + $0x268] sm:$0xff]
        %v6884 = vld [vmem:[%s9 + $0x270] sm:$0xff]
        %v6885 = vld [vmem:[%s9 + $0x278] sm:$0xff]
        %v6886 = vld [vmem:[%s9 + $0x280] sm:$0xff]
        %v6887 = vld [vmem:[%s9 + $0x288] sm:$0xff]
        %v6888 = vld [vmem:[%s9 + $0x290] sm:$0xff]
        %v6889 = vld [vmem:[%s9 + $0x298] sm:$0xff]
        %v6890 = vld [vmem:[%s9 + $0x2a0] sm:$0xff]
        %v6891 = vld [vmem:[%s9 + $0x2a8] sm:$0xff]
        %v6892 = vld [vmem:[%s9 + $0x2b0] sm:$0xff]
        %v6893 = vld [vmem:[%s9 + $0x2b8] sm:$0xff]
        %v6894 = vld [vmem:[%s9 + $0x2c0] sm:$0xff]
        %v6895 = vld [vmem:[%s9 + $0x2c8] sm:$0xff]
        %v6896 = vld [vmem:[%s9 + $0x2d0] sm:$0xff]
        %v6897 = vld [vmem:[%s9 + $0x2d8] sm:$0xff]
        %v6898 = vld [vmem:[%s9 + $0x2e0] sm:$0xff]
        %v6899 = vld [vmem:[%s9 + $0x2e8] sm:$0xff]
        %v6900 = vld [vmem:[%s9 + $0x2f0] sm:$0xff]
        %v6901 = vld [vmem:[%s9 + $0x2f8] sm:$0xff]
        %v6902 = vld [vmem:[%s9 + $0x300] sm:$0xff]
        %v6903 = vld [vmem:[%s9 + $0x308] sm:$0xff]
        %v6904 = vld [vmem:[%s9 + $0x310] sm:$0xff]
        %v6905 = vld [vmem:[%s9 + $0x318] sm:$0xff]
        %v6906 = vld [vmem:[%s9 + $0x320] sm:$0xff]
        %v6907 = vld [vmem:[%s9 + $0x328] sm:$0xff]
        %v6908 = vld [vmem:[%s9 + $0x330] sm:$0xff]
        %v6909 = vld [vmem:[%s9 + $0x338] sm:$0xff]
        %v6910 = vld [vmem:[%s9 + $0x340] sm:$0xff]
        %v6911 = vld [vmem:[%s9 + $0x348] sm:$0xff]
        %v6912 = vld [vmem:[%s9 + $0x350] sm:$0xff]
        %v6913 = vld [vmem:[%s9 + $0x358] sm:$0xff]
        %v6914 = vld [vmem:[%s9 + $0x360] sm:$0xff]
        %v6915 = vld [vmem:[%s9 + $0x368] sm:$0xff]
        %v6916 = vld [vmem:[%s9 + $0x370] sm:$0xff]
        %v6917 = vld [vmem:[%s9 + $0x378] sm:$0xff]
        %v6918 = vld [vmem:[%s9 + $0x380] sm:$0xff]
        %v6919 = vld [vmem:[%s9 + $0x388] sm:$0xff]
        %v6920 = vld [vmem:[%s9 + $0x390] sm:$0xff]
        %v6921 = vld [vmem:[%s9 + $0x398] sm:$0xff]
        %v6922 = vld [vmem:[%s9 + $0x3a0] sm:$0xff]
        %v6923 = vld [vmem:[%s9 + $0x3a8] sm:$0xff]
        %v6924 = vld [vmem:[%s9 + $0x3b0] sm:$0xff]
        %v6925 = vld [vmem:[%s9 + $0x3b8] sm:$0xff]
        %v6926 = vld [vmem:[%s9 + $0x3c0] sm:$0xff]
        %v6927 = vld [vmem:[%s9 + $0x3c8] sm:$0xff]
        %v6928 = vld [vmem:[%s9 + $0x3d0] sm:$0xff]
        %v6929 = vld [vmem:[%s9 + $0x3d8] sm:$0xff]
        %v6930 = vld [vmem:[%s9 + $0x3e0] sm:$0xff]
        %v6931 = vld [vmem:[%s9 + $0x3e8] sm:$0xff]
        %v6932 = vld [vmem:[%s9 + $0x3f0] sm:$0xff]
        %v6933 = vld [vmem:[%s9 + $0x3f8] sm:$0xff]
        %v6934 = vld [vmem:[%s10] sm:$0xf]
        %v7063 = vunpack.c.l.b16 %v6806
        %v7064 = vunpack.c.h.b16 %v6806
        %v7065 = vunpack.c.l.b16 %v6807
        %v7066 = vunpack.c.h.b16 %v6807
        %v7067 = vunpack.c.l.b16 %v6808
        %v7068 = vunpack.c.h.b16 %v6808
        %v7069 = vunpack.c.l.b16 %v6809
        %v7070 = vunpack.c.h.b16 %v6809
        %v7071 = vunpack.c.l.b16 %v6810
        %v7072 = vunpack.c.h.b16 %v6810
        %v7073 = vunpack.c.l.b16 %v6811
        %v7074 = vunpack.c.h.b16 %v6811
        %v7075 = vunpack.c.l.b16 %v6812
        %v7076 = vunpack.c.h.b16 %v6812
        %v7077 = vunpack.c.l.b16 %v6813
        %v7078 = vunpack.c.h.b16 %v6813
        %v7079 = vunpack.c.l.b16 %v6814
        %v7080 = vunpack.c.h.b16 %v6814
        %v7081 = vunpack.c.l.b16 %v6815
        %v7082 = vunpack.c.h.b16 %v6815
        %v7083 = vunpack.c.l.b16 %v6816
        %v7084 = vunpack.c.h.b16 %v6816
        %v7085 = vunpack.c.l.b16 %v6817
        %v7086 = vunpack.c.h.b16 %v6817
        %v7087 = vunpack.c.l.b16 %v6818
        %v7088 = vunpack.c.h.b16 %v6818
        %v7089 = vunpack.c.l.b16 %v6819
        %v7090 = vunpack.c.h.b16 %v6819
        %v7091 = vunpack.c.l.b16 %v6820
        %v7092 = vunpack.c.h.b16 %v6820
        %v7093 = vunpack.c.l.b16 %v6821
        %v7094 = vunpack.c.h.b16 %v6821
        %v7095 = vunpack.c.l.b16 %v6822
        %v7096 = vunpack.c.h.b16 %v6822
        %v7097 = vunpack.c.l.b16 %v6823
        %v7098 = vunpack.c.h.b16 %v6823
        %v7099 = vunpack.c.l.b16 %v6824
        %v7100 = vunpack.c.h.b16 %v6824
        %v7101 = vunpack.c.l.b16 %v6825
        %v7102 = vunpack.c.h.b16 %v6825
        %v7103 = vunpack.c.l.b16 %v6826
        %v7104 = vunpack.c.h.b16 %v6826
        %v7105 = vunpack.c.l.b16 %v6827
        %v7106 = vunpack.c.h.b16 %v6827
        %v7107 = vunpack.c.l.b16 %v6828
        %v7108 = vunpack.c.h.b16 %v6828
        %v7109 = vunpack.c.l.b16 %v6829
        %v7110 = vunpack.c.h.b16 %v6829
        %v7111 = vunpack.c.l.b16 %v6830
        %v7112 = vunpack.c.h.b16 %v6830
        %v7113 = vunpack.c.l.b16 %v6831
        %v7114 = vunpack.c.h.b16 %v6831
        %v7115 = vunpack.c.l.b16 %v6832
        %v7116 = vunpack.c.h.b16 %v6832
        %v7117 = vunpack.c.l.b16 %v6833
        %v7118 = vunpack.c.h.b16 %v6833
        %v7119 = vunpack.c.l.b16 %v6834
        %v7120 = vunpack.c.h.b16 %v6834
        %v7121 = vunpack.c.l.b16 %v6835
        %v7122 = vunpack.c.h.b16 %v6835
        %v7123 = vunpack.c.l.b16 %v6836
        %v7124 = vunpack.c.h.b16 %v6836
        %v7125 = vunpack.c.l.b16 %v6837
        %v7126 = vunpack.c.h.b16 %v6837
        %v7127 = vunpack.c.l.b16 %v6838
        %v7128 = vunpack.c.h.b16 %v6838
        %v7129 = vunpack.c.l.b16 %v6839
        %v7130 = vunpack.c.h.b16 %v6839
        %v7131 = vunpack.c.l.b16 %v6840
        %v7132 = vunpack.c.h.b16 %v6840
        %v7133 = vunpack.c.l.b16 %v6841
        %v7134 = vunpack.c.h.b16 %v6841
        %v7135 = vunpack.c.l.b16 %v6842
        %v7136 = vunpack.c.h.b16 %v6842
        %v7137 = vunpack.c.l.b16 %v6843
        %v7138 = vunpack.c.h.b16 %v6843
        %v7139 = vunpack.c.l.b16 %v6844
        %v7140 = vunpack.c.h.b16 %v6844
        %v7141 = vunpack.c.l.b16 %v6845
        %v7142 = vunpack.c.h.b16 %v6845
        %v7143 = vunpack.c.l.b16 %v6846
        %v7144 = vunpack.c.h.b16 %v6846
        %v7145 = vunpack.c.l.b16 %v6847
        %v7146 = vunpack.c.h.b16 %v6847
        %v7147 = vunpack.c.l.b16 %v6848
        %v7148 = vunpack.c.h.b16 %v6848
        %v7149 = vunpack.c.l.b16 %v6849
        %v7150 = vunpack.c.h.b16 %v6849
        %v7151 = vunpack.c.l.b16 %v6850
        %v7152 = vunpack.c.h.b16 %v6850
        %v7153 = vunpack.c.l.b16 %v6851
        %v7154 = vunpack.c.h.b16 %v6851
        %v7155 = vunpack.c.l.b16 %v6852
        %v7156 = vunpack.c.h.b16 %v6852
        %v7157 = vunpack.c.l.b16 %v6853
        %v7158 = vunpack.c.h.b16 %v6853
        %v7159 = vunpack.c.l.b16 %v6854
        %v7160 = vunpack.c.h.b16 %v6854
        %v7161 = vunpack.c.l.b16 %v6855
        %v7162 = vunpack.c.h.b16 %v6855
        %v7163 = vunpack.c.l.b16 %v6856
        %v7164 = vunpack.c.h.b16 %v6856
        %v7165 = vunpack.c.l.b16 %v6857
        %v7166 = vunpack.c.h.b16 %v6857
        %v7167 = vunpack.c.l.b16 %v6858
        %v7168 = vunpack.c.h.b16 %v6858
        %v7169 = vunpack.c.l.b16 %v6859
        %v7170 = vunpack.c.h.b16 %v6859
        %v7171 = vunpack.c.l.b16 %v6860
        %v7172 = vunpack.c.h.b16 %v6860
        %v7173 = vunpack.c.l.b16 %v6861
        %v7174 = vunpack.c.h.b16 %v6861
        %v7175 = vunpack.c.l.b16 %v6862
        %v7176 = vunpack.c.h.b16 %v6862
        %v7177 = vunpack.c.l.b16 %v6863
        %v7178 = vunpack.c.h.b16 %v6863
        %v7179 = vunpack.c.l.b16 %v6864
        %v7180 = vunpack.c.h.b16 %v6864
        %v7181 = vunpack.c.l.b16 %v6865
        %v7182 = vunpack.c.h.b16 %v6865
        %v7183 = vunpack.c.l.b16 %v6866
        %v7184 = vunpack.c.h.b16 %v6866
        %v7185 = vunpack.c.l.b16 %v6867
        %v7186 = vunpack.c.h.b16 %v6867
        %v7187 = vunpack.c.l.b16 %v6868
        %v7188 = vunpack.c.h.b16 %v6868
        %v7189 = vunpack.c.l.b16 %v6869
        %v7190 = vunpack.c.h.b16 %v6869
        %v7191 = vunpack.c.l.b16 %v6870
        %v7192 = vunpack.c.h.b16 %v6870
        %v7193 = vunpack.c.l.b16 %v6871
        %v7194 = vunpack.c.h.b16 %v6871
        %v7195 = vunpack.c.l.b16 %v6872
        %v7196 = vunpack.c.h.b16 %v6872
        %v7197 = vunpack.c.l.b16 %v6873
        %v7198 = vunpack.c.h.b16 %v6873
        %v7199 = vunpack.c.l.b16 %v6874
        %v7200 = vunpack.c.h.b16 %v6874
        %v7201 = vunpack.c.l.b16 %v6875
        %v7202 = vunpack.c.h.b16 %v6875
        %v7203 = vunpack.c.l.b16 %v6876
        %v7204 = vunpack.c.h.b16 %v6876
        %v7205 = vunpack.c.l.b16 %v6877
        %v7206 = vunpack.c.h.b16 %v6877
        %v7207 = vunpack.c.l.b16 %v6878
        %v7208 = vunpack.c.h.b16 %v6878
        %v7209 = vunpack.c.l.b16 %v6879
        %v7210 = vunpack.c.h.b16 %v6879
        %v7211 = vunpack.c.l.b16 %v6880
        %v7212 = vunpack.c.h.b16 %v6880
        %v7213 = vunpack.c.l.b16 %v6881
        %v7214 = vunpack.c.h.b16 %v6881
        %v7215 = vunpack.c.l.b16 %v6882
        %v7216 = vunpack.c.h.b16 %v6882
        %v7217 = vunpack.c.l.b16 %v6883
        %v7218 = vunpack.c.h.b16 %v6883
        %v7219 = vunpack.c.l.b16 %v6884
        %v7220 = vunpack.c.h.b16 %v6884
        %v7221 = vunpack.c.l.b16 %v6885
        %v7222 = vunpack.c.h.b16 %v6885
        %v7223 = vunpack.c.l.b16 %v6886
        %v7224 = vunpack.c.h.b16 %v6886
        %v7225 = vunpack.c.l.b16 %v6887
        %v7226 = vunpack.c.h.b16 %v6887
        %v7227 = vunpack.c.l.b16 %v6888
        %v7228 = vunpack.c.h.b16 %v6888
        %v7229 = vunpack.c.l.b16 %v6889
        %v7230 = vunpack.c.h.b16 %v6889
        %v7231 = vunpack.c.l.b16 %v6890
        %v7232 = vunpack.c.h.b16 %v6890
        %v7233 = vunpack.c.l.b16 %v6891
        %v7234 = vunpack.c.h.b16 %v6891
        %v7235 = vunpack.c.l.b16 %v6892
        %v7236 = vunpack.c.h.b16 %v6892
        %v7237 = vunpack.c.l.b16 %v6893
        %v7238 = vunpack.c.h.b16 %v6893
        %v7239 = vunpack.c.l.b16 %v6894
        %v7240 = vunpack.c.h.b16 %v6894
        %v7241 = vunpack.c.l.b16 %v6895
        %v7242 = vunpack.c.h.b16 %v6895
        %v7243 = vunpack.c.l.b16 %v6896
        %v7244 = vunpack.c.h.b16 %v6896
        %v7245 = vunpack.c.l.b16 %v6897
        %v7246 = vunpack.c.h.b16 %v6897
        %v7247 = vunpack.c.l.b16 %v6898
        %v7248 = vunpack.c.h.b16 %v6898
        %v7249 = vunpack.c.l.b16 %v6899
        %v7250 = vunpack.c.h.b16 %v6899
        %v7251 = vunpack.c.l.b16 %v6900
        %v7252 = vunpack.c.h.b16 %v6900
        %v7253 = vunpack.c.l.b16 %v6901
        %v7254 = vunpack.c.h.b16 %v6901
        %v7255 = vunpack.c.l.b16 %v6902
        %v7256 = vunpack.c.h.b16 %v6902
        %v7257 = vunpack.c.l.b16 %v6903
        %v7258 = vunpack.c.h.b16 %v6903
        %v7259 = vunpack.c.l.b16 %v6904
        %v7260 = vunpack.c.h.b16 %v6904
        %v7261 = vunpack.c.l.b16 %v6905
        %v7262 = vunpack.c.h.b16 %v6905
        %v7263 = vunpack.c.l.b16 %v6906
        %v7264 = vunpack.c.h.b16 %v6906
        %v7265 = vunpack.c.l.b16 %v6907
        %v7266 = vunpack.c.h.b16 %v6907
        %v7267 = vunpack.c.l.b16 %v6908
        %v7268 = vunpack.c.h.b16 %v6908
        %v7269 = vunpack.c.l.b16 %v6909
        %v7270 = vunpack.c.h.b16 %v6909
        %v7271 = vunpack.c.l.b16 %v6910
        %v7272 = vunpack.c.h.b16 %v6910
        %v7273 = vunpack.c.l.b16 %v6911
        %v7274 = vunpack.c.h.b16 %v6911
        %v7275 = vunpack.c.l.b16 %v6912
        %v7276 = vunpack.c.h.b16 %v6912
        %v7277 = vunpack.c.l.b16 %v6913
        %v7278 = vunpack.c.h.b16 %v6913
        %v7279 = vunpack.c.l.b16 %v6914
        %v7280 = vunpack.c.h.b16 %v6914
        %v7281 = vunpack.c.l.b16 %v6915
        %v7282 = vunpack.c.h.b16 %v6915
        %v7283 = vunpack.c.l.b16 %v6916
        %v7284 = vunpack.c.h.b16 %v6916
        %v7285 = vunpack.c.l.b16 %v6917
        %v7286 = vunpack.c.h.b16 %v6917
        %v7287 = vunpack.c.l.b16 %v6918
        %v7288 = vunpack.c.h.b16 %v6918
        %v7289 = vunpack.c.l.b16 %v6919
        %v7290 = vunpack.c.h.b16 %v6919
        %v7291 = vunpack.c.l.b16 %v6920
        %v7292 = vunpack.c.h.b16 %v6920
        %v7293 = vunpack.c.l.b16 %v6921
        %v7294 = vunpack.c.h.b16 %v6921
        %v7295 = vunpack.c.l.b16 %v6922
        %v7296 = vunpack.c.h.b16 %v6922
        %v7297 = vunpack.c.l.b16 %v6923
        %v7298 = vunpack.c.h.b16 %v6923
        %v7299 = vunpack.c.l.b16 %v6924
        %v7300 = vunpack.c.h.b16 %v6924
        %v7301 = vunpack.c.l.b16 %v6925
        %v7302 = vunpack.c.h.b16 %v6925
        %v7303 = vunpack.c.l.b16 %v6926
        %v7304 = vunpack.c.h.b16 %v6926
        %v7305 = vunpack.c.l.b16 %v6927
        %v7306 = vunpack.c.h.b16 %v6927
        %v7307 = vunpack.c.l.b16 %v6928
        %v7308 = vunpack.c.h.b16 %v6928
        %v7309 = vunpack.c.l.b16 %v6929
        %v7310 = vunpack.c.h.b16 %v6929
        %v7311 = vunpack.c.l.b16 %v6930
        %v7312 = vunpack.c.h.b16 %v6930
        %v7313 = vunpack.c.l.b16 %v6931
        %v7314 = vunpack.c.h.b16 %v6931
        %v7315 = vunpack.c.l.b16 %v6932
        %v7316 = vunpack.c.h.b16 %v6932
        %v7317 = vunpack.c.l.b16 %v6933
        %v7318 = vunpack.c.h.b16 %v6933
        %v7319 = vpack.c.b16 %v7067, %v7063
        %v7320 = vpack.c.b16 %v7068, %v7064
        %v7321 = vpack.c.b16 %v7069, %v7065
        %v7322 = vpack.c.b16 %v7070, %v7066
        %v7323 = vpack.c.b16 %v7075, %v7071
        %v7324 = vpack.c.b16 %v7076, %v7072
        %v7325 = vpack.c.b16 %v7077, %v7073
        %v7326 = vpack.c.b16 %v7078, %v7074
        %v7327 = vpack.c.b16 %v7083, %v7079
        %v7328 = vpack.c.b16 %v7084, %v7080
        %v7329 = vpack.c.b16 %v7085, %v7081
        %v7330 = vpack.c.b16 %v7086, %v7082
        %v7331 = vpack.c.b16 %v7091, %v7087
        %v7332 = vpack.c.b16 %v7092, %v7088
        %v7333 = vpack.c.b16 %v7093, %v7089
        %v7334 = vpack.c.b16 %v7094, %v7090
        %v7335 = vpack.c.b16 %v7099, %v7095
        %v7336 = vpack.c.b16 %v7100, %v7096
        %v7337 = vpack.c.b16 %v7101, %v7097
        %v7338 = vpack.c.b16 %v7102, %v7098
        %v7339 = vpack.c.b16 %v7107, %v7103
        %v7340 = vpack.c.b16 %v7108, %v7104
        %v7341 = vpack.c.b16 %v7109, %v7105
        %v7342 = vpack.c.b16 %v7110, %v7106
        %v7343 = vpack.c.b16 %v7115, %v7111
        %v7344 = vpack.c.b16 %v7116, %v7112
        %v7345 = vpack.c.b16 %v7117, %v7113
        %v7346 = vpack.c.b16 %v7118, %v7114
        %v7347 = vpack.c.b16 %v7123, %v7119
        %v7348 = vpack.c.b16 %v7124, %v7120
        %v7349 = vpack.c.b16 %v7125, %v7121
        %v7350 = vpack.c.b16 %v7126, %v7122
        %v7351 = vpack.c.b16 %v7131, %v7127
        %v7352 = vpack.c.b16 %v7132, %v7128
        %v7353 = vpack.c.b16 %v7133, %v7129
        %v7354 = vpack.c.b16 %v7134, %v7130
        %v7355 = vpack.c.b16 %v7139, %v7135
        %v7356 = vpack.c.b16 %v7140, %v7136
        %v7357 = vpack.c.b16 %v7141, %v7137
        %v7358 = vpack.c.b16 %v7142, %v7138
        %v7359 = vpack.c.b16 %v7147, %v7143
        %v7360 = vpack.c.b16 %v7148, %v7144
        %v7361 = vpack.c.b16 %v7149, %v7145
        %v7362 = vpack.c.b16 %v7150, %v7146
        %v7363 = vpack.c.b16 %v7155, %v7151
        %v7364 = vpack.c.b16 %v7156, %v7152
        %v7365 = vpack.c.b16 %v7157, %v7153
        %v7366 = vpack.c.b16 %v7158, %v7154
        %v7367 = vpack.c.b16 %v7163, %v7159
        %v7368 = vpack.c.b16 %v7164, %v7160
        %v7369 = vpack.c.b16 %v7165, %v7161
        %v7370 = vpack.c.b16 %v7166, %v7162
        %v7371 = vpack.c.b16 %v7171, %v7167
        %v7372 = vpack.c.b16 %v7172, %v7168
        %v7373 = vpack.c.b16 %v7173, %v7169
        %v7374 = vpack.c.b16 %v7174, %v7170
        %v7375 = vpack.c.b16 %v7179, %v7175
        %v7376 = vpack.c.b16 %v7180, %v7176
        %v7377 = vpack.c.b16 %v7181, %v7177
        %v7378 = vpack.c.b16 %v7182, %v7178
        %v7379 = vpack.c.b16 %v7187, %v7183
        %v7380 = vpack.c.b16 %v7188, %v7184
        %v7381 = vpack.c.b16 %v7189, %v7185
        %v7382 = vpack.c.b16 %v7190, %v7186
        %v7383 = vpack.c.b16 %v7195, %v7191
        %v7384 = vpack.c.b16 %v7196, %v7192
        %v7385 = vpack.c.b16 %v7197, %v7193
        %v7386 = vpack.c.b16 %v7198, %v7194
        %v7387 = vpack.c.b16 %v7203, %v7199
        %v7388 = vpack.c.b16 %v7204, %v7200
        %v7389 = vpack.c.b16 %v7205, %v7201
        %v7390 = vpack.c.b16 %v7206, %v7202
        %v7391 = vpack.c.b16 %v7211, %v7207
        %v7392 = vpack.c.b16 %v7212, %v7208
        %v7393 = vpack.c.b16 %v7213, %v7209
        %v7394 = vpack.c.b16 %v7214, %v7210
        %v7395 = vpack.c.b16 %v7219, %v7215
        %v7396 = vpack.c.b16 %v7220, %v7216
        %v7397 = vpack.c.b16 %v7221, %v7217
        %v7398 = vpack.c.b16 %v7222, %v7218
        %v7399 = vpack.c.b16 %v7227, %v7223
        %v7400 = vpack.c.b16 %v7228, %v7224
        %v7401 = vpack.c.b16 %v7229, %v7225
        %v7402 = vpack.c.b16 %v7230, %v7226
        %v7403 = vpack.c.b16 %v7235, %v7231
        %v7404 = vpack.c.b16 %v7236, %v7232
        %v7405 = vpack.c.b16 %v7237, %v7233
        %v7406 = vpack.c.b16 %v7238, %v7234
        %v7407 = vpack.c.b16 %v7243, %v7239
        %v7408 = vpack.c.b16 %v7244, %v7240
        %v7409 = vpack.c.b16 %v7245, %v7241
        %v7410 = vpack.c.b16 %v7246, %v7242
        %v7411 = vpack.c.b16 %v7251, %v7247
        %v7412 = vpack.c.b16 %v7252, %v7248
        %v7413 = vpack.c.b16 %v7253, %v7249
        %v7414 = vpack.c.b16 %v7254, %v7250
        %v7415 = vpack.c.b16 %v7259, %v7255
        %v7416 = vpack.c.b16 %v7260, %v7256
        %v7417 = vpack.c.b16 %v7261, %v7257
        %v7418 = vpack.c.b16 %v7262, %v7258
        %v7419 = vpack.c.b16 %v7267, %v7263
        %v7420 = vpack.c.b16 %v7268, %v7264
        %v7421 = vpack.c.b16 %v7269, %v7265
        %v7422 = vpack.c.b16 %v7270, %v7266
        %v7423 = vpack.c.b16 %v7275, %v7271
        %v7424 = vpack.c.b16 %v7276, %v7272
        %v7425 = vpack.c.b16 %v7277, %v7273
        %v7426 = vpack.c.b16 %v7278, %v7274
        %v7427 = vpack.c.b16 %v7283, %v7279
        %v7428 = vpack.c.b16 %v7284, %v7280
        %v7429 = vpack.c.b16 %v7285, %v7281
        %v7430 = vpack.c.b16 %v7286, %v7282
        %v7431 = vpack.c.b16 %v7291, %v7287
        %v7432 = vpack.c.b16 %v7292, %v7288
        %v7433 = vpack.c.b16 %v7293, %v7289
        %v7434 = vpack.c.b16 %v7294, %v7290
        %v7435 = vpack.c.b16 %v7299, %v7295
        %v7436 = vpack.c.b16 %v7300, %v7296
        %v7437 = vpack.c.b16 %v7301, %v7297
        %v7438 = vpack.c.b16 %v7302, %v7298
        %v7439 = vpack.c.b16 %v7307, %v7303
        %v7440 = vpack.c.b16 %v7308, %v7304
        %v7441 = vpack.c.b16 %v7309, %v7305
        %v7442 = vpack.c.b16 %v7310, %v7306
        %v7443 = vpack.c.b16 %v7315, %v7311
        %v7444 = vpack.c.b16 %v7316, %v7312
        %v7445 = vpack.c.b16 %v7317, %v7313
        %v7446 = vpack.c.b16 %v7318, %v7314
        %v7576 = vlaneseq
        %v7577 = vshrl.u32 %v7576, 7
        %v7578 = vsub.s32 0, %v7577
        %v7579 = vrot.slane %v6934, %v7578
        %v7580 = vlaneseq
        %v7581 = vshrl.u32 %v7580, 7
        %v7582 = vsub.s32 1, %v7581
        %v7583 = vrot.slane %v6934, %v7582
        %v7584 = vlaneseq
        %v7585 = vshrl.u32 %v7584, 7
        %v7586 = vsub.s32 2, %v7585
        %v7587 = vrot.slane %v6934, %v7586
        %v7588 = vlaneseq
        %v7589 = vshrl.u32 %v7588, 7
        %v7590 = vsub.s32 3, %v7589
        %v7591 = vrot.slane %v6934, %v7590
        %7596 = vmatprep.subr.bf16.mxu0 %v7320
        %7597 = vmatpush1.bf16.msra.mxu0 %v7319
        %7598 = vmatprep.subr.bf16.mxu0 %v7324
        %7599 = vmatpush1.bf16.msra.mxu0 %v7323
        %7600 = vmatprep.subr.bf16.mxu0 %v7328
        %7601 = vmatpush1.bf16.msra.mxu0 %v7327
        %7602 = vmatprep.subr.bf16.mxu0 %v7332
        %7603 = vmatpush1.bf16.msra.mxu0 %v7331
        %7604 = vmatprep.subr.bf16.mxu0 %v7336
        %7605 = vmatpush1.bf16.msra.mxu0 %v7335
        %7606 = vmatprep.subr.bf16.mxu0 %v7340
        %7607 = vmatpush1.bf16.msra.mxu0 %v7339
        %7608 = vmatprep.subr.bf16.mxu0 %v7344
        %7609 = vmatpush1.bf16.msra.mxu0 %v7343
        %7610 = vmatprep.subr.bf16.mxu0 %v7348
        %7611 = vmatpush1.bf16.msra.mxu0 %v7347
        %7612 = vmatprep.subr.bf16.mxu0 %v7352
        %7613 = vmatpush1.bf16.msra.mxu0 %v7351
        %7614 = vmatprep.subr.bf16.mxu0 %v7356
        %7615 = vmatpush1.bf16.msra.mxu0 %v7355
        %7616 = vmatprep.subr.bf16.mxu0 %v7360
        %7617 = vmatpush1.bf16.msra.mxu0 %v7359
        %7618 = vmatprep.subr.bf16.mxu0 %v7364
        %7619 = vmatpush1.bf16.msra.mxu0 %v7363
        %7620 = vmatprep.subr.bf16.mxu0 %v7368
        %7621 = vmatpush1.bf16.msra.mxu0 %v7367
        %7622 = vmatprep.subr.bf16.mxu0 %v7372
        %7623 = vmatpush1.bf16.msra.mxu0 %v7371
        %7624 = vmatprep.subr.bf16.mxu0 %v7376
        %7625 = vmatpush1.bf16.msra.mxu0 %v7375
        %7626 = vmatprep.subr.bf16.mxu0 %v7380
        %7627 = vmatpush1.bf16.msra.mxu0 %v7379
        %7628 = vmatprep.mubr.bf16.mxu0 %v6803
        %7629 = vmatmul.mubr.bf16.gmra.mrb[0].mxu0 %v6802
        %v7630 = vpop.f32.mrb[0].mxu0
        %v7631 = vadd.f32 %v7579, %v7630
        %v7632 = vpop.f32.mrb[0].mxu0
        %v7633 = vadd.f32 %v7583, %v7632
        %v7634 = vpop.f32.mrb[0].mxu0
        %v7635 = vpop.f32.mrb[0].mxu0
        %7636 = vdwg.mxu0
        %7637 = vmatprep.subr.bf16.mxu0 %v7384
        %7638 = vmatpush1.bf16.msra.mxu0 %v7383
        %7639 = vmatprep.subr.bf16.mxu0 %v7388
        %7640 = vmatpush1.bf16.msra.mxu0 %v7387
        %7641 = vmatprep.subr.bf16.mxu0 %v7392
        %7642 = vmatpush1.bf16.msra.mxu0 %v7391
        %7643 = vmatprep.subr.bf16.mxu0 %v7396
        %7644 = vmatpush1.bf16.msra.mxu0 %v7395
        %7645 = vmatprep.subr.bf16.mxu0 %v7400
        %7646 = vmatpush1.bf16.msra.mxu0 %v7399
        %7647 = vmatprep.subr.bf16.mxu0 %v7404
        %7648 = vmatpush1.bf16.msra.mxu0 %v7403
        %7649 = vmatprep.subr.bf16.mxu0 %v7408
        %7650 = vmatpush1.bf16.msra.mxu0 %v7407
        %7651 = vmatprep.subr.bf16.mxu0 %v7412
        %7652 = vmatpush1.bf16.msra.mxu0 %v7411
        %7653 = vmatprep.subr.bf16.mxu0 %v7416
        %7654 = vmatpush1.bf16.msra.mxu0 %v7415
        %7655 = vmatprep.subr.bf16.mxu0 %v7420
        %7656 = vmatpush1.bf16.msra.mxu0 %v7419
        %7657 = vmatprep.subr.bf16.mxu0 %v7424
        %7658 = vmatpush1.bf16.msra.mxu0 %v7423
        %7659 = vmatprep.subr.bf16.mxu0 %v7428
        %7660 = vmatpush1.bf16.msra.mxu0 %v7427
        %7661 = vmatprep.subr.bf16.mxu0 %v7432
        %7662 = vmatpush1.bf16.msra.mxu0 %v7431
        %7663 = vmatprep.subr.bf16.mxu0 %v7436
        %7664 = vmatpush1.bf16.msra.mxu0 %v7435
        %7665 = vmatprep.subr.bf16.mxu0 %v7440
        %7666 = vmatpush1.bf16.msra.mxu0 %v7439
        %7667 = vmatprep.subr.bf16.mxu0 %v7444
        %7668 = vmatpush1.bf16.msra.mxu0 %v7443
        %7669 = vmatprep.mubr.bf16.mxu0 %v6805
        %7670 = vmatmul.mubr.bf16.gmra.mrb[0].mxu0 %v6804
        %v7671 = vpop.f32.mrb[0].mxu0
        %v7672 = vadd.f32 %v7631, %v7671
        %v7673 = vpop.f32.mrb[0].mxu0
        %v7674 = vadd.f32 %v7633, %v7673
        %v7675 = vpop.f32.mrb[0].mxu0
        %v7676 = vpop.f32.mrb[0].mxu0
        %7677 = vdwg.mxu0
        %7678 = vmatprep.subr.bf16.mxu0 %v7322
        %7679 = vmatpush1.bf16.msra.mxu0 %v7321
        %7680 = vmatprep.subr.bf16.mxu0 %v7326
        %7681 = vmatpush1.bf16.msra.mxu0 %v7325
        %7682 = vmatprep.subr.bf16.mxu0 %v7330
        %7683 = vmatpush1.bf16.msra.mxu0 %v7329
        %7684 = vmatprep.subr.bf16.mxu0 %v7334
        %7685 = vmatpush1.bf16.msra.mxu0 %v7333
        %7686 = vmatprep.subr.bf16.mxu0 %v7338
        %7687 = vmatpush1.bf16.msra.mxu0 %v7337
        %7688 = vmatprep.subr.bf16.mxu0 %v7342
        %7689 = vmatpush1.bf16.msra.mxu0 %v7341
        %7690 = vmatprep.subr.bf16.mxu0 %v7346
        %7691 = vmatpush1.bf16.msra.mxu0 %v7345
        %7692 = vmatprep.subr.bf16.mxu0 %v7350
        %7693 = vmatpush1.bf16.msra.mxu0 %v7349
        %7694 = vmatprep.subr.bf16.mxu0 %v7354
        %7695 = vmatpush1.bf16.msra.mxu0 %v7353
        %7696 = vmatprep.subr.bf16.mxu0 %v7358
        %7697 = vmatpush1.bf16.msra.mxu0 %v7357
        %7698 = vmatprep.subr.bf16.mxu0 %v7362
        %7699 = vmatpush1.bf16.msra.mxu0 %v7361
        %7700 = vmatprep.subr.bf16.mxu0 %v7366
        %7701 = vmatpush1.bf16.msra.mxu0 %v7365
        %7702 = vmatprep.subr.bf16.mxu0 %v7370
        %7703 = vmatpush1.bf16.msra.mxu0 %v7369
        %7704 = vmatprep.subr.bf16.mxu0 %v7374
        %7705 = vmatpush1.bf16.msra.mxu0 %v7373
        %7706 = vmatprep.subr.bf16.mxu0 %v7378
        %7707 = vmatpush1.bf16.msra.mxu0 %v7377
        %7708 = vmatprep.subr.bf16.mxu0 %v7382
        %7709 = vmatpush1.bf16.msra.mxu0 %v7381
        %7710 = vmatprep.mubr.bf16.mxu0 %v6803
        %7711 = vmatmul.mubr.bf16.gmra.mrb[0].mxu0 %v6802
        %v7712 = vpop.f32.mrb[0].mxu0
        %v7713 = vadd.f32 %v7587, %v7712
        %v7714 = vpop.f32.mrb[0].mxu0
        %v7715 = vadd.f32 %v7591, %v7714
        %v7716 = vpop.f32.mrb[0].mxu0
        %v7717 = vpop.f32.mrb[0].mxu0
        %7718 = vdwg.mxu0
        %7719 = vmatprep.subr.bf16.mxu0 %v7386
        %7720 = vmatpush1.bf16.msra.mxu0 %v7385
        %7721 = vmatprep.subr.bf16.mxu0 %v7390
        %7722 = vmatpush1.bf16.msra.mxu0 %v7389
        %7723 = vmatprep.subr.bf16.mxu0 %v7394
        %7724 = vmatpush1.bf16.msra.mxu0 %v7393
        %7725 = vmatprep.subr.bf16.mxu0 %v7398
        %7726 = vmatpush1.bf16.msra.mxu0 %v7397
        %7727 = vmatprep.subr.bf16.mxu0 %v7402
        %7728 = vmatpush1.bf16.msra.mxu0 %v7401
        %7729 = vmatprep.subr.bf16.mxu0 %v7406
        %7730 = vmatpush1.bf16.msra.mxu0 %v7405
        %7731 = vmatprep.subr.bf16.mxu0 %v7410
        %7732 = vmatpush1.bf16.msra.mxu0 %v7409
        %7733 = vmatprep.subr.bf16.mxu0 %v7414
        %7734 = vmatpush1.bf16.msra.mxu0 %v7413
        %7735 = vmatprep.subr.bf16.mxu0 %v7418
        %7736 = vmatpush1.bf16.msra.mxu0 %v7417
        %7737 = vmatprep.subr.bf16.mxu0 %v7422
        %7738 = vmatpush1.bf16.msra.mxu0 %v7421
        %7739 = vmatprep.subr.bf16.mxu0 %v7426
        %7740 = vmatpush1.bf16.msra.mxu0 %v7425
        %7741 = vmatprep.subr.bf16.mxu0 %v7430
        %7742 = vmatpush1.bf16.msra.mxu0 %v7429
        %7743 = vmatprep.subr.bf16.mxu0 %v7434
        %7744 = vmatpush1.bf16.msra.mxu0 %v7433
        %7745 = vmatprep.subr.bf16.mxu0 %v7438
        %7746 = vmatpush1.bf16.msra.mxu0 %v7437
        %7747 = vmatprep.subr.bf16.mxu0 %v7442
        %7748 = vmatpush1.bf16.msra.mxu0 %v7441
        %7749 = vmatprep.subr.bf16.mxu0 %v7446
        %7750 = vmatpush1.bf16.msra.mxu0 %v7445
        %7751 = vmatprep.mubr.bf16.mxu0 %v6805
        %7752 = vmatmul.mubr.bf16.gmra.mrb[0].mxu0 %v6804
        %v7753 = vpop.f32.mrb[0].mxu0
        %v7754 = vadd.f32 %v7713, %v7753
        %v7755 = vpop.f32.mrb[0].mxu0
        %v7756 = vadd.f32 %v7715, %v7755
        %v7757 = vpop.f32.mrb[0].mxu0
        %v7758 = vpop.f32.mrb[0].mxu0
        %7759 = vdwg.mxu0
        %v7760 = vmax.f32 %v7672, 0.0
        %v7761 = vmax.f32 %v7674, 0.0
        %v7762 = vmax.f32 %v7754, 0.0
        %v7763 = vmax.f32 %v7756, 0.0
        %v7764 = vpack.c.bf16 %v7760, %v7760
        %v7765 = vpack.c.bf16 %v7761, %v7761
        %v7766 = vpack.c.bf16 %v7762, %v7762
        %v7767 = vpack.c.bf16 %v7763, %v7763
        %v7768 = vld [vmem:[%s11] sm:$0xf]
        %v7769 = vld [vmem:[%s11 + $0x4] sm:$0xf]
        %v7770 = vld [vmem:[%s11 + $0x8] sm:$0xf]
        %v7771 = vld [vmem:[%s11 + $0xc] sm:$0xf]
        %v7772 = vld [vmem:[%s11 + $0x10] sm:$0xf]
        %v7773 = vld [vmem:[%s11 + $0x14] sm:$0xf]
        %v7774 = vld [vmem:[%s11 + $0x18] sm:$0xf]
        %v7775 = vld [vmem:[%s11 + $0x1c] sm:$0xf]
        %v7776 = vld [vmem:[%s11 + $0x20] sm:$0xf]
        %v7777 = vld [vmem:[%s11 + $0x24] sm:$0xf]
        %v7778 = vld [vmem:[%s11 + $0x28] sm:$0xf]
        %v7779 = vld [vmem:[%s11 + $0x2c] sm:$0xf]
        %v7780 = vld [vmem:[%s11 + $0x30] sm:$0xf]
        %v7781 = vld [vmem:[%s11 + $0x34] sm:$0xf]
        %v7782 = vld [vmem:[%s11 + $0x38] sm:$0xf]
        %v7783 = vld [vmem:[%s11 + $0x3c] sm:$0xf]
        %v7784 = vld [vmem:[%s11 + $0x40] sm:$0xf]
        %v7785 = vld [vmem:[%s11 + $0x44] sm:$0xf]
        %v7786 = vld [vmem:[%s11 + $0x48] sm:$0xf]
        %v7787 = vld [vmem:[%s11 + $0x4c] sm:$0xf]
        %v7788 = vld [vmem:[%s11 + $0x50] sm:$0xf]
        %v7789 = vld [vmem:[%s11 + $0x54] sm:$0xf]
        %v7790 = vld [vmem:[%s11 + $0x58] sm:$0xf]
        %v7791 = vld [vmem:[%s11 + $0x5c] sm:$0xf]
        %v7792 = vld [vmem:[%s11 + $0x60] sm:$0xf]
        %v7793 = vld [vmem:[%s11 + $0x64] sm:$0xf]
        %v7794 = vld [vmem:[%s11 + $0x68] sm:$0xf]
        %v7795 = vld [vmem:[%s11 + $0x6c] sm:$0xf]
        %v7796 = vld [vmem:[%s11 + $0x70] sm:$0xf]
        %v7797 = vld [vmem:[%s11 + $0x74] sm:$0xf]
        %v7798 = vld [vmem:[%s11 + $0x78] sm:$0xf]
        %v7799 = vld [vmem:[%s11 + $0x7c] sm:$0xf]
        %v7800 = vld [vmem:[%s11 + $0x80] sm:$0xf]
        %v7801 = vld [vmem:[%s11 + $0x84] sm:$0xf]
        %v7802 = vld [vmem:[%s11 + $0x88] sm:$0xf]
        %v7803 = vld [vmem:[%s11 + $0x8c] sm:$0xf]
        %v7804 = vld [vmem:[%s11 + $0x90] sm:$0xf]
        %v7805 = vld [vmem:[%s11 + $0x94] sm:$0xf]
        %v7806 = vld [vmem:[%s11 + $0x98] sm:$0xf]
        %v7807 = vld [vmem:[%s11 + $0x9c] sm:$0xf]
        %v7808 = vld [vmem:[%s11 + $0xa0] sm:$0xf]
        %v7809 = vld [vmem:[%s11 + $0xa4] sm:$0xf]
        %v7810 = vld [vmem:[%s11 + $0xa8] sm:$0xf]
        %v7811 = vld [vmem:[%s11 + $0xac] sm:$0xf]
        %v7812 = vld [vmem:[%s11 + $0xb0] sm:$0xf]
        %v7813 = vld [vmem:[%s11 + $0xb4] sm:$0xf]
        %v7814 = vld [vmem:[%s11 + $0xb8] sm:$0xf]
        %v7815 = vld [vmem:[%s11 + $0xbc] sm:$0xf]
        %v7816 = vld [vmem:[%s11 + $0xc0] sm:$0xf]
        %v7817 = vld [vmem:[%s11 + $0xc4] sm:$0xf]
        %v7818 = vld [vmem:[%s11 + $0xc8] sm:$0xf]
        %v7819 = vld [vmem:[%s11 + $0xcc] sm:$0xf]
        %v7820 = vld [vmem:[%s11 + $0xd0] sm:$0xf]
        %v7821 = vld [vmem:[%s11 + $0xd4] sm:$0xf]
        %v7822 = vld [vmem:[%s11 + $0xd8] sm:$0xf]
        %v7823 = vld [vmem:[%s11 + $0xdc] sm:$0xf]
        %v7824 = vld [vmem:[%s11 + $0xe0] sm:$0xf]
        %v7825 = vld [vmem:[%s11 + $0xe4] sm:$0xf]
        %v7826 = vld [vmem:[%s11 + $0xe8] sm:$0xf]
        %v7827 = vld [vmem:[%s11 + $0xec] sm:$0xf]
        %v7828 = vld [vmem:[%s11 + $0xf0] sm:$0xf]
        %v7829 = vld [vmem:[%s11 + $0xf4] sm:$0xf]
        %v7830 = vld [vmem:[%s11 + $0xf8] sm:$0xf]
        %v7831 = vld [vmem:[%s11 + $0xfc] sm:$0xf]
        %v7832 = vld [vmem:[%s12] sm:$0x1]
        %v7897 = vunpack.c.l.b16 %v7768
        %v7898 = vunpack.c.l.b16 %v7769
        %v7899 = vunpack.c.l.b16 %v7770
        %v7900 = vunpack.c.l.b16 %v7771
        %v7901 = vunpack.c.l.b16 %v7772
        %v7902 = vunpack.c.l.b16 %v7773
        %v7903 = vunpack.c.l.b16 %v7774
        %v7904 = vunpack.c.l.b16 %v7775
        %v7905 = vunpack.c.l.b16 %v7776
        %v7906 = vunpack.c.l.b16 %v7777
        %v7907 = vunpack.c.l.b16 %v7778
        %v7908 = vunpack.c.l.b16 %v7779
        %v7909 = vunpack.c.l.b16 %v7780
        %v7910 = vunpack.c.l.b16 %v7781
        %v7911 = vunpack.c.l.b16 %v7782
        %v7912 = vunpack.c.l.b16 %v7783
        %v7913 = vunpack.c.l.b16 %v7784
        %v7914 = vunpack.c.l.b16 %v7785
        %v7915 = vunpack.c.l.b16 %v7786
        %v7916 = vunpack.c.l.b16 %v7787
        %v7917 = vunpack.c.l.b16 %v7788
        %v7918 = vunpack.c.l.b16 %v7789
        %v7919 = vunpack.c.l.b16 %v7790
        %v7920 = vunpack.c.l.b16 %v7791
        %v7921 = vunpack.c.l.b16 %v7792
        %v7922 = vunpack.c.l.b16 %v7793
        %v7923 = vunpack.c.l.b16 %v7794
        %v7924 = vunpack.c.l.b16 %v7795
        %v7925 = vunpack.c.l.b16 %v7796
        %v7926 = vunpack.c.l.b16 %v7797
        %v7927 = vunpack.c.l.b16 %v7798
        %v7928 = vunpack.c.l.b16 %v7799
        %v7929 = vunpack.c.l.b16 %v7800
        %v7930 = vunpack.c.l.b16 %v7801
        %v7931 = vunpack.c.l.b16 %v7802
        %v7932 = vunpack.c.l.b16 %v7803
        %v7933 = vunpack.c.l.b16 %v7804
        %v7934 = vunpack.c.l.b16 %v7805
        %v7935 = vunpack.c.l.b16 %v7806
        %v7936 = vunpack.c.l.b16 %v7807
        %v7937 = vunpack.c.l.b16 %v7808
        %v7938 = vunpack.c.l.b16 %v7809
        %v7939 = vunpack.c.l.b16 %v7810
        %v7940 = vunpack.c.l.b16 %v7811
        %v7941 = vunpack.c.l.b16 %v7812
        %v7942 = vunpack.c.l.b16 %v7813
        %v7943 = vunpack.c.l.b16 %v7814
        %v7944 = vunpack.c.l.b16 %v7815
        %v7945 = vunpack.c.l.b16 %v7816
        %v7946 = vunpack.c.l.b16 %v7817
        %v7947 = vunpack.c.l.b16 %v7818
        %v7948 = vunpack.c.l.b16 %v7819
        %v7949 = vunpack.c.l.b16 %v7820
        %v7950 = vunpack.c.l.b16 %v7821
        %v7951 = vunpack.c.l.b16 %v7822
        %v7952 = vunpack.c.l.b16 %v7823
        %v7953 = vunpack.c.l.b16 %v7824
        %v7954 = vunpack.c.l.b16 %v7825
        %v7955 = vunpack.c.l.b16 %v7826
        %v7956 = vunpack.c.l.b16 %v7827
        %v7957 = vunpack.c.l.b16 %v7828
        %v7958 = vunpack.c.l.b16 %v7829
        %v7959 = vunpack.c.l.b16 %v7830
        %v7960 = vunpack.c.l.b16 %v7831
        %v7961 = vpack.c.b16 %v7898, %v7897
        %v7962 = vpack.c.b16 %v7900, %v7899
        %v7963 = vpack.c.b16 %v7902, %v7901
        %v7964 = vpack.c.b16 %v7904, %v7903
        %v7965 = vpack.c.b16 %v7906, %v7905
        %v7966 = vpack.c.b16 %v7908, %v7907
        %v7967 = vpack.c.b16 %v7910, %v7909
        %v7968 = vpack.c.b16 %v7912, %v7911
        %v7969 = vpack.c.b16 %v7914, %v7913
        %v7970 = vpack.c.b16 %v7916, %v7915
        %v7971 = vpack.c.b16 %v7918, %v7917
        %v7972 = vpack.c.b16 %v7920, %v7919
        %v7973 = vpack.c.b16 %v7922, %v7921
        %v7974 = vpack.c.b16 %v7924, %v7923
        %v7975 = vpack.c.b16 %v7926, %v7925
        %v7976 = vpack.c.b16 %v7928, %v7927
        %v7977 = vpack.c.b16 %v7930, %v7929
        %v7978 = vpack.c.b16 %v7932, %v7931
        %v7979 = vpack.c.b16 %v7934, %v7933
        %v7980 = vpack.c.b16 %v7936, %v7935
        %v7981 = vpack.c.b16 %v7938, %v7937
        %v7982 = vpack.c.b16 %v7940, %v7939
        %v7983 = vpack.c.b16 %v7942, %v7941
        %v7984 = vpack.c.b16 %v7944, %v7943
        %v7985 = vpack.c.b16 %v7946, %v7945
        %v7986 = vpack.c.b16 %v7948, %v7947
        %v7987 = vpack.c.b16 %v7950, %v7949
        %v7988 = vpack.c.b16 %v7952, %v7951
        %v7989 = vpack.c.b16 %v7954, %v7953
        %v7990 = vpack.c.b16 %v7956, %v7955
        %v7991 = vpack.c.b16 %v7958, %v7957
        %v7992 = vpack.c.b16 %v7960, %v7959
        %8025 = vmatprep.subr.bf16.mxu0 0
        %8026 = vmatpush1.bf16.msra.mxu0 %v7961
        %8027 = vmatprep.subr.bf16.mxu0 0
        %8028 = vmatpush1.bf16.msra.mxu0 %v7962
        %8029 = vmatprep.subr.bf16.mxu0 0
        %8030 = vmatpush1.bf16.msra.mxu0 %v7963
        %8031 = vmatprep.subr.bf16.mxu0 0
        %8032 = vmatpush1.bf16.msra.mxu0 %v7964
        %8033 = vmatprep.subr.bf16.mxu0 0
        %8034 = vmatpush1.bf16.msra.mxu0 %v7965
        %8035 = vmatprep.subr.bf16.mxu0 0
        %8036 = vmatpush1.bf16.msra.mxu0 %v7966
        %8037 = vmatprep.subr.bf16.mxu0 0
        %8038 = vmatpush1.bf16.msra.mxu0 %v7967
        %8039 = vmatprep.subr.bf16.mxu0 0
        %8040 = vmatpush1.bf16.msra.mxu0 %v7968
        %8041 = vmatprep.subr.bf16.mxu0 0
        %8042 = vmatpush1.bf16.msra.mxu0 %v7969
        %8043 = vmatprep.subr.bf16.mxu0 0
        %8044 = vmatpush1.bf16.msra.mxu0 %v7970
        %8045 = vmatprep.subr.bf16.mxu0 0
        %8046 = vmatpush1.bf16.msra.mxu0 %v7971
        %8047 = vmatprep.subr.bf16.mxu0 0
        %8048 = vmatpush1.bf16.msra.mxu0 %v7972
        %8049 = vmatprep.subr.bf16.mxu0 0
        %8050 = vmatpush1.bf16.msra.mxu0 %v7973
        %8051 = vmatprep.subr.bf16.mxu0 0
        %8052 = vmatpush1.bf16.msra.mxu0 %v7974
        %8053 = vmatprep.subr.bf16.mxu0 0
        %8054 = vmatpush1.bf16.msra.mxu0 %v7975
        %8055 = vmatprep.subr.bf16.mxu0 0
        %8056 = vmatpush1.bf16.msra.mxu0 %v7976
        %8057 = vmatprep.mubr.bf16.mxu0 %v7765
        %8058 = vmatmul.mubr.bf16.gmra.mrb[0].mxu0 %v7764
        %v8059 = vpop.f32.mrb[0].mxu0
        %v8060 = vadd.f32 %v7832, %v8059
        %v8061 = vpop.f32.mrb[0].mxu0
        %v8062 = vpop.f32.mrb[0].mxu0
        %v8063 = vpop.f32.mrb[0].mxu0
        %8064 = vdwg.mxu0
        %8065 = vmatprep.subr.bf16.mxu0 0
        %8066 = vmatpush1.bf16.msra.mxu0 %v7977
        %8067 = vmatprep.subr.bf16.mxu0 0
        %8068 = vmatpush1.bf16.msra.mxu0 %v7978
        %8069 = vmatprep.subr.bf16.mxu0 0
        %8070 = vmatpush1.bf16.msra.mxu0 %v7979
        %8071 = vmatprep.subr.bf16.mxu0 0
        %8072 = vmatpush1.bf16.msra.mxu0 %v7980
        %8073 = vmatprep.subr.bf16.mxu0 0
        %8074 = vmatpush1.bf16.msra.mxu0 %v7981
        %8075 = vmatprep.subr.bf16.mxu0 0
        %8076 = vmatpush1.bf16.msra.mxu0 %v7982
        %8077 = vmatprep.subr.bf16.mxu0 0
        %8078 = vmatpush1.bf16.msra.mxu0 %v7983
        %8079 = vmatprep.subr.bf16.mxu0 0
        %8080 = vmatpush1.bf16.msra.mxu0 %v7984
        %8081 = vmatprep.subr.bf16.mxu0 0
        %8082 = vmatpush1.bf16.msra.mxu0 %v7985
        %8083 = vmatprep.subr.bf16.mxu0 0
        %8084 = vmatpush1.bf16.msra.mxu0 %v7986
        %8085 = vmatprep.subr.bf16.mxu0 0
        %8086 = vmatpush1.bf16.msra.mxu0 %v7987
        %8087 = vmatprep.subr.bf16.mxu0 0
        %8088 = vmatpush1.bf16.msra.mxu0 %v7988
        %8089 = vmatprep.subr.bf16.mxu0 0
        %8090 = vmatpush1.bf16.msra.mxu0 %v7989
        %8091 = vmatprep.subr.bf16.mxu0 0
        %8092 = vmatpush1.bf16.msra.mxu0 %v7990
        %8093 = vmatprep.subr.bf16.mxu0 0
        %8094 = vmatpush1.bf16.msra.mxu0 %v7991
        %8095 = vmatprep.subr.bf16.mxu0 0
        %8096 = vmatpush1.bf16.msra.mxu0 %v7992
        %8097 = vmatprep.mubr.bf16.mxu0 %v7767
        %8098 = vmatmul.mubr.bf16.gmra.mrb[0].mxu0 %v7766
        %v8099 = vpop.f32.mrb[0].mxu0
        %v8100 = vadd.f32 %v8060, %v8099
        %v8101 = vpop.f32.mrb[0].mxu0
        %v8102 = vpop.f32.mrb[0].mxu0
        %v8103 = vpop.f32.mrb[0].mxu0
        %8104 = vdwg.mxu0
        %vm8105 = vcmask 73728
        %8106 = vst.msk [vmem:[%s432] sm:$0x1] %vm8105, %v8100
        %s8107 = sand.u32 %s313, 1
        %s8108 = scalar_lea.sflag [#allocation9], %s8107
        %s8109 = sand.u32 %s313, 1
        %s8110 = scalar_lea.vmem [#allocation8], %s8109
        // Predicated region
        $region73: #{vgg_forward.1} parent=71 // pred_check
          %p8111 = pneg %p323
        $region74: #{vgg_forward.1} parent=71 // pred_check_branch
          %8113 = sbr.rel (%p8111) target = $region76
        $region75: #{vgg_forward.1} parent=71 // pred_region
          %s8115 = ssub.s32 16, 16
          %8116 = vsyncadd %s8108, %s8115
          %s8117 = smul.addr %s27, 16
          %s8118 = scalar_lea.hbm %s13, %s8117
          %s8120 = sshll.u32 %s8110, 4
          %s8121 = int_to_ptr.vmem [resolvable:$true] %s8120
          %8123 = dma.vmem_to_hbm [thread:$0]  %s8121, 16, %s8118, %s8108
        $region76: #{vgg_forward.1} parent=71 // pred_fallthru
          _
      $region72: #{vgg_forward.1} parent=5 // pred_fallthru
        _
      %p8124 = scmp.le.s32.totalorder 2, %s22
      // Predicated region
      $region77: #{vgg_forward.1} parent=5 // pred_check
        %p8125 = pneg %p8124
      $region78: #{vgg_forward.1} parent=5 // pred_check_branch
        %8127 = sbr.rel (%p8125) target = $region80
      $region79: #{vgg_forward.1} parent=5 // pred_region
        %s8128 = ssub.s32 %s22, 2
        // Predicated region
        $region81: #{vgg_forward.1} parent=79 // pred_check
          %p8129 = pneg %p329
        $region82: #{vgg_forward.1} parent=79 // pred_check_branch
          %8131 = sbr.rel (%p8129) target = $region84
        $region83: #{vgg_forward.1} parent=79 // pred_region
          %s8132 = sand.u32 %s314, 1
          %s8133 = scalar_lea.sflag [#allocation9], %s8132
          %s8134 = sand.u32 %s314, 1
          %s8135 = scalar_lea.vmem [#allocation8], %s8134
          %8136 = dma.done %s8133, 16
        $region84: #{vgg_forward.1} parent=79 // pred_fallthru
          _
      $region80: #{vgg_forward.1} parent=5 // pred_fallthru
        _
    $region6: #{vgg_forward.1} parent=1 // loop_footer
      %s26 = sadd.s32 1, %s22
    $region7: #{vgg_forward.1} parent=1 // loop_footer_branch
      %21 = sbr.rel target = $region3
    $region8: #{vgg_forward.1} parent=1 // loop_exit
      _
    %8137 = vsyncpa [#allocation9], 1
    %s8138 = scalar_lea.sflag [#allocation9], 1
    %8139 = vsyncpa %s8138, 1

</llo_original>
